<compile_context>
chip_gen: v7x
topology: tpu7x:2x2x1
jax: 0.10.0
libtpu: 0.0.40
codegen_flags: <defaults>
</compile_context>

<pallas_src>
import functools

import jax
import jax.numpy as jnp
from jax.experimental import pallas as pl
from jax.experimental.pallas import tpu as pltpu

EPS = 1e-5
RATIO = 0.5
LFU = False  # example configuration

# Tile caps for the fused matmul kernel.  Chosen so every matmul in this block
# gets a single K tile and a single lane-dense N tile; per-step working set is
# ~1 MiB at these caps.  (On v5e/v6e the 128 MiB VMEM leaves room to raise them.)
_TM_MAX = 512    # multiple of 16 (bf16 sublane pack)
_TN_MAX = 512    # multiple of 128 (lane-dense output, feeds the 256-wide MXU)
_TK_MAX = 1024   # multiple of 128


def _round_up(x, m):
    return ((x + m - 1) // m) * m


def _pick_tile(dim, max_tile, align):
    """Largest aligned tile: minimize (number of blocks, then padding)."""
    dim_a = _round_up(dim, align)
    if dim_a <= max_tile:
        return dim_a
    nb = -(-dim_a // max_tile)                 # minimum block count
    return _round_up(-(-dim_a // nb), align)   # then least padding


def _vmem_limit(tm, tn, tk, n_k):
    """Scoped-VMEM limit from actual tile bytes + margin, capped for v7x (64 MiB)."""
    need = 2 * (tm * tk * 2 + tk * tn * 2 + 2 * tn * 4 + tm * tn * 4)
    if n_k > 1:
        need += tm * tn * 4
    return int(min(max(4 * need, 8 << 20), 32 << 20))


# --------------------------------------------------------------------------
# Pallas kernels
# --------------------------------------------------------------------------
def _mm_bn_act_kernel(a_ref, w_ref, s_ref, b_ref, o_ref, *, relu):
    """Single-K-tile (tm,tn) output tile: matmul -> fused BN+ReLU, no scratch."""
    out = jnp.dot(a_ref[...], w_ref[...], preferred_element_type=jnp.float32)
    out = out * s_ref[...] + b_ref[...]          # f32 epilogue
    if relu:
        out = jnp.maximum(out, 0.0)
    o_ref[...] = out.astype(o_ref.dtype)


def _mm_bn_act_acc_kernel(a_ref, w_ref, s_ref, b_ref, o_ref, acc_ref, *, relu):
    """K-tiled variant (only used when Kp > _TK_MAX): f32 VMEM accumulator."""
    # TODO(synk): on v7x an in-kernel K loop (emit_pipeline) would keep the
    # accumulator in the MRB instead of a VMEM read-modify-write per K step.
    @pl.when(pl.program_id(2) == 0)
    def _init():
        acc_ref[...] = jnp.zeros_like(acc_ref)

    acc_ref[...] += jnp.dot(a_ref[...], w_ref[...],
                            preferred_element_type=jnp.float32)

    @pl.when(pl.program_id(2) == pl.num_programs(2) - 1)
    def _finalize():
        out = acc_ref[...] * s_ref[...] + b_ref[...]
        if relu:
            out = jnp.maximum(out, 0.0)
        o_ref[...] = out.astype(o_ref.dtype)


def matmul_bn_act(a, w, scale, bias, relu, out_dtype=jnp.float32):
    """Fused (im2col) conv:  relu((A @ W) * scale + bias), tiled & pipelined.

    A/W are cast to bf16 for the MXU; accumulation and epilogue stay f32.
    M is sublane-aligned, C is 128-aligned (lane-dense output); K is padded
    only to a multiple of 16 when it fits in a single tile.
    """
    M, K = a.shape
    K2, C = w.shape
    assert K == K2

    # N (output-channel) tiling: lane-dense, largest tile.
    tn = _pick_tile(C, _TN_MAX, 128)
    Cp = _round_up(C, tn)
    n_j = Cp // tn

    # K tiling: single full-K block whenever it fits (no accumulator machinery),
    # otherwise 128-aligned K tiles with a reduction grid axis.
    if _round_up(K, 16) <= _TK_MAX:
        tk = Kp = _round_up(K, 16)
    else:
        tk = _pick_tile(K, _TK_MAX, 128)
        Kp = _round_up(K, tk)
    n_k = Kp // tk

    # M tiling: largest tile, but guarantee >=2 parallel grid steps when the
    # (i, j) grid would otherwise be degenerate (v7x megacore has 2 TCs).
    tm = _pick_tile(M, _TM_MAX, 16)
    n_i = _round_up(M, tm) // tm
    if n_i * n_j == 1 and M > 16:
        tm = _round_up(-(-M // 2), 16)
    Mp = _round_up(M, tm)
    n_i = Mp // tm

    a_p = jnp.pad(a.astype(jnp.bfloat16), ((0, Mp - M), (0, Kp - K)))
    w_p = jnp.pad(w.astype(jnp.bfloat16), ((0, Kp - K), (0, Cp - C)))
    s_p = jnp.pad(scale.reshape(1, C).astype(jnp.float32), ((0, 0), (0, Cp - C)))
    b_p = jnp.pad(bias.reshape(1, C).astype(jnp.float32), ((0, 0), (0, Cp - C)))

    vmem_limit = _vmem_limit(tm, tn, tk, n_k)

    if n_k == 1:
        out = pl.pallas_call(
            functools.partial(_mm_bn_act_kernel, relu=relu),
            out_shape=jax.ShapeDtypeStruct((Mp, Cp), out_dtype),
            grid=(n_i, n_j),
            in_specs=[
                pl.BlockSpec((tm, Kp), lambda i, j: (i, 0)),
                pl.BlockSpec((Kp, tn), lambda i, j: (0, j)),
                pl.BlockSpec((1, tn), lambda i, j: (0, j)),
                pl.BlockSpec((1, tn), lambda i, j: (0, j)),
            ],
            out_specs=pl.BlockSpec((tm, tn), lambda i, j: (i, j)),
            compiler_params=pltpu.CompilerParams(
                dimension_semantics=("parallel", "parallel"),
                vmem_limit_bytes=vmem_limit,
            ),
        )(a_p, w_p, s_p, b_p)
    else:
        out = pl.pallas_call(
            functools.partial(_mm_bn_act_acc_kernel, relu=relu),
            out_shape=jax.ShapeDtypeStruct((Mp, Cp), out_dtype),
            grid=(n_i, n_j, n_k),
            in_specs=[
                pl.BlockSpec((tm, tk), lambda i, j, k: (i, k)),
                pl.BlockSpec((tk, tn), lambda i, j, k: (k, j)),
                pl.BlockSpec((1, tn), lambda i, j, k: (0, j)),
                pl.BlockSpec((1, tn), lambda i, j, k: (0, j)),
            ],
            out_specs=pl.BlockSpec((tm, tn), lambda i, j, k: (i, j)),
            scratch_shapes=[pltpu.VMEM((tm, tn), jnp.float32)],
            compiler_params=pltpu.CompilerParams(
                dimension_semantics=("parallel", "parallel", "arbitrary"),
                vmem_limit_bytes=vmem_limit,
            ),
        )(a_p, w_p, s_p, b_p)
    return out[:M, :C]


# --------------------------------------------------------------------------
# Pooling (left to XLA per perf review: launch overhead > work at these shapes)
# --------------------------------------------------------------------------
def max_pool_3x3_s2(x):
    # TODO(synk): a dedicated Pallas pooling kernel costs more than the
    # reduction at N=2, 15x15; kept as an XLA reduce_window.
    return jax.lax.reduce_window(x, jnp.asarray(-jnp.inf, x.dtype), jax.lax.max,
                                 (1, 1, 3, 3), (1, 1, 2, 2), "VALID")


def avg_pool_2x2_s2(x):
    s = jax.lax.reduce_window(x, jnp.asarray(0, x.dtype), jax.lax.add,
                              (1, 1, 2, 2), (1, 1, 2, 2), "VALID")
    return s * jnp.asarray(0.25, x.dtype)


# --------------------------------------------------------------------------
# Plain-JAX glue (layout plumbing)
# --------------------------------------------------------------------------
def im2col(x, k, stride, padding):
    """Build bf16 conv patches.  k==1/s==1 is a plain reshape (no stack)."""
    # TODO(synk): for the 3x3 paths, a k*k tap-accumulation grid axis inside the
    # matmul kernel would avoid materializing the 9x patches in HBM (biggest win
    # on v5e's lower HBM bandwidth); kept as JAX-side glue here.
    x = x.astype(jnp.bfloat16)
    n, c, h, w = x.shape
    if k == 1 and stride == 1 and padding == 0:
        return nchw_to_mat(x), h, w
    if padding:
        x = jnp.pad(x, ((0, 0), (0, 0), (padding, padding), (padding, padding)))
        h, w = h + 2 * padding, w + 2 * padding
    oh = (h - k) // stride + 1
    ow = (w - k) // stride + 1
    cols = []
    for i in range(k):
        for j in range(k):
            cols.append(x[:, :,
                          i:i + stride * (oh - 1) + 1:stride,
                          j:j + stride * (ow - 1) + 1:stride])
    patches = jnp.stack(cols, axis=2)                       # (n, c, k*k, oh, ow)
    patches = patches.transpose(0, 3, 4, 1, 2).reshape(n * oh * ow, c * k * k)
    return patches, oh, ow


def flat_w(w):  # PyTorch (Cout, Cin, k, k) -> (Cin*k*k, Cout)
    return w.reshape(w.shape[0], -1).T


def nchw_to_mat(x):
    n, c, h, w = x.shape
    return x.transpose(0, 2, 3, 1).reshape(n * h * w, c)


def mat_to_nchw(y, n, h, w):
    c = y.shape[-1]
    return y.reshape(n, h, w, c).transpose(0, 3, 1, 2)


def bn_scale_bias(bn):
    scale = bn["gamma"] / jnp.sqrt(bn["var"] + EPS)
    bias = bn["beta"] - bn["mean"] * scale
    return scale, bias


# --------------------------------------------------------------------------
# FFC components
# --------------------------------------------------------------------------
def fourier_unit(p, x):
    """FourierUnit: rfft2 -> 1x1 conv + BN + ReLU on stacked re/im -> irfft2."""
    n, c, h, w = x.shape
    # TODO(synk): FFT itself has no Pallas primitive; stays in jnp.fft (f32 path).
    ff = jnp.fft.rfft2(x, axes=(-2, -1), norm="ortho")      # (n, c, h, w2) complex
    w2 = ff.shape[-1]
    feat = jnp.stack([ff.real, ff.imag], axis=2).reshape(n, 2 * c, h, w2)
    s, b = bn_scale_bias(p["fu_bn"])
    y = matmul_bn_act(nchw_to_mat(feat), flat_w(p["fu_conv_w"]), s, b, relu=True)
    y = mat_to_nchw(y, n, h, w2).reshape(n, c, 2, h, w2)
    comp = y[:, :, 0] + 1j * y[:, :, 1]
    return jnp.fft.irfft2(comp, s=(h, w), axes=(-2, -1), norm="ortho").astype(jnp.float32)


def spectral_features(p, x_g, stride):
    """SpectralTransform up to (but not including) conv2: returns x1 + FU(x1)."""
    if stride == 2:
        x_g = avg_pool_2x2_s2(x_g)
    n, _, h, w = x_g.shape
    s, b = bn_scale_bias(p["st_conv1_bn"])
    y = matmul_bn_act(nchw_to_mat(x_g), flat_w(p["st_conv1_w"]), s, b, relu=True)
    x1 = mat_to_nchw(y, n, h, w)
    fu = fourier_unit(p, x1)
    if LFU:
        # TODO(synk): LFU (local Fourier unit split/repeat) path not implemented; example uses lfu=False.
        raise NotImplementedError("lfu=True path not implemented")
    # Residual add left to XLA: tiny tensor sandwiched between two jnp.fft ops.
    return x1 + fu


def ffc_bn_forward(p, x_l, x_g, k, stride, padding, out_dtype=jnp.float32):
    """FFC_BN(_ACT): (x_l, x_g) -> (out_l, out_g), BN+ReLU applied per path.

    Both output paths are computed by ONE fused Pallas matmul:
        A = [ a_l | a_g | spectral_feat ]          (a_l loaded once)
        W = [[w_l2l, w_l2g],
             [w_g2l,   0  ],
             [  0  , w_st_conv2]]
    giving one lane-dense (out_cl + out_cg)-wide output slab with BN+ReLU fused.
    """
    n = x_l.shape[0]

    a_l, oh, ow = im2col(x_l, k, stride, padding)
    a_g, _, _ = im2col(x_g, k, stride, padding)

    # SpectralTransform up to (not including) its final 1x1 conv2 (f32 FFT path).
    feat_g = spectral_features(p, x_g, stride)               # (n, out_cg//2, oh, ow)
    a_f = nchw_to_mat(feat_g).astype(jnp.bfloat16)

    w_l2l, w_l2g = flat_w(p["w_l2l"]), flat_w(p["w_l2g"])
    w_g2l, w_st2 = flat_w(p["w_g2l"]), flat_w(p["st_conv2_w"])
    kl, cl = w_l2l.shape
    kg = w_g2l.shape[0]
    kf, cg = w_st2.shape

    # TODO(synk): ~40% of w_all is structurally zero; skipping those (j,k) tiles
    # via a prefetched validity table only pays off once the matmul stops being
    # launch-bound (bigger N/H/W), so it is left dense at these shapes.
    w_all = jnp.concatenate([
        jnp.concatenate([w_l2l, w_l2g], axis=1),
        jnp.concatenate([w_g2l, jnp.zeros((kg, cg), w_g2l.dtype)], axis=1),
        jnp.concatenate([jnp.zeros((kf, cl), w_st2.dtype), w_st2], axis=1),
    ], axis=0)
    a_all = jnp.concatenate([a_l, a_g, a_f], axis=1)

    s_l, b_l = bn_scale_bias(p["bn_l"])
    s_g, b_g = bn_scale_bias(p["bn_g"])
    y = matmul_bn_act(a_all, w_all,
                      jnp.concatenate([s_l, s_g]),
                      jnp.concatenate([b_l, b_g]),
                      relu=True, out_dtype=out_dtype)
    # TODO(synk): keeping activations in (M, C) layout between chained FFC blocks
    # would remove the mat_to_nchw / im2col transpose pairs; kept NCHW for clarity.
    out = mat_to_nchw(y, n, oh, ow)
    return out[:, :cl], out[:, cl:]


def inception_b_forward(params, x_l, x_g):
    b3_l, b3_g = ffc_bn_forward(params["branch3x3"], x_l, x_g, k=3, stride=2, padding=0)
    # Intermediate FFC blocks emit bf16 activations (they only feed more convs);
    # block outputs and the FFT path stay f32.
    d_l, d_g = ffc_bn_forward(params["dbl1"], x_l, x_g, k=1, stride=1, padding=0,
                              out_dtype=jnp.bfloat16)
    d_l, d_g = ffc_bn_forward(params["dbl2"], d_l, d_g, k=3, stride=1, padding=1,
                              out_dtype=jnp.bfloat16)
    d_l, d_g = ffc_bn_forward(params["dbl3"], d_l, d_g, k=3, stride=2, padding=0)
    p_l = max_pool_3x3_s2(x_l)
    p_g = max_pool_3x3_s2(x_g)
    out0 = jnp.concatenate([b3_l, d_l, p_l], axis=1)
    out1 = jnp.concatenate([b3_g, d_g, p_g], axis=1)
    return out0, out1


# --------------------------------------------------------------------------
# Deterministic parameter initialization
# --------------------------------------------------------------------------
def _conv_w(key, cout, cin, k):
    return jax.random.normal(key, (cout, cin, k, k), jnp.float32) / jnp.sqrt(cin * k * k)


def _bn(key, c):
    k1, k2, k3, k4 = jax.random.split(key, 4)
    return dict(gamma=jax.random.uniform(k1, (c,), jnp.float32, 0.5, 1.5),
                beta=jax.random.normal(k2, (c,), jnp.float32) * 0.1,
                mean=jax.random.normal(k3, (c,), jnp.float32) * 0.1,
                var=jax.random.uniform(k4, (c,), jnp.float32, 0.5, 1.5))


def init_ffc_bn(key, cin, cout, k):
    in_cl = in_cg = int(cin * RATIO)
    out_cl = out_cg = int(cout * RATIO)
    c_half = out_cg // 2
    ks = jax.random.split(key, 10)
    return dict(
        w_l2l=_conv_w(ks[0], out_cl, in_cl, k),
        w_l2g=_conv_w(ks[1], out_cg, in_cl, k),
        w_g2l=_conv_w(ks[2], out_cl, in_cg, k),
        st_conv1_w=_conv_w(ks[3], c_half, in_cg, 1),
        st_conv1_bn=_bn(ks[4], c_half),
        fu_conv_w=_conv_w(ks[5], 2 * c_half, 2 * c_half, 1),
        fu_bn=_bn(ks[6], 2 * c_half),
        st_conv2_w=_conv_w(ks[7], out_cg, c_half, 1),
        bn_l=_bn(ks[8], out_cl),
        bn_g=_bn(ks[9], out_cg),
    )


def init_inception_b(key, in_channels):
    k1, k2, k3, k4 = jax.random.split(key, 4)
    return dict(
        branch3x3=init_ffc_bn(k1, in_channels, 384, 3),
        dbl1=init_ffc_bn(k2, in_channels, 64, 1),
        dbl2=init_ffc_bn(k3, 64, 96, 3),
        dbl3=init_ffc_bn(k4, 96, 96, 3),
    )


# --------------------------------------------------------------------------
if __name__ == "__main__":
    key = jax.random.PRNGKey(0)
    kp, kx1, kx2 = jax.random.split(key, 3)

    in_channels = 8
    N, H, W = 2, 15, 15  # odd spatial size, as in Inception-v3 (35x35 stage)

    params = init_inception_b(kp, in_channels)
    x_l = jax.random.normal(kx1, (N, in_channels // 2, H, W), jnp.float32)
    x_g = jax.random.normal(kx2, (N, in_channels // 2, H, W), jnp.float32)

    fwd = jax.jit(functools.partial(inception_b_forward, params))
    out0, out1 = fwd(x_l, x_g)
    jax.block_until_ready((out0, out1))

    exp_c = 384 // 2 + 96 // 2 + in_channels // 2  # 244
    assert out0.shape == (N, exp_c, 7, 7), out0.shape
    assert out1.shape == (N, exp_c, 7, 7), out1.shape
    assert out0.dtype == jnp.float32 and out1.dtype == jnp.float32
    assert bool(jnp.all(jnp.isfinite(out0))) and bool(jnp.all(jnp.isfinite(out1)))

    print("KERNEL_OK")
</pallas_src>

<mosaic_0001>
module attributes {stable_mosaic.version = 11 : i64} {
  func.func @_mm_bn_act_kernel(%arg0: i32, %arg1: i32, %arg2: memref<240x16xbf16, #tpu.memory_space<vmem>>, %arg3: memref<16x128xbf16, #tpu.memory_space<vmem>>, %arg4: memref<1x128xf32, #tpu.memory_space<vmem>>, %arg5: memref<1x128xf32, #tpu.memory_space<vmem>>, %arg6: memref<240x128xf32, #tpu.memory_space<vmem>>) attributes {dimension_semantics = [#tpu.dimension_semantics<parallel>, #tpu.dimension_semantics<parallel>], iteration_bounds = array<i64: 2, 1>, scalar_prefetch = 0 : i64, scratch_operands = 0 : i64, tpu.core_type = #tpu.core_type<tc>, window_params = [{transform_indices = @transform_0, window_bounds = array<i64: 240, 16>}, {transform_indices = @transform_1, window_bounds = array<i64: 16, 128>}, {transform_indices = @transform_2, window_bounds = array<i64: 1, 128>}, {transform_indices = @transform_3, window_bounds = array<i64: 1, 128>}, {transform_indices = @transform_4, window_bounds = array<i64: 240, 128>}]} {
    %c0 = arith.constant 0 : index
    %c0_0 = arith.constant 0 : index
    %0 = vector.load %arg2[%c0, %c0_0] : memref<240x16xbf16, #tpu.memory_space<vmem>>, vector<240x16xbf16>
    %c0_1 = arith.constant 0 : index
    %c0_2 = arith.constant 0 : index
    %1 = vector.load %arg3[%c0_1, %c0_2] : memref<16x128xbf16, #tpu.memory_space<vmem>>, vector<16x128xbf16>
    %cst = arith.constant dense<0.000000e+00> : vector<240x128xf32>
    %2 = tpu.matmul %0, %1, %cst {dimension_numbers = #tpu.dot_dimension_numbers<[1], [0], [0], [1], [0, 0, 1, 1], [], []>} : vector<240x16xbf16>, vector<16x128xbf16>, vector<240x128xf32> -> vector<240x128xf32>
    %c0_3 = arith.constant 0 : index
    %c0_4 = arith.constant 0 : index
    %3 = vector.load %arg4[%c0_3, %c0_4] : memref<1x128xf32, #tpu.memory_space<vmem>>, vector<1x128xf32>
    %4 = vector.broadcast %3 : vector<1x128xf32> to vector<240x128xf32>
    %5 = arith.mulf %2, %4 : vector<240x128xf32>
    %c0_5 = arith.constant 0 : index
    %c0_6 = arith.constant 0 : index
    %6 = vector.load %arg5[%c0_5, %c0_6] : memref<1x128xf32, #tpu.memory_space<vmem>>, vector<1x128xf32>
    %7 = vector.broadcast %6 : vector<1x128xf32> to vector<240x128xf32>
    %8 = arith.addf %5, %7 : vector<240x128xf32>
    %cst_7 = arith.constant 0.000000e+00 : f32
    %9 = vector.broadcast %cst_7 : f32 to vector<240x128xf32>
    %10 = arith.maximumf %8, %9 : vector<240x128xf32>
    %c0_8 = arith.constant 0 : index
    %c0_9 = arith.constant 0 : index
    %11 = vector.load %arg6[%c0_8, %c0_9] : memref<240x128xf32, #tpu.memory_space<vmem>>, vector<240x128xf32>
    tpu.vector_store %arg6[%c0_8, %c0_9], %10 {strides = array<i32>} : memref<240x128xf32, #tpu.memory_space<vmem>>, vector<240x128xf32>,
    return
  }
  func.func @transform_0(%arg0: i32, %arg1: i32) -> (i32, i32) {
    %c0_i32 = arith.constant 0 : i32
    %c0_i32_0 = arith.constant 0 : i32
    return %arg0, %c0_i32 : i32, i32
  }
  func.func @transform_1(%arg0: i32, %arg1: i32) -> (i32, i32) {
    %c0_i32 = arith.constant 0 : i32
    %c0_i32_0 = arith.constant 0 : i32
    return %c0_i32, %arg1 : i32, i32
  }
  func.func @transform_2(%arg0: i32, %arg1: i32) -> (i32, i32) {
    %c0_i32 = arith.constant 0 : i32
    %c0_i32_0 = arith.constant 0 : i32
    return %c0_i32, %arg1 : i32, i32
  }
  func.func @transform_3(%arg0: i32, %arg1: i32) -> (i32, i32) {
    %c0_i32 = arith.constant 0 : i32
    %c0_i32_0 = arith.constant 0 : i32
    return %c0_i32, %arg1 : i32, i32
  }
  func.func @transform_4(%arg0: i32, %arg1: i32) -> (i32, i32) {
    %c0_i32 = arith.constant 0 : i32
    return %arg0, %arg1 : i32, i32
  }
}

module attributes {stable_mosaic.version = 11 : i64} {
  func.func @_mm_bn_act_kernel(%arg0: i32, %arg1: i32, %arg2: memref<128x32xbf16, #tpu.memory_space<vmem>>, %arg3: memref<32x128xbf16, #tpu.memory_space<vmem>>, %arg4: memref<1x128xf32, #tpu.memory_space<vmem>>, %arg5: memref<1x128xf32, #tpu.memory_space<vmem>>, %arg6: memref<128x128xf32, #tpu.memory_space<vmem>>) attributes {dimension_semantics = [#tpu.dimension_semantics<parallel>, #tpu.dimension_semantics<parallel>], iteration_bounds = array<i64: 2, 1>, scalar_prefetch = 0 : i64, scratch_operands = 0 : i64, tpu.core_type = #tpu.core_type<tc>, window_params = [{transform_indices = @transform_0, window_bounds = array<i64: 128, 32>}, {transform_indices = @transform_1, window_bounds = array<i64: 32, 128>}, {transform_indices = @transform_2, window_bounds = array<i64: 1, 128>}, {transform_indices = @transform_3, window_bounds = array<i64: 1, 128>}, {transform_indices = @transform_4, window_bounds = array<i64: 128, 128>}]} {
    %c0 = arith.constant 0 : index
    %c0_0 = arith.constant 0 : index
    %0 = vector.load %arg2[%c0, %c0_0] : memref<128x32xbf16, #tpu.memory_space<vmem>>, vector<128x32xbf16>
    %c0_1 = arith.constant 0 : index
    %c0_2 = arith.constant 0 : index
    %1 = vector.load %arg3[%c0_1, %c0_2] : memref<32x128xbf16, #tpu.memory_space<vmem>>, vector<32x128xbf16>
    %cst = arith.constant dense<0.000000e+00> : vector<128x128xf32>
    %2 = tpu.matmul %0, %1, %cst {dimension_numbers = #tpu.dot_dimension_numbers<[1], [0], [0], [1], [0, 0, 1, 1], [], []>} : vector<128x32xbf16>, vector<32x128xbf16>, vector<128x128xf32> -> vector<128x128xf32>
    %c0_3 = arith.constant 0 : index
    %c0_4 = arith.constant 0 : index
    %3 = vector.load %arg4[%c0_3, %c0_4] : memref<1x128xf32, #tpu.memory_space<vmem>>, vector<1x128xf32>
    %4 = vector.broadcast %3 : vector<1x128xf32> to vector<128x128xf32>
    %5 = arith.mulf %2, %4 : vector<128x128xf32>
    %c0_5 = arith.constant 0 : index
    %c0_6 = arith.constant 0 : index
    %6 = vector.load %arg5[%c0_5, %c0_6] : memref<1x128xf32, #tpu.memory_space<vmem>>, vector<1x128xf32>
    %7 = vector.broadcast %6 : vector<1x128xf32> to vector<128x128xf32>
    %8 = arith.addf %5, %7 : vector<128x128xf32>
    %cst_7 = arith.constant 0.000000e+00 : f32
    %9 = vector.broadcast %cst_7 : f32 to vector<128x128xf32>
    %10 = arith.maximumf %8, %9 : vector<128x128xf32>
    %c0_8 = arith.constant 0 : index
    %c0_9 = arith.constant 0 : index
    %11 = vector.load %arg6[%c0_8, %c0_9] : memref<128x128xf32, #tpu.memory_space<vmem>>, vector<128x128xf32>
    tpu.vector_store %arg6[%c0_8, %c0_9], %10 {strides = array<i32>} : memref<128x128xf32, #tpu.memory_space<vmem>>, vector<128x128xf32>,
    return
  }
  func.func @transform_0(%arg0: i32, %arg1: i32) -> (i32, i32) {
    %c0_i32 = arith.constant 0 : i32
    %c0_i32_0 = arith.constant 0 : i32
    return %arg0, %c0_i32 : i32, i32
  }
  func.func @transform_1(%arg0: i32, %arg1: i32) -> (i32, i32) {
    %c0_i32 = arith.constant 0 : i32
    %c0_i32_0 = arith.constant 0 : i32
    return %c0_i32, %arg1 : i32, i32
  }
  func.func @transform_2(%arg0: i32, %arg1: i32) -> (i32, i32) {
    %c0_i32 = arith.constant 0 : i32
    %c0_i32_0 = arith.constant 0 : i32
    return %c0_i32, %arg1 : i32, i32
  }
  func.func @transform_3(%arg0: i32, %arg1: i32) -> (i32, i32) {
    %c0_i32 = arith.constant 0 : i32
    %c0_i32_0 = arith.constant 0 : i32
    return %c0_i32, %arg1 : i32, i32
  }
  func.func @transform_4(%arg0: i32, %arg1: i32) -> (i32, i32) {
    %c0_i32 = arith.constant 0 : i32
    return %arg0, %arg1 : i32, i32
  }
}

module attributes {stable_mosaic.version = 11 : i64} {
  func.func @_mm_bn_act_kernel(%arg0: i32, %arg1: i32, %arg2: memref<240x32xbf16, #tpu.memory_space<vmem>>, %arg3: memref<32x128xbf16, #tpu.memory_space<vmem>>, %arg4: memref<1x128xf32, #tpu.memory_space<vmem>>, %arg5: memref<1x128xf32, #tpu.memory_space<vmem>>, %arg6: memref<240x128xbf16, #tpu.memory_space<vmem>>) attributes {dimension_semantics = [#tpu.dimension_semantics<parallel>, #tpu.dimension_semantics<parallel>], iteration_bounds = array<i64: 2, 1>, scalar_prefetch = 0 : i64, scratch_operands = 0 : i64, tpu.core_type = #tpu.core_type<tc>, window_params = [{transform_indices = @transform_0, window_bounds = array<i64: 240, 32>}, {transform_indices = @transform_1, window_bounds = array<i64: 32, 128>}, {transform_indices = @transform_2, window_bounds = array<i64: 1, 128>}, {transform_indices = @transform_3, window_bounds = array<i64: 1, 128>}, {transform_indices = @transform_4, window_bounds = array<i64: 240, 128>}]} {
    %c0 = arith.constant 0 : index
    %c0_0 = arith.constant 0 : index
    %0 = vector.load %arg2[%c0, %c0_0] : memref<240x32xbf16, #tpu.memory_space<vmem>>, vector<240x32xbf16>
    %c0_1 = arith.constant 0 : index
    %c0_2 = arith.constant 0 : index
    %1 = vector.load %arg3[%c0_1, %c0_2] : memref<32x128xbf16, #tpu.memory_space<vmem>>, vector<32x128xbf16>
    %cst = arith.constant dense<0.000000e+00> : vector<240x128xf32>
    %2 = tpu.matmul %0, %1, %cst {dimension_numbers = #tpu.dot_dimension_numbers<[1], [0], [0], [1], [0, 0, 1, 1], [], []>} : vector<240x32xbf16>, vector<32x128xbf16>, vector<240x128xf32> -> vector<240x128xf32>
    %c0_3 = arith.constant 0 : index
    %c0_4 = arith.constant 0 : index
    %3 = vector.load %arg4[%c0_3, %c0_4] : memref<1x128xf32, #tpu.memory_space<vmem>>, vector<1x128xf32>
    %4 = vector.broadcast %3 : vector<1x128xf32> to vector<240x128xf32>
    %5 = arith.mulf %2, %4 : vector<240x128xf32>
    %c0_5 = arith.constant 0 : index
    %c0_6 = arith.constant 0 : index
    %6 = vector.load %arg5[%c0_5, %c0_6] : memref<1x128xf32, #tpu.memory_space<vmem>>, vector<1x128xf32>
    %7 = vector.broadcast %6 : vector<1x128xf32> to vector<240x128xf32>
    %8 = arith.addf %5, %7 : vector<240x128xf32>
    %cst_7 = arith.constant 0.000000e+00 : f32
    %9 = vector.broadcast %cst_7 : f32 to vector<240x128xf32>
    %10 = arith.maximumf %8, %9 : vector<240x128xf32>
    %11 = arith.truncf %10 : vector<240x128xf32> to vector<240x128xbf16>
    %c0_8 = arith.constant 0 : index
    %c0_9 = arith.constant 0 : index
    %12 = vector.load %arg6[%c0_8, %c0_9] : memref<240x128xbf16, #tpu.memory_space<vmem>>, vector<240x128xbf16>
    tpu.vector_store %arg6[%c0_8, %c0_9], %11 {strides = array<i32>} : memref<240x128xbf16, #tpu.memory_space<vmem>>, vector<240x128xbf16>,
    return
  }
  func.func @transform_0(%arg0: i32, %arg1: i32) -> (i32, i32) {
    %c0_i32 = arith.constant 0 : i32
    %c0_i32_0 = arith.constant 0 : i32
    return %arg0, %c0_i32 : i32, i32
  }
  func.func @transform_1(%arg0: i32, %arg1: i32) -> (i32, i32) {
    %c0_i32 = arith.constant 0 : i32
    %c0_i32_0 = arith.constant 0 : i32
    return %c0_i32, %arg1 : i32, i32
  }
  func.func @transform_2(%arg0: i32, %arg1: i32) -> (i32, i32) {
    %c0_i32 = arith.constant 0 : i32
    %c0_i32_0 = arith.constant 0 : i32
    return %c0_i32, %arg1 : i32, i32
  }
  func.func @transform_3(%arg0: i32, %arg1: i32) -> (i32, i32) {
    %c0_i32 = arith.constant 0 : i32
    %c0_i32_0 = arith.constant 0 : i32
    return %c0_i32, %arg1 : i32, i32
  }
  func.func @transform_4(%arg0: i32, %arg1: i32) -> (i32, i32) {
    %c0_i32 = arith.constant 0 : i32
    return %arg0, %arg1 : i32, i32
  }
}

module attributes {stable_mosaic.version = 11 : i64} {
  func.func @_mm_bn_act_kernel(%arg0: i32, %arg1: i32, %arg2: memref<240x32xbf16, #tpu.memory_space<vmem>>, %arg3: memref<32x128xbf16, #tpu.memory_space<vmem>>, %arg4: memref<1x128xf32, #tpu.memory_space<vmem>>, %arg5: memref<1x128xf32, #tpu.memory_space<vmem>>, %arg6: memref<240x128xf32, #tpu.memory_space<vmem>>) attributes {dimension_semantics = [#tpu.dimension_semantics<parallel>, #tpu.dimension_semantics<parallel>], iteration_bounds = array<i64: 2, 1>, scalar_prefetch = 0 : i64, scratch_operands = 0 : i64, tpu.core_type = #tpu.core_type<tc>, window_params = [{transform_indices = @transform_0, window_bounds = array<i64: 240, 32>}, {transform_indices = @transform_1, window_bounds = array<i64: 32, 128>}, {transform_indices = @transform_2, window_bounds = array<i64: 1, 128>}, {transform_indices = @transform_3, window_bounds = array<i64: 1, 128>}, {transform_indices = @transform_4, window_bounds = array<i64: 240, 128>}]} {
    %c0 = arith.constant 0 : index
    %c0_0 = arith.constant 0 : index
    %0 = vector.load %arg2[%c0, %c0_0] : memref<240x32xbf16, #tpu.memory_space<vmem>>, vector<240x32xbf16>
    %c0_1 = arith.constant 0 : index
    %c0_2 = arith.constant 0 : index
    %1 = vector.load %arg3[%c0_1, %c0_2] : memref<32x128xbf16, #tpu.memory_space<vmem>>, vector<32x128xbf16>
    %cst = arith.constant dense<0.000000e+00> : vector<240x128xf32>
    %2 = tpu.matmul %0, %1, %cst {dimension_numbers = #tpu.dot_dimension_numbers<[1], [0], [0], [1], [0, 0, 1, 1], [], []>} : vector<240x32xbf16>, vector<32x128xbf16>, vector<240x128xf32> -> vector<240x128xf32>
    %c0_3 = arith.constant 0 : index
    %c0_4 = arith.constant 0 : index
    %3 = vector.load %arg4[%c0_3, %c0_4] : memref<1x128xf32, #tpu.memory_space<vmem>>, vector<1x128xf32>
    %4 = vector.broadcast %3 : vector<1x128xf32> to vector<240x128xf32>
    %5 = arith.mulf %2, %4 : vector<240x128xf32>
    %c0_5 = arith.constant 0 : index
    %c0_6 = arith.constant 0 : index
    %6 = vector.load %arg5[%c0_5, %c0_6] : memref<1x128xf32, #tpu.memory_space<vmem>>, vector<1x128xf32>
    %7 = vector.broadcast %6 : vector<1x128xf32> to vector<240x128xf32>
    %8 = arith.addf %5, %7 : vector<240x128xf32>
    %cst_7 = arith.constant 0.000000e+00 : f32
    %9 = vector.broadcast %cst_7 : f32 to vector<240x128xf32>
    %10 = arith.maximumf %8, %9 : vector<240x128xf32>
    %c0_8 = arith.constant 0 : index
    %c0_9 = arith.constant 0 : index
    %11 = vector.load %arg6[%c0_8, %c0_9] : memref<240x128xf32, #tpu.memory_space<vmem>>, vector<240x128xf32>
    tpu.vector_store %arg6[%c0_8, %c0_9], %10 {strides = array<i32>} : memref<240x128xf32, #tpu.memory_space<vmem>>, vector<240x128xf32>,
    return
  }
  func.func @transform_0(%arg0: i32, %arg1: i32) -> (i32, i32) {
    %c0_i32 = arith.constant 0 : i32
    %c0_i32_0 = arith.constant 0 : i32
    return %arg0, %c0_i32 : i32, i32
  }
  func.func @transform_1(%arg0: i32, %arg1: i32) -> (i32, i32) {
    %c0_i32 = arith.constant 0 : i32
    %c0_i32_0 = arith.constant 0 : i32
    return %c0_i32, %arg1 : i32, i32
  }
  func.func @transform_2(%arg0: i32, %arg1: i32) -> (i32, i32) {
    %c0_i32 = arith.constant 0 : i32
    %c0_i32_0 = arith.constant 0 : i32
    return %c0_i32, %arg1 : i32, i32
  }
  func.func @transform_3(%arg0: i32, %arg1: i32) -> (i32, i32) {
    %c0_i32 = arith.constant 0 : i32
    %c0_i32_0 = arith.constant 0 : i32
    return %c0_i32, %arg1 : i32, i32
  }
  func.func @transform_4(%arg0: i32, %arg1: i32) -> (i32, i32) {
    %c0_i32 = arith.constant 0 : i32
    return %arg0, %arg1 : i32, i32
  }
}

module attributes {stable_mosaic.version = 11 : i64} {
  func.func @_mm_bn_act_kernel(%arg0: i32, %arg1: i32, %arg2: memref<128x48xbf16, #tpu.memory_space<vmem>>, %arg3: memref<48x128xbf16, #tpu.memory_space<vmem>>, %arg4: memref<1x128xf32, #tpu.memory_space<vmem>>, %arg5: memref<1x128xf32, #tpu.memory_space<vmem>>, %arg6: memref<128x128xf32, #tpu.memory_space<vmem>>) attributes {dimension_semantics = [#tpu.dimension_semantics<parallel>, #tpu.dimension_semantics<parallel>], iteration_bounds = array<i64: 2, 1>, scalar_prefetch = 0 : i64, scratch_operands = 0 : i64, tpu.core_type = #tpu.core_type<tc>, window_params = [{transform_indices = @transform_0, window_bounds = array<i64: 128, 48>}, {transform_indices = @transform_1, window_bounds = array<i64: 48, 128>}, {transform_indices = @transform_2, window_bounds = array<i64: 1, 128>}, {transform_indices = @transform_3, window_bounds = array<i64: 1, 128>}, {transform_indices = @transform_4, window_bounds = array<i64: 128, 128>}]} {
    %c0 = arith.constant 0 : index
    %c0_0 = arith.constant 0 : index
    %0 = vector.load %arg2[%c0, %c0_0] : memref<128x48xbf16, #tpu.memory_space<vmem>>, vector<128x48xbf16>
    %c0_1 = arith.constant 0 : index
    %c0_2 = arith.constant 0 : index
    %1 = vector.load %arg3[%c0_1, %c0_2] : memref<48x128xbf16, #tpu.memory_space<vmem>>, vector<48x128xbf16>
    %cst = arith.constant dense<0.000000e+00> : vector<128x128xf32>
    %2 = tpu.matmul %0, %1, %cst {dimension_numbers = #tpu.dot_dimension_numbers<[1], [0], [0], [1], [0, 0, 1, 1], [], []>} : vector<128x48xbf16>, vector<48x128xbf16>, vector<128x128xf32> -> vector<128x128xf32>
    %c0_3 = arith.constant 0 : index
    %c0_4 = arith.constant 0 : index
    %3 = vector.load %arg4[%c0_3, %c0_4] : memref<1x128xf32, #tpu.memory_space<vmem>>, vector<1x128xf32>
    %4 = vector.broadcast %3 : vector<1x128xf32> to vector<128x128xf32>
    %5 = arith.mulf %2, %4 : vector<128x128xf32>
    %c0_5 = arith.constant 0 : index
    %c0_6 = arith.constant 0 : index
    %6 = vector.load %arg5[%c0_5, %c0_6] : memref<1x128xf32, #tpu.memory_space<vmem>>, vector<1x128xf32>
    %7 = vector.broadcast %6 : vector<1x128xf32> to vector<128x128xf32>
    %8 = arith.addf %5, %7 : vector<128x128xf32>
    %cst_7 = arith.constant 0.000000e+00 : f32
    %9 = vector.broadcast %cst_7 : f32 to vector<128x128xf32>
    %10 = arith.maximumf %8, %9 : vector<128x128xf32>
    %c0_8 = arith.constant 0 : index
    %c0_9 = arith.constant 0 : index
    %11 = vector.load %arg6[%c0_8, %c0_9] : memref<128x128xf32, #tpu.memory_space<vmem>>, vector<128x128xf32>
    tpu.vector_store %arg6[%c0_8, %c0_9], %10 {strides = array<i32>} : memref<128x128xf32, #tpu.memory_space<vmem>>, vector<128x128xf32>,
    return
  }
  func.func @transform_0(%arg0: i32, %arg1: i32) -> (i32, i32) {
    %c0_i32 = arith.constant 0 : i32
    %c0_i32_0 = arith.constant 0 : i32
    return %arg0, %c0_i32 : i32, i32
  }
  func.func @transform_1(%arg0: i32, %arg1: i32) -> (i32, i32) {
    %c0_i32 = arith.constant 0 : i32
    %c0_i32_0 = arith.constant 0 : i32
    return %c0_i32, %arg1 : i32, i32
  }
  func.func @transform_2(%arg0: i32, %arg1: i32) -> (i32, i32) {
    %c0_i32 = arith.constant 0 : i32
    %c0_i32_0 = arith.constant 0 : i32
    return %c0_i32, %arg1 : i32, i32
  }
  func.func @transform_3(%arg0: i32, %arg1: i32) -> (i32, i32) {
    %c0_i32 = arith.constant 0 : i32
    %c0_i32_0 = arith.constant 0 : i32
    return %c0_i32, %arg1 : i32, i32
  }
  func.func @transform_4(%arg0: i32, %arg1: i32) -> (i32, i32) {
    %c0_i32 = arith.constant 0 : i32
    return %arg0, %arg1 : i32, i32
  }
}

module attributes {stable_mosaic.version = 11 : i64} {
  func.func @_mm_bn_act_kernel(%arg0: i32, %arg1: i32, %arg2: memref<240x608xbf16, #tpu.memory_space<vmem>>, %arg3: memref<608x128xbf16, #tpu.memory_space<vmem>>, %arg4: memref<1x128xf32, #tpu.memory_space<vmem>>, %arg5: memref<1x128xf32, #tpu.memory_space<vmem>>, %arg6: memref<240x128xbf16, #tpu.memory_space<vmem>>) attributes {dimension_semantics = [#tpu.dimension_semantics<parallel>, #tpu.dimension_semantics<parallel>], iteration_bounds = array<i64: 2, 1>, scalar_prefetch = 0 : i64, scratch_operands = 0 : i64, tpu.core_type = #tpu.core_type<tc>, window_params = [{transform_indices = @transform_0, window_bounds = array<i64: 240, 608>}, {transform_indices = @transform_1, window_bounds = array<i64: 608, 128>}, {transform_indices = @transform_2, window_bounds = array<i64: 1, 128>}, {transform_indices = @transform_3, window_bounds = array<i64: 1, 128>}, {transform_indices = @transform_4, window_bounds = array<i64: 240, 128>}]} {
    %c0 = arith.constant 0 : index
    %c0_0 = arith.constant 0 : index
    %0 = vector.load %arg2[%c0, %c0_0] : memref<240x608xbf16, #tpu.memory_space<vmem>>, vector<240x608xbf16>
    %c0_1 = arith.constant 0 : index
    %c0_2 = arith.constant 0 : index
    %1 = vector.load %arg3[%c0_1, %c0_2] : memref<608x128xbf16, #tpu.memory_space<vmem>>, vector<608x128xbf16>
    %cst = arith.constant dense<0.000000e+00> : vector<240x128xf32>
    %2 = tpu.matmul %0, %1, %cst {dimension_numbers = #tpu.dot_dimension_numbers<[1], [0], [0], [1], [0, 0, 1, 1], [], []>} : vector<240x608xbf16>, vector<608x128xbf16>, vector<240x128xf32> -> vector<240x128xf32>
    %c0_3 = arith.constant 0 : index
    %c0_4 = arith.constant 0 : index
    %3 = vector.load %arg4[%c0_3, %c0_4] : memref<1x128xf32, #tpu.memory_space<vmem>>, vector<1x128xf32>
    %4 = vector.broadcast %3 : vector<1x128xf32> to vector<240x128xf32>
    %5 = arith.mulf %2, %4 : vector<240x128xf32>
    %c0_5 = arith.constant 0 : index
    %c0_6 = arith.constant 0 : index
    %6 = vector.load %arg5[%c0_5, %c0_6] : memref<1x128xf32, #tpu.memory_space<vmem>>, vector<1x128xf32>
    %7 = vector.broadcast %6 : vector<1x128xf32> to vector<240x128xf32>
    %8 = arith.addf %5, %7 : vector<240x128xf32>
    %cst_7 = arith.constant 0.000000e+00 : f32
    %9 = vector.broadcast %cst_7 : f32 to vector<240x128xf32>
    %10 = arith.maximumf %8, %9 : vector<240x128xf32>
    %11 = arith.truncf %10 : vector<240x128xf32> to vector<240x128xbf16>
    %c0_8 = arith.constant 0 : index
    %c0_9 = arith.constant 0 : index
    %12 = vector.load %arg6[%c0_8, %c0_9] : memref<240x128xbf16, #tpu.memory_space<vmem>>, vector<240x128xbf16>
    tpu.vector_store %arg6[%c0_8, %c0_9], %11 {strides = array<i32>} : memref<240x128xbf16, #tpu.memory_space<vmem>>, vector<240x128xbf16>,
    return
  }
  func.func @transform_0(%arg0: i32, %arg1: i32) -> (i32, i32) {
    %c0_i32 = arith.constant 0 : i32
    %c0_i32_0 = arith.constant 0 : i32
    return %arg0, %c0_i32 : i32, i32
  }
  func.func @transform_1(%arg0: i32, %arg1: i32) -> (i32, i32) {
    %c0_i32 = arith.constant 0 : i32
    %c0_i32_0 = arith.constant 0 : i32
    return %c0_i32, %arg1 : i32, i32
  }
  func.func @transform_2(%arg0: i32, %arg1: i32) -> (i32, i32) {
    %c0_i32 = arith.constant 0 : i32
    %c0_i32_0 = arith.constant 0 : i32
    return %c0_i32, %arg1 : i32, i32
  }
  func.func @transform_3(%arg0: i32, %arg1: i32) -> (i32, i32) {
    %c0_i32 = arith.constant 0 : i32
    %c0_i32_0 = arith.constant 0 : i32
    return %c0_i32, %arg1 : i32, i32
  }
  func.func @transform_4(%arg0: i32, %arg1: i32) -> (i32, i32) {
    %c0_i32 = arith.constant 0 : i32
    return %arg0, %arg1 : i32, i32
  }
}

module attributes {stable_mosaic.version = 11 : i64} {
  func.func @_mm_bn_act_kernel(%arg0: i32, %arg1: i32, %arg2: memref<64x48xbf16, #tpu.memory_space<vmem>>, %arg3: memref<48x128xbf16, #tpu.memory_space<vmem>>, %arg4: memref<1x128xf32, #tpu.memory_space<vmem>>, %arg5: memref<1x128xf32, #tpu.memory_space<vmem>>, %arg6: memref<64x128xf32, #tpu.memory_space<vmem>>) attributes {dimension_semantics = [#tpu.dimension_semantics<parallel>, #tpu.dimension_semantics<parallel>], iteration_bounds = array<i64: 2, 1>, scalar_prefetch = 0 : i64, scratch_operands = 0 : i64, tpu.core_type = #tpu.core_type<tc>, window_params = [{transform_indices = @transform_0, window_bounds = array<i64: 64, 48>}, {transform_indices = @transform_1, window_bounds = array<i64: 48, 128>}, {transform_indices = @transform_2, window_bounds = array<i64: 1, 128>}, {transform_indices = @transform_3, window_bounds = array<i64: 1, 128>}, {transform_indices = @transform_4, window_bounds = array<i64: 64, 128>}]} {
    %c0 = arith.constant 0 : index
    %c0_0 = arith.constant 0 : index
    %0 = vector.load %arg2[%c0, %c0_0] : memref<64x48xbf16, #tpu.memory_space<vmem>>, vector<64x48xbf16>
    %c0_1 = arith.constant 0 : index
    %c0_2 = arith.constant 0 : index
    %1 = vector.load %arg3[%c0_1, %c0_2] : memref<48x128xbf16, #tpu.memory_space<vmem>>, vector<48x128xbf16>
    %cst = arith.constant dense<0.000000e+00> : vector<64x128xf32>
    %2 = tpu.matmul %0, %1, %cst {dimension_numbers = #tpu.dot_dimension_numbers<[1], [0], [0], [1], [0, 0, 1, 1], [], []>} : vector<64x48xbf16>, vector<48x128xbf16>, vector<64x128xf32> -> vector<64x128xf32>
    %c0_3 = arith.constant 0 : index
    %c0_4 = arith.constant 0 : index
    %3 = vector.load %arg4[%c0_3, %c0_4] : memref<1x128xf32, #tpu.memory_space<vmem>>, vector<1x128xf32>
    %4 = vector.broadcast %3 : vector<1x128xf32> to vector<64x128xf32>
    %5 = arith.mulf %2, %4 : vector<64x128xf32>
    %c0_5 = arith.constant 0 : index
    %c0_6 = arith.constant 0 : index
    %6 = vector.load %arg5[%c0_5, %c0_6] : memref<1x128xf32, #tpu.memory_space<vmem>>, vector<1x128xf32>
    %7 = vector.broadcast %6 : vector<1x128xf32> to vector<64x128xf32>
    %8 = arith.addf %5, %7 : vector<64x128xf32>
    %cst_7 = arith.constant 0.000000e+00 : f32
    %9 = vector.broadcast %cst_7 : f32 to vector<64x128xf32>
    %10 = arith.maximumf %8, %9 : vector<64x128xf32>
    %c0_8 = arith.constant 0 : index
    %c0_9 = arith.constant 0 : index
    %11 = vector.load %arg6[%c0_8, %c0_9] : memref<64x128xf32, #tpu.memory_space<vmem>>, vector<64x128xf32>
    tpu.vector_store %arg6[%c0_8, %c0_9], %10 {strides = array<i32>} : memref<64x128xf32, #tpu.memory_space<vmem>>, vector<64x128xf32>,
    return
  }
  func.func @transform_0(%arg0: i32, %arg1: i32) -> (i32, i32) {
    %c0_i32 = arith.constant 0 : i32
    %c0_i32_0 = arith.constant 0 : i32
    return %arg0, %c0_i32 : i32, i32
  }
  func.func @transform_1(%arg0: i32, %arg1: i32) -> (i32, i32) {
    %c0_i32 = arith.constant 0 : i32
    %c0_i32_0 = arith.constant 0 : i32
    return %c0_i32, %arg1 : i32, i32
  }
  func.func @transform_2(%arg0: i32, %arg1: i32) -> (i32, i32) {
    %c0_i32 = arith.constant 0 : i32
    %c0_i32_0 = arith.constant 0 : i32
    return %c0_i32, %arg1 : i32, i32
  }
  func.func @transform_3(%arg0: i32, %arg1: i32) -> (i32, i32) {
    %c0_i32 = arith.constant 0 : i32
    %c0_i32_0 = arith.constant 0 : i32
    return %c0_i32, %arg1 : i32, i32
  }
  func.func @transform_4(%arg0: i32, %arg1: i32) -> (i32, i32) {
    %c0_i32 = arith.constant 0 : i32
    return %arg0, %arg1 : i32, i32
  }
}

module attributes {stable_mosaic.version = 11 : i64} {
  func.func @_mm_bn_act_kernel(%arg0: i32, %arg1: i32, %arg2: memref<32x48xbf16, #tpu.memory_space<vmem>>, %arg3: memref<48x128xbf16, #tpu.memory_space<vmem>>, %arg4: memref<1x128xf32, #tpu.memory_space<vmem>>, %arg5: memref<1x128xf32, #tpu.memory_space<vmem>>, %arg6: memref<32x128xf32, #tpu.memory_space<vmem>>) attributes {dimension_semantics = [#tpu.dimension_semantics<parallel>, #tpu.dimension_semantics<parallel>], iteration_bounds = array<i64: 2, 1>, scalar_prefetch = 0 : i64, scratch_operands = 0 : i64, tpu.core_type = #tpu.core_type<tc>, window_params = [{transform_indices = @transform_0, window_bounds = array<i64: 32, 48>}, {transform_indices = @transform_1, window_bounds = array<i64: 48, 128>}, {transform_indices = @transform_2, window_bounds = array<i64: 1, 128>}, {transform_indices = @transform_3, window_bounds = array<i64: 1, 128>}, {transform_indices = @transform_4, window_bounds = array<i64: 32, 128>}]} {
    %c0 = arith.constant 0 : index
    %c0_0 = arith.constant 0 : index
    %0 = vector.load %arg2[%c0, %c0_0] : memref<32x48xbf16, #tpu.memory_space<vmem>>, vector<32x48xbf16>
    %c0_1 = arith.constant 0 : index
    %c0_2 = arith.constant 0 : index
    %1 = vector.load %arg3[%c0_1, %c0_2] : memref<48x128xbf16, #tpu.memory_space<vmem>>, vector<48x128xbf16>
    %cst = arith.constant dense<0.000000e+00> : vector<32x128xf32>
    %2 = tpu.matmul %0, %1, %cst {dimension_numbers = #tpu.dot_dimension_numbers<[1], [0], [0], [1], [0, 0, 1, 1], [], []>} : vector<32x48xbf16>, vector<48x128xbf16>, vector<32x128xf32> -> vector<32x128xf32>
    %c0_3 = arith.constant 0 : index
    %c0_4 = arith.constant 0 : index
    %3 = vector.load %arg4[%c0_3, %c0_4] : memref<1x128xf32, #tpu.memory_space<vmem>>, vector<1x128xf32>
    %4 = vector.broadcast %3 : vector<1x128xf32> to vector<32x128xf32>
    %5 = arith.mulf %2, %4 : vector<32x128xf32>
    %c0_5 = arith.constant 0 : index
    %c0_6 = arith.constant 0 : index
    %6 = vector.load %arg5[%c0_5, %c0_6] : memref<1x128xf32, #tpu.memory_space<vmem>>, vector<1x128xf32>
    %7 = vector.broadcast %6 : vector<1x128xf32> to vector<32x128xf32>
    %8 = arith.addf %5, %7 : vector<32x128xf32>
    %cst_7 = arith.constant 0.000000e+00 : f32
    %9 = vector.broadcast %cst_7 : f32 to vector<32x128xf32>
    %10 = arith.maximumf %8, %9 : vector<32x128xf32>
    %c0_8 = arith.constant 0 : index
    %c0_9 = arith.constant 0 : index
    %11 = vector.load %arg6[%c0_8, %c0_9] : memref<32x128xf32, #tpu.memory_space<vmem>>, vector<32x128xf32>
    tpu.vector_store %arg6[%c0_8, %c0_9], %10 {strides = array<i32>} : memref<32x128xf32, #tpu.memory_space<vmem>>, vector<32x128xf32>,
    return
  }
  func.func @transform_0(%arg0: i32, %arg1: i32) -> (i32, i32) {
    %c0_i32 = arith.constant 0 : i32
    %c0_i32_0 = arith.constant 0 : i32
    return %arg0, %c0_i32 : i32, i32
  }
  func.func @transform_1(%arg0: i32, %arg1: i32) -> (i32, i32) {
    %c0_i32 = arith.constant 0 : i32
    %c0_i32_0 = arith.constant 0 : i32
    return %c0_i32, %arg1 : i32, i32
  }
  func.func @transform_2(%arg0: i32, %arg1: i32) -> (i32, i32) {
    %c0_i32 = arith.constant 0 : i32
    %c0_i32_0 = arith.constant 0 : i32
    return %c0_i32, %arg1 : i32, i32
  }
  func.func @transform_3(%arg0: i32, %arg1: i32) -> (i32, i32) {
    %c0_i32 = arith.constant 0 : i32
    %c0_i32_0 = arith.constant 0 : i32
    return %c0_i32, %arg1 : i32, i32
  }
  func.func @transform_4(%arg0: i32, %arg1: i32) -> (i32, i32) {
    %c0_i32 = arith.constant 0 : i32
    return %arg0, %arg1 : i32, i32
  }
}

module attributes {stable_mosaic.version = 11 : i64} {
  func.func @_mm_bn_act_kernel(%arg0: i32, %arg1: i32, %arg2: memref<64x896xbf16, #tpu.memory_space<vmem>>, %arg3: memref<896x128xbf16, #tpu.memory_space<vmem>>, %arg4: memref<1x128xf32, #tpu.memory_space<vmem>>, %arg5: memref<1x128xf32, #tpu.memory_space<vmem>>, %arg6: memref<64x128xf32, #tpu.memory_space<vmem>>) attributes {dimension_semantics = [#tpu.dimension_semantics<parallel>, #tpu.dimension_semantics<parallel>], iteration_bounds = array<i64: 2, 1>, scalar_prefetch = 0 : i64, scratch_operands = 0 : i64, tpu.core_type = #tpu.core_type<tc>, window_params = [{transform_indices = @transform_0, window_bounds = array<i64: 64, 896>}, {transform_indices = @transform_1, window_bounds = array<i64: 896, 128>}, {transform_indices = @transform_2, window_bounds = array<i64: 1, 128>}, {transform_indices = @transform_3, window_bounds = array<i64: 1, 128>}, {transform_indices = @transform_4, window_bounds = array<i64: 64, 128>}]} {
    %c0 = arith.constant 0 : index
    %c0_0 = arith.constant 0 : index
    %0 = vector.load %arg2[%c0, %c0_0] : memref<64x896xbf16, #tpu.memory_space<vmem>>, vector<64x896xbf16>
    %c0_1 = arith.constant 0 : index
    %c0_2 = arith.constant 0 : index
    %1 = vector.load %arg3[%c0_1, %c0_2] : memref<896x128xbf16, #tpu.memory_space<vmem>>, vector<896x128xbf16>
    %cst = arith.constant dense<0.000000e+00> : vector<64x128xf32>
    %2 = tpu.matmul %0, %1, %cst {dimension_numbers = #tpu.dot_dimension_numbers<[1], [0], [0], [1], [0, 0, 1, 1], [], []>} : vector<64x896xbf16>, vector<896x128xbf16>, vector<64x128xf32> -> vector<64x128xf32>
    %c0_3 = arith.constant 0 : index
    %c0_4 = arith.constant 0 : index
    %3 = vector.load %arg4[%c0_3, %c0_4] : memref<1x128xf32, #tpu.memory_space<vmem>>, vector<1x128xf32>
    %4 = vector.broadcast %3 : vector<1x128xf32> to vector<64x128xf32>
    %5 = arith.mulf %2, %4 : vector<64x128xf32>
    %c0_5 = arith.constant 0 : index
    %c0_6 = arith.constant 0 : index
    %6 = vector.load %arg5[%c0_5, %c0_6] : memref<1x128xf32, #tpu.memory_space<vmem>>, vector<1x128xf32>
    %7 = vector.broadcast %6 : vector<1x128xf32> to vector<64x128xf32>
    %8 = arith.addf %5, %7 : vector<64x128xf32>
    %cst_7 = arith.constant 0.000000e+00 : f32
    %9 = vector.broadcast %cst_7 : f32 to vector<64x128xf32>
    %10 = arith.maximumf %8, %9 : vector<64x128xf32>
    %c0_8 = arith.constant 0 : index
    %c0_9 = arith.constant 0 : index
    %11 = vector.load %arg6[%c0_8, %c0_9] : memref<64x128xf32, #tpu.memory_space<vmem>>, vector<64x128xf32>
    tpu.vector_store %arg6[%c0_8, %c0_9], %10 {strides = array<i32>} : memref<64x128xf32, #tpu.memory_space<vmem>>, vector<64x128xf32>,
    return
  }
  func.func @transform_0(%arg0: i32, %arg1: i32) -> (i32, i32) {
    %c0_i32 = arith.constant 0 : i32
    %c0_i32_0 = arith.constant 0 : i32
    return %arg0, %c0_i32 : i32, i32
  }
  func.func @transform_1(%arg0: i32, %arg1: i32) -> (i32, i32) {
    %c0_i32 = arith.constant 0 : i32
    %c0_i32_0 = arith.constant 0 : i32
    return %c0_i32, %arg1 : i32, i32
  }
  func.func @transform_2(%arg0: i32, %arg1: i32) -> (i32, i32) {
    %c0_i32 = arith.constant 0 : i32
    %c0_i32_0 = arith.constant 0 : i32
    return %c0_i32, %arg1 : i32, i32
  }
  func.func @transform_3(%arg0: i32, %arg1: i32) -> (i32, i32) {
    %c0_i32 = arith.constant 0 : i32
    %c0_i32_0 = arith.constant 0 : i32
    return %c0_i32, %arg1 : i32, i32
  }
  func.func @transform_4(%arg0: i32, %arg1: i32) -> (i32, i32) {
    %c0_i32 = arith.constant 0 : i32
    return %arg0, %arg1 : i32, i32
  }
}

module attributes {stable_mosaic.version = 11 : i64} {
  func.func @_mm_bn_act_kernel(%arg0: i32, %arg1: i32, %arg2: memref<64x16xbf16, #tpu.memory_space<vmem>>, %arg3: memref<16x128xbf16, #tpu.memory_space<vmem>>, %arg4: memref<1x128xf32, #tpu.memory_space<vmem>>, %arg5: memref<1x128xf32, #tpu.memory_space<vmem>>, %arg6: memref<64x128xf32, #tpu.memory_space<vmem>>) attributes {dimension_semantics = [#tpu.dimension_semantics<parallel>, #tpu.dimension_semantics<parallel>], iteration_bounds = array<i64: 2, 1>, scalar_prefetch = 0 : i64, scratch_operands = 0 : i64, tpu.core_type = #tpu.core_type<tc>, window_params = [{transform_indices = @transform_0, window_bounds = array<i64: 64, 16>}, {transform_indices = @transform_1, window_bounds = array<i64: 16, 128>}, {transform_indices = @transform_2, window_bounds = array<i64: 1, 128>}, {transform_indices = @transform_3, window_bounds = array<i64: 1, 128>}, {transform_indices = @transform_4, window_bounds = array<i64: 64, 128>}]} {
    %c0 = arith.constant 0 : index
    %c0_0 = arith.constant 0 : index
    %0 = vector.load %arg2[%c0, %c0_0] : memref<64x16xbf16, #tpu.memory_space<vmem>>, vector<64x16xbf16>
    %c0_1 = arith.constant 0 : index
    %c0_2 = arith.constant 0 : index
    %1 = vector.load %arg3[%c0_1, %c0_2] : memref<16x128xbf16, #tpu.memory_space<vmem>>, vector<16x128xbf16>
    %cst = arith.constant dense<0.000000e+00> : vector<64x128xf32>
    %2 = tpu.matmul %0, %1, %cst {dimension_numbers = #tpu.dot_dimension_numbers<[1], [0], [0], [1], [0, 0, 1, 1], [], []>} : vector<64x16xbf16>, vector<16x128xbf16>, vector<64x128xf32> -> vector<64x128xf32>
    %c0_3 = arith.constant 0 : index
    %c0_4 = arith.constant 0 : index
    %3 = vector.load %arg4[%c0_3, %c0_4] : memref<1x128xf32, #tpu.memory_space<vmem>>, vector<1x128xf32>
    %4 = vector.broadcast %3 : vector<1x128xf32> to vector<64x128xf32>
    %5 = arith.mulf %2, %4 : vector<64x128xf32>
    %c0_5 = arith.constant 0 : index
    %c0_6 = arith.constant 0 : index
    %6 = vector.load %arg5[%c0_5, %c0_6] : memref<1x128xf32, #tpu.memory_space<vmem>>, vector<1x128xf32>
    %7 = vector.broadcast %6 : vector<1x128xf32> to vector<64x128xf32>
    %8 = arith.addf %5, %7 : vector<64x128xf32>
    %cst_7 = arith.constant 0.000000e+00 : f32
    %9 = vector.broadcast %cst_7 : f32 to vector<64x128xf32>
    %10 = arith.maximumf %8, %9 : vector<64x128xf32>
    %c0_8 = arith.constant 0 : index
    %c0_9 = arith.constant 0 : index
    %11 = vector.load %arg6[%c0_8, %c0_9] : memref<64x128xf32, #tpu.memory_space<vmem>>, vector<64x128xf32>
    tpu.vector_store %arg6[%c0_8, %c0_9], %10 {strides = array<i32>} : memref<64x128xf32, #tpu.memory_space<vmem>>, vector<64x128xf32>,
    return
  }
  func.func @transform_0(%arg0: i32, %arg1: i32) -> (i32, i32) {
    %c0_i32 = arith.constant 0 : i32
    %c0_i32_0 = arith.constant 0 : i32
    return %arg0, %c0_i32 : i32, i32
  }
  func.func @transform_1(%arg0: i32, %arg1: i32) -> (i32, i32) {
    %c0_i32 = arith.constant 0 : i32
    %c0_i32_0 = arith.constant 0 : i32
    return %c0_i32, %arg1 : i32, i32
  }
  func.func @transform_2(%arg0: i32, %arg1: i32) -> (i32, i32) {
    %c0_i32 = arith.constant 0 : i32
    %c0_i32_0 = arith.constant 0 : i32
    return %c0_i32, %arg1 : i32, i32
  }
  func.func @transform_3(%arg0: i32, %arg1: i32) -> (i32, i32) {
    %c0_i32 = arith.constant 0 : i32
    %c0_i32_0 = arith.constant 0 : i32
    return %c0_i32, %arg1 : i32, i32
  }
  func.func @transform_4(%arg0: i32, %arg1: i32) -> (i32, i32) {
    %c0_i32 = arith.constant 0 : i32
    return %arg0, %arg1 : i32, i32
  }
}

module attributes {stable_mosaic.version = 11 : i64} {
  func.func @_mm_bn_act_kernel(%arg0: i32, %arg1: i32, %arg2: memref<32x192xbf16, #tpu.memory_space<vmem>>, %arg3: memref<192x256xbf16, #tpu.memory_space<vmem>>, %arg4: memref<1x256xf32, #tpu.memory_space<vmem>>, %arg5: memref<1x256xf32, #tpu.memory_space<vmem>>, %arg6: memref<32x256xf32, #tpu.memory_space<vmem>>) attributes {dimension_semantics = [#tpu.dimension_semantics<parallel>, #tpu.dimension_semantics<parallel>], iteration_bounds = array<i64: 2, 1>, scalar_prefetch = 0 : i64, scratch_operands = 0 : i64, tpu.core_type = #tpu.core_type<tc>, window_params = [{transform_indices = @transform_0, window_bounds = array<i64: 32, 192>}, {transform_indices = @transform_1, window_bounds = array<i64: 192, 256>}, {transform_indices = @transform_2, window_bounds = array<i64: 1, 256>}, {transform_indices = @transform_3, window_bounds = array<i64: 1, 256>}, {transform_indices = @transform_4, window_bounds = array<i64: 32, 256>}]} {
    %c0 = arith.constant 0 : index
    %c0_0 = arith.constant 0 : index
    %0 = vector.load %arg2[%c0, %c0_0] : memref<32x192xbf16, #tpu.memory_space<vmem>>, vector<32x192xbf16>
    %c0_1 = arith.constant 0 : index
    %c0_2 = arith.constant 0 : index
    %1 = vector.load %arg3[%c0_1, %c0_2] : memref<192x256xbf16, #tpu.memory_space<vmem>>, vector<192x256xbf16>
    %cst = arith.constant dense<0.000000e+00> : vector<32x256xf32>
    %2 = tpu.matmul %0, %1, %cst {dimension_numbers = #tpu.dot_dimension_numbers<[1], [0], [0], [1], [0, 0, 1, 1], [], []>} : vector<32x192xbf16>, vector<192x256xbf16>, vector<32x256xf32> -> vector<32x256xf32>
    %c0_3 = arith.constant 0 : index
    %c0_4 = arith.constant 0 : index
    %3 = vector.load %arg4[%c0_3, %c0_4] : memref<1x256xf32, #tpu.memory_space<vmem>>, vector<1x256xf32>
    %4 = vector.broadcast %3 : vector<1x256xf32> to vector<32x256xf32>
    %5 = arith.mulf %2, %4 : vector<32x256xf32>
    %c0_5 = arith.constant 0 : index
    %c0_6 = arith.constant 0 : index
    %6 = vector.load %arg5[%c0_5, %c0_6] : memref<1x256xf32, #tpu.memory_space<vmem>>, vector<1x256xf32>
    %7 = vector.broadcast %6 : vector<1x256xf32> to vector<32x256xf32>
    %8 = arith.addf %5, %7 : vector<32x256xf32>
    %cst_7 = arith.constant 0.000000e+00 : f32
    %9 = vector.broadcast %cst_7 : f32 to vector<32x256xf32>
    %10 = arith.maximumf %8, %9 : vector<32x256xf32>
    %c0_8 = arith.constant 0 : index
    %c0_9 = arith.constant 0 : index
    %11 = vector.load %arg6[%c0_8, %c0_9] : memref<32x256xf32, #tpu.memory_space<vmem>>, vector<32x256xf32>
    tpu.vector_store %arg6[%c0_8, %c0_9], %10 {strides = array<i32>} : memref<32x256xf32, #tpu.memory_space<vmem>>, vector<32x256xf32>,
    return
  }
  func.func @transform_0(%arg0: i32, %arg1: i32) -> (i32, i32) {
    %c0_i32 = arith.constant 0 : i32
    %c0_i32_0 = arith.constant 0 : i32
    return %arg0, %c0_i32 : i32, i32
  }
  func.func @transform_1(%arg0: i32, %arg1: i32) -> (i32, i32) {
    %c0_i32 = arith.constant 0 : i32
    %c0_i32_0 = arith.constant 0 : i32
    return %c0_i32, %arg1 : i32, i32
  }
  func.func @transform_2(%arg0: i32, %arg1: i32) -> (i32, i32) {
    %c0_i32 = arith.constant 0 : i32
    %c0_i32_0 = arith.constant 0 : i32
    return %c0_i32, %arg1 : i32, i32
  }
  func.func @transform_3(%arg0: i32, %arg1: i32) -> (i32, i32) {
    %c0_i32 = arith.constant 0 : i32
    %c0_i32_0 = arith.constant 0 : i32
    return %c0_i32, %arg1 : i32, i32
  }
  func.func @transform_4(%arg0: i32, %arg1: i32) -> (i32, i32) {
    %c0_i32 = arith.constant 0 : i32
    return %arg0, %arg1 : i32, i32
  }
}

module attributes {stable_mosaic.version = 11 : i64} {
  func.func @_mm_bn_act_kernel(%arg0: i32, %arg1: i32, %arg2: memref<64x176xbf16, #tpu.memory_space<vmem>>, %arg3: memref<176x384xbf16, #tpu.memory_space<vmem>>, %arg4: memref<1x384xf32, #tpu.memory_space<vmem>>, %arg5: memref<1x384xf32, #tpu.memory_space<vmem>>, %arg6: memref<64x384xf32, #tpu.memory_space<vmem>>) attributes {dimension_semantics = [#tpu.dimension_semantics<parallel>, #tpu.dimension_semantics<parallel>], iteration_bounds = array<i64: 2, 1>, scalar_prefetch = 0 : i64, scratch_operands = 0 : i64, tpu.core_type = #tpu.core_type<tc>, window_params = [{transform_indices = @transform_0, window_bounds = array<i64: 64, 176>}, {transform_indices = @transform_1, window_bounds = array<i64: 176, 384>}, {transform_indices = @transform_2, window_bounds = array<i64: 1, 384>}, {transform_indices = @transform_3, window_bounds = array<i64: 1, 384>}, {transform_indices = @transform_4, window_bounds = array<i64: 64, 384>}]} {
    %c0 = arith.constant 0 : index
    %c0_0 = arith.constant 0 : index
    %0 = vector.load %arg2[%c0, %c0_0] : memref<64x176xbf16, #tpu.memory_space<vmem>>, vector<64x176xbf16>
    %c0_1 = arith.constant 0 : index
    %c0_2 = arith.constant 0 : index
    %1 = vector.load %arg3[%c0_1, %c0_2] : memref<176x384xbf16, #tpu.memory_space<vmem>>, vector<176x384xbf16>
    %cst = arith.constant dense<0.000000e+00> : vector<64x384xf32>
    %2 = tpu.matmul %0, %1, %cst {dimension_numbers = #tpu.dot_dimension_numbers<[1], [0], [0], [1], [0, 0, 1, 1], [], []>} : vector<64x176xbf16>, vector<176x384xbf16>, vector<64x384xf32> -> vector<64x384xf32>
    %c0_3 = arith.constant 0 : index
    %c0_4 = arith.constant 0 : index
    %3 = vector.load %arg4[%c0_3, %c0_4] : memref<1x384xf32, #tpu.memory_space<vmem>>, vector<1x384xf32>
    %4 = vector.broadcast %3 : vector<1x384xf32> to vector<64x384xf32>
    %5 = arith.mulf %2, %4 : vector<64x384xf32>
    %c0_5 = arith.constant 0 : index
    %c0_6 = arith.constant 0 : index
    %6 = vector.load %arg5[%c0_5, %c0_6] : memref<1x384xf32, #tpu.memory_space<vmem>>, vector<1x384xf32>
    %7 = vector.broadcast %6 : vector<1x384xf32> to vector<64x384xf32>
    %8 = arith.addf %5, %7 : vector<64x384xf32>
    %cst_7 = arith.constant 0.000000e+00 : f32
    %9 = vector.broadcast %cst_7 : f32 to vector<64x384xf32>
    %10 = arith.maximumf %8, %9 : vector<64x384xf32>
    %c0_8 = arith.constant 0 : index
    %c0_9 = arith.constant 0 : index
    %11 = vector.load %arg6[%c0_8, %c0_9] : memref<64x384xf32, #tpu.memory_space<vmem>>, vector<64x384xf32>
    tpu.vector_store %arg6[%c0_8, %c0_9], %10 {strides = array<i32>} : memref<64x384xf32, #tpu.memory_space<vmem>>, vector<64x384xf32>,
    return
  }
  func.func @transform_0(%arg0: i32, %arg1: i32) -> (i32, i32) {
    %c0_i32 = arith.constant 0 : i32
    %c0_i32_0 = arith.constant 0 : i32
    return %arg0, %c0_i32 : i32, i32
  }
  func.func @transform_1(%arg0: i32, %arg1: i32) -> (i32, i32) {
    %c0_i32 = arith.constant 0 : i32
    %c0_i32_0 = arith.constant 0 : i32
    return %c0_i32, %arg1 : i32, i32
  }
  func.func @transform_2(%arg0: i32, %arg1: i32) -> (i32, i32) {
    %c0_i32 = arith.constant 0 : i32
    %c0_i32_0 = arith.constant 0 : i32
    return %c0_i32, %arg1 : i32, i32
  }
  func.func @transform_3(%arg0: i32, %arg1: i32) -> (i32, i32) {
    %c0_i32 = arith.constant 0 : i32
    %c0_i32_0 = arith.constant 0 : i32
    return %c0_i32, %arg1 : i32, i32
  }
  func.func @transform_4(%arg0: i32, %arg1: i32) -> (i32, i32) {
    %c0_i32 = arith.constant 0 : i32
    return %arg0, %arg1 : i32, i32
  }
}

</mosaic_0001>

<llo_original>
// kernel: inception_b_forward.15
$region0: #{inception_b_forward.15}
  #allocation0 [shape = 'u32[]', space=smem, size = 0x4, offset = 0x4, fixed_abs, tag = 'smem constant byte address 0x4 - core index']
  #allocation1 [shape = 'u32[144,128]{1,0:T(1,128)}', space=vmem, size = 0x12000, scoped, tag = 'internal scratch']
  %s0 = inlined_call_operand.vmem [shape: bf16[480,16], index: 0, kind: input, shape index: {}]
  %s1 = inlined_call_operand.vmem [shape: bf16[16,128], index: 1, kind: input, shape index: {}]
  %s2 = inlined_call_operand.vmem [shape: f32[1,128], index: 2, kind: input, shape index: {}]
  %s3 = inlined_call_operand.vmem [shape: f32[1,128], index: 3, kind: input, shape index: {}]
  %s4 = inlined_call_operand.vmem [shape: f32[480,128], index: 4, kind: output, shape index: {}]
  %s5 = sld [smem:[#allocation0]]
  $region49: #{inception_b_forward.15} parent=0
    _
  %s7 = ssub.s32 1, %s5
  %s8 = scalar_select 0, %s7, %s5
  loop: start=0, step=1, limit=4
  $region2: #{inception_b_forward.15} parent=0 // loop_pre_header
    _
  $region3: #{inception_b_forward.15} parent=0 // loop_header
    %s10 = sphi 0, %s14
    %p11 = scmp.ge.s32.totalorder %s10, 4
    %s17 = sphi 0, %s29
    %s18 = sphi 0, %s25
    %s19 = sphi 0, %s17
    %s20 = sphi 0, %s18
    %s21 = sphi 0, %s19
    %s22 = sphi 0, %s20
    %s32 = sphi 0, %s34
    %s35 = sphi 0, %s32
    %s36 = sphi 0, %s35
    %s52 = sphi 0, %s36
    %s58 = sphi 0, %s60
    %s61 = sphi 0, %s58
    %s62 = sphi 0, %s61
    %s78 = sphi 0, %s62
    %s84 = sphi 0, %s86
    %s87 = sphi 0, %s84
    %s88 = sphi 0, %s87
    %s104 = sphi 0, %s88
    %s110 = sphi 0, %s112
    %s113 = sphi 0, %s110
    %s114 = sphi 0, %s113
    %s130 = sphi 0, %s114
    %s138 = sphi 0, %s140
    %s141 = sphi 0, %s138
    %s142 = sphi 0, %s141
    %s158 = sphi 0, %s142
  $region4: #{inception_b_forward.15} parent=0 // loop_header_branch
    %13 = sbr.rel (%p11) target = $region8
  $region5: #{inception_b_forward.15} parent=0 // loop_body
    %s15 = ssub.s32 %s10, 1
    %s16 = ssub.s32 %s10, 2
    %s23 = sadd.s32 1, %s18
    %p24 = scmp.ge.s32.totalorder %s23, 1
    %s25 = scalar_select %p24, 0, %s23
    %s26 = sadd.s32 1, %s17
    %s27 = scalar_select %p24, %s26, %s17
    %p28 = scmp.ge.s32.totalorder %s27, 2
    %s29 = scalar_select %p28, 0, %s27
    %s30 = ssub.s32 %s17, %s29
    %p31 = scmp.eq.s32.totalorder %s30, 0
    %s33 = sadd.s32 %s32, 1
    %s34 = scalar_select %p31, %s32, %s33
    %p37 = pneg %p31
    %p38 = scmp.eq.s32.totalorder %s10, 1
    %p39 = por %p37, %p38
    %p40 = scmp.ne.s32.totalorder %s32, %s35
    %p41 = scmp.eq.s32.totalorder %s10, 0
    %p42 = por %p40, %p41
    %p43 = scmp.ne.s32.totalorder %s32, %s35
    %p44 = scmp.eq.s32.totalorder %s15, 1
    %p45 = por %p43, %p44
    %p46 = scmp.ne.s32.totalorder %s35, %s36
    %p47 = scmp.eq.s32.totalorder %s15, 0
    %p48 = por %p46, %p47
    %p49 = scmp.ne.s32.totalorder %s35, %s36
    %p50 = scmp.eq.s32.totalorder %s16, 1
    %p51 = por %p49, %p50
    %p53 = scmp.ne.s32.totalorder %s36, %s52
    %p54 = scmp.eq.s32.totalorder %s16, 0
    %p55 = por %p53, %p54
    %s56 = ssub.s32 %s18, %s25
    %p57 = scmp.eq.s32.totalorder %s56, 0
    %s59 = sadd.s32 %s58, 1
    %s60 = scalar_select %p57, %s58, %s59
    %p63 = pneg %p57
    %p64 = scmp.eq.s32.totalorder %s10, 1
    %p65 = por %p63, %p64
    %p66 = scmp.ne.s32.totalorder %s58, %s61
    %p67 = scmp.eq.s32.totalorder %s10, 0
    %p68 = por %p66, %p67
    %p69 = scmp.ne.s32.totalorder %s58, %s61
    %p70 = scmp.eq.s32.totalorder %s15, 1
    %p71 = por %p69, %p70
    %p72 = scmp.ne.s32.totalorder %s61, %s62
    %p73 = scmp.eq.s32.totalorder %s15, 0
    %p74 = por %p72, %p73
    %p75 = scmp.ne.s32.totalorder %s61, %s62
    %p76 = scmp.eq.s32.totalorder %s16, 1
    %p77 = por %p75, %p76
    %p79 = scmp.ne.s32.totalorder %s62, %s78
    %p80 = scmp.eq.s32.totalorder %s16, 0
    %p81 = por %p79, %p80
    %s82 = ssub.s32 %s18, %s25
    %p83 = scmp.eq.s32.totalorder %s82, 0
    %s85 = sadd.s32 %s84, 1
    %s86 = scalar_select %p83, %s84, %s85
    %p89 = pneg %p83
    %p90 = scmp.eq.s32.totalorder %s10, 1
    %p91 = por %p89, %p90
    %p92 = scmp.ne.s32.totalorder %s84, %s87
    %p93 = scmp.eq.s32.totalorder %s10, 0
    %p94 = por %p92, %p93
    %p95 = scmp.ne.s32.totalorder %s84, %s87
    %p96 = scmp.eq.s32.totalorder %s15, 1
    %p97 = por %p95, %p96
    %p98 = scmp.ne.s32.totalorder %s87, %s88
    %p99 = scmp.eq.s32.totalorder %s15, 0
    %p100 = por %p98, %p99
    %p101 = scmp.ne.s32.totalorder %s87, %s88
    %p102 = scmp.eq.s32.totalorder %s16, 1
    %p103 = por %p101, %p102
    %p105 = scmp.ne.s32.totalorder %s88, %s104
    %p106 = scmp.eq.s32.totalorder %s16, 0
    %p107 = por %p105, %p106
    %s108 = ssub.s32 %s18, %s25
    %p109 = scmp.eq.s32.totalorder %s108, 0
    %s111 = sadd.s32 %s110, 1
    %s112 = scalar_select %p109, %s110, %s111
    %p115 = pneg %p109
    %p116 = scmp.eq.s32.totalorder %s10, 1
    %p117 = por %p115, %p116
    %p118 = scmp.ne.s32.totalorder %s110, %s113
    %p119 = scmp.eq.s32.totalorder %s10, 0
    %p120 = por %p118, %p119
    %p121 = scmp.ne.s32.totalorder %s110, %s113
    %p122 = scmp.eq.s32.totalorder %s15, 1
    %p123 = por %p121, %p122
    %p124 = scmp.ne.s32.totalorder %s113, %s114
    %p125 = scmp.eq.s32.totalorder %s15, 0
    %p126 = por %p124, %p125
    %p127 = scmp.ne.s32.totalorder %s113, %s114
    %p128 = scmp.eq.s32.totalorder %s16, 1
    %p129 = por %p127, %p128
    %p131 = scmp.ne.s32.totalorder %s114, %s130
    %p132 = scmp.eq.s32.totalorder %s16, 0
    %p133 = por %p131, %p132
    %s134 = ssub.s32 %s17, %s29
    %s135 = ssub.s32 %s18, %s25
    %s136 = sor.u32 %s134, %s135
    %p137 = scmp.eq.s32.totalorder %s136, 0
    %s139 = sadd.s32 %s138, 1
    %s140 = scalar_select %p137, %s138, %s139
    %p143 = pneg %p137
    %p144 = scmp.eq.s32.totalorder %s10, 1
    %p145 = por %p143, %p144
    %p146 = scmp.ne.s32.totalorder %s138, %s141
    %p147 = scmp.eq.s32.totalorder %s10, 0
    %p148 = por %p146, %p147
    %p149 = scmp.ne.s32.totalorder %s138, %s141
    %p150 = scmp.eq.s32.totalorder %s15, 1
    %p151 = por %p149, %p150
    %p152 = scmp.ne.s32.totalorder %s141, %s142
    %p153 = scmp.eq.s32.totalorder %s15, 0
    %p154 = por %p152, %p153
    %p155 = scmp.ne.s32.totalorder %s141, %s142
    %p156 = scmp.eq.s32.totalorder %s16, 1
    %p157 = por %p155, %p156
    %p159 = scmp.ne.s32.totalorder %s142, %s158
    %p160 = scmp.eq.s32.totalorder %s16, 0
    %p161 = por %p159, %p160
    %p162 = scmp.le.s32.totalorder 1, %s10
    %p163 = scmp.lt.s32.totalorder %s10, 3
    %p164 = pnand %p162, %p163
    %p165 = pneg %p164
    // Predicated region
    $region9: #{inception_b_forward.15} parent=5 // pred_check
      _
    $region10: #{inception_b_forward.15} parent=5 // pred_check_branch
      %167 = sbr.rel (%p164) target = $region12
    $region11: #{inception_b_forward.15} parent=5 // pred_region
      %s168 = ssub.s32 %s10, 1
      // Predicated region
      $region13: #{inception_b_forward.15} parent=11 // pred_check
        %p169 = pneg %p74
      $region14: #{inception_b_forward.15} parent=11 // pred_check_branch
        %171 = sbr.rel (%p169) target = $region16
      $region15: #{inception_b_forward.15} parent=11 // pred_region
        %p172 = scmp.lt.s32.totalorder %s20, 0
        %s173 = scalar_select %p172, %s20, 0
        %s174 = smul.addr %s173, 4
        %s175 = scalar_lea.vmem %s1, %s174
      $region16: #{inception_b_forward.15} parent=11 // pred_fallthru
        _
      // Predicated region
      $region17: #{inception_b_forward.15} parent=11 // pred_check
        %p176 = pneg %p100
      $region18: #{inception_b_forward.15} parent=11 // pred_check_branch
        %178 = sbr.rel (%p176) target = $region20
      $region19: #{inception_b_forward.15} parent=11 // pred_region
        %p179 = scmp.lt.s32.totalorder %s20, 0
        %s180 = scalar_select %p179, %s20, 0
        %s181 = scalar_lea.vmem %s2, %s180
      $region20: #{inception_b_forward.15} parent=11 // pred_fallthru
        _
      // Predicated region
      $region21: #{inception_b_forward.15} parent=11 // pred_check
        %p182 = pneg %p126
      $region22: #{inception_b_forward.15} parent=11 // pred_check_branch
        %184 = sbr.rel (%p182) target = $region24
      $region23: #{inception_b_forward.15} parent=11 // pred_region
        %p185 = scmp.lt.s32.totalorder %s20, 0
        %s186 = scalar_select %p185, %s20, 0
        %s187 = scalar_lea.vmem %s3, %s186
      $region24: #{inception_b_forward.15} parent=11 // pred_fallthru
        _
    $region12: #{inception_b_forward.15} parent=5 // pred_fallthru
      _
    %p188 = scmp.lt.s32.totalorder %s10, 2
    // Predicated region
    $region25: #{inception_b_forward.15} parent=5 // pred_check
      %p189 = pneg %p188
    $region26: #{inception_b_forward.15} parent=5 // pred_check_branch
      %191 = sbr.rel (%p189) target = $region28
    $region27: #{inception_b_forward.15} parent=5 // pred_region
      // Predicated region
      $region29: #{inception_b_forward.15} parent=27 // pred_check
        %p192 = pneg %p42
      $region30: #{inception_b_forward.15} parent=27 // pred_check_branch
        %194 = sbr.rel (%p192) target = $region32
      $region31: #{inception_b_forward.15} parent=27 // pred_region
        %s195 = smul.u32 30, %s17
        %p196 = scmp.lt.s32.totalorder %s195, 59
        %s197 = scalar_select %p196, %s195, 59
        %s198 = smul.addr %s197, 4
        %s199 = scalar_lea.vmem %s0, %s198
        %s200 = smul.u32 30, %s17
      $region32: #{inception_b_forward.15} parent=27 // pred_fallthru
        _
    $region28: #{inception_b_forward.15} parent=5 // pred_fallthru
      _
    %p201 = scmp.le.s32.totalorder 1, %s10
    %p202 = scmp.lt.s32.totalorder %s10, 3
    %p203 = pnand %p201, %p202
    %p204 = pneg %p203
    // Predicated region
    $region33: #{inception_b_forward.15} parent=5 // pred_check
      _
    $region34: #{inception_b_forward.15} parent=5 // pred_check_branch
      %206 = sbr.rel (%p203) target = $region36
    $region35: #{inception_b_forward.15} parent=5 // pred_region
      %s207 = ssub.s32 %s10, 1
      %s208 = smul.u32 30, %s19
      %p209 = scmp.lt.s32.totalorder %s208, 59
      %s210 = scalar_select %p209, %s208, 59
      %s211 = smul.addr %s210, 4
      %s212 = scalar_lea.vmem %s0, %s211
      %p213 = pneg %p48
      %p214 = pneg %p45
      %p215 = scmp.lt.s32.totalorder %s20, 0
      %s216 = scalar_select %p215, %s20, 0
      %s217 = smul.addr %s216, 4
      %s218 = scalar_lea.vmem %s1, %s217
      %p219 = pneg %p74
      %p220 = pneg %p71
      %p221 = scmp.lt.s32.totalorder %s20, 0
      %s222 = scalar_select %p221, %s20, 0
      %s223 = scalar_lea.vmem %s2, %s222
      %p224 = pneg %p100
      %p225 = pneg %p97
      %p226 = scmp.lt.s32.totalorder %s20, 0
      %s227 = scalar_select %p226, %s20, 0
      %s228 = scalar_lea.vmem %s3, %s227
      %p229 = pneg %p126
      %p230 = pneg %p123
      %p231 = pneg %p154
      %p232 = pneg %p151
      %s233 = smul.u32 30, %s19
      %p234 = scmp.lt.s32.totalorder %s233, 59
      %s235 = scalar_select %p234, %s233, 59
      %p236 = scmp.lt.s32.totalorder %s20, 0
      %s237 = scalar_select %p236, %s20, 0
      %s238 = sadd.s32 %s237, %s235
      %s239 = smul.addr %s238, 8
      %s240 = scalar_lea.vmem %s4, %s239
      %s241 = smul.u32 30, %s19
      %p242 = scmp.lt.s32.totalorder %s241, 59
      %s243 = scalar_select %p242, %s241, 59
      %s244 = smul.addr %s243, 4
      %s245 = scalar_lea.vmem %s0, %s244
      %s246 = smul.u32 30, %s19
      %p247 = scmp.lt.s32.totalorder %s20, 0
      %s248 = scalar_select %p247, %s20, 0
      %s249 = smul.addr %s248, 4
      %s250 = scalar_lea.vmem %s1, %s249
      %p251 = scmp.lt.s32.totalorder %s20, 0
      %s252 = scalar_select %p251, %s20, 0
      %s253 = scalar_lea.vmem %s2, %s252
      %p254 = scmp.lt.s32.totalorder %s20, 0
      %s255 = scalar_select %p254, %s20, 0
      %s256 = scalar_lea.vmem %s3, %s255
      %s257 = smul.u32 30, %s19
      %p258 = scmp.lt.s32.totalorder %s257, 59
      %s259 = scalar_select %p258, %s257, 59
      %p260 = scmp.lt.s32.totalorder %s20, 0
      %s261 = scalar_select %p260, %s20, 0
      %s262 = sadd.s32 %s261, %s259
      %s263 = smul.addr %s262, 8
      %s264 = scalar_lea.vmem %s4, %s263
      %s265 = smul.u32 30, %s19
      %v267 = vld [vmem:[%s245] sm:$0xf]
      %v268 = vld [vmem:[%s245 + $0x4] sm:$0xf]
      %v269 = vld [vmem:[%s245 + $0x8] sm:$0xf]
      %v270 = vld [vmem:[%s245 + $0xc] sm:$0xf]
      %v271 = vld [vmem:[%s245 + $0x10] sm:$0xf]
      %v272 = vld [vmem:[%s245 + $0x14] sm:$0xf]
      %v273 = vld [vmem:[%s245 + $0x18] sm:$0xf]
      %v274 = vld [vmem:[%s245 + $0x1c] sm:$0xf]
      %v275 = vld [vmem:[%s245 + $0x20] sm:$0xf]
      %v276 = vld [vmem:[%s245 + $0x24] sm:$0xf]
      %v277 = vld [vmem:[%s245 + $0x28] sm:$0xf]
      %v278 = vld [vmem:[%s245 + $0x2c] sm:$0xf]
      %v279 = vld [vmem:[%s245 + $0x30] sm:$0xf]
      %v280 = vld [vmem:[%s245 + $0x34] sm:$0xf]
      %v281 = vld [vmem:[%s245 + $0x38] sm:$0xf]
      %v282 = vld [vmem:[%s245 + $0x3c] sm:$0xf]
      %v283 = vld [vmem:[%s245 + $0x40] sm:$0xf]
      %v284 = vld [vmem:[%s245 + $0x44] sm:$0xf]
      %v285 = vld [vmem:[%s245 + $0x48] sm:$0xf]
      %v286 = vld [vmem:[%s245 + $0x4c] sm:$0xf]
      %v287 = vld [vmem:[%s245 + $0x50] sm:$0xf]
      %v288 = vld [vmem:[%s245 + $0x54] sm:$0xf]
      %v289 = vld [vmem:[%s245 + $0x58] sm:$0xf]
      %v290 = vld [vmem:[%s245 + $0x5c] sm:$0xf]
      %v291 = vld [vmem:[%s245 + $0x60] sm:$0xf]
      %v292 = vld [vmem:[%s245 + $0x64] sm:$0xf]
      %v293 = vld [vmem:[%s245 + $0x68] sm:$0xf]
      %v294 = vld [vmem:[%s245 + $0x6c] sm:$0xf]
      %v295 = vld [vmem:[%s245 + $0x70] sm:$0xf]
      %v296 = vld [vmem:[%s245 + $0x74] sm:$0xf]
      %v297 = vld [vmem:[%s250] sm:$0xf]
      %v298 = vld [vmem:[%s250 + $0x4] sm:$0xf]
      %v329 = vunpack.c.l.b16 %v267
      %v330 = vunpack.c.l.b16 %v268
      %v331 = vunpack.c.l.b16 %v269
      %v332 = vunpack.c.l.b16 %v270
      %v333 = vunpack.c.l.b16 %v271
      %v334 = vunpack.c.l.b16 %v272
      %v335 = vunpack.c.l.b16 %v273
      %v336 = vunpack.c.l.b16 %v274
      %v337 = vunpack.c.l.b16 %v275
      %v338 = vunpack.c.l.b16 %v276
      %v339 = vunpack.c.l.b16 %v277
      %v340 = vunpack.c.l.b16 %v278
      %v341 = vunpack.c.l.b16 %v279
      %v342 = vunpack.c.l.b16 %v280
      %v343 = vunpack.c.l.b16 %v281
      %v344 = vunpack.c.l.b16 %v282
      %v345 = vunpack.c.l.b16 %v283
      %v346 = vunpack.c.l.b16 %v284
      %v347 = vunpack.c.l.b16 %v285
      %v348 = vunpack.c.l.b16 %v286
      %v349 = vunpack.c.l.b16 %v287
      %v350 = vunpack.c.l.b16 %v288
      %v351 = vunpack.c.l.b16 %v289
      %v352 = vunpack.c.l.b16 %v290
      %v353 = vunpack.c.l.b16 %v291
      %v354 = vunpack.c.l.b16 %v292
      %v355 = vunpack.c.l.b16 %v293
      %v356 = vunpack.c.l.b16 %v294
      %v357 = vunpack.c.l.b16 %v295
      %v358 = vunpack.c.l.b16 %v296
      %v359 = vpack.c.b16 %v330, %v329
      %v360 = vpack.c.b16 %v332, %v331
      %v361 = vpack.c.b16 %v334, %v333
      %v362 = vpack.c.b16 %v336, %v335
      %v363 = vpack.c.b16 %v338, %v337
      %v364 = vpack.c.b16 %v340, %v339
      %v365 = vpack.c.b16 %v342, %v341
      %v366 = vpack.c.b16 %v344, %v343
      %v367 = vpack.c.b16 %v346, %v345
      %v368 = vpack.c.b16 %v348, %v347
      %v369 = vpack.c.b16 %v350, %v349
      %v370 = vpack.c.b16 %v352, %v351
      %v371 = vpack.c.b16 %v354, %v353
      %v372 = vpack.c.b16 %v356, %v355
      %v373 = vpack.c.b16 %v358, %v357
      %v376 = vunpack.c.l.b16 %v297
      %v377 = vunpack.c.l.b16 %v298
      %v378 = vpack.c.b16 %v377, %v376
      %vm380 = vcmask 130048
      %v382 = vsel %vm380, %v359, 0
      %v385 = vsel %vm380, %v360, 0
      %v388 = vsel %vm380, %v361, 0
      %v391 = vsel %vm380, %v362, 0
      %v394 = vsel %vm380, %v363, 0
      %v397 = vsel %vm380, %v364, 0
      %v400 = vsel %vm380, %v365, 0
      %v403 = vsel %vm380, %v366, 0
      %v406 = vsel %vm380, %v367, 0
      %v409 = vsel %vm380, %v368, 0
      %v412 = vsel %vm380, %v369, 0
      %v415 = vsel %vm380, %v370, 0
      %v418 = vsel %vm380, %v371, 0
      %v421 = vsel %vm380, %v372, 0
      %v424 = vsel %vm380, %v373, 0
      %426 = vmatprep.subr.bf16.mxu0 0
      %427 = vmatpush1.bf16.msra.mxu0 %v378
      %428 = vmatprep.subr.bf16.mxu0 0
      %429 = vmatpush1.bf16.msra.mxu0 0
      %430 = vmatprep.subr.bf16.mxu0 0
      %431 = vmatpush1.bf16.msra.mxu0 0
      %432 = vmatprep.subr.bf16.mxu0 0
      %433 = vmatpush1.bf16.msra.mxu0 0
      %434 = vmatprep.subr.bf16.mxu0 0
      %435 = vmatpush1.bf16.msra.mxu0 0
      %436 = vmatprep.subr.bf16.mxu0 0
      %437 = vmatpush1.bf16.msra.mxu0 0
      %438 = vmatprep.subr.bf16.mxu0 0
      %439 = vmatpush1.bf16.msra.mxu0 0
      %440 = vmatprep.subr.bf16.mxu0 0
      %441 = vmatpush1.bf16.msra.mxu0 0
      %442 = vmatprep.subr.bf16.mxu0 0
      %443 = vmatpush1.bf16.msra.mxu0 0
      %444 = vmatprep.subr.bf16.mxu0 0
      %445 = vmatpush1.bf16.msra.mxu0 0
      %446 = vmatprep.subr.bf16.mxu0 0
      %447 = vmatpush1.bf16.msra.mxu0 0
      %448 = vmatprep.subr.bf16.mxu0 0
      %449 = vmatpush1.bf16.msra.mxu0 0
      %450 = vmatprep.subr.bf16.mxu0 0
      %451 = vmatpush1.bf16.msra.mxu0 0
      %452 = vmatprep.subr.bf16.mxu0 0
      %453 = vmatpush1.bf16.msra.mxu0 0
      %454 = vmatprep.subr.bf16.mxu0 0
      %455 = vmatpush1.bf16.msra.mxu0 0
      %456 = vmatprep.subr.bf16.mxu0 0
      %457 = vmatpush1.bf16.msra.mxu0 0
      %458 = vmatprep.mubr.bf16.mxu0 0
      %459 = vmatmul.mubr.bf16.gmra.mrb[0].mxu0 %v382
      %v460 = vpop.f32.mrb[0].mxu0
      %v461 = vadd.f32 0.0, %v460
      %v462 = vpop.f32.mrb[0].mxu0
      %v463 = vpop.f32.mrb[0].mxu0
      %v464 = vadd.f32 0.0, %v463
      %v465 = vpop.f32.mrb[0].mxu0
      %466 = vmatprep.mubr.bf16.mxu0 0
      %467 = vmatmul.mubr.bf16.gmra.mrb[0].mxu0 %v385
      %v468 = vpop.f32.mrb[0].mxu0
      %v469 = vadd.f32 0.0, %v468
      %v470 = vpop.f32.mrb[0].mxu0
      %v471 = vpop.f32.mrb[0].mxu0
      %v472 = vadd.f32 0.0, %v471
      %v473 = vpop.f32.mrb[0].mxu0
      %474 = vmatprep.mubr.bf16.mxu0 0
      %475 = vmatmul.mubr.bf16.gmra.mrb[0].mxu0 %v388
      %v476 = vpop.f32.mrb[0].mxu0
      %v477 = vadd.f32 0.0, %v476
      %v478 = vpop.f32.mrb[0].mxu0
      %v479 = vpop.f32.mrb[0].mxu0
      %v480 = vadd.f32 0.0, %v479
      %v481 = vpop.f32.mrb[0].mxu0
      %482 = vmatprep.mubr.bf16.mxu0 0
      %483 = vmatmul.mubr.bf16.gmra.mrb[0].mxu0 %v391
      %v484 = vpop.f32.mrb[0].mxu0
      %v485 = vadd.f32 0.0, %v484
      %v486 = vpop.f32.mrb[0].mxu0
      %v487 = vpop.f32.mrb[0].mxu0
      %v488 = vadd.f32 0.0, %v487
      %v489 = vpop.f32.mrb[0].mxu0
      %490 = vmatprep.mubr.bf16.mxu0 0
      %491 = vmatmul.mubr.bf16.gmra.mrb[0].mxu0 %v394
      %v492 = vpop.f32.mrb[0].mxu0
      %v493 = vadd.f32 0.0, %v492
      %v494 = vpop.f32.mrb[0].mxu0
      %v495 = vpop.f32.mrb[0].mxu0
      %v496 = vadd.f32 0.0, %v495
      %v497 = vpop.f32.mrb[0].mxu0
      %498 = vmatprep.mubr.bf16.mxu0 0
      %499 = vmatmul.mubr.bf16.gmra.mrb[0].mxu0 %v397
      %v500 = vpop.f32.mrb[0].mxu0
      %v501 = vadd.f32 0.0, %v500
      %v502 = vpop.f32.mrb[0].mxu0
      %v503 = vpop.f32.mrb[0].mxu0
      %v504 = vadd.f32 0.0, %v503
      %v505 = vpop.f32.mrb[0].mxu0
      %506 = vmatprep.mubr.bf16.mxu0 0
      %507 = vmatmul.mubr.bf16.gmra.mrb[0].mxu0 %v400
      %v508 = vpop.f32.mrb[0].mxu0
      %v509 = vadd.f32 0.0, %v508
      %v510 = vpop.f32.mrb[0].mxu0
      %v511 = vpop.f32.mrb[0].mxu0
      %v512 = vadd.f32 0.0, %v511
      %v513 = vpop.f32.mrb[0].mxu0
      %514 = vmatprep.mubr.bf16.mxu0 0
      %515 = vmatmul.mubr.bf16.gmra.mrb[0].mxu0 %v403
      %v516 = vpop.f32.mrb[0].mxu0
      %v517 = vadd.f32 0.0, %v516
      %v518 = vpop.f32.mrb[0].mxu0
      %v519 = vpop.f32.mrb[0].mxu0
      %v520 = vadd.f32 0.0, %v519
      %v521 = vpop.f32.mrb[0].mxu0
      %522 = vmatprep.mubr.bf16.mxu0 0
      %523 = vmatmul.mubr.bf16.gmra.mrb[0].mxu0 %v406
      %v524 = vpop.f32.mrb[0].mxu0
      %v525 = vadd.f32 0.0, %v524
      %v526 = vpop.f32.mrb[0].mxu0
      %v527 = vpop.f32.mrb[0].mxu0
      %v528 = vadd.f32 0.0, %v527
      %v529 = vpop.f32.mrb[0].mxu0
      %530 = vmatprep.mubr.bf16.mxu0 0
      %531 = vmatmul.mubr.bf16.gmra.mrb[0].mxu0 %v409
      %v532 = vpop.f32.mrb[0].mxu0
      %v533 = vadd.f32 0.0, %v532
      %v534 = vpop.f32.mrb[0].mxu0
      %v535 = vpop.f32.mrb[0].mxu0
      %v536 = vadd.f32 0.0, %v535
      %v537 = vpop.f32.mrb[0].mxu0
      %538 = vmatprep.mubr.bf16.mxu0 0
      %539 = vmatmul.mubr.bf16.gmra.mrb[0].mxu0 %v412
      %v540 = vpop.f32.mrb[0].mxu0
      %v541 = vadd.f32 0.0, %v540
      %v542 = vpop.f32.mrb[0].mxu0
      %v543 = vpop.f32.mrb[0].mxu0
      %v544 = vadd.f32 0.0, %v543
      %v545 = vpop.f32.mrb[0].mxu0
      %546 = vmatprep.mubr.bf16.mxu0 0
      %547 = vmatmul.mubr.bf16.gmra.mrb[0].mxu0 %v415
      %v548 = vpop.f32.mrb[0].mxu0
      %v549 = vadd.f32 0.0, %v548
      %v550 = vpop.f32.mrb[0].mxu0
      %v551 = vpop.f32.mrb[0].mxu0
      %v552 = vadd.f32 0.0, %v551
      %v553 = vpop.f32.mrb[0].mxu0
      %554 = vmatprep.mubr.bf16.mxu0 0
      %555 = vmatmul.mubr.bf16.gmra.mrb[0].mxu0 %v418
      %v556 = vpop.f32.mrb[0].mxu0
      %v557 = vadd.f32 0.0, %v556
      %v558 = vpop.f32.mrb[0].mxu0
      %v559 = vpop.f32.mrb[0].mxu0
      %v560 = vadd.f32 0.0, %v559
      %v561 = vpop.f32.mrb[0].mxu0
      %562 = vmatprep.mubr.bf16.mxu0 0
      %563 = vmatmul.mubr.bf16.gmra.mrb[0].mxu0 %v421
      %v564 = vpop.f32.mrb[0].mxu0
      %v565 = vadd.f32 0.0, %v564
      %v566 = vpop.f32.mrb[0].mxu0
      %v567 = vpop.f32.mrb[0].mxu0
      %v568 = vadd.f32 0.0, %v567
      %v569 = vpop.f32.mrb[0].mxu0
      %570 = vmatprep.mubr.bf16.mxu0 0
      %571 = vmatmul.mubr.bf16.gmra.mrb[0].mxu0 %v424
      %v572 = vpop.f32.mrb[0].mxu0
      %v573 = vadd.f32 0.0, %v572
      %v574 = vpop.f32.mrb[0].mxu0
      %v575 = vpop.f32.mrb[0].mxu0
      %v576 = vadd.f32 0.0, %v575
      %v577 = vpop.f32.mrb[0].mxu0
      %578 = vdwg.mxu0
      %v579 = vld [vmem:[%s253] sm:$0x1]
      %v581 = vlaneseq
      %v582 = vshrl.u32 %v581, 7
      %v583 = vsub.s32 0, %v582
      %v584 = vrot.slane %v579, %v583
      %v586 = vmul.f32 %v461, %v584
      %v587 = vmul.f32 %v464, %v584
      %v588 = vmul.f32 %v469, %v584
      %v589 = vmul.f32 %v472, %v584
      %v590 = vmul.f32 %v477, %v584
      %v591 = vmul.f32 %v480, %v584
      %v592 = vmul.f32 %v485, %v584
      %v593 = vmul.f32 %v488, %v584
      %v594 = vmul.f32 %v493, %v584
      %v595 = vmul.f32 %v496, %v584
      %v596 = vmul.f32 %v501, %v584
      %v597 = vmul.f32 %v504, %v584
      %v598 = vmul.f32 %v509, %v584
      %v599 = vmul.f32 %v512, %v584
      %v600 = vmul.f32 %v517, %v584
      %v601 = vmul.f32 %v520, %v584
      %v602 = vmul.f32 %v525, %v584
      %v603 = vmul.f32 %v528, %v584
      %v604 = vmul.f32 %v533, %v584
      %v605 = vmul.f32 %v536, %v584
      %v606 = vmul.f32 %v541, %v584
      %v607 = vmul.f32 %v544, %v584
      %v608 = vmul.f32 %v549, %v584
      %v609 = vmul.f32 %v552, %v584
      %v610 = vmul.f32 %v557, %v584
      %v611 = vmul.f32 %v560, %v584
      %v612 = vmul.f32 %v565, %v584
      %v613 = vmul.f32 %v568, %v584
      %v614 = vmul.f32 %v573, %v584
      %v615 = vmul.f32 %v576, %v584
      %v616 = vld [vmem:[%s256] sm:$0x1]
      %v618 = vlaneseq
      %v619 = vshrl.u32 %v618, 7
      %v620 = vsub.s32 0, %v619
      %v621 = vrot.slane %v616, %v620
      %v623 = vadd.f32 %v586, %v621
      %v624 = vadd.f32 %v587, %v621
      %v625 = vadd.f32 %v588, %v621
      %v626 = vadd.f32 %v589, %v621
      %v627 = vadd.f32 %v590, %v621
      %v628 = vadd.f32 %v591, %v621
      %v629 = vadd.f32 %v592, %v621
      %v630 = vadd.f32 %v593, %v621
      %v631 = vadd.f32 %v594, %v621
      %v632 = vadd.f32 %v595, %v621
      %v633 = vadd.f32 %v596, %v621
      %v634 = vadd.f32 %v597, %v621
      %v635 = vadd.f32 %v598, %v621
      %v636 = vadd.f32 %v599, %v621
      %v637 = vadd.f32 %v600, %v621
      %v638 = vadd.f32 %v601, %v621
      %v639 = vadd.f32 %v602, %v621
      %v640 = vadd.f32 %v603, %v621
      %v641 = vadd.f32 %v604, %v621
      %v642 = vadd.f32 %v605, %v621
      %v643 = vadd.f32 %v606, %v621
      %v644 = vadd.f32 %v607, %v621
      %v645 = vadd.f32 %v608, %v621
      %v646 = vadd.f32 %v609, %v621
      %v647 = vadd.f32 %v610, %v621
      %v648 = vadd.f32 %v611, %v621
      %v649 = vadd.f32 %v612, %v621
      %v650 = vadd.f32 %v613, %v621
      %v651 = vadd.f32 %v614, %v621
      %v652 = vadd.f32 %v615, %v621
      %v653 = vmax.f32 %v623, 0.0
      %v654 = vmax.f32 %v624, 0.0
      %v655 = vmax.f32 %v625, 0.0
      %v656 = vmax.f32 %v626, 0.0
      %v657 = vmax.f32 %v627, 0.0
      %v658 = vmax.f32 %v628, 0.0
      %v659 = vmax.f32 %v629, 0.0
      %v660 = vmax.f32 %v630, 0.0
      %v661 = vmax.f32 %v631, 0.0
      %v662 = vmax.f32 %v632, 0.0
      %v663 = vmax.f32 %v633, 0.0
      %v664 = vmax.f32 %v634, 0.0
      %v665 = vmax.f32 %v635, 0.0
      %v666 = vmax.f32 %v636, 0.0
      %v667 = vmax.f32 %v637, 0.0
      %v668 = vmax.f32 %v638, 0.0
      %v669 = vmax.f32 %v639, 0.0
      %v670 = vmax.f32 %v640, 0.0
      %v671 = vmax.f32 %v641, 0.0
      %v672 = vmax.f32 %v642, 0.0
      %v673 = vmax.f32 %v643, 0.0
      %v674 = vmax.f32 %v644, 0.0
      %v675 = vmax.f32 %v645, 0.0
      %v676 = vmax.f32 %v646, 0.0
      %v677 = vmax.f32 %v647, 0.0
      %v678 = vmax.f32 %v648, 0.0
      %v679 = vmax.f32 %v649, 0.0
      %v680 = vmax.f32 %v650, 0.0
      %v681 = vmax.f32 %v651, 0.0
      %v682 = vmax.f32 %v652, 0.0
      %683 = vst [vmem:[%s264] sm:$0xff] %v653
      %684 = vst [vmem:[%s264 + $0x8] sm:$0xff] %v654
      %685 = vst [vmem:[%s264 + $0x10] sm:$0xff] %v655
      %686 = vst [vmem:[%s264 + $0x18] sm:$0xff] %v656
      %687 = vst [vmem:[%s264 + $0x20] sm:$0xff] %v657
      %688 = vst [vmem:[%s264 + $0x28] sm:$0xff] %v658
      %689 = vst [vmem:[%s264 + $0x30] sm:$0xff] %v659
      %690 = vst [vmem:[%s264 + $0x38] sm:$0xff] %v660
      %691 = vst [vmem:[%s264 + $0x40] sm:$0xff] %v661
      %692 = vst [vmem:[%s264 + $0x48] sm:$0xff] %v662
      %693 = vst [vmem:[%s264 + $0x50] sm:$0xff] %v663
      %694 = vst [vmem:[%s264 + $0x58] sm:$0xff] %v664
      %695 = vst [vmem:[%s264 + $0x60] sm:$0xff] %v665
      %696 = vst [vmem:[%s264 + $0x68] sm:$0xff] %v666
      %697 = vst [vmem:[%s264 + $0x70] sm:$0xff] %v667
      %698 = vst [vmem:[%s264 + $0x78] sm:$0xff] %v668
      %699 = vst [vmem:[%s264 + $0x80] sm:$0xff] %v669
      %700 = vst [vmem:[%s264 + $0x88] sm:$0xff] %v670
      %701 = vst [vmem:[%s264 + $0x90] sm:$0xff] %v671
      %702 = vst [vmem:[%s264 + $0x98] sm:$0xff] %v672
      %703 = vst [vmem:[%s264 + $0xa0] sm:$0xff] %v673
      %704 = vst [vmem:[%s264 + $0xa8] sm:$0xff] %v674
      %705 = vst [vmem:[%s264 + $0xb0] sm:$0xff] %v675
      %706 = vst [vmem:[%s264 + $0xb8] sm:$0xff] %v676
      %707 = vst [vmem:[%s264 + $0xc0] sm:$0xff] %v677
      %708 = vst [vmem:[%s264 + $0xc8] sm:$0xff] %v678
      %709 = vst [vmem:[%s264 + $0xd0] sm:$0xff] %v679
      %710 = vst [vmem:[%s264 + $0xd8] sm:$0xff] %v680
      %711 = vst [vmem:[%s264 + $0xe0] sm:$0xff] %v681
      %712 = vst [vmem:[%s264 + $0xe8] sm:$0xff] %v682
      %s713 = smul.u32 30, %s19
      %p714 = scmp.lt.s32.totalorder %s713, 59
      %s715 = scalar_select %p714, %s713, 59
      %p716 = scmp.lt.s32.totalorder %s20, 0
      %s717 = scalar_select %p716, %s20, 0
      %s718 = sadd.s32 %s717, %s715
      %s719 = smul.addr %s718, 8
      %s720 = scalar_lea.vmem %s4, %s719
      // Predicated region
      $region37: #{inception_b_forward.15} parent=35 // pred_check
        %p721 = pneg %p151
      $region38: #{inception_b_forward.15} parent=35 // pred_check_branch
        %723 = sbr.rel (%p721) target = $region40
      $region39: #{inception_b_forward.15} parent=35 // pred_region
        %s724 = smul.u32 30, %s19
      $region40: #{inception_b_forward.15} parent=35 // pred_fallthru
        _
    $region36: #{inception_b_forward.15} parent=5 // pred_fallthru
      _
    %p725 = scmp.le.s32.totalorder 2, %s10
    // Predicated region
    $region41: #{inception_b_forward.15} parent=5 // pred_check
      %p726 = pneg %p725
    $region42: #{inception_b_forward.15} parent=5 // pred_check_branch
      %728 = sbr.rel (%p726) target = $region44
    $region43: #{inception_b_forward.15} parent=5 // pred_region
      %s729 = ssub.s32 %s10, 2
      // Predicated region
      $region45: #{inception_b_forward.15} parent=43 // pred_check
        %p730 = pneg %p157
      $region46: #{inception_b_forward.15} parent=43 // pred_check_branch
        %732 = sbr.rel (%p730) target = $region48
      $region47: #{inception_b_forward.15} parent=43 // pred_region
        %s733 = smul.u32 30, %s21
        %p734 = scmp.lt.s32.totalorder %s733, 59
        %s735 = scalar_select %p734, %s733, 59
        %p736 = scmp.lt.s32.totalorder %s22, 0
        %s737 = scalar_select %p736, %s22, 0
        %s738 = sadd.s32 %s737, %s735
        %s739 = smul.addr %s738, 8
        %s740 = scalar_lea.vmem %s4, %s739
      $region48: #{inception_b_forward.15} parent=43 // pred_fallthru
        _
    $region44: #{inception_b_forward.15} parent=5 // pred_fallthru
      _
  $region6: #{inception_b_forward.15} parent=0 // loop_footer
    %s14 = sadd.s32 1, %s10
  $region7: #{inception_b_forward.15} parent=0 // loop_footer_branch
    %9 = sbr.rel target = $region3
  $region8: #{inception_b_forward.15} parent=0 // loop_exit
    _

// kernel: inception_b_forward.16
$region0: #{inception_b_forward.16}
  #allocation0 [shape = 'u32[]', space=smem, size = 0x4, offset = 0x4, fixed_abs, tag = 'smem constant byte address 0x4 - core index']
  #allocation1 [shape = 'u32[144,128]{1,0:T(1,128)}', space=vmem, size = 0x12000, scoped, tag = 'internal scratch']
  %s0 = inlined_call_operand.vmem [shape: bf16[256,32], index: 0, kind: input, shape index: {}]
  %s1 = inlined_call_operand.vmem [shape: bf16[32,128], index: 1, kind: input, shape index: {}]
  %s2 = inlined_call_operand.vmem [shape: f32[1,128], index: 2, kind: input, shape index: {}]
  %s3 = inlined_call_operand.vmem [shape: f32[1,128], index: 3, kind: input, shape index: {}]
  %s4 = inlined_call_operand.vmem [shape: f32[256,128], index: 4, kind: output, shape index: {}]
  %s5 = sld [smem:[#allocation0]]
  $region49: #{inception_b_forward.16} parent=0
    _
  %s7 = ssub.s32 1, %s5
  %s8 = scalar_select 0, %s7, %s5
  loop: start=0, step=1, limit=4
  $region2: #{inception_b_forward.16} parent=0 // loop_pre_header
    _
  $region3: #{inception_b_forward.16} parent=0 // loop_header
    %s10 = sphi 0, %s14
    %p11 = scmp.ge.s32.totalorder %s10, 4
    %s17 = sphi 0, %s29
    %s18 = sphi 0, %s25
    %s19 = sphi 0, %s17
    %s20 = sphi 0, %s18
    %s21 = sphi 0, %s19
    %s22 = sphi 0, %s20
    %s32 = sphi 0, %s34
    %s35 = sphi 0, %s32
    %s36 = sphi 0, %s35
    %s52 = sphi 0, %s36
    %s58 = sphi 0, %s60
    %s61 = sphi 0, %s58
    %s62 = sphi 0, %s61
    %s78 = sphi 0, %s62
    %s84 = sphi 0, %s86
    %s87 = sphi 0, %s84
    %s88 = sphi 0, %s87
    %s104 = sphi 0, %s88
    %s110 = sphi 0, %s112
    %s113 = sphi 0, %s110
    %s114 = sphi 0, %s113
    %s130 = sphi 0, %s114
    %s138 = sphi 0, %s140
    %s141 = sphi 0, %s138
    %s142 = sphi 0, %s141
    %s158 = sphi 0, %s142
  $region4: #{inception_b_forward.16} parent=0 // loop_header_branch
    %13 = sbr.rel (%p11) target = $region8
  $region5: #{inception_b_forward.16} parent=0 // loop_body
    %s15 = ssub.s32 %s10, 1
    %s16 = ssub.s32 %s10, 2
    %s23 = sadd.s32 1, %s18
    %p24 = scmp.ge.s32.totalorder %s23, 1
    %s25 = scalar_select %p24, 0, %s23
    %s26 = sadd.s32 1, %s17
    %s27 = scalar_select %p24, %s26, %s17
    %p28 = scmp.ge.s32.totalorder %s27, 2
    %s29 = scalar_select %p28, 0, %s27
    %s30 = ssub.s32 %s17, %s29
    %p31 = scmp.eq.s32.totalorder %s30, 0
    %s33 = sadd.s32 %s32, 1
    %s34 = scalar_select %p31, %s32, %s33
    %p37 = pneg %p31
    %p38 = scmp.eq.s32.totalorder %s10, 1
    %p39 = por %p37, %p38
    %p40 = scmp.ne.s32.totalorder %s32, %s35
    %p41 = scmp.eq.s32.totalorder %s10, 0
    %p42 = por %p40, %p41
    %p43 = scmp.ne.s32.totalorder %s32, %s35
    %p44 = scmp.eq.s32.totalorder %s15, 1
    %p45 = por %p43, %p44
    %p46 = scmp.ne.s32.totalorder %s35, %s36
    %p47 = scmp.eq.s32.totalorder %s15, 0
    %p48 = por %p46, %p47
    %p49 = scmp.ne.s32.totalorder %s35, %s36
    %p50 = scmp.eq.s32.totalorder %s16, 1
    %p51 = por %p49, %p50
    %p53 = scmp.ne.s32.totalorder %s36, %s52
    %p54 = scmp.eq.s32.totalorder %s16, 0
    %p55 = por %p53, %p54
    %s56 = ssub.s32 %s18, %s25
    %p57 = scmp.eq.s32.totalorder %s56, 0
    %s59 = sadd.s32 %s58, 1
    %s60 = scalar_select %p57, %s58, %s59
    %p63 = pneg %p57
    %p64 = scmp.eq.s32.totalorder %s10, 1
    %p65 = por %p63, %p64
    %p66 = scmp.ne.s32.totalorder %s58, %s61
    %p67 = scmp.eq.s32.totalorder %s10, 0
    %p68 = por %p66, %p67
    %p69 = scmp.ne.s32.totalorder %s58, %s61
    %p70 = scmp.eq.s32.totalorder %s15, 1
    %p71 = por %p69, %p70
    %p72 = scmp.ne.s32.totalorder %s61, %s62
    %p73 = scmp.eq.s32.totalorder %s15, 0
    %p74 = por %p72, %p73
    %p75 = scmp.ne.s32.totalorder %s61, %s62
    %p76 = scmp.eq.s32.totalorder %s16, 1
    %p77 = por %p75, %p76
    %p79 = scmp.ne.s32.totalorder %s62, %s78
    %p80 = scmp.eq.s32.totalorder %s16, 0
    %p81 = por %p79, %p80
    %s82 = ssub.s32 %s18, %s25
    %p83 = scmp.eq.s32.totalorder %s82, 0
    %s85 = sadd.s32 %s84, 1
    %s86 = scalar_select %p83, %s84, %s85
    %p89 = pneg %p83
    %p90 = scmp.eq.s32.totalorder %s10, 1
    %p91 = por %p89, %p90
    %p92 = scmp.ne.s32.totalorder %s84, %s87
    %p93 = scmp.eq.s32.totalorder %s10, 0
    %p94 = por %p92, %p93
    %p95 = scmp.ne.s32.totalorder %s84, %s87
    %p96 = scmp.eq.s32.totalorder %s15, 1
    %p97 = por %p95, %p96
    %p98 = scmp.ne.s32.totalorder %s87, %s88
    %p99 = scmp.eq.s32.totalorder %s15, 0
    %p100 = por %p98, %p99
    %p101 = scmp.ne.s32.totalorder %s87, %s88
    %p102 = scmp.eq.s32.totalorder %s16, 1
    %p103 = por %p101, %p102
    %p105 = scmp.ne.s32.totalorder %s88, %s104
    %p106 = scmp.eq.s32.totalorder %s16, 0
    %p107 = por %p105, %p106
    %s108 = ssub.s32 %s18, %s25
    %p109 = scmp.eq.s32.totalorder %s108, 0
    %s111 = sadd.s32 %s110, 1
    %s112 = scalar_select %p109, %s110, %s111
    %p115 = pneg %p109
    %p116 = scmp.eq.s32.totalorder %s10, 1
    %p117 = por %p115, %p116
    %p118 = scmp.ne.s32.totalorder %s110, %s113
    %p119 = scmp.eq.s32.totalorder %s10, 0
    %p120 = por %p118, %p119
    %p121 = scmp.ne.s32.totalorder %s110, %s113
    %p122 = scmp.eq.s32.totalorder %s15, 1
    %p123 = por %p121, %p122
    %p124 = scmp.ne.s32.totalorder %s113, %s114
    %p125 = scmp.eq.s32.totalorder %s15, 0
    %p126 = por %p124, %p125
    %p127 = scmp.ne.s32.totalorder %s113, %s114
    %p128 = scmp.eq.s32.totalorder %s16, 1
    %p129 = por %p127, %p128
    %p131 = scmp.ne.s32.totalorder %s114, %s130
    %p132 = scmp.eq.s32.totalorder %s16, 0
    %p133 = por %p131, %p132
    %s134 = ssub.s32 %s17, %s29
    %s135 = ssub.s32 %s18, %s25
    %s136 = sor.u32 %s134, %s135
    %p137 = scmp.eq.s32.totalorder %s136, 0
    %s139 = sadd.s32 %s138, 1
    %s140 = scalar_select %p137, %s138, %s139
    %p143 = pneg %p137
    %p144 = scmp.eq.s32.totalorder %s10, 1
    %p145 = por %p143, %p144
    %p146 = scmp.ne.s32.totalorder %s138, %s141
    %p147 = scmp.eq.s32.totalorder %s10, 0
    %p148 = por %p146, %p147
    %p149 = scmp.ne.s32.totalorder %s138, %s141
    %p150 = scmp.eq.s32.totalorder %s15, 1
    %p151 = por %p149, %p150
    %p152 = scmp.ne.s32.totalorder %s141, %s142
    %p153 = scmp.eq.s32.totalorder %s15, 0
    %p154 = por %p152, %p153
    %p155 = scmp.ne.s32.totalorder %s141, %s142
    %p156 = scmp.eq.s32.totalorder %s16, 1
    %p157 = por %p155, %p156
    %p159 = scmp.ne.s32.totalorder %s142, %s158
    %p160 = scmp.eq.s32.totalorder %s16, 0
    %p161 = por %p159, %p160
    %p162 = scmp.le.s32.totalorder 1, %s10
    %p163 = scmp.lt.s32.totalorder %s10, 3
    %p164 = pnand %p162, %p163
    %p165 = pneg %p164
    // Predicated region
    $region9: #{inception_b_forward.16} parent=5 // pred_check
      _
    $region10: #{inception_b_forward.16} parent=5 // pred_check_branch
      %167 = sbr.rel (%p164) target = $region12
    $region11: #{inception_b_forward.16} parent=5 // pred_region
      %s168 = ssub.s32 %s10, 1
      // Predicated region
      $region13: #{inception_b_forward.16} parent=11 // pred_check
        %p169 = pneg %p74
      $region14: #{inception_b_forward.16} parent=11 // pred_check_branch
        %171 = sbr.rel (%p169) target = $region16
      $region15: #{inception_b_forward.16} parent=11 // pred_region
        %p172 = scmp.lt.s32.totalorder %s20, 0
        %s173 = scalar_select %p172, %s20, 0
        %s174 = smul.addr %s173, 4
        %s175 = scalar_lea.vmem %s1, %s174
      $region16: #{inception_b_forward.16} parent=11 // pred_fallthru
        _
      // Predicated region
      $region17: #{inception_b_forward.16} parent=11 // pred_check
        %p176 = pneg %p100
      $region18: #{inception_b_forward.16} parent=11 // pred_check_branch
        %178 = sbr.rel (%p176) target = $region20
      $region19: #{inception_b_forward.16} parent=11 // pred_region
        %p179 = scmp.lt.s32.totalorder %s20, 0
        %s180 = scalar_select %p179, %s20, 0
        %s181 = scalar_lea.vmem %s2, %s180
      $region20: #{inception_b_forward.16} parent=11 // pred_fallthru
        _
      // Predicated region
      $region21: #{inception_b_forward.16} parent=11 // pred_check
        %p182 = pneg %p126
      $region22: #{inception_b_forward.16} parent=11 // pred_check_branch
        %184 = sbr.rel (%p182) target = $region24
      $region23: #{inception_b_forward.16} parent=11 // pred_region
        %p185 = scmp.lt.s32.totalorder %s20, 0
        %s186 = scalar_select %p185, %s20, 0
        %s187 = scalar_lea.vmem %s3, %s186
      $region24: #{inception_b_forward.16} parent=11 // pred_fallthru
        _
    $region12: #{inception_b_forward.16} parent=5 // pred_fallthru
      _
    %p188 = scmp.lt.s32.totalorder %s10, 2
    // Predicated region
    $region25: #{inception_b_forward.16} parent=5 // pred_check
      %p189 = pneg %p188
    $region26: #{inception_b_forward.16} parent=5 // pred_check_branch
      %191 = sbr.rel (%p189) target = $region28
    $region27: #{inception_b_forward.16} parent=5 // pred_region
      // Predicated region
      $region29: #{inception_b_forward.16} parent=27 // pred_check
        %p192 = pneg %p42
      $region30: #{inception_b_forward.16} parent=27 // pred_check_branch
        %194 = sbr.rel (%p192) target = $region32
      $region31: #{inception_b_forward.16} parent=27 // pred_region
        %s195 = smul.u32 16, %s17
        %p196 = scmp.lt.s32.totalorder %s195, 31
        %s197 = scalar_select %p196, %s195, 31
        %s198 = smul.addr %s197, 4
        %s199 = scalar_lea.vmem %s0, %s198
        %s200 = smul.u32 16, %s17
      $region32: #{inception_b_forward.16} parent=27 // pred_fallthru
        _
    $region28: #{inception_b_forward.16} parent=5 // pred_fallthru
      _
    %p201 = scmp.le.s32.totalorder 1, %s10
    %p202 = scmp.lt.s32.totalorder %s10, 3
    %p203 = pnand %p201, %p202
    %p204 = pneg %p203
    // Predicated region
    $region33: #{inception_b_forward.16} parent=5 // pred_check
      _
    $region34: #{inception_b_forward.16} parent=5 // pred_check_branch
      %206 = sbr.rel (%p203) target = $region36
    $region35: #{inception_b_forward.16} parent=5 // pred_region
      %s207 = ssub.s32 %s10, 1
      %s208 = smul.u32 16, %s19
      %p209 = scmp.lt.s32.totalorder %s208, 31
      %s210 = scalar_select %p209, %s208, 31
      %s211 = smul.addr %s210, 4
      %s212 = scalar_lea.vmem %s0, %s211
      %p213 = pneg %p48
      %p214 = pneg %p45
      %p215 = scmp.lt.s32.totalorder %s20, 0
      %s216 = scalar_select %p215, %s20, 0
      %s217 = smul.addr %s216, 4
      %s218 = scalar_lea.vmem %s1, %s217
      %p219 = pneg %p74
      %p220 = pneg %p71
      %p221 = scmp.lt.s32.totalorder %s20, 0
      %s222 = scalar_select %p221, %s20, 0
      %s223 = scalar_lea.vmem %s2, %s222
      %p224 = pneg %p100
      %p225 = pneg %p97
      %p226 = scmp.lt.s32.totalorder %s20, 0
      %s227 = scalar_select %p226, %s20, 0
      %s228 = scalar_lea.vmem %s3, %s227
      %p229 = pneg %p126
      %p230 = pneg %p123
      %p231 = pneg %p154
      %p232 = pneg %p151
      %s233 = smul.u32 16, %s19
      %p234 = scmp.lt.s32.totalorder %s233, 31
      %s235 = scalar_select %p234, %s233, 31
      %p236 = scmp.lt.s32.totalorder %s20, 0
      %s237 = scalar_select %p236, %s20, 0
      %s238 = sadd.s32 %s237, %s235
      %s239 = smul.addr %s238, 8
      %s240 = scalar_lea.vmem %s4, %s239
      %s241 = smul.u32 16, %s19
      %p242 = scmp.lt.s32.totalorder %s241, 31
      %s243 = scalar_select %p242, %s241, 31
      %s244 = smul.addr %s243, 4
      %s245 = scalar_lea.vmem %s0, %s244
      %s246 = smul.u32 16, %s19
      %p247 = scmp.lt.s32.totalorder %s20, 0
      %s248 = scalar_select %p247, %s20, 0
      %s249 = smul.addr %s248, 4
      %s250 = scalar_lea.vmem %s1, %s249
      %p251 = scmp.lt.s32.totalorder %s20, 0
      %s252 = scalar_select %p251, %s20, 0
      %s253 = scalar_lea.vmem %s2, %s252
      %p254 = scmp.lt.s32.totalorder %s20, 0
      %s255 = scalar_select %p254, %s20, 0
      %s256 = scalar_lea.vmem %s3, %s255
      %s257 = smul.u32 16, %s19
      %p258 = scmp.lt.s32.totalorder %s257, 31
      %s259 = scalar_select %p258, %s257, 31
      %p260 = scmp.lt.s32.totalorder %s20, 0
      %s261 = scalar_select %p260, %s20, 0
      %s262 = sadd.s32 %s261, %s259
      %s263 = smul.addr %s262, 8
      %s264 = scalar_lea.vmem %s4, %s263
      %s265 = smul.u32 16, %s19
      %v267 = vld [vmem:[%s245] sm:$0xf]
      %v268 = vld [vmem:[%s245 + $0x4] sm:$0xf]
      %v269 = vld [vmem:[%s245 + $0x8] sm:$0xf]
      %v270 = vld [vmem:[%s245 + $0xc] sm:$0xf]
      %v271 = vld [vmem:[%s245 + $0x10] sm:$0xf]
      %v272 = vld [vmem:[%s245 + $0x14] sm:$0xf]
      %v273 = vld [vmem:[%s245 + $0x18] sm:$0xf]
      %v274 = vld [vmem:[%s245 + $0x1c] sm:$0xf]
      %v275 = vld [vmem:[%s245 + $0x20] sm:$0xf]
      %v276 = vld [vmem:[%s245 + $0x24] sm:$0xf]
      %v277 = vld [vmem:[%s245 + $0x28] sm:$0xf]
      %v278 = vld [vmem:[%s245 + $0x2c] sm:$0xf]
      %v279 = vld [vmem:[%s245 + $0x30] sm:$0xf]
      %v280 = vld [vmem:[%s245 + $0x34] sm:$0xf]
      %v281 = vld [vmem:[%s245 + $0x38] sm:$0xf]
      %v282 = vld [vmem:[%s245 + $0x3c] sm:$0xf]
      %v283 = vld [vmem:[%s250] sm:$0xf]
      %v284 = vld [vmem:[%s250 + $0x4] sm:$0xf]
      %v285 = vld [vmem:[%s250 + $0x8] sm:$0xf]
      %v286 = vld [vmem:[%s250 + $0xc] sm:$0xf]
      %v303 = vunpack.c.l.b16 %v267
      %v304 = vunpack.c.l.b16 %v268
      %v305 = vunpack.c.l.b16 %v269
      %v306 = vunpack.c.l.b16 %v270
      %v307 = vunpack.c.l.b16 %v271
      %v308 = vunpack.c.l.b16 %v272
      %v309 = vunpack.c.l.b16 %v273
      %v310 = vunpack.c.l.b16 %v274
      %v311 = vunpack.c.l.b16 %v275
      %v312 = vunpack.c.l.b16 %v276
      %v313 = vunpack.c.l.b16 %v277
      %v314 = vunpack.c.l.b16 %v278
      %v315 = vunpack.c.l.b16 %v279
      %v316 = vunpack.c.l.b16 %v280
      %v317 = vunpack.c.l.b16 %v281
      %v318 = vunpack.c.l.b16 %v282
      %v319 = vpack.c.b16 %v304, %v303
      %v320 = vpack.c.b16 %v306, %v305
      %v321 = vpack.c.b16 %v308, %v307
      %v322 = vpack.c.b16 %v310, %v309
      %v323 = vpack.c.b16 %v312, %v311
      %v324 = vpack.c.b16 %v314, %v313
      %v325 = vpack.c.b16 %v316, %v315
      %v326 = vpack.c.b16 %v318, %v317
      %v331 = vunpack.c.l.b16 %v283
      %v332 = vunpack.c.l.b16 %v284
      %v333 = vunpack.c.l.b16 %v285
      %v334 = vunpack.c.l.b16 %v286
      %v335 = vpack.c.b16 %v332, %v331
      %v336 = vpack.c.b16 %v334, %v333
      %vm339 = vcmask 261120
      %v341 = vsel %vm339, %v319, 0
      %v344 = vsel %vm339, %v320, 0
      %v347 = vsel %vm339, %v321, 0
      %v350 = vsel %vm339, %v322, 0
      %v353 = vsel %vm339, %v323, 0
      %v356 = vsel %vm339, %v324, 0
      %v359 = vsel %vm339, %v325, 0
      %v362 = vsel %vm339, %v326, 0
      %364 = vmatprep.subr.bf16.mxu0 0
      %365 = vmatpush1.bf16.msra.mxu0 %v335
      %366 = vmatprep.subr.bf16.mxu0 0
      %367 = vmatpush1.bf16.msra.mxu0 %v336
      %368 = vmatprep.subr.bf16.mxu0 0
      %369 = vmatpush1.bf16.msra.mxu0 0
      %370 = vmatprep.subr.bf16.mxu0 0
      %371 = vmatpush1.bf16.msra.mxu0 0
      %372 = vmatprep.subr.bf16.mxu0 0
      %373 = vmatpush1.bf16.msra.mxu0 0
      %374 = vmatprep.subr.bf16.mxu0 0
      %375 = vmatpush1.bf16.msra.mxu0 0
      %376 = vmatprep.subr.bf16.mxu0 0
      %377 = vmatpush1.bf16.msra.mxu0 0
      %378 = vmatprep.subr.bf16.mxu0 0
      %379 = vmatpush1.bf16.msra.mxu0 0
      %380 = vmatprep.subr.bf16.mxu0 0
      %381 = vmatpush1.bf16.msra.mxu0 0
      %382 = vmatprep.subr.bf16.mxu0 0
      %383 = vmatpush1.bf16.msra.mxu0 0
      %384 = vmatprep.subr.bf16.mxu0 0
      %385 = vmatpush1.bf16.msra.mxu0 0
      %386 = vmatprep.subr.bf16.mxu0 0
      %387 = vmatpush1.bf16.msra.mxu0 0
      %388 = vmatprep.subr.bf16.mxu0 0
      %389 = vmatpush1.bf16.msra.mxu0 0
      %390 = vmatprep.subr.bf16.mxu0 0
      %391 = vmatpush1.bf16.msra.mxu0 0
      %392 = vmatprep.subr.bf16.mxu0 0
      %393 = vmatpush1.bf16.msra.mxu0 0
      %394 = vmatprep.subr.bf16.mxu0 0
      %395 = vmatpush1.bf16.msra.mxu0 0
      %396 = vmatprep.mubr.bf16.mxu0 0
      %397 = vmatmul.mubr.bf16.gmra.mrb[0].mxu0 %v341
      %v398 = vpop.f32.mrb[0].mxu0
      %v399 = vadd.f32 0.0, %v398
      %v400 = vpop.f32.mrb[0].mxu0
      %v401 = vpop.f32.mrb[0].mxu0
      %v402 = vadd.f32 0.0, %v401
      %v403 = vpop.f32.mrb[0].mxu0
      %404 = vmatprep.mubr.bf16.mxu0 0
      %405 = vmatmul.mubr.bf16.gmra.mrb[0].mxu0 %v344
      %v406 = vpop.f32.mrb[0].mxu0
      %v407 = vadd.f32 0.0, %v406
      %v408 = vpop.f32.mrb[0].mxu0
      %v409 = vpop.f32.mrb[0].mxu0
      %v410 = vadd.f32 0.0, %v409
      %v411 = vpop.f32.mrb[0].mxu0
      %412 = vmatprep.mubr.bf16.mxu0 0
      %413 = vmatmul.mubr.bf16.gmra.mrb[0].mxu0 %v347
      %v414 = vpop.f32.mrb[0].mxu0
      %v415 = vadd.f32 0.0, %v414
      %v416 = vpop.f32.mrb[0].mxu0
      %v417 = vpop.f32.mrb[0].mxu0
      %v418 = vadd.f32 0.0, %v417
      %v419 = vpop.f32.mrb[0].mxu0
      %420 = vmatprep.mubr.bf16.mxu0 0
      %421 = vmatmul.mubr.bf16.gmra.mrb[0].mxu0 %v350
      %v422 = vpop.f32.mrb[0].mxu0
      %v423 = vadd.f32 0.0, %v422
      %v424 = vpop.f32.mrb[0].mxu0
      %v425 = vpop.f32.mrb[0].mxu0
      %v426 = vadd.f32 0.0, %v425
      %v427 = vpop.f32.mrb[0].mxu0
      %428 = vmatprep.mubr.bf16.mxu0 0
      %429 = vmatmul.mubr.bf16.gmra.mrb[0].mxu0 %v353
      %v430 = vpop.f32.mrb[0].mxu0
      %v431 = vadd.f32 0.0, %v430
      %v432 = vpop.f32.mrb[0].mxu0
      %v433 = vpop.f32.mrb[0].mxu0
      %v434 = vadd.f32 0.0, %v433
      %v435 = vpop.f32.mrb[0].mxu0
      %436 = vmatprep.mubr.bf16.mxu0 0
      %437 = vmatmul.mubr.bf16.gmra.mrb[0].mxu0 %v356
      %v438 = vpop.f32.mrb[0].mxu0
      %v439 = vadd.f32 0.0, %v438
      %v440 = vpop.f32.mrb[0].mxu0
      %v441 = vpop.f32.mrb[0].mxu0
      %v442 = vadd.f32 0.0, %v441
      %v443 = vpop.f32.mrb[0].mxu0
      %444 = vmatprep.mubr.bf16.mxu0 0
      %445 = vmatmul.mubr.bf16.gmra.mrb[0].mxu0 %v359
      %v446 = vpop.f32.mrb[0].mxu0
      %v447 = vadd.f32 0.0, %v446
      %v448 = vpop.f32.mrb[0].mxu0
      %v449 = vpop.f32.mrb[0].mxu0
      %v450 = vadd.f32 0.0, %v449
      %v451 = vpop.f32.mrb[0].mxu0
      %452 = vmatprep.mubr.bf16.mxu0 0
      %453 = vmatmul.mubr.bf16.gmra.mrb[0].mxu0 %v362
      %v454 = vpop.f32.mrb[0].mxu0
      %v455 = vadd.f32 0.0, %v454
      %v456 = vpop.f32.mrb[0].mxu0
      %v457 = vpop.f32.mrb[0].mxu0
      %v458 = vadd.f32 0.0, %v457
      %v459 = vpop.f32.mrb[0].mxu0
      %460 = vdwg.mxu0
      %v461 = vld [vmem:[%s253] sm:$0x1]
      %v463 = vlaneseq
      %v464 = vshrl.u32 %v463, 7
      %v465 = vsub.s32 0, %v464
      %v466 = vrot.slane %v461, %v465
      %v468 = vmul.f32 %v399, %v466
      %v469 = vmul.f32 %v402, %v466
      %v470 = vmul.f32 %v407, %v466
      %v471 = vmul.f32 %v410, %v466
      %v472 = vmul.f32 %v415, %v466
      %v473 = vmul.f32 %v418, %v466
      %v474 = vmul.f32 %v423, %v466
      %v475 = vmul.f32 %v426, %v466
      %v476 = vmul.f32 %v431, %v466
      %v477 = vmul.f32 %v434, %v466
      %v478 = vmul.f32 %v439, %v466
      %v479 = vmul.f32 %v442, %v466
      %v480 = vmul.f32 %v447, %v466
      %v481 = vmul.f32 %v450, %v466
      %v482 = vmul.f32 %v455, %v466
      %v483 = vmul.f32 %v458, %v466
      %v484 = vld [vmem:[%s256] sm:$0x1]
      %v486 = vlaneseq
      %v487 = vshrl.u32 %v486, 7
      %v488 = vsub.s32 0, %v487
      %v489 = vrot.slane %v484, %v488
      %v491 = vadd.f32 %v468, %v489
      %v492 = vadd.f32 %v469, %v489
      %v493 = vadd.f32 %v470, %v489
      %v494 = vadd.f32 %v471, %v489
      %v495 = vadd.f32 %v472, %v489
      %v496 = vadd.f32 %v473, %v489
      %v497 = vadd.f32 %v474, %v489
      %v498 = vadd.f32 %v475, %v489
      %v499 = vadd.f32 %v476, %v489
      %v500 = vadd.f32 %v477, %v489
      %v501 = vadd.f32 %v478, %v489
      %v502 = vadd.f32 %v479, %v489
      %v503 = vadd.f32 %v480, %v489
      %v504 = vadd.f32 %v481, %v489
      %v505 = vadd.f32 %v482, %v489
      %v506 = vadd.f32 %v483, %v489
      %v507 = vmax.f32 %v491, 0.0
      %v508 = vmax.f32 %v492, 0.0
      %v509 = vmax.f32 %v493, 0.0
      %v510 = vmax.f32 %v494, 0.0
      %v511 = vmax.f32 %v495, 0.0
      %v512 = vmax.f32 %v496, 0.0
      %v513 = vmax.f32 %v497, 0.0
      %v514 = vmax.f32 %v498, 0.0
      %v515 = vmax.f32 %v499, 0.0
      %v516 = vmax.f32 %v500, 0.0
      %v517 = vmax.f32 %v501, 0.0
      %v518 = vmax.f32 %v502, 0.0
      %v519 = vmax.f32 %v503, 0.0
      %v520 = vmax.f32 %v504, 0.0
      %v521 = vmax.f32 %v505, 0.0
      %v522 = vmax.f32 %v506, 0.0
      %523 = vst [vmem:[%s264] sm:$0xff] %v507
      %524 = vst [vmem:[%s264 + $0x8] sm:$0xff] %v508
      %525 = vst [vmem:[%s264 + $0x10] sm:$0xff] %v509
      %526 = vst [vmem:[%s264 + $0x18] sm:$0xff] %v510
      %527 = vst [vmem:[%s264 + $0x20] sm:$0xff] %v511
      %528 = vst [vmem:[%s264 + $0x28] sm:$0xff] %v512
      %529 = vst [vmem:[%s264 + $0x30] sm:$0xff] %v513
      %530 = vst [vmem:[%s264 + $0x38] sm:$0xff] %v514
      %531 = vst [vmem:[%s264 + $0x40] sm:$0xff] %v515
      %532 = vst [vmem:[%s264 + $0x48] sm:$0xff] %v516
      %533 = vst [vmem:[%s264 + $0x50] sm:$0xff] %v517
      %534 = vst [vmem:[%s264 + $0x58] sm:$0xff] %v518
      %535 = vst [vmem:[%s264 + $0x60] sm:$0xff] %v519
      %536 = vst [vmem:[%s264 + $0x68] sm:$0xff] %v520
      %537 = vst [vmem:[%s264 + $0x70] sm:$0xff] %v521
      %538 = vst [vmem:[%s264 + $0x78] sm:$0xff] %v522
      %s539 = smul.u32 16, %s19
      %p540 = scmp.lt.s32.totalorder %s539, 31
      %s541 = scalar_select %p540, %s539, 31
      %p542 = scmp.lt.s32.totalorder %s20, 0
      %s543 = scalar_select %p542, %s20, 0
      %s544 = sadd.s32 %s543, %s541
      %s545 = smul.addr %s544, 8
      %s546 = scalar_lea.vmem %s4, %s545
      // Predicated region
      $region37: #{inception_b_forward.16} parent=35 // pred_check
        %p547 = pneg %p151
      $region38: #{inception_b_forward.16} parent=35 // pred_check_branch
        %549 = sbr.rel (%p547) target = $region40
      $region39: #{inception_b_forward.16} parent=35 // pred_region
        %s550 = smul.u32 16, %s19
      $region40: #{inception_b_forward.16} parent=35 // pred_fallthru
        _
    $region36: #{inception_b_forward.16} parent=5 // pred_fallthru
      _
    %p551 = scmp.le.s32.totalorder 2, %s10
    // Predicated region
    $region41: #{inception_b_forward.16} parent=5 // pred_check
      %p552 = pneg %p551
    $region42: #{inception_b_forward.16} parent=5 // pred_check_branch
      %554 = sbr.rel (%p552) target = $region44
    $region43: #{inception_b_forward.16} parent=5 // pred_region
      %s555 = ssub.s32 %s10, 2
      // Predicated region
      $region45: #{inception_b_forward.16} parent=43 // pred_check
        %p556 = pneg %p157
      $region46: #{inception_b_forward.16} parent=43 // pred_check_branch
        %558 = sbr.rel (%p556) target = $region48
      $region47: #{inception_b_forward.16} parent=43 // pred_region
        %s559 = smul.u32 16, %s21
        %p560 = scmp.lt.s32.totalorder %s559, 31
        %s561 = scalar_select %p560, %s559, 31
        %p562 = scmp.lt.s32.totalorder %s22, 0
        %s563 = scalar_select %p562, %s22, 0
        %s564 = sadd.s32 %s563, %s561
        %s565 = smul.addr %s564, 8
        %s566 = scalar_lea.vmem %s4, %s565
      $region48: #{inception_b_forward.16} parent=43 // pred_fallthru
        _
    $region44: #{inception_b_forward.16} parent=5 // pred_fallthru
      _
  $region6: #{inception_b_forward.16} parent=0 // loop_footer
    %s14 = sadd.s32 1, %s10
  $region7: #{inception_b_forward.16} parent=0 // loop_footer_branch
    %9 = sbr.rel target = $region3
  $region8: #{inception_b_forward.16} parent=0 // loop_exit
    _

// kernel: reverse.5
$region0: #{reverse.5}
  #allocation0 [shape = 's32[1]{0}', space=sflag, size = 0x4, scoped, tag = 'scoped memory for reverse.5']
  %s0 = inlined_call_operand.vmem [shape: f32[2,16,15,7], index: 0, kind: input, shape index: {}]
  %s1 = inlined_call_operand.vmem [shape: f32[2,16,15,7], index: 1, kind: output, shape index: {}]
  %s2 = scalar_lea.vmem %s0, 96
  %v3 = vld [vmem:[%s2] sm:$0xff]
  %4 = vst [vmem:[%s1] sm:$0xff] %v3
  %s5 = scalar_lea.vmem %s0, 208
  %v6 = vld [vmem:[%s5] sm:$0xff]
  %s7 = scalar_lea.vmem %s1, 112
  %8 = vst [vmem:[%s7] sm:$0xff] %v6
  %s9 = scalar_lea.vmem %s0, 80
  %v10 = vld [vmem:[%s9] sm:$0xff]
  %s11 = scalar_lea.vmem %s1, 16
  %12 = vst [vmem:[%s11] sm:$0xff] %v10
  %s13 = scalar_lea.vmem %s0, 192
  %v14 = vld [vmem:[%s13] sm:$0xff]
  %s15 = scalar_lea.vmem %s1, 128
  %16 = vst [vmem:[%s15] sm:$0xff] %v14
  %s17 = scalar_lea.vmem %s0, 64
  %v18 = vld [vmem:[%s17] sm:$0xff]
  %s19 = scalar_lea.vmem %s1, 32
  %20 = vst [vmem:[%s19] sm:$0xff] %v18
  %s21 = scalar_lea.vmem %s0, 176
  %v22 = vld [vmem:[%s21] sm:$0xff]
  %s23 = scalar_lea.vmem %s1, 144
  %24 = vst [vmem:[%s23] sm:$0xff] %v22
  %s25 = scalar_lea.vmem %s0, 48
  %v26 = vld [vmem:[%s25] sm:$0xff]
  %s27 = scalar_lea.vmem %s1, 48
  %28 = vst [vmem:[%s27] sm:$0xff] %v26
  %s29 = scalar_lea.vmem %s0, 160
  %v30 = vld [vmem:[%s29] sm:$0xff]
  %s31 = scalar_lea.vmem %s1, 160
  %32 = vst [vmem:[%s31] sm:$0xff] %v30
  %s33 = scalar_lea.vmem %s0, 32
  %v34 = vld [vmem:[%s33] sm:$0xff]
  %s35 = scalar_lea.vmem %s1, 64
  %36 = vst [vmem:[%s35] sm:$0xff] %v34
  %s37 = scalar_lea.vmem %s0, 144
  %v38 = vld [vmem:[%s37] sm:$0xff]
  %s39 = scalar_lea.vmem %s1, 176
  %40 = vst [vmem:[%s39] sm:$0xff] %v38
  %s41 = scalar_lea.vmem %s0, 16
  %v42 = vld [vmem:[%s41] sm:$0xff]
  %s43 = scalar_lea.vmem %s1, 80
  %44 = vst [vmem:[%s43] sm:$0xff] %v42
  %s45 = scalar_lea.vmem %s0, 128
  %v46 = vld [vmem:[%s45] sm:$0xff]
  %s47 = scalar_lea.vmem %s1, 192
  %48 = vst [vmem:[%s47] sm:$0xff] %v46
  %v49 = vld [vmem:[%s0] sm:$0xff]
  %s50 = scalar_lea.vmem %s1, 96
  %51 = vst [vmem:[%s50] sm:$0xff] %v49
  %s52 = scalar_lea.vmem %s0, 112
  %v53 = vld [vmem:[%s52] sm:$0xff]
  %s54 = scalar_lea.vmem %s1, 208
  %55 = vst [vmem:[%s54] sm:$0xff] %v53
  %s56 = scalar_lea.vmem %s0, 104
  %v57 = vld [vmem:[%s56] sm:$0xff]
  %s58 = scalar_lea.vmem %s1, 8
  %59 = vst [vmem:[%s58] sm:$0xff] %v57
  %s60 = scalar_lea.vmem %s0, 216
  %v61 = vld [vmem:[%s60] sm:$0xff]
  %s62 = scalar_lea.vmem %s1, 120
  %63 = vst [vmem:[%s62] sm:$0xff] %v61
  %s64 = scalar_lea.vmem %s0, 88
  %v65 = vld [vmem:[%s64] sm:$0xff]
  %s66 = scalar_lea.vmem %s1, 24
  %67 = vst [vmem:[%s66] sm:$0xff] %v65
  %s68 = scalar_lea.vmem %s0, 200
  %v69 = vld [vmem:[%s68] sm:$0xff]
  %s70 = scalar_lea.vmem %s1, 136
  %71 = vst [vmem:[%s70] sm:$0xff] %v69
  %s72 = scalar_lea.vmem %s0, 72
  %v73 = vld [vmem:[%s72] sm:$0xff]
  %s74 = scalar_lea.vmem %s1, 40
  %75 = vst [vmem:[%s74] sm:$0xff] %v73
  %s76 = scalar_lea.vmem %s0, 184
  %v77 = vld [vmem:[%s76] sm:$0xff]
  %s78 = scalar_lea.vmem %s1, 152
  %79 = vst [vmem:[%s78] sm:$0xff] %v77
  %s80 = scalar_lea.vmem %s0, 56
  %v81 = vld [vmem:[%s80] sm:$0xff]
  %s82 = scalar_lea.vmem %s1, 56
  %83 = vst [vmem:[%s82] sm:$0xff] %v81
  %s84 = scalar_lea.vmem %s0, 168
  %v85 = vld [vmem:[%s84] sm:$0xff]
  %s86 = scalar_lea.vmem %s1, 168
  %87 = vst [vmem:[%s86] sm:$0xff] %v85
  %s88 = scalar_lea.vmem %s0, 40
  %v89 = vld [vmem:[%s88] sm:$0xff]
  %s90 = scalar_lea.vmem %s1, 72
  %91 = vst [vmem:[%s90] sm:$0xff] %v89
  %s92 = scalar_lea.vmem %s0, 152
  %v93 = vld [vmem:[%s92] sm:$0xff]
  %s94 = scalar_lea.vmem %s1, 184
  %95 = vst [vmem:[%s94] sm:$0xff] %v93
  %s96 = scalar_lea.vmem %s0, 24
  %v97 = vld [vmem:[%s96] sm:$0xff]
  %s98 = scalar_lea.vmem %s1, 88
  %99 = vst [vmem:[%s98] sm:$0xff] %v97
  %s100 = scalar_lea.vmem %s0, 136
  %v101 = vld [vmem:[%s100] sm:$0xff]
  %s102 = scalar_lea.vmem %s1, 200
  %103 = vst [vmem:[%s102] sm:$0xff] %v101
  %s104 = scalar_lea.vmem %s0, 8
  %v105 = vld [vmem:[%s104] sm:$0xff]
  %s106 = scalar_lea.vmem %s1, 104
  %107 = vst [vmem:[%s106] sm:$0xff] %v105
  %s108 = scalar_lea.vmem %s0, 120
  %v109 = vld [vmem:[%s108] sm:$0xff]
  %s110 = scalar_lea.vmem %s1, 216
  %111 = vst [vmem:[%s110] sm:$0xff] %v109

// kernel: inception_b_forward.17
$region0: #{inception_b_forward.17}
  #allocation0 [shape = 'u32[]', space=smem, size = 0x4, offset = 0x4, fixed_abs, tag = 'smem constant byte address 0x4 - core index']
  #allocation1 [shape = 'u32[144,128]{1,0:T(1,128)}', space=vmem, size = 0x12000, scoped, tag = 'internal scratch']
  %s0 = inlined_call_operand.vmem [shape: bf16[480,32], index: 0, kind: input, shape index: {}]
  %s1 = inlined_call_operand.vmem [shape: bf16[32,128], index: 1, kind: input, shape index: {}]
  %s2 = inlined_call_operand.vmem [shape: f32[1,128], index: 2, kind: input, shape index: {}]
  %s3 = inlined_call_operand.vmem [shape: f32[1,128], index: 3, kind: input, shape index: {}]
  %s4 = inlined_call_operand.vmem [shape: bf16[480,128], index: 4, kind: output, shape index: {}]
  %s5 = sld [smem:[#allocation0]]
  $region49: #{inception_b_forward.17} parent=0
    _
  %s7 = ssub.s32 1, %s5
  %s8 = scalar_select 0, %s7, %s5
  loop: start=0, step=1, limit=4
  $region2: #{inception_b_forward.17} parent=0 // loop_pre_header
    _
  $region3: #{inception_b_forward.17} parent=0 // loop_header
    %s10 = sphi 0, %s14
    %p11 = scmp.ge.s32.totalorder %s10, 4
    %s17 = sphi 0, %s29
    %s18 = sphi 0, %s25
    %s19 = sphi 0, %s17
    %s20 = sphi 0, %s18
    %s21 = sphi 0, %s19
    %s22 = sphi 0, %s20
    %s32 = sphi 0, %s34
    %s35 = sphi 0, %s32
    %s36 = sphi 0, %s35
    %s52 = sphi 0, %s36
    %s58 = sphi 0, %s60
    %s61 = sphi 0, %s58
    %s62 = sphi 0, %s61
    %s78 = sphi 0, %s62
    %s84 = sphi 0, %s86
    %s87 = sphi 0, %s84
    %s88 = sphi 0, %s87
    %s104 = sphi 0, %s88
    %s110 = sphi 0, %s112
    %s113 = sphi 0, %s110
    %s114 = sphi 0, %s113
    %s130 = sphi 0, %s114
    %s138 = sphi 0, %s140
    %s141 = sphi 0, %s138
    %s142 = sphi 0, %s141
    %s158 = sphi 0, %s142
  $region4: #{inception_b_forward.17} parent=0 // loop_header_branch
    %13 = sbr.rel (%p11) target = $region8
  $region5: #{inception_b_forward.17} parent=0 // loop_body
    %s15 = ssub.s32 %s10, 1
    %s16 = ssub.s32 %s10, 2
    %s23 = sadd.s32 1, %s18
    %p24 = scmp.ge.s32.totalorder %s23, 1
    %s25 = scalar_select %p24, 0, %s23
    %s26 = sadd.s32 1, %s17
    %s27 = scalar_select %p24, %s26, %s17
    %p28 = scmp.ge.s32.totalorder %s27, 2
    %s29 = scalar_select %p28, 0, %s27
    %s30 = ssub.s32 %s17, %s29
    %p31 = scmp.eq.s32.totalorder %s30, 0
    %s33 = sadd.s32 %s32, 1
    %s34 = scalar_select %p31, %s32, %s33
    %p37 = pneg %p31
    %p38 = scmp.eq.s32.totalorder %s10, 1
    %p39 = por %p37, %p38
    %p40 = scmp.ne.s32.totalorder %s32, %s35
    %p41 = scmp.eq.s32.totalorder %s10, 0
    %p42 = por %p40, %p41
    %p43 = scmp.ne.s32.totalorder %s32, %s35
    %p44 = scmp.eq.s32.totalorder %s15, 1
    %p45 = por %p43, %p44
    %p46 = scmp.ne.s32.totalorder %s35, %s36
    %p47 = scmp.eq.s32.totalorder %s15, 0
    %p48 = por %p46, %p47
    %p49 = scmp.ne.s32.totalorder %s35, %s36
    %p50 = scmp.eq.s32.totalorder %s16, 1
    %p51 = por %p49, %p50
    %p53 = scmp.ne.s32.totalorder %s36, %s52
    %p54 = scmp.eq.s32.totalorder %s16, 0
    %p55 = por %p53, %p54
    %s56 = ssub.s32 %s18, %s25
    %p57 = scmp.eq.s32.totalorder %s56, 0
    %s59 = sadd.s32 %s58, 1
    %s60 = scalar_select %p57, %s58, %s59
    %p63 = pneg %p57
    %p64 = scmp.eq.s32.totalorder %s10, 1
    %p65 = por %p63, %p64
    %p66 = scmp.ne.s32.totalorder %s58, %s61
    %p67 = scmp.eq.s32.totalorder %s10, 0
    %p68 = por %p66, %p67
    %p69 = scmp.ne.s32.totalorder %s58, %s61
    %p70 = scmp.eq.s32.totalorder %s15, 1
    %p71 = por %p69, %p70
    %p72 = scmp.ne.s32.totalorder %s61, %s62
    %p73 = scmp.eq.s32.totalorder %s15, 0
    %p74 = por %p72, %p73
    %p75 = scmp.ne.s32.totalorder %s61, %s62
    %p76 = scmp.eq.s32.totalorder %s16, 1
    %p77 = por %p75, %p76
    %p79 = scmp.ne.s32.totalorder %s62, %s78
    %p80 = scmp.eq.s32.totalorder %s16, 0
    %p81 = por %p79, %p80
    %s82 = ssub.s32 %s18, %s25
    %p83 = scmp.eq.s32.totalorder %s82, 0
    %s85 = sadd.s32 %s84, 1
    %s86 = scalar_select %p83, %s84, %s85
    %p89 = pneg %p83
    %p90 = scmp.eq.s32.totalorder %s10, 1
    %p91 = por %p89, %p90
    %p92 = scmp.ne.s32.totalorder %s84, %s87
    %p93 = scmp.eq.s32.totalorder %s10, 0
    %p94 = por %p92, %p93
    %p95 = scmp.ne.s32.totalorder %s84, %s87
    %p96 = scmp.eq.s32.totalorder %s15, 1
    %p97 = por %p95, %p96
    %p98 = scmp.ne.s32.totalorder %s87, %s88
    %p99 = scmp.eq.s32.totalorder %s15, 0
    %p100 = por %p98, %p99
    %p101 = scmp.ne.s32.totalorder %s87, %s88
    %p102 = scmp.eq.s32.totalorder %s16, 1
    %p103 = por %p101, %p102
    %p105 = scmp.ne.s32.totalorder %s88, %s104
    %p106 = scmp.eq.s32.totalorder %s16, 0
    %p107 = por %p105, %p106
    %s108 = ssub.s32 %s18, %s25
    %p109 = scmp.eq.s32.totalorder %s108, 0
    %s111 = sadd.s32 %s110, 1
    %s112 = scalar_select %p109, %s110, %s111
    %p115 = pneg %p109
    %p116 = scmp.eq.s32.totalorder %s10, 1
    %p117 = por %p115, %p116
    %p118 = scmp.ne.s32.totalorder %s110, %s113
    %p119 = scmp.eq.s32.totalorder %s10, 0
    %p120 = por %p118, %p119
    %p121 = scmp.ne.s32.totalorder %s110, %s113
    %p122 = scmp.eq.s32.totalorder %s15, 1
    %p123 = por %p121, %p122
    %p124 = scmp.ne.s32.totalorder %s113, %s114
    %p125 = scmp.eq.s32.totalorder %s15, 0
    %p126 = por %p124, %p125
    %p127 = scmp.ne.s32.totalorder %s113, %s114
    %p128 = scmp.eq.s32.totalorder %s16, 1
    %p129 = por %p127, %p128
    %p131 = scmp.ne.s32.totalorder %s114, %s130
    %p132 = scmp.eq.s32.totalorder %s16, 0
    %p133 = por %p131, %p132
    %s134 = ssub.s32 %s17, %s29
    %s135 = ssub.s32 %s18, %s25
    %s136 = sor.u32 %s134, %s135
    %p137 = scmp.eq.s32.totalorder %s136, 0
    %s139 = sadd.s32 %s138, 1
    %s140 = scalar_select %p137, %s138, %s139
    %p143 = pneg %p137
    %p144 = scmp.eq.s32.totalorder %s10, 1
    %p145 = por %p143, %p144
    %p146 = scmp.ne.s32.totalorder %s138, %s141
    %p147 = scmp.eq.s32.totalorder %s10, 0
    %p148 = por %p146, %p147
    %p149 = scmp.ne.s32.totalorder %s138, %s141
    %p150 = scmp.eq.s32.totalorder %s15, 1
    %p151 = por %p149, %p150
    %p152 = scmp.ne.s32.totalorder %s141, %s142
    %p153 = scmp.eq.s32.totalorder %s15, 0
    %p154 = por %p152, %p153
    %p155 = scmp.ne.s32.totalorder %s141, %s142
    %p156 = scmp.eq.s32.totalorder %s16, 1
    %p157 = por %p155, %p156
    %p159 = scmp.ne.s32.totalorder %s142, %s158
    %p160 = scmp.eq.s32.totalorder %s16, 0
    %p161 = por %p159, %p160
    %p162 = scmp.le.s32.totalorder 1, %s10
    %p163 = scmp.lt.s32.totalorder %s10, 3
    %p164 = pnand %p162, %p163
    %p165 = pneg %p164
    // Predicated region
    $region9: #{inception_b_forward.17} parent=5 // pred_check
      _
    $region10: #{inception_b_forward.17} parent=5 // pred_check_branch
      %167 = sbr.rel (%p164) target = $region12
    $region11: #{inception_b_forward.17} parent=5 // pred_region
      %s168 = ssub.s32 %s10, 1
      // Predicated region
      $region13: #{inception_b_forward.17} parent=11 // pred_check
        %p169 = pneg %p74
      $region14: #{inception_b_forward.17} parent=11 // pred_check_branch
        %171 = sbr.rel (%p169) target = $region16
      $region15: #{inception_b_forward.17} parent=11 // pred_region
        %p172 = scmp.lt.s32.totalorder %s20, 0
        %s173 = scalar_select %p172, %s20, 0
        %s174 = smul.addr %s173, 4
        %s175 = scalar_lea.vmem %s1, %s174
      $region16: #{inception_b_forward.17} parent=11 // pred_fallthru
        _
      // Predicated region
      $region17: #{inception_b_forward.17} parent=11 // pred_check
        %p176 = pneg %p100
      $region18: #{inception_b_forward.17} parent=11 // pred_check_branch
        %178 = sbr.rel (%p176) target = $region20
      $region19: #{inception_b_forward.17} parent=11 // pred_region
        %p179 = scmp.lt.s32.totalorder %s20, 0
        %s180 = scalar_select %p179, %s20, 0
        %s181 = scalar_lea.vmem %s2, %s180
      $region20: #{inception_b_forward.17} parent=11 // pred_fallthru
        _
      // Predicated region
      $region21: #{inception_b_forward.17} parent=11 // pred_check
        %p182 = pneg %p126
      $region22: #{inception_b_forward.17} parent=11 // pred_check_branch
        %184 = sbr.rel (%p182) target = $region24
      $region23: #{inception_b_forward.17} parent=11 // pred_region
        %p185 = scmp.lt.s32.totalorder %s20, 0
        %s186 = scalar_select %p185, %s20, 0
        %s187 = scalar_lea.vmem %s3, %s186
      $region24: #{inception_b_forward.17} parent=11 // pred_fallthru
        _
    $region12: #{inception_b_forward.17} parent=5 // pred_fallthru
      _
    %p188 = scmp.lt.s32.totalorder %s10, 2
    // Predicated region
    $region25: #{inception_b_forward.17} parent=5 // pred_check
      %p189 = pneg %p188
    $region26: #{inception_b_forward.17} parent=5 // pred_check_branch
      %191 = sbr.rel (%p189) target = $region28
    $region27: #{inception_b_forward.17} parent=5 // pred_region
      // Predicated region
      $region29: #{inception_b_forward.17} parent=27 // pred_check
        %p192 = pneg %p42
      $region30: #{inception_b_forward.17} parent=27 // pred_check_branch
        %194 = sbr.rel (%p192) target = $region32
      $region31: #{inception_b_forward.17} parent=27 // pred_region
        %s195 = smul.u32 30, %s17
        %p196 = scmp.lt.s32.totalorder %s195, 59
        %s197 = scalar_select %p196, %s195, 59
        %s198 = smul.addr %s197, 4
        %s199 = scalar_lea.vmem %s0, %s198
        %s200 = smul.u32 30, %s17
      $region32: #{inception_b_forward.17} parent=27 // pred_fallthru
        _
    $region28: #{inception_b_forward.17} parent=5 // pred_fallthru
      _
    %p201 = scmp.le.s32.totalorder 1, %s10
    %p202 = scmp.lt.s32.totalorder %s10, 3
    %p203 = pnand %p201, %p202
    %p204 = pneg %p203
    // Predicated region
    $region33: #{inception_b_forward.17} parent=5 // pred_check
      _
    $region34: #{inception_b_forward.17} parent=5 // pred_check_branch
      %206 = sbr.rel (%p203) target = $region36
    $region35: #{inception_b_forward.17} parent=5 // pred_region
      %s207 = ssub.s32 %s10, 1
      %s208 = smul.u32 30, %s19
      %p209 = scmp.lt.s32.totalorder %s208, 59
      %s210 = scalar_select %p209, %s208, 59
      %s211 = smul.addr %s210, 4
      %s212 = scalar_lea.vmem %s0, %s211
      %p213 = pneg %p48
      %p214 = pneg %p45
      %p215 = scmp.lt.s32.totalorder %s20, 0
      %s216 = scalar_select %p215, %s20, 0
      %s217 = smul.addr %s216, 4
      %s218 = scalar_lea.vmem %s1, %s217
      %p219 = pneg %p74
      %p220 = pneg %p71
      %p221 = scmp.lt.s32.totalorder %s20, 0
      %s222 = scalar_select %p221, %s20, 0
      %s223 = scalar_lea.vmem %s2, %s222
      %p224 = pneg %p100
      %p225 = pneg %p97
      %p226 = scmp.lt.s32.totalorder %s20, 0
      %s227 = scalar_select %p226, %s20, 0
      %s228 = scalar_lea.vmem %s3, %s227
      %p229 = pneg %p126
      %p230 = pneg %p123
      %p231 = pneg %p154
      %p232 = pneg %p151
      %s233 = smul.u32 30, %s19
      %p234 = scmp.lt.s32.totalorder %s233, 59
      %s235 = scalar_select %p234, %s233, 59
      %p236 = scmp.lt.s32.totalorder %s20, 0
      %s237 = scalar_select %p236, %s20, 0
      %s238 = sadd.s32 %s237, %s235
      %s239 = smul.addr %s238, 4
      %s240 = scalar_lea.vmem %s4, %s239
      %s241 = smul.u32 30, %s19
      %p242 = scmp.lt.s32.totalorder %s241, 59
      %s243 = scalar_select %p242, %s241, 59
      %s244 = smul.addr %s243, 4
      %s245 = scalar_lea.vmem %s0, %s244
      %s246 = smul.u32 30, %s19
      %p247 = scmp.lt.s32.totalorder %s20, 0
      %s248 = scalar_select %p247, %s20, 0
      %s249 = smul.addr %s248, 4
      %s250 = scalar_lea.vmem %s1, %s249
      %p251 = scmp.lt.s32.totalorder %s20, 0
      %s252 = scalar_select %p251, %s20, 0
      %s253 = scalar_lea.vmem %s2, %s252
      %p254 = scmp.lt.s32.totalorder %s20, 0
      %s255 = scalar_select %p254, %s20, 0
      %s256 = scalar_lea.vmem %s3, %s255
      %s257 = smul.u32 30, %s19
      %p258 = scmp.lt.s32.totalorder %s257, 59
      %s259 = scalar_select %p258, %s257, 59
      %p260 = scmp.lt.s32.totalorder %s20, 0
      %s261 = scalar_select %p260, %s20, 0
      %s262 = sadd.s32 %s261, %s259
      %s263 = smul.addr %s262, 4
      %s264 = scalar_lea.vmem %s4, %s263
      %s265 = smul.u32 30, %s19
      %v267 = vld [vmem:[%s245] sm:$0xf]
      %v268 = vld [vmem:[%s245 + $0x4] sm:$0xf]
      %v269 = vld [vmem:[%s245 + $0x8] sm:$0xf]
      %v270 = vld [vmem:[%s245 + $0xc] sm:$0xf]
      %v271 = vld [vmem:[%s245 + $0x10] sm:$0xf]
      %v272 = vld [vmem:[%s245 + $0x14] sm:$0xf]
      %v273 = vld [vmem:[%s245 + $0x18] sm:$0xf]
      %v274 = vld [vmem:[%s245 + $0x1c] sm:$0xf]
      %v275 = vld [vmem:[%s245 + $0x20] sm:$0xf]
      %v276 = vld [vmem:[%s245 + $0x24] sm:$0xf]
      %v277 = vld [vmem:[%s245 + $0x28] sm:$0xf]
      %v278 = vld [vmem:[%s245 + $0x2c] sm:$0xf]
      %v279 = vld [vmem:[%s245 + $0x30] sm:$0xf]
      %v280 = vld [vmem:[%s245 + $0x34] sm:$0xf]
      %v281 = vld [vmem:[%s245 + $0x38] sm:$0xf]
      %v282 = vld [vmem:[%s245 + $0x3c] sm:$0xf]
      %v283 = vld [vmem:[%s245 + $0x40] sm:$0xf]
      %v284 = vld [vmem:[%s245 + $0x44] sm:$0xf]
      %v285 = vld [vmem:[%s245 + $0x48] sm:$0xf]
      %v286 = vld [vmem:[%s245 + $0x4c] sm:$0xf]
      %v287 = vld [vmem:[%s245 + $0x50] sm:$0xf]
      %v288 = vld [vmem:[%s245 + $0x54] sm:$0xf]
      %v289 = vld [vmem:[%s245 + $0x58] sm:$0xf]
      %v290 = vld [vmem:[%s245 + $0x5c] sm:$0xf]
      %v291 = vld [vmem:[%s245 + $0x60] sm:$0xf]
      %v292 = vld [vmem:[%s245 + $0x64] sm:$0xf]
      %v293 = vld [vmem:[%s245 + $0x68] sm:$0xf]
      %v294 = vld [vmem:[%s245 + $0x6c] sm:$0xf]
      %v295 = vld [vmem:[%s245 + $0x70] sm:$0xf]
      %v296 = vld [vmem:[%s245 + $0x74] sm:$0xf]
      %v297 = vld [vmem:[%s250] sm:$0xf]
      %v298 = vld [vmem:[%s250 + $0x4] sm:$0xf]
      %v299 = vld [vmem:[%s250 + $0x8] sm:$0xf]
      %v300 = vld [vmem:[%s250 + $0xc] sm:$0xf]
      %v331 = vunpack.c.l.b16 %v267
      %v332 = vunpack.c.l.b16 %v268
      %v333 = vunpack.c.l.b16 %v269
      %v334 = vunpack.c.l.b16 %v270
      %v335 = vunpack.c.l.b16 %v271
      %v336 = vunpack.c.l.b16 %v272
      %v337 = vunpack.c.l.b16 %v273
      %v338 = vunpack.c.l.b16 %v274
      %v339 = vunpack.c.l.b16 %v275
      %v340 = vunpack.c.l.b16 %v276
      %v341 = vunpack.c.l.b16 %v277
      %v342 = vunpack.c.l.b16 %v278
      %v343 = vunpack.c.l.b16 %v279
      %v344 = vunpack.c.l.b16 %v280
      %v345 = vunpack.c.l.b16 %v281
      %v346 = vunpack.c.l.b16 %v282
      %v347 = vunpack.c.l.b16 %v283
      %v348 = vunpack.c.l.b16 %v284
      %v349 = vunpack.c.l.b16 %v285
      %v350 = vunpack.c.l.b16 %v286
      %v351 = vunpack.c.l.b16 %v287
      %v352 = vunpack.c.l.b16 %v288
      %v353 = vunpack.c.l.b16 %v289
      %v354 = vunpack.c.l.b16 %v290
      %v355 = vunpack.c.l.b16 %v291
      %v356 = vunpack.c.l.b16 %v292
      %v357 = vunpack.c.l.b16 %v293
      %v358 = vunpack.c.l.b16 %v294
      %v359 = vunpack.c.l.b16 %v295
      %v360 = vunpack.c.l.b16 %v296
      %v361 = vpack.c.b16 %v332, %v331
      %v362 = vpack.c.b16 %v334, %v333
      %v363 = vpack.c.b16 %v336, %v335
      %v364 = vpack.c.b16 %v338, %v337
      %v365 = vpack.c.b16 %v340, %v339
      %v366 = vpack.c.b16 %v342, %v341
      %v367 = vpack.c.b16 %v344, %v343
      %v368 = vpack.c.b16 %v346, %v345
      %v369 = vpack.c.b16 %v348, %v347
      %v370 = vpack.c.b16 %v350, %v349
      %v371 = vpack.c.b16 %v352, %v351
      %v372 = vpack.c.b16 %v354, %v353
      %v373 = vpack.c.b16 %v356, %v355
      %v374 = vpack.c.b16 %v358, %v357
      %v375 = vpack.c.b16 %v360, %v359
      %v380 = vunpack.c.l.b16 %v297
      %v381 = vunpack.c.l.b16 %v298
      %v382 = vunpack.c.l.b16 %v299
      %v383 = vunpack.c.l.b16 %v300
      %v384 = vpack.c.b16 %v381, %v380
      %v385 = vpack.c.b16 %v383, %v382
      %vm388 = vcmask 261120
      %v390 = vsel %vm388, %v361, 0
      %v393 = vsel %vm388, %v362, 0
      %v396 = vsel %vm388, %v363, 0
      %v399 = vsel %vm388, %v364, 0
      %v402 = vsel %vm388, %v365, 0
      %v405 = vsel %vm388, %v366, 0
      %v408 = vsel %vm388, %v367, 0
      %v411 = vsel %vm388, %v368, 0
      %v414 = vsel %vm388, %v369, 0
      %v417 = vsel %vm388, %v370, 0
      %v420 = vsel %vm388, %v371, 0
      %v423 = vsel %vm388, %v372, 0
      %v426 = vsel %vm388, %v373, 0
      %v429 = vsel %vm388, %v374, 0
      %v432 = vsel %vm388, %v375, 0
      %434 = vmatprep.subr.bf16.mxu0 0
      %435 = vmatpush1.bf16.msra.mxu0 %v384
      %436 = vmatprep.subr.bf16.mxu0 0
      %437 = vmatpush1.bf16.msra.mxu0 %v385
      %438 = vmatprep.subr.bf16.mxu0 0
      %439 = vmatpush1.bf16.msra.mxu0 0
      %440 = vmatprep.subr.bf16.mxu0 0
      %441 = vmatpush1.bf16.msra.mxu0 0
      %442 = vmatprep.subr.bf16.mxu0 0
      %443 = vmatpush1.bf16.msra.mxu0 0
      %444 = vmatprep.subr.bf16.mxu0 0
      %445 = vmatpush1.bf16.msra.mxu0 0
      %446 = vmatprep.subr.bf16.mxu0 0
      %447 = vmatpush1.bf16.msra.mxu0 0
      %448 = vmatprep.subr.bf16.mxu0 0
      %449 = vmatpush1.bf16.msra.mxu0 0
      %450 = vmatprep.subr.bf16.mxu0 0
      %451 = vmatpush1.bf16.msra.mxu0 0
      %452 = vmatprep.subr.bf16.mxu0 0
      %453 = vmatpush1.bf16.msra.mxu0 0
      %454 = vmatprep.subr.bf16.mxu0 0
      %455 = vmatpush1.bf16.msra.mxu0 0
      %456 = vmatprep.subr.bf16.mxu0 0
      %457 = vmatpush1.bf16.msra.mxu0 0
      %458 = vmatprep.subr.bf16.mxu0 0
      %459 = vmatpush1.bf16.msra.mxu0 0
      %460 = vmatprep.subr.bf16.mxu0 0
      %461 = vmatpush1.bf16.msra.mxu0 0
      %462 = vmatprep.subr.bf16.mxu0 0
      %463 = vmatpush1.bf16.msra.mxu0 0
      %464 = vmatprep.subr.bf16.mxu0 0
      %465 = vmatpush1.bf16.msra.mxu0 0
      %466 = vmatprep.mubr.bf16.mxu0 0
      %467 = vmatmul.mubr.bf16.gmra.mrb[0].mxu0 %v390
      %v468 = vpop.f32.mrb[0].mxu0
      %v469 = vadd.f32 0.0, %v468
      %v470 = vpop.f32.mrb[0].mxu0
      %v471 = vpop.f32.mrb[0].mxu0
      %v472 = vadd.f32 0.0, %v471
      %v473 = vpop.f32.mrb[0].mxu0
      %474 = vmatprep.mubr.bf16.mxu0 0
      %475 = vmatmul.mubr.bf16.gmra.mrb[0].mxu0 %v393
      %v476 = vpop.f32.mrb[0].mxu0
      %v477 = vadd.f32 0.0, %v476
      %v478 = vpop.f32.mrb[0].mxu0
      %v479 = vpop.f32.mrb[0].mxu0
      %v480 = vadd.f32 0.0, %v479
      %v481 = vpop.f32.mrb[0].mxu0
      %482 = vmatprep.mubr.bf16.mxu0 0
      %483 = vmatmul.mubr.bf16.gmra.mrb[0].mxu0 %v396
      %v484 = vpop.f32.mrb[0].mxu0
      %v485 = vadd.f32 0.0, %v484
      %v486 = vpop.f32.mrb[0].mxu0
      %v487 = vpop.f32.mrb[0].mxu0
      %v488 = vadd.f32 0.0, %v487
      %v489 = vpop.f32.mrb[0].mxu0
      %490 = vmatprep.mubr.bf16.mxu0 0
      %491 = vmatmul.mubr.bf16.gmra.mrb[0].mxu0 %v399
      %v492 = vpop.f32.mrb[0].mxu0
      %v493 = vadd.f32 0.0, %v492
      %v494 = vpop.f32.mrb[0].mxu0
      %v495 = vpop.f32.mrb[0].mxu0
      %v496 = vadd.f32 0.0, %v495
      %v497 = vpop.f32.mrb[0].mxu0
      %498 = vmatprep.mubr.bf16.mxu0 0
      %499 = vmatmul.mubr.bf16.gmra.mrb[0].mxu0 %v402
      %v500 = vpop.f32.mrb[0].mxu0
      %v501 = vadd.f32 0.0, %v500
      %v502 = vpop.f32.mrb[0].mxu0
      %v503 = vpop.f32.mrb[0].mxu0
      %v504 = vadd.f32 0.0, %v503
      %v505 = vpop.f32.mrb[0].mxu0
      %506 = vmatprep.mubr.bf16.mxu0 0
      %507 = vmatmul.mubr.bf16.gmra.mrb[0].mxu0 %v405
      %v508 = vpop.f32.mrb[0].mxu0
      %v509 = vadd.f32 0.0, %v508
      %v510 = vpop.f32.mrb[0].mxu0
      %v511 = vpop.f32.mrb[0].mxu0
      %v512 = vadd.f32 0.0, %v511
      %v513 = vpop.f32.mrb[0].mxu0
      %514 = vmatprep.mubr.bf16.mxu0 0
      %515 = vmatmul.mubr.bf16.gmra.mrb[0].mxu0 %v408
      %v516 = vpop.f32.mrb[0].mxu0
      %v517 = vadd.f32 0.0, %v516
      %v518 = vpop.f32.mrb[0].mxu0
      %v519 = vpop.f32.mrb[0].mxu0
      %v520 = vadd.f32 0.0, %v519
      %v521 = vpop.f32.mrb[0].mxu0
      %522 = vmatprep.mubr.bf16.mxu0 0
      %523 = vmatmul.mubr.bf16.gmra.mrb[0].mxu0 %v411
      %v524 = vpop.f32.mrb[0].mxu0
      %v525 = vadd.f32 0.0, %v524
      %v526 = vpop.f32.mrb[0].mxu0
      %v527 = vpop.f32.mrb[0].mxu0
      %v528 = vadd.f32 0.0, %v527
      %v529 = vpop.f32.mrb[0].mxu0
      %530 = vmatprep.mubr.bf16.mxu0 0
      %531 = vmatmul.mubr.bf16.gmra.mrb[0].mxu0 %v414
      %v532 = vpop.f32.mrb[0].mxu0
      %v533 = vadd.f32 0.0, %v532
      %v534 = vpop.f32.mrb[0].mxu0
      %v535 = vpop.f32.mrb[0].mxu0
      %v536 = vadd.f32 0.0, %v535
      %v537 = vpop.f32.mrb[0].mxu0
      %538 = vmatprep.mubr.bf16.mxu0 0
      %539 = vmatmul.mubr.bf16.gmra.mrb[0].mxu0 %v417
      %v540 = vpop.f32.mrb[0].mxu0
      %v541 = vadd.f32 0.0, %v540
      %v542 = vpop.f32.mrb[0].mxu0
      %v543 = vpop.f32.mrb[0].mxu0
      %v544 = vadd.f32 0.0, %v543
      %v545 = vpop.f32.mrb[0].mxu0
      %546 = vmatprep.mubr.bf16.mxu0 0
      %547 = vmatmul.mubr.bf16.gmra.mrb[0].mxu0 %v420
      %v548 = vpop.f32.mrb[0].mxu0
      %v549 = vadd.f32 0.0, %v548
      %v550 = vpop.f32.mrb[0].mxu0
      %v551 = vpop.f32.mrb[0].mxu0
      %v552 = vadd.f32 0.0, %v551
      %v553 = vpop.f32.mrb[0].mxu0
      %554 = vmatprep.mubr.bf16.mxu0 0
      %555 = vmatmul.mubr.bf16.gmra.mrb[0].mxu0 %v423
      %v556 = vpop.f32.mrb[0].mxu0
      %v557 = vadd.f32 0.0, %v556
      %v558 = vpop.f32.mrb[0].mxu0
      %v559 = vpop.f32.mrb[0].mxu0
      %v560 = vadd.f32 0.0, %v559
      %v561 = vpop.f32.mrb[0].mxu0
      %562 = vmatprep.mubr.bf16.mxu0 0
      %563 = vmatmul.mubr.bf16.gmra.mrb[0].mxu0 %v426
      %v564 = vpop.f32.mrb[0].mxu0
      %v565 = vadd.f32 0.0, %v564
      %v566 = vpop.f32.mrb[0].mxu0
      %v567 = vpop.f32.mrb[0].mxu0
      %v568 = vadd.f32 0.0, %v567
      %v569 = vpop.f32.mrb[0].mxu0
      %570 = vmatprep.mubr.bf16.mxu0 0
      %571 = vmatmul.mubr.bf16.gmra.mrb[0].mxu0 %v429
      %v572 = vpop.f32.mrb[0].mxu0
      %v573 = vadd.f32 0.0, %v572
      %v574 = vpop.f32.mrb[0].mxu0
      %v575 = vpop.f32.mrb[0].mxu0
      %v576 = vadd.f32 0.0, %v575
      %v577 = vpop.f32.mrb[0].mxu0
      %578 = vmatprep.mubr.bf16.mxu0 0
      %579 = vmatmul.mubr.bf16.gmra.mrb[0].mxu0 %v432
      %v580 = vpop.f32.mrb[0].mxu0
      %v581 = vadd.f32 0.0, %v580
      %v582 = vpop.f32.mrb[0].mxu0
      %v583 = vpop.f32.mrb[0].mxu0
      %v584 = vadd.f32 0.0, %v583
      %v585 = vpop.f32.mrb[0].mxu0
      %586 = vdwg.mxu0
      %v587 = vld [vmem:[%s253] sm:$0x1]
      %v589 = vlaneseq
      %v590 = vshrl.u32 %v589, 7
      %v591 = vsub.s32 0, %v590
      %v592 = vrot.slane %v587, %v591
      %v594 = vmul.f32 %v469, %v592
      %v595 = vmul.f32 %v472, %v592
      %v596 = vmul.f32 %v477, %v592
      %v597 = vmul.f32 %v480, %v592
      %v598 = vmul.f32 %v485, %v592
      %v599 = vmul.f32 %v488, %v592
      %v600 = vmul.f32 %v493, %v592
      %v601 = vmul.f32 %v496, %v592
      %v602 = vmul.f32 %v501, %v592
      %v603 = vmul.f32 %v504, %v592
      %v604 = vmul.f32 %v509, %v592
      %v605 = vmul.f32 %v512, %v592
      %v606 = vmul.f32 %v517, %v592
      %v607 = vmul.f32 %v520, %v592
      %v608 = vmul.f32 %v525, %v592
      %v609 = vmul.f32 %v528, %v592
      %v610 = vmul.f32 %v533, %v592
      %v611 = vmul.f32 %v536, %v592
      %v612 = vmul.f32 %v541, %v592
      %v613 = vmul.f32 %v544, %v592
      %v614 = vmul.f32 %v549, %v592
      %v615 = vmul.f32 %v552, %v592
      %v616 = vmul.f32 %v557, %v592
      %v617 = vmul.f32 %v560, %v592
      %v618 = vmul.f32 %v565, %v592
      %v619 = vmul.f32 %v568, %v592
      %v620 = vmul.f32 %v573, %v592
      %v621 = vmul.f32 %v576, %v592
      %v622 = vmul.f32 %v581, %v592
      %v623 = vmul.f32 %v584, %v592
      %v624 = vld [vmem:[%s256] sm:$0x1]
      %v626 = vlaneseq
      %v627 = vshrl.u32 %v626, 7
      %v628 = vsub.s32 0, %v627
      %v629 = vrot.slane %v624, %v628
      %v631 = vadd.f32 %v594, %v629
      %v632 = vadd.f32 %v595, %v629
      %v633 = vadd.f32 %v596, %v629
      %v634 = vadd.f32 %v597, %v629
      %v635 = vadd.f32 %v598, %v629
      %v636 = vadd.f32 %v599, %v629
      %v637 = vadd.f32 %v600, %v629
      %v638 = vadd.f32 %v601, %v629
      %v639 = vadd.f32 %v602, %v629
      %v640 = vadd.f32 %v603, %v629
      %v641 = vadd.f32 %v604, %v629
      %v642 = vadd.f32 %v605, %v629
      %v643 = vadd.f32 %v606, %v629
      %v644 = vadd.f32 %v607, %v629
      %v645 = vadd.f32 %v608, %v629
      %v646 = vadd.f32 %v609, %v629
      %v647 = vadd.f32 %v610, %v629
      %v648 = vadd.f32 %v611, %v629
      %v649 = vadd.f32 %v612, %v629
      %v650 = vadd.f32 %v613, %v629
      %v651 = vadd.f32 %v614, %v629
      %v652 = vadd.f32 %v615, %v629
      %v653 = vadd.f32 %v616, %v629
      %v654 = vadd.f32 %v617, %v629
      %v655 = vadd.f32 %v618, %v629
      %v656 = vadd.f32 %v619, %v629
      %v657 = vadd.f32 %v620, %v629
      %v658 = vadd.f32 %v621, %v629
      %v659 = vadd.f32 %v622, %v629
      %v660 = vadd.f32 %v623, %v629
      %v661 = vmax.f32 %v631, 0.0
      %v662 = vmax.f32 %v632, 0.0
      %v663 = vmax.f32 %v633, 0.0
      %v664 = vmax.f32 %v634, 0.0
      %v665 = vmax.f32 %v635, 0.0
      %v666 = vmax.f32 %v636, 0.0
      %v667 = vmax.f32 %v637, 0.0
      %v668 = vmax.f32 %v638, 0.0
      %v669 = vmax.f32 %v639, 0.0
      %v670 = vmax.f32 %v640, 0.0
      %v671 = vmax.f32 %v641, 0.0
      %v672 = vmax.f32 %v642, 0.0
      %v673 = vmax.f32 %v643, 0.0
      %v674 = vmax.f32 %v644, 0.0
      %v675 = vmax.f32 %v645, 0.0
      %v676 = vmax.f32 %v646, 0.0
      %v677 = vmax.f32 %v647, 0.0
      %v678 = vmax.f32 %v648, 0.0
      %v679 = vmax.f32 %v649, 0.0
      %v680 = vmax.f32 %v650, 0.0
      %v681 = vmax.f32 %v651, 0.0
      %v682 = vmax.f32 %v652, 0.0
      %v683 = vmax.f32 %v653, 0.0
      %v684 = vmax.f32 %v654, 0.0
      %v685 = vmax.f32 %v655, 0.0
      %v686 = vmax.f32 %v656, 0.0
      %v687 = vmax.f32 %v657, 0.0
      %v688 = vmax.f32 %v658, 0.0
      %v689 = vmax.f32 %v659, 0.0
      %v690 = vmax.f32 %v660, 0.0
      %v691 = vpack.c.bf16 %v662, %v661
      %v692 = vpack.c.bf16 %v664, %v663
      %v693 = vpack.c.bf16 %v666, %v665
      %v694 = vpack.c.bf16 %v668, %v667
      %v695 = vpack.c.bf16 %v670, %v669
      %v696 = vpack.c.bf16 %v672, %v671
      %v697 = vpack.c.bf16 %v674, %v673
      %v698 = vpack.c.bf16 %v676, %v675
      %v699 = vpack.c.bf16 %v678, %v677
      %v700 = vpack.c.bf16 %v680, %v679
      %v701 = vpack.c.bf16 %v682, %v681
      %v702 = vpack.c.bf16 %v684, %v683
      %v703 = vpack.c.bf16 %v686, %v685
      %v704 = vpack.c.bf16 %v688, %v687
      %v705 = vpack.c.bf16 %v690, %v689
      %v721 = vunpack.c.l.b16 %v691
      %v722 = vunpack.c.h.b16 %v691
      %v723 = vunpack.c.l.b16 %v692
      %v724 = vunpack.c.h.b16 %v692
      %v725 = vunpack.c.l.b16 %v693
      %v726 = vunpack.c.h.b16 %v693
      %v727 = vunpack.c.l.b16 %v694
      %v728 = vunpack.c.h.b16 %v694
      %v729 = vunpack.c.l.b16 %v695
      %v730 = vunpack.c.h.b16 %v695
      %v731 = vunpack.c.l.b16 %v696
      %v732 = vunpack.c.h.b16 %v696
      %v733 = vunpack.c.l.b16 %v697
      %v734 = vunpack.c.h.b16 %v697
      %v735 = vunpack.c.l.b16 %v698
      %v736 = vunpack.c.h.b16 %v698
      %v737 = vunpack.c.l.b16 %v699
      %v738 = vunpack.c.h.b16 %v699
      %v739 = vunpack.c.l.b16 %v700
      %v740 = vunpack.c.h.b16 %v700
      %v741 = vunpack.c.l.b16 %v701
      %v742 = vunpack.c.h.b16 %v701
      %v743 = vunpack.c.l.b16 %v702
      %v744 = vunpack.c.h.b16 %v702
      %v745 = vunpack.c.l.b16 %v703
      %v746 = vunpack.c.h.b16 %v703
      %v747 = vunpack.c.l.b16 %v704
      %v748 = vunpack.c.h.b16 %v704
      %v749 = vunpack.c.l.b16 %v705
      %v750 = vunpack.c.h.b16 %v705
      %v751 = vpack.c.b16 %v721, %v721
      %v752 = vpack.c.b16 %v722, %v722
      %v753 = vpack.c.b16 %v723, %v723
      %v754 = vpack.c.b16 %v724, %v724
      %v755 = vpack.c.b16 %v725, %v725
      %v756 = vpack.c.b16 %v726, %v726
      %v757 = vpack.c.b16 %v727, %v727
      %v758 = vpack.c.b16 %v728, %v728
      %v759 = vpack.c.b16 %v729, %v729
      %v760 = vpack.c.b16 %v730, %v730
      %v761 = vpack.c.b16 %v731, %v731
      %v762 = vpack.c.b16 %v732, %v732
      %v763 = vpack.c.b16 %v733, %v733
      %v764 = vpack.c.b16 %v734, %v734
      %v765 = vpack.c.b16 %v735, %v735
      %v766 = vpack.c.b16 %v736, %v736
      %v767 = vpack.c.b16 %v737, %v737
      %v768 = vpack.c.b16 %v738, %v738
      %v769 = vpack.c.b16 %v739, %v739
      %v770 = vpack.c.b16 %v740, %v740
      %v771 = vpack.c.b16 %v741, %v741
      %v772 = vpack.c.b16 %v742, %v742
      %v773 = vpack.c.b16 %v743, %v743
      %v774 = vpack.c.b16 %v744, %v744
      %v775 = vpack.c.b16 %v745, %v745
      %v776 = vpack.c.b16 %v746, %v746
      %v777 = vpack.c.b16 %v747, %v747
      %v778 = vpack.c.b16 %v748, %v748
      %v779 = vpack.c.b16 %v749, %v749
      %v780 = vpack.c.b16 %v750, %v750
      %811 = vst [vmem:[%s264] sm:$0xf] %v751
      %812 = vst [vmem:[%s264 + $0x4] sm:$0xf] %v752
      %813 = vst [vmem:[%s264 + $0x8] sm:$0xf] %v753
      %814 = vst [vmem:[%s264 + $0xc] sm:$0xf] %v754
      %815 = vst [vmem:[%s264 + $0x10] sm:$0xf] %v755
      %816 = vst [vmem:[%s264 + $0x14] sm:$0xf] %v756
      %817 = vst [vmem:[%s264 + $0x18] sm:$0xf] %v757
      %818 = vst [vmem:[%s264 + $0x1c] sm:$0xf] %v758
      %819 = vst [vmem:[%s264 + $0x20] sm:$0xf] %v759
      %820 = vst [vmem:[%s264 + $0x24] sm:$0xf] %v760
      %821 = vst [vmem:[%s264 + $0x28] sm:$0xf] %v761
      %822 = vst [vmem:[%s264 + $0x2c] sm:$0xf] %v762
      %823 = vst [vmem:[%s264 + $0x30] sm:$0xf] %v763
      %824 = vst [vmem:[%s264 + $0x34] sm:$0xf] %v764
      %825 = vst [vmem:[%s264 + $0x38] sm:$0xf] %v765
      %826 = vst [vmem:[%s264 + $0x3c] sm:$0xf] %v766
      %827 = vst [vmem:[%s264 + $0x40] sm:$0xf] %v767
      %828 = vst [vmem:[%s264 + $0x44] sm:$0xf] %v768
      %829 = vst [vmem:[%s264 + $0x48] sm:$0xf] %v769
      %830 = vst [vmem:[%s264 + $0x4c] sm:$0xf] %v770
      %831 = vst [vmem:[%s264 + $0x50] sm:$0xf] %v771
      %832 = vst [vmem:[%s264 + $0x54] sm:$0xf] %v772
      %833 = vst [vmem:[%s264 + $0x58] sm:$0xf] %v773
      %834 = vst [vmem:[%s264 + $0x5c] sm:$0xf] %v774
      %835 = vst [vmem:[%s264 + $0x60] sm:$0xf] %v775
      %836 = vst [vmem:[%s264 + $0x64] sm:$0xf] %v776
      %837 = vst [vmem:[%s264 + $0x68] sm:$0xf] %v777
      %838 = vst [vmem:[%s264 + $0x6c] sm:$0xf] %v778
      %839 = vst [vmem:[%s264 + $0x70] sm:$0xf] %v779
      %840 = vst [vmem:[%s264 + $0x74] sm:$0xf] %v780
      %s841 = smul.u32 30, %s19
      %p842 = scmp.lt.s32.totalorder %s841, 59
      %s843 = scalar_select %p842, %s841, 59
      %p844 = scmp.lt.s32.totalorder %s20, 0
      %s845 = scalar_select %p844, %s20, 0
      %s846 = sadd.s32 %s845, %s843
      %s847 = smul.addr %s846, 4
      %s848 = scalar_lea.vmem %s4, %s847
      // Predicated region
      $region37: #{inception_b_forward.17} parent=35 // pred_check
        %p849 = pneg %p151
      $region38: #{inception_b_forward.17} parent=35 // pred_check_branch
        %851 = sbr.rel (%p849) target = $region40
      $region39: #{inception_b_forward.17} parent=35 // pred_region
        %s852 = smul.u32 30, %s19
      $region40: #{inception_b_forward.17} parent=35 // pred_fallthru
        _
    $region36: #{inception_b_forward.17} parent=5 // pred_fallthru
      _
    %p853 = scmp.le.s32.totalorder 2, %s10
    // Predicated region
    $region41: #{inception_b_forward.17} parent=5 // pred_check
      %p854 = pneg %p853
    $region42: #{inception_b_forward.17} parent=5 // pred_check_branch
      %856 = sbr.rel (%p854) target = $region44
    $region43: #{inception_b_forward.17} parent=5 // pred_region
      %s857 = ssub.s32 %s10, 2
      // Predicated region
      $region45: #{inception_b_forward.17} parent=43 // pred_check
        %p858 = pneg %p157
      $region46: #{inception_b_forward.17} parent=43 // pred_check_branch
        %860 = sbr.rel (%p858) target = $region48
      $region47: #{inception_b_forward.17} parent=43 // pred_region
        %s861 = smul.u32 30, %s21
        %p862 = scmp.lt.s32.totalorder %s861, 59
        %s863 = scalar_select %p862, %s861, 59
        %p864 = scmp.lt.s32.totalorder %s22, 0
        %s865 = scalar_select %p864, %s22, 0
        %s866 = sadd.s32 %s865, %s863
        %s867 = smul.addr %s866, 4
        %s868 = scalar_lea.vmem %s4, %s867
      $region48: #{inception_b_forward.17} parent=43 // pred_fallthru
        _
    $region44: #{inception_b_forward.17} parent=5 // pred_fallthru
      _
  $region6: #{inception_b_forward.17} parent=0 // loop_footer
    %s14 = sadd.s32 1, %s10
  $region7: #{inception_b_forward.17} parent=0 // loop_footer_branch
    %9 = sbr.rel target = $region3
  $region8: #{inception_b_forward.17} parent=0 // loop_exit
    _

// kernel: inception_b_forward.18
$region0: #{inception_b_forward.18}
  #allocation0 [shape = 'u32[]', space=smem, size = 0x4, offset = 0x4, fixed_abs, tag = 'smem constant byte address 0x4 - core index']
  #allocation1 [shape = 'u32[144,128]{1,0:T(1,128)}', space=vmem, size = 0x12000, scoped, tag = 'internal scratch']
  %s0 = inlined_call_operand.vmem [shape: bf16[480,32], index: 0, kind: input, shape index: {}]
  %s1 = inlined_call_operand.vmem [shape: bf16[32,128], index: 1, kind: input, shape index: {}]
  %s2 = inlined_call_operand.vmem [shape: f32[1,128], index: 2, kind: input, shape index: {}]
  %s3 = inlined_call_operand.vmem [shape: f32[1,128], index: 3, kind: input, shape index: {}]
  %s4 = inlined_call_operand.vmem [shape: f32[480,128], index: 4, kind: output, shape index: {}]
  %s5 = sld [smem:[#allocation0]]
  $region49: #{inception_b_forward.18} parent=0
    _
  %s7 = ssub.s32 1, %s5
  %s8 = scalar_select 0, %s7, %s5
  loop: start=0, step=1, limit=4
  $region2: #{inception_b_forward.18} parent=0 // loop_pre_header
    _
  $region3: #{inception_b_forward.18} parent=0 // loop_header
    %s10 = sphi 0, %s14
    %p11 = scmp.ge.s32.totalorder %s10, 4
    %s17 = sphi 0, %s29
    %s18 = sphi 0, %s25
    %s19 = sphi 0, %s17
    %s20 = sphi 0, %s18
    %s21 = sphi 0, %s19
    %s22 = sphi 0, %s20
    %s32 = sphi 0, %s34
    %s35 = sphi 0, %s32
    %s36 = sphi 0, %s35
    %s52 = sphi 0, %s36
    %s58 = sphi 0, %s60
    %s61 = sphi 0, %s58
    %s62 = sphi 0, %s61
    %s78 = sphi 0, %s62
    %s84 = sphi 0, %s86
    %s87 = sphi 0, %s84
    %s88 = sphi 0, %s87
    %s104 = sphi 0, %s88
    %s110 = sphi 0, %s112
    %s113 = sphi 0, %s110
    %s114 = sphi 0, %s113
    %s130 = sphi 0, %s114
    %s138 = sphi 0, %s140
    %s141 = sphi 0, %s138
    %s142 = sphi 0, %s141
    %s158 = sphi 0, %s142
  $region4: #{inception_b_forward.18} parent=0 // loop_header_branch
    %13 = sbr.rel (%p11) target = $region8
  $region5: #{inception_b_forward.18} parent=0 // loop_body
    %s15 = ssub.s32 %s10, 1
    %s16 = ssub.s32 %s10, 2
    %s23 = sadd.s32 1, %s18
    %p24 = scmp.ge.s32.totalorder %s23, 1
    %s25 = scalar_select %p24, 0, %s23
    %s26 = sadd.s32 1, %s17
    %s27 = scalar_select %p24, %s26, %s17
    %p28 = scmp.ge.s32.totalorder %s27, 2
    %s29 = scalar_select %p28, 0, %s27
    %s30 = ssub.s32 %s17, %s29
    %p31 = scmp.eq.s32.totalorder %s30, 0
    %s33 = sadd.s32 %s32, 1
    %s34 = scalar_select %p31, %s32, %s33
    %p37 = pneg %p31
    %p38 = scmp.eq.s32.totalorder %s10, 1
    %p39 = por %p37, %p38
    %p40 = scmp.ne.s32.totalorder %s32, %s35
    %p41 = scmp.eq.s32.totalorder %s10, 0
    %p42 = por %p40, %p41
    %p43 = scmp.ne.s32.totalorder %s32, %s35
    %p44 = scmp.eq.s32.totalorder %s15, 1
    %p45 = por %p43, %p44
    %p46 = scmp.ne.s32.totalorder %s35, %s36
    %p47 = scmp.eq.s32.totalorder %s15, 0
    %p48 = por %p46, %p47
    %p49 = scmp.ne.s32.totalorder %s35, %s36
    %p50 = scmp.eq.s32.totalorder %s16, 1
    %p51 = por %p49, %p50
    %p53 = scmp.ne.s32.totalorder %s36, %s52
    %p54 = scmp.eq.s32.totalorder %s16, 0
    %p55 = por %p53, %p54
    %s56 = ssub.s32 %s18, %s25
    %p57 = scmp.eq.s32.totalorder %s56, 0
    %s59 = sadd.s32 %s58, 1
    %s60 = scalar_select %p57, %s58, %s59
    %p63 = pneg %p57
    %p64 = scmp.eq.s32.totalorder %s10, 1
    %p65 = por %p63, %p64
    %p66 = scmp.ne.s32.totalorder %s58, %s61
    %p67 = scmp.eq.s32.totalorder %s10, 0
    %p68 = por %p66, %p67
    %p69 = scmp.ne.s32.totalorder %s58, %s61
    %p70 = scmp.eq.s32.totalorder %s15, 1
    %p71 = por %p69, %p70
    %p72 = scmp.ne.s32.totalorder %s61, %s62
    %p73 = scmp.eq.s32.totalorder %s15, 0
    %p74 = por %p72, %p73
    %p75 = scmp.ne.s32.totalorder %s61, %s62
    %p76 = scmp.eq.s32.totalorder %s16, 1
    %p77 = por %p75, %p76
    %p79 = scmp.ne.s32.totalorder %s62, %s78
    %p80 = scmp.eq.s32.totalorder %s16, 0
    %p81 = por %p79, %p80
    %s82 = ssub.s32 %s18, %s25
    %p83 = scmp.eq.s32.totalorder %s82, 0
    %s85 = sadd.s32 %s84, 1
    %s86 = scalar_select %p83, %s84, %s85
    %p89 = pneg %p83
    %p90 = scmp.eq.s32.totalorder %s10, 1
    %p91 = por %p89, %p90
    %p92 = scmp.ne.s32.totalorder %s84, %s87
    %p93 = scmp.eq.s32.totalorder %s10, 0
    %p94 = por %p92, %p93
    %p95 = scmp.ne.s32.totalorder %s84, %s87
    %p96 = scmp.eq.s32.totalorder %s15, 1
    %p97 = por %p95, %p96
    %p98 = scmp.ne.s32.totalorder %s87, %s88
    %p99 = scmp.eq.s32.totalorder %s15, 0
    %p100 = por %p98, %p99
    %p101 = scmp.ne.s32.totalorder %s87, %s88
    %p102 = scmp.eq.s32.totalorder %s16, 1
    %p103 = por %p101, %p102
    %p105 = scmp.ne.s32.totalorder %s88, %s104
    %p106 = scmp.eq.s32.totalorder %s16, 0
    %p107 = por %p105, %p106
    %s108 = ssub.s32 %s18, %s25
    %p109 = scmp.eq.s32.totalorder %s108, 0
    %s111 = sadd.s32 %s110, 1
    %s112 = scalar_select %p109, %s110, %s111
    %p115 = pneg %p109
    %p116 = scmp.eq.s32.totalorder %s10, 1
    %p117 = por %p115, %p116
    %p118 = scmp.ne.s32.totalorder %s110, %s113
    %p119 = scmp.eq.s32.totalorder %s10, 0
    %p120 = por %p118, %p119
    %p121 = scmp.ne.s32.totalorder %s110, %s113
    %p122 = scmp.eq.s32.totalorder %s15, 1
    %p123 = por %p121, %p122
    %p124 = scmp.ne.s32.totalorder %s113, %s114
    %p125 = scmp.eq.s32.totalorder %s15, 0
    %p126 = por %p124, %p125
    %p127 = scmp.ne.s32.totalorder %s113, %s114
    %p128 = scmp.eq.s32.totalorder %s16, 1
    %p129 = por %p127, %p128
    %p131 = scmp.ne.s32.totalorder %s114, %s130
    %p132 = scmp.eq.s32.totalorder %s16, 0
    %p133 = por %p131, %p132
    %s134 = ssub.s32 %s17, %s29
    %s135 = ssub.s32 %s18, %s25
    %s136 = sor.u32 %s134, %s135
    %p137 = scmp.eq.s32.totalorder %s136, 0
    %s139 = sadd.s32 %s138, 1
    %s140 = scalar_select %p137, %s138, %s139
    %p143 = pneg %p137
    %p144 = scmp.eq.s32.totalorder %s10, 1
    %p145 = por %p143, %p144
    %p146 = scmp.ne.s32.totalorder %s138, %s141
    %p147 = scmp.eq.s32.totalorder %s10, 0
    %p148 = por %p146, %p147
    %p149 = scmp.ne.s32.totalorder %s138, %s141
    %p150 = scmp.eq.s32.totalorder %s15, 1
    %p151 = por %p149, %p150
    %p152 = scmp.ne.s32.totalorder %s141, %s142
    %p153 = scmp.eq.s32.totalorder %s15, 0
    %p154 = por %p152, %p153
    %p155 = scmp.ne.s32.totalorder %s141, %s142
    %p156 = scmp.eq.s32.totalorder %s16, 1
    %p157 = por %p155, %p156
    %p159 = scmp.ne.s32.totalorder %s142, %s158
    %p160 = scmp.eq.s32.totalorder %s16, 0
    %p161 = por %p159, %p160
    %p162 = scmp.le.s32.totalorder 1, %s10
    %p163 = scmp.lt.s32.totalorder %s10, 3
    %p164 = pnand %p162, %p163
    %p165 = pneg %p164
    // Predicated region
    $region9: #{inception_b_forward.18} parent=5 // pred_check
      _
    $region10: #{inception_b_forward.18} parent=5 // pred_check_branch
      %167 = sbr.rel (%p164) target = $region12
    $region11: #{inception_b_forward.18} parent=5 // pred_region
      %s168 = ssub.s32 %s10, 1
      // Predicated region
      $region13: #{inception_b_forward.18} parent=11 // pred_check
        %p169 = pneg %p74
      $region14: #{inception_b_forward.18} parent=11 // pred_check_branch
        %171 = sbr.rel (%p169) target = $region16
      $region15: #{inception_b_forward.18} parent=11 // pred_region
        %p172 = scmp.lt.s32.totalorder %s20, 0
        %s173 = scalar_select %p172, %s20, 0
        %s174 = smul.addr %s173, 4
        %s175 = scalar_lea.vmem %s1, %s174
      $region16: #{inception_b_forward.18} parent=11 // pred_fallthru
        _
      // Predicated region
      $region17: #{inception_b_forward.18} parent=11 // pred_check
        %p176 = pneg %p100
      $region18: #{inception_b_forward.18} parent=11 // pred_check_branch
        %178 = sbr.rel (%p176) target = $region20
      $region19: #{inception_b_forward.18} parent=11 // pred_region
        %p179 = scmp.lt.s32.totalorder %s20, 0
        %s180 = scalar_select %p179, %s20, 0
        %s181 = scalar_lea.vmem %s2, %s180
      $region20: #{inception_b_forward.18} parent=11 // pred_fallthru
        _
      // Predicated region
      $region21: #{inception_b_forward.18} parent=11 // pred_check
        %p182 = pneg %p126
      $region22: #{inception_b_forward.18} parent=11 // pred_check_branch
        %184 = sbr.rel (%p182) target = $region24
      $region23: #{inception_b_forward.18} parent=11 // pred_region
        %p185 = scmp.lt.s32.totalorder %s20, 0
        %s186 = scalar_select %p185, %s20, 0
        %s187 = scalar_lea.vmem %s3, %s186
      $region24: #{inception_b_forward.18} parent=11 // pred_fallthru
        _
    $region12: #{inception_b_forward.18} parent=5 // pred_fallthru
      _
    %p188 = scmp.lt.s32.totalorder %s10, 2
    // Predicated region
    $region25: #{inception_b_forward.18} parent=5 // pred_check
      %p189 = pneg %p188
    $region26: #{inception_b_forward.18} parent=5 // pred_check_branch
      %191 = sbr.rel (%p189) target = $region28
    $region27: #{inception_b_forward.18} parent=5 // pred_region
      // Predicated region
      $region29: #{inception_b_forward.18} parent=27 // pred_check
        %p192 = pneg %p42
      $region30: #{inception_b_forward.18} parent=27 // pred_check_branch
        %194 = sbr.rel (%p192) target = $region32
      $region31: #{inception_b_forward.18} parent=27 // pred_region
        %s195 = smul.u32 30, %s17
        %p196 = scmp.lt.s32.totalorder %s195, 59
        %s197 = scalar_select %p196, %s195, 59
        %s198 = smul.addr %s197, 4
        %s199 = scalar_lea.vmem %s0, %s198
        %s200 = smul.u32 30, %s17
      $region32: #{inception_b_forward.18} parent=27 // pred_fallthru
        _
    $region28: #{inception_b_forward.18} parent=5 // pred_fallthru
      _
    %p201 = scmp.le.s32.totalorder 1, %s10
    %p202 = scmp.lt.s32.totalorder %s10, 3
    %p203 = pnand %p201, %p202
    %p204 = pneg %p203
    // Predicated region
    $region33: #{inception_b_forward.18} parent=5 // pred_check
      _
    $region34: #{inception_b_forward.18} parent=5 // pred_check_branch
      %206 = sbr.rel (%p203) target = $region36
    $region35: #{inception_b_forward.18} parent=5 // pred_region
      %s207 = ssub.s32 %s10, 1
      %s208 = smul.u32 30, %s19
      %p209 = scmp.lt.s32.totalorder %s208, 59
      %s210 = scalar_select %p209, %s208, 59
      %s211 = smul.addr %s210, 4
      %s212 = scalar_lea.vmem %s0, %s211
      %p213 = pneg %p48
      %p214 = pneg %p45
      %p215 = scmp.lt.s32.totalorder %s20, 0
      %s216 = scalar_select %p215, %s20, 0
      %s217 = smul.addr %s216, 4
      %s218 = scalar_lea.vmem %s1, %s217
      %p219 = pneg %p74
      %p220 = pneg %p71
      %p221 = scmp.lt.s32.totalorder %s20, 0
      %s222 = scalar_select %p221, %s20, 0
      %s223 = scalar_lea.vmem %s2, %s222
      %p224 = pneg %p100
      %p225 = pneg %p97
      %p226 = scmp.lt.s32.totalorder %s20, 0
      %s227 = scalar_select %p226, %s20, 0
      %s228 = scalar_lea.vmem %s3, %s227
      %p229 = pneg %p126
      %p230 = pneg %p123
      %p231 = pneg %p154
      %p232 = pneg %p151
      %s233 = smul.u32 30, %s19
      %p234 = scmp.lt.s32.totalorder %s233, 59
      %s235 = scalar_select %p234, %s233, 59
      %p236 = scmp.lt.s32.totalorder %s20, 0
      %s237 = scalar_select %p236, %s20, 0
      %s238 = sadd.s32 %s237, %s235
      %s239 = smul.addr %s238, 8
      %s240 = scalar_lea.vmem %s4, %s239
      %s241 = smul.u32 30, %s19
      %p242 = scmp.lt.s32.totalorder %s241, 59
      %s243 = scalar_select %p242, %s241, 59
      %s244 = smul.addr %s243, 4
      %s245 = scalar_lea.vmem %s0, %s244
      %s246 = smul.u32 30, %s19
      %p247 = scmp.lt.s32.totalorder %s20, 0
      %s248 = scalar_select %p247, %s20, 0
      %s249 = smul.addr %s248, 4
      %s250 = scalar_lea.vmem %s1, %s249
      %p251 = scmp.lt.s32.totalorder %s20, 0
      %s252 = scalar_select %p251, %s20, 0
      %s253 = scalar_lea.vmem %s2, %s252
      %p254 = scmp.lt.s32.totalorder %s20, 0
      %s255 = scalar_select %p254, %s20, 0
      %s256 = scalar_lea.vmem %s3, %s255
      %s257 = smul.u32 30, %s19
      %p258 = scmp.lt.s32.totalorder %s257, 59
      %s259 = scalar_select %p258, %s257, 59
      %p260 = scmp.lt.s32.totalorder %s20, 0
      %s261 = scalar_select %p260, %s20, 0
      %s262 = sadd.s32 %s261, %s259
      %s263 = smul.addr %s262, 8
      %s264 = scalar_lea.vmem %s4, %s263
      %s265 = smul.u32 30, %s19
      %v267 = vld [vmem:[%s245] sm:$0xf]
      %v268 = vld [vmem:[%s245 + $0x4] sm:$0xf]
      %v269 = vld [vmem:[%s245 + $0x8] sm:$0xf]
      %v270 = vld [vmem:[%s245 + $0xc] sm:$0xf]
      %v271 = vld [vmem:[%s245 + $0x10] sm:$0xf]
      %v272 = vld [vmem:[%s245 + $0x14] sm:$0xf]
      %v273 = vld [vmem:[%s245 + $0x18] sm:$0xf]
      %v274 = vld [vmem:[%s245 + $0x1c] sm:$0xf]
      %v275 = vld [vmem:[%s245 + $0x20] sm:$0xf]
      %v276 = vld [vmem:[%s245 + $0x24] sm:$0xf]
      %v277 = vld [vmem:[%s245 + $0x28] sm:$0xf]
      %v278 = vld [vmem:[%s245 + $0x2c] sm:$0xf]
      %v279 = vld [vmem:[%s245 + $0x30] sm:$0xf]
      %v280 = vld [vmem:[%s245 + $0x34] sm:$0xf]
      %v281 = vld [vmem:[%s245 + $0x38] sm:$0xf]
      %v282 = vld [vmem:[%s245 + $0x3c] sm:$0xf]
      %v283 = vld [vmem:[%s245 + $0x40] sm:$0xf]
      %v284 = vld [vmem:[%s245 + $0x44] sm:$0xf]
      %v285 = vld [vmem:[%s245 + $0x48] sm:$0xf]
      %v286 = vld [vmem:[%s245 + $0x4c] sm:$0xf]
      %v287 = vld [vmem:[%s245 + $0x50] sm:$0xf]
      %v288 = vld [vmem:[%s245 + $0x54] sm:$0xf]
      %v289 = vld [vmem:[%s245 + $0x58] sm:$0xf]
      %v290 = vld [vmem:[%s245 + $0x5c] sm:$0xf]
      %v291 = vld [vmem:[%s245 + $0x60] sm:$0xf]
      %v292 = vld [vmem:[%s245 + $0x64] sm:$0xf]
      %v293 = vld [vmem:[%s245 + $0x68] sm:$0xf]
      %v294 = vld [vmem:[%s245 + $0x6c] sm:$0xf]
      %v295 = vld [vmem:[%s245 + $0x70] sm:$0xf]
      %v296 = vld [vmem:[%s245 + $0x74] sm:$0xf]
      %v297 = vld [vmem:[%s250] sm:$0xf]
      %v298 = vld [vmem:[%s250 + $0x4] sm:$0xf]
      %v299 = vld [vmem:[%s250 + $0x8] sm:$0xf]
      %v300 = vld [vmem:[%s250 + $0xc] sm:$0xf]
      %v331 = vunpack.c.l.b16 %v267
      %v332 = vunpack.c.l.b16 %v268
      %v333 = vunpack.c.l.b16 %v269
      %v334 = vunpack.c.l.b16 %v270
      %v335 = vunpack.c.l.b16 %v271
      %v336 = vunpack.c.l.b16 %v272
      %v337 = vunpack.c.l.b16 %v273
      %v338 = vunpack.c.l.b16 %v274
      %v339 = vunpack.c.l.b16 %v275
      %v340 = vunpack.c.l.b16 %v276
      %v341 = vunpack.c.l.b16 %v277
      %v342 = vunpack.c.l.b16 %v278
      %v343 = vunpack.c.l.b16 %v279
      %v344 = vunpack.c.l.b16 %v280
      %v345 = vunpack.c.l.b16 %v281
      %v346 = vunpack.c.l.b16 %v282
      %v347 = vunpack.c.l.b16 %v283
      %v348 = vunpack.c.l.b16 %v284
      %v349 = vunpack.c.l.b16 %v285
      %v350 = vunpack.c.l.b16 %v286
      %v351 = vunpack.c.l.b16 %v287
      %v352 = vunpack.c.l.b16 %v288
      %v353 = vunpack.c.l.b16 %v289
      %v354 = vunpack.c.l.b16 %v290
      %v355 = vunpack.c.l.b16 %v291
      %v356 = vunpack.c.l.b16 %v292
      %v357 = vunpack.c.l.b16 %v293
      %v358 = vunpack.c.l.b16 %v294
      %v359 = vunpack.c.l.b16 %v295
      %v360 = vunpack.c.l.b16 %v296
      %v361 = vpack.c.b16 %v332, %v331
      %v362 = vpack.c.b16 %v334, %v333
      %v363 = vpack.c.b16 %v336, %v335
      %v364 = vpack.c.b16 %v338, %v337
      %v365 = vpack.c.b16 %v340, %v339
      %v366 = vpack.c.b16 %v342, %v341
      %v367 = vpack.c.b16 %v344, %v343
      %v368 = vpack.c.b16 %v346, %v345
      %v369 = vpack.c.b16 %v348, %v347
      %v370 = vpack.c.b16 %v350, %v349
      %v371 = vpack.c.b16 %v352, %v351
      %v372 = vpack.c.b16 %v354, %v353
      %v373 = vpack.c.b16 %v356, %v355
      %v374 = vpack.c.b16 %v358, %v357
      %v375 = vpack.c.b16 %v360, %v359
      %v380 = vunpack.c.l.b16 %v297
      %v381 = vunpack.c.l.b16 %v298
      %v382 = vunpack.c.l.b16 %v299
      %v383 = vunpack.c.l.b16 %v300
      %v384 = vpack.c.b16 %v381, %v380
      %v385 = vpack.c.b16 %v383, %v382
      %vm388 = vcmask 261120
      %v390 = vsel %vm388, %v361, 0
      %v393 = vsel %vm388, %v362, 0
      %v396 = vsel %vm388, %v363, 0
      %v399 = vsel %vm388, %v364, 0
      %v402 = vsel %vm388, %v365, 0
      %v405 = vsel %vm388, %v366, 0
      %v408 = vsel %vm388, %v367, 0
      %v411 = vsel %vm388, %v368, 0
      %v414 = vsel %vm388, %v369, 0
      %v417 = vsel %vm388, %v370, 0
      %v420 = vsel %vm388, %v371, 0
      %v423 = vsel %vm388, %v372, 0
      %v426 = vsel %vm388, %v373, 0
      %v429 = vsel %vm388, %v374, 0
      %v432 = vsel %vm388, %v375, 0
      %434 = vmatprep.subr.bf16.mxu0 0
      %435 = vmatpush1.bf16.msra.mxu0 %v384
      %436 = vmatprep.subr.bf16.mxu0 0
      %437 = vmatpush1.bf16.msra.mxu0 %v385
      %438 = vmatprep.subr.bf16.mxu0 0
      %439 = vmatpush1.bf16.msra.mxu0 0
      %440 = vmatprep.subr.bf16.mxu0 0
      %441 = vmatpush1.bf16.msra.mxu0 0
      %442 = vmatprep.subr.bf16.mxu0 0
      %443 = vmatpush1.bf16.msra.mxu0 0
      %444 = vmatprep.subr.bf16.mxu0 0
      %445 = vmatpush1.bf16.msra.mxu0 0
      %446 = vmatprep.subr.bf16.mxu0 0
      %447 = vmatpush1.bf16.msra.mxu0 0
      %448 = vmatprep.subr.bf16.mxu0 0
      %449 = vmatpush1.bf16.msra.mxu0 0
      %450 = vmatprep.subr.bf16.mxu0 0
      %451 = vmatpush1.bf16.msra.mxu0 0
      %452 = vmatprep.subr.bf16.mxu0 0
      %453 = vmatpush1.bf16.msra.mxu0 0
      %454 = vmatprep.subr.bf16.mxu0 0
      %455 = vmatpush1.bf16.msra.mxu0 0
      %456 = vmatprep.subr.bf16.mxu0 0
      %457 = vmatpush1.bf16.msra.mxu0 0
      %458 = vmatprep.subr.bf16.mxu0 0
      %459 = vmatpush1.bf16.msra.mxu0 0
      %460 = vmatprep.subr.bf16.mxu0 0
      %461 = vmatpush1.bf16.msra.mxu0 0
      %462 = vmatprep.subr.bf16.mxu0 0
      %463 = vmatpush1.bf16.msra.mxu0 0
      %464 = vmatprep.subr.bf16.mxu0 0
      %465 = vmatpush1.bf16.msra.mxu0 0
      %466 = vmatprep.mubr.bf16.mxu0 0
      %467 = vmatmul.mubr.bf16.gmra.mrb[0].mxu0 %v390
      %v468 = vpop.f32.mrb[0].mxu0
      %v469 = vadd.f32 0.0, %v468
      %v470 = vpop.f32.mrb[0].mxu0
      %v471 = vpop.f32.mrb[0].mxu0
      %v472 = vadd.f32 0.0, %v471
      %v473 = vpop.f32.mrb[0].mxu0
      %474 = vmatprep.mubr.bf16.mxu0 0
      %475 = vmatmul.mubr.bf16.gmra.mrb[0].mxu0 %v393
      %v476 = vpop.f32.mrb[0].mxu0
      %v477 = vadd.f32 0.0, %v476
      %v478 = vpop.f32.mrb[0].mxu0
      %v479 = vpop.f32.mrb[0].mxu0
      %v480 = vadd.f32 0.0, %v479
      %v481 = vpop.f32.mrb[0].mxu0
      %482 = vmatprep.mubr.bf16.mxu0 0
      %483 = vmatmul.mubr.bf16.gmra.mrb[0].mxu0 %v396
      %v484 = vpop.f32.mrb[0].mxu0
      %v485 = vadd.f32 0.0, %v484
      %v486 = vpop.f32.mrb[0].mxu0
      %v487 = vpop.f32.mrb[0].mxu0
      %v488 = vadd.f32 0.0, %v487
      %v489 = vpop.f32.mrb[0].mxu0
      %490 = vmatprep.mubr.bf16.mxu0 0
      %491 = vmatmul.mubr.bf16.gmra.mrb[0].mxu0 %v399
      %v492 = vpop.f32.mrb[0].mxu0
      %v493 = vadd.f32 0.0, %v492
      %v494 = vpop.f32.mrb[0].mxu0
      %v495 = vpop.f32.mrb[0].mxu0
      %v496 = vadd.f32 0.0, %v495
      %v497 = vpop.f32.mrb[0].mxu0
      %498 = vmatprep.mubr.bf16.mxu0 0
      %499 = vmatmul.mubr.bf16.gmra.mrb[0].mxu0 %v402
      %v500 = vpop.f32.mrb[0].mxu0
      %v501 = vadd.f32 0.0, %v500
      %v502 = vpop.f32.mrb[0].mxu0
      %v503 = vpop.f32.mrb[0].mxu0
      %v504 = vadd.f32 0.0, %v503
      %v505 = vpop.f32.mrb[0].mxu0
      %506 = vmatprep.mubr.bf16.mxu0 0
      %507 = vmatmul.mubr.bf16.gmra.mrb[0].mxu0 %v405
      %v508 = vpop.f32.mrb[0].mxu0
      %v509 = vadd.f32 0.0, %v508
      %v510 = vpop.f32.mrb[0].mxu0
      %v511 = vpop.f32.mrb[0].mxu0
      %v512 = vadd.f32 0.0, %v511
      %v513 = vpop.f32.mrb[0].mxu0
      %514 = vmatprep.mubr.bf16.mxu0 0
      %515 = vmatmul.mubr.bf16.gmra.mrb[0].mxu0 %v408
      %v516 = vpop.f32.mrb[0].mxu0
      %v517 = vadd.f32 0.0, %v516
      %v518 = vpop.f32.mrb[0].mxu0
      %v519 = vpop.f32.mrb[0].mxu0
      %v520 = vadd.f32 0.0, %v519
      %v521 = vpop.f32.mrb[0].mxu0
      %522 = vmatprep.mubr.bf16.mxu0 0
      %523 = vmatmul.mubr.bf16.gmra.mrb[0].mxu0 %v411
      %v524 = vpop.f32.mrb[0].mxu0
      %v525 = vadd.f32 0.0, %v524
      %v526 = vpop.f32.mrb[0].mxu0
      %v527 = vpop.f32.mrb[0].mxu0
      %v528 = vadd.f32 0.0, %v527
      %v529 = vpop.f32.mrb[0].mxu0
      %530 = vmatprep.mubr.bf16.mxu0 0
      %531 = vmatmul.mubr.bf16.gmra.mrb[0].mxu0 %v414
      %v532 = vpop.f32.mrb[0].mxu0
      %v533 = vadd.f32 0.0, %v532
      %v534 = vpop.f32.mrb[0].mxu0
      %v535 = vpop.f32.mrb[0].mxu0
      %v536 = vadd.f32 0.0, %v535
      %v537 = vpop.f32.mrb[0].mxu0
      %538 = vmatprep.mubr.bf16.mxu0 0
      %539 = vmatmul.mubr.bf16.gmra.mrb[0].mxu0 %v417
      %v540 = vpop.f32.mrb[0].mxu0
      %v541 = vadd.f32 0.0, %v540
      %v542 = vpop.f32.mrb[0].mxu0
      %v543 = vpop.f32.mrb[0].mxu0
      %v544 = vadd.f32 0.0, %v543
      %v545 = vpop.f32.mrb[0].mxu0
      %546 = vmatprep.mubr.bf16.mxu0 0
      %547 = vmatmul.mubr.bf16.gmra.mrb[0].mxu0 %v420
      %v548 = vpop.f32.mrb[0].mxu0
      %v549 = vadd.f32 0.0, %v548
      %v550 = vpop.f32.mrb[0].mxu0
      %v551 = vpop.f32.mrb[0].mxu0
      %v552 = vadd.f32 0.0, %v551
      %v553 = vpop.f32.mrb[0].mxu0
      %554 = vmatprep.mubr.bf16.mxu0 0
      %555 = vmatmul.mubr.bf16.gmra.mrb[0].mxu0 %v423
      %v556 = vpop.f32.mrb[0].mxu0
      %v557 = vadd.f32 0.0, %v556
      %v558 = vpop.f32.mrb[0].mxu0
      %v559 = vpop.f32.mrb[0].mxu0
      %v560 = vadd.f32 0.0, %v559
      %v561 = vpop.f32.mrb[0].mxu0
      %562 = vmatprep.mubr.bf16.mxu0 0
      %563 = vmatmul.mubr.bf16.gmra.mrb[0].mxu0 %v426
      %v564 = vpop.f32.mrb[0].mxu0
      %v565 = vadd.f32 0.0, %v564
      %v566 = vpop.f32.mrb[0].mxu0
      %v567 = vpop.f32.mrb[0].mxu0
      %v568 = vadd.f32 0.0, %v567
      %v569 = vpop.f32.mrb[0].mxu0
      %570 = vmatprep.mubr.bf16.mxu0 0
      %571 = vmatmul.mubr.bf16.gmra.mrb[0].mxu0 %v429
      %v572 = vpop.f32.mrb[0].mxu0
      %v573 = vadd.f32 0.0, %v572
      %v574 = vpop.f32.mrb[0].mxu0
      %v575 = vpop.f32.mrb[0].mxu0
      %v576 = vadd.f32 0.0, %v575
      %v577 = vpop.f32.mrb[0].mxu0
      %578 = vmatprep.mubr.bf16.mxu0 0
      %579 = vmatmul.mubr.bf16.gmra.mrb[0].mxu0 %v432
      %v580 = vpop.f32.mrb[0].mxu0
      %v581 = vadd.f32 0.0, %v580
      %v582 = vpop.f32.mrb[0].mxu0
      %v583 = vpop.f32.mrb[0].mxu0
      %v584 = vadd.f32 0.0, %v583
      %v585 = vpop.f32.mrb[0].mxu0
      %586 = vdwg.mxu0
      %v587 = vld [vmem:[%s253] sm:$0x1]
      %v589 = vlaneseq
      %v590 = vshrl.u32 %v589, 7
      %v591 = vsub.s32 0, %v590
      %v592 = vrot.slane %v587, %v591
      %v594 = vmul.f32 %v469, %v592
      %v595 = vmul.f32 %v472, %v592
      %v596 = vmul.f32 %v477, %v592
      %v597 = vmul.f32 %v480, %v592
      %v598 = vmul.f32 %v485, %v592
      %v599 = vmul.f32 %v488, %v592
      %v600 = vmul.f32 %v493, %v592
      %v601 = vmul.f32 %v496, %v592
      %v602 = vmul.f32 %v501, %v592
      %v603 = vmul.f32 %v504, %v592
      %v604 = vmul.f32 %v509, %v592
      %v605 = vmul.f32 %v512, %v592
      %v606 = vmul.f32 %v517, %v592
      %v607 = vmul.f32 %v520, %v592
      %v608 = vmul.f32 %v525, %v592
      %v609 = vmul.f32 %v528, %v592
      %v610 = vmul.f32 %v533, %v592
      %v611 = vmul.f32 %v536, %v592
      %v612 = vmul.f32 %v541, %v592
      %v613 = vmul.f32 %v544, %v592
      %v614 = vmul.f32 %v549, %v592
      %v615 = vmul.f32 %v552, %v592
      %v616 = vmul.f32 %v557, %v592
      %v617 = vmul.f32 %v560, %v592
      %v618 = vmul.f32 %v565, %v592
      %v619 = vmul.f32 %v568, %v592
      %v620 = vmul.f32 %v573, %v592
      %v621 = vmul.f32 %v576, %v592
      %v622 = vmul.f32 %v581, %v592
      %v623 = vmul.f32 %v584, %v592
      %v624 = vld [vmem:[%s256] sm:$0x1]
      %v626 = vlaneseq
      %v627 = vshrl.u32 %v626, 7
      %v628 = vsub.s32 0, %v627
      %v629 = vrot.slane %v624, %v628
      %v631 = vadd.f32 %v594, %v629
      %v632 = vadd.f32 %v595, %v629
      %v633 = vadd.f32 %v596, %v629
      %v634 = vadd.f32 %v597, %v629
      %v635 = vadd.f32 %v598, %v629
      %v636 = vadd.f32 %v599, %v629
      %v637 = vadd.f32 %v600, %v629
      %v638 = vadd.f32 %v601, %v629
      %v639 = vadd.f32 %v602, %v629
      %v640 = vadd.f32 %v603, %v629
      %v641 = vadd.f32 %v604, %v629
      %v642 = vadd.f32 %v605, %v629
      %v643 = vadd.f32 %v606, %v629
      %v644 = vadd.f32 %v607, %v629
      %v645 = vadd.f32 %v608, %v629
      %v646 = vadd.f32 %v609, %v629
      %v647 = vadd.f32 %v610, %v629
      %v648 = vadd.f32 %v611, %v629
      %v649 = vadd.f32 %v612, %v629
      %v650 = vadd.f32 %v613, %v629
      %v651 = vadd.f32 %v614, %v629
      %v652 = vadd.f32 %v615, %v629
      %v653 = vadd.f32 %v616, %v629
      %v654 = vadd.f32 %v617, %v629
      %v655 = vadd.f32 %v618, %v629
      %v656 = vadd.f32 %v619, %v629
      %v657 = vadd.f32 %v620, %v629
      %v658 = vadd.f32 %v621, %v629
      %v659 = vadd.f32 %v622, %v629
      %v660 = vadd.f32 %v623, %v629
      %v661 = vmax.f32 %v631, 0.0
      %v662 = vmax.f32 %v632, 0.0
      %v663 = vmax.f32 %v633, 0.0
      %v664 = vmax.f32 %v634, 0.0
      %v665 = vmax.f32 %v635, 0.0
      %v666 = vmax.f32 %v636, 0.0
      %v667 = vmax.f32 %v637, 0.0
      %v668 = vmax.f32 %v638, 0.0
      %v669 = vmax.f32 %v639, 0.0
      %v670 = vmax.f32 %v640, 0.0
      %v671 = vmax.f32 %v641, 0.0
      %v672 = vmax.f32 %v642, 0.0
      %v673 = vmax.f32 %v643, 0.0
      %v674 = vmax.f32 %v644, 0.0
      %v675 = vmax.f32 %v645, 0.0
      %v676 = vmax.f32 %v646, 0.0
      %v677 = vmax.f32 %v647, 0.0
      %v678 = vmax.f32 %v648, 0.0
      %v679 = vmax.f32 %v649, 0.0
      %v680 = vmax.f32 %v650, 0.0
      %v681 = vmax.f32 %v651, 0.0
      %v682 = vmax.f32 %v652, 0.0
      %v683 = vmax.f32 %v653, 0.0
      %v684 = vmax.f32 %v654, 0.0
      %v685 = vmax.f32 %v655, 0.0
      %v686 = vmax.f32 %v656, 0.0
      %v687 = vmax.f32 %v657, 0.0
      %v688 = vmax.f32 %v658, 0.0
      %v689 = vmax.f32 %v659, 0.0
      %v690 = vmax.f32 %v660, 0.0
      %691 = vst [vmem:[%s264] sm:$0xff] %v661
      %692 = vst [vmem:[%s264 + $0x8] sm:$0xff] %v662
      %693 = vst [vmem:[%s264 + $0x10] sm:$0xff] %v663
      %694 = vst [vmem:[%s264 + $0x18] sm:$0xff] %v664
      %695 = vst [vmem:[%s264 + $0x20] sm:$0xff] %v665
      %696 = vst [vmem:[%s264 + $0x28] sm:$0xff] %v666
      %697 = vst [vmem:[%s264 + $0x30] sm:$0xff] %v667
      %698 = vst [vmem:[%s264 + $0x38] sm:$0xff] %v668
      %699 = vst [vmem:[%s264 + $0x40] sm:$0xff] %v669
      %700 = vst [vmem:[%s264 + $0x48] sm:$0xff] %v670
      %701 = vst [vmem:[%s264 + $0x50] sm:$0xff] %v671
      %702 = vst [vmem:[%s264 + $0x58] sm:$0xff] %v672
      %703 = vst [vmem:[%s264 + $0x60] sm:$0xff] %v673
      %704 = vst [vmem:[%s264 + $0x68] sm:$0xff] %v674
      %705 = vst [vmem:[%s264 + $0x70] sm:$0xff] %v675
      %706 = vst [vmem:[%s264 + $0x78] sm:$0xff] %v676
      %707 = vst [vmem:[%s264 + $0x80] sm:$0xff] %v677
      %708 = vst [vmem:[%s264 + $0x88] sm:$0xff] %v678
      %709 = vst [vmem:[%s264 + $0x90] sm:$0xff] %v679
      %710 = vst [vmem:[%s264 + $0x98] sm:$0xff] %v680
      %711 = vst [vmem:[%s264 + $0xa0] sm:$0xff] %v681
      %712 = vst [vmem:[%s264 + $0xa8] sm:$0xff] %v682
      %713 = vst [vmem:[%s264 + $0xb0] sm:$0xff] %v683
      %714 = vst [vmem:[%s264 + $0xb8] sm:$0xff] %v684
      %715 = vst [vmem:[%s264 + $0xc0] sm:$0xff] %v685
      %716 = vst [vmem:[%s264 + $0xc8] sm:$0xff] %v686
      %717 = vst [vmem:[%s264 + $0xd0] sm:$0xff] %v687
      %718 = vst [vmem:[%s264 + $0xd8] sm:$0xff] %v688
      %719 = vst [vmem:[%s264 + $0xe0] sm:$0xff] %v689
      %720 = vst [vmem:[%s264 + $0xe8] sm:$0xff] %v690
      %s721 = smul.u32 30, %s19
      %p722 = scmp.lt.s32.totalorder %s721, 59
      %s723 = scalar_select %p722, %s721, 59
      %p724 = scmp.lt.s32.totalorder %s20, 0
      %s725 = scalar_select %p724, %s20, 0
      %s726 = sadd.s32 %s725, %s723
      %s727 = smul.addr %s726, 8
      %s728 = scalar_lea.vmem %s4, %s727
      // Predicated region
      $region37: #{inception_b_forward.18} parent=35 // pred_check
        %p729 = pneg %p151
      $region38: #{inception_b_forward.18} parent=35 // pred_check_branch
        %731 = sbr.rel (%p729) target = $region40
      $region39: #{inception_b_forward.18} parent=35 // pred_region
        %s732 = smul.u32 30, %s19
      $region40: #{inception_b_forward.18} parent=35 // pred_fallthru
        _
    $region36: #{inception_b_forward.18} parent=5 // pred_fallthru
      _
    %p733 = scmp.le.s32.totalorder 2, %s10
    // Predicated region
    $region41: #{inception_b_forward.18} parent=5 // pred_check
      %p734 = pneg %p733
    $region42: #{inception_b_forward.18} parent=5 // pred_check_branch
      %736 = sbr.rel (%p734) target = $region44
    $region43: #{inception_b_forward.18} parent=5 // pred_region
      %s737 = ssub.s32 %s10, 2
      // Predicated region
      $region45: #{inception_b_forward.18} parent=43 // pred_check
        %p738 = pneg %p157
      $region46: #{inception_b_forward.18} parent=43 // pred_check_branch
        %740 = sbr.rel (%p738) target = $region48
      $region47: #{inception_b_forward.18} parent=43 // pred_region
        %s741 = smul.u32 30, %s21
        %p742 = scmp.lt.s32.totalorder %s741, 59
        %s743 = scalar_select %p742, %s741, 59
        %p744 = scmp.lt.s32.totalorder %s22, 0
        %s745 = scalar_select %p744, %s22, 0
        %s746 = sadd.s32 %s745, %s743
        %s747 = smul.addr %s746, 8
        %s748 = scalar_lea.vmem %s4, %s747
      $region48: #{inception_b_forward.18} parent=43 // pred_fallthru
        _
    $region44: #{inception_b_forward.18} parent=5 // pred_fallthru
      _
  $region6: #{inception_b_forward.18} parent=0 // loop_footer
    %s14 = sadd.s32 1, %s10
  $region7: #{inception_b_forward.18} parent=0 // loop_footer_branch
    %9 = sbr.rel target = $region3
  $region8: #{inception_b_forward.18} parent=0 // loop_exit
    _

// kernel: inception_b_forward.19
$region0: #{inception_b_forward.19}
  #allocation0 [shape = 'u32[]', space=smem, size = 0x4, offset = 0x4, fixed_abs, tag = 'smem constant byte address 0x4 - core index']
  #allocation1 [shape = 'u32[144,128]{1,0:T(1,128)}', space=vmem, size = 0x12000, scoped, tag = 'internal scratch']
  %s0 = inlined_call_operand.vmem [shape: bf16[256,48], index: 0, kind: input, shape index: {}]
  %s1 = inlined_call_operand.vmem [shape: bf16[48,128], index: 1, kind: input, shape index: {}]
  %s2 = inlined_call_operand.vmem [shape: f32[1,128], index: 2, kind: input, shape index: {}]
  %s3 = inlined_call_operand.vmem [shape: f32[1,128], index: 3, kind: input, shape index: {}]
  %s4 = inlined_call_operand.vmem [shape: f32[256,128], index: 4, kind: output, shape index: {}]
  %s5 = sld [smem:[#allocation0]]
  $region49: #{inception_b_forward.19} parent=0
    _
  %s7 = ssub.s32 1, %s5
  %s8 = scalar_select 0, %s7, %s5
  loop: start=0, step=1, limit=4
  $region2: #{inception_b_forward.19} parent=0 // loop_pre_header
    _
  $region3: #{inception_b_forward.19} parent=0 // loop_header
    %s10 = sphi 0, %s14
    %p11 = scmp.ge.s32.totalorder %s10, 4
    %s17 = sphi 0, %s29
    %s18 = sphi 0, %s25
    %s19 = sphi 0, %s17
    %s20 = sphi 0, %s18
    %s21 = sphi 0, %s19
    %s22 = sphi 0, %s20
    %s32 = sphi 0, %s34
    %s35 = sphi 0, %s32
    %s36 = sphi 0, %s35
    %s52 = sphi 0, %s36
    %s58 = sphi 0, %s60
    %s61 = sphi 0, %s58
    %s62 = sphi 0, %s61
    %s78 = sphi 0, %s62
    %s84 = sphi 0, %s86
    %s87 = sphi 0, %s84
    %s88 = sphi 0, %s87
    %s104 = sphi 0, %s88
    %s110 = sphi 0, %s112
    %s113 = sphi 0, %s110
    %s114 = sphi 0, %s113
    %s130 = sphi 0, %s114
    %s138 = sphi 0, %s140
    %s141 = sphi 0, %s138
    %s142 = sphi 0, %s141
    %s158 = sphi 0, %s142
  $region4: #{inception_b_forward.19} parent=0 // loop_header_branch
    %13 = sbr.rel (%p11) target = $region8
  $region5: #{inception_b_forward.19} parent=0 // loop_body
    %s15 = ssub.s32 %s10, 1
    %s16 = ssub.s32 %s10, 2
    %s23 = sadd.s32 1, %s18
    %p24 = scmp.ge.s32.totalorder %s23, 1
    %s25 = scalar_select %p24, 0, %s23
    %s26 = sadd.s32 1, %s17
    %s27 = scalar_select %p24, %s26, %s17
    %p28 = scmp.ge.s32.totalorder %s27, 2
    %s29 = scalar_select %p28, 0, %s27
    %s30 = ssub.s32 %s17, %s29
    %p31 = scmp.eq.s32.totalorder %s30, 0
    %s33 = sadd.s32 %s32, 1
    %s34 = scalar_select %p31, %s32, %s33
    %p37 = pneg %p31
    %p38 = scmp.eq.s32.totalorder %s10, 1
    %p39 = por %p37, %p38
    %p40 = scmp.ne.s32.totalorder %s32, %s35
    %p41 = scmp.eq.s32.totalorder %s10, 0
    %p42 = por %p40, %p41
    %p43 = scmp.ne.s32.totalorder %s32, %s35
    %p44 = scmp.eq.s32.totalorder %s15, 1
    %p45 = por %p43, %p44
    %p46 = scmp.ne.s32.totalorder %s35, %s36
    %p47 = scmp.eq.s32.totalorder %s15, 0
    %p48 = por %p46, %p47
    %p49 = scmp.ne.s32.totalorder %s35, %s36
    %p50 = scmp.eq.s32.totalorder %s16, 1
    %p51 = por %p49, %p50
    %p53 = scmp.ne.s32.totalorder %s36, %s52
    %p54 = scmp.eq.s32.totalorder %s16, 0
    %p55 = por %p53, %p54
    %s56 = ssub.s32 %s18, %s25
    %p57 = scmp.eq.s32.totalorder %s56, 0
    %s59 = sadd.s32 %s58, 1
    %s60 = scalar_select %p57, %s58, %s59
    %p63 = pneg %p57
    %p64 = scmp.eq.s32.totalorder %s10, 1
    %p65 = por %p63, %p64
    %p66 = scmp.ne.s32.totalorder %s58, %s61
    %p67 = scmp.eq.s32.totalorder %s10, 0
    %p68 = por %p66, %p67
    %p69 = scmp.ne.s32.totalorder %s58, %s61
    %p70 = scmp.eq.s32.totalorder %s15, 1
    %p71 = por %p69, %p70
    %p72 = scmp.ne.s32.totalorder %s61, %s62
    %p73 = scmp.eq.s32.totalorder %s15, 0
    %p74 = por %p72, %p73
    %p75 = scmp.ne.s32.totalorder %s61, %s62
    %p76 = scmp.eq.s32.totalorder %s16, 1
    %p77 = por %p75, %p76
    %p79 = scmp.ne.s32.totalorder %s62, %s78
    %p80 = scmp.eq.s32.totalorder %s16, 0
    %p81 = por %p79, %p80
    %s82 = ssub.s32 %s18, %s25
    %p83 = scmp.eq.s32.totalorder %s82, 0
    %s85 = sadd.s32 %s84, 1
    %s86 = scalar_select %p83, %s84, %s85
    %p89 = pneg %p83
    %p90 = scmp.eq.s32.totalorder %s10, 1
    %p91 = por %p89, %p90
    %p92 = scmp.ne.s32.totalorder %s84, %s87
    %p93 = scmp.eq.s32.totalorder %s10, 0
    %p94 = por %p92, %p93
    %p95 = scmp.ne.s32.totalorder %s84, %s87
    %p96 = scmp.eq.s32.totalorder %s15, 1
    %p97 = por %p95, %p96
    %p98 = scmp.ne.s32.totalorder %s87, %s88
    %p99 = scmp.eq.s32.totalorder %s15, 0
    %p100 = por %p98, %p99
    %p101 = scmp.ne.s32.totalorder %s87, %s88
    %p102 = scmp.eq.s32.totalorder %s16, 1
    %p103 = por %p101, %p102
    %p105 = scmp.ne.s32.totalorder %s88, %s104
    %p106 = scmp.eq.s32.totalorder %s16, 0
    %p107 = por %p105, %p106
    %s108 = ssub.s32 %s18, %s25
    %p109 = scmp.eq.s32.totalorder %s108, 0
    %s111 = sadd.s32 %s110, 1
    %s112 = scalar_select %p109, %s110, %s111
    %p115 = pneg %p109
    %p116 = scmp.eq.s32.totalorder %s10, 1
    %p117 = por %p115, %p116
    %p118 = scmp.ne.s32.totalorder %s110, %s113
    %p119 = scmp.eq.s32.totalorder %s10, 0
    %p120 = por %p118, %p119
    %p121 = scmp.ne.s32.totalorder %s110, %s113
    %p122 = scmp.eq.s32.totalorder %s15, 1
    %p123 = por %p121, %p122
    %p124 = scmp.ne.s32.totalorder %s113, %s114
    %p125 = scmp.eq.s32.totalorder %s15, 0
    %p126 = por %p124, %p125
    %p127 = scmp.ne.s32.totalorder %s113, %s114
    %p128 = scmp.eq.s32.totalorder %s16, 1
    %p129 = por %p127, %p128
    %p131 = scmp.ne.s32.totalorder %s114, %s130
    %p132 = scmp.eq.s32.totalorder %s16, 0
    %p133 = por %p131, %p132
    %s134 = ssub.s32 %s17, %s29
    %s135 = ssub.s32 %s18, %s25
    %s136 = sor.u32 %s134, %s135
    %p137 = scmp.eq.s32.totalorder %s136, 0
    %s139 = sadd.s32 %s138, 1
    %s140 = scalar_select %p137, %s138, %s139
    %p143 = pneg %p137
    %p144 = scmp.eq.s32.totalorder %s10, 1
    %p145 = por %p143, %p144
    %p146 = scmp.ne.s32.totalorder %s138, %s141
    %p147 = scmp.eq.s32.totalorder %s10, 0
    %p148 = por %p146, %p147
    %p149 = scmp.ne.s32.totalorder %s138, %s141
    %p150 = scmp.eq.s32.totalorder %s15, 1
    %p151 = por %p149, %p150
    %p152 = scmp.ne.s32.totalorder %s141, %s142
    %p153 = scmp.eq.s32.totalorder %s15, 0
    %p154 = por %p152, %p153
    %p155 = scmp.ne.s32.totalorder %s141, %s142
    %p156 = scmp.eq.s32.totalorder %s16, 1
    %p157 = por %p155, %p156
    %p159 = scmp.ne.s32.totalorder %s142, %s158
    %p160 = scmp.eq.s32.totalorder %s16, 0
    %p161 = por %p159, %p160
    %p162 = scmp.le.s32.totalorder 1, %s10
    %p163 = scmp.lt.s32.totalorder %s10, 3
    %p164 = pnand %p162, %p163
    %p165 = pneg %p164
    // Predicated region
    $region9: #{inception_b_forward.19} parent=5 // pred_check
      _
    $region10: #{inception_b_forward.19} parent=5 // pred_check_branch
      %167 = sbr.rel (%p164) target = $region12
    $region11: #{inception_b_forward.19} parent=5 // pred_region
      %s168 = ssub.s32 %s10, 1
      // Predicated region
      $region13: #{inception_b_forward.19} parent=11 // pred_check
        %p169 = pneg %p74
      $region14: #{inception_b_forward.19} parent=11 // pred_check_branch
        %171 = sbr.rel (%p169) target = $region16
      $region15: #{inception_b_forward.19} parent=11 // pred_region
        %p172 = scmp.lt.s32.totalorder %s20, 0
        %s173 = scalar_select %p172, %s20, 0
        %s174 = smul.addr %s173, 4
        %s175 = scalar_lea.vmem %s1, %s174
      $region16: #{inception_b_forward.19} parent=11 // pred_fallthru
        _
      // Predicated region
      $region17: #{inception_b_forward.19} parent=11 // pred_check
        %p176 = pneg %p100
      $region18: #{inception_b_forward.19} parent=11 // pred_check_branch
        %178 = sbr.rel (%p176) target = $region20
      $region19: #{inception_b_forward.19} parent=11 // pred_region
        %p179 = scmp.lt.s32.totalorder %s20, 0
        %s180 = scalar_select %p179, %s20, 0
        %s181 = scalar_lea.vmem %s2, %s180
      $region20: #{inception_b_forward.19} parent=11 // pred_fallthru
        _
      // Predicated region
      $region21: #{inception_b_forward.19} parent=11 // pred_check
        %p182 = pneg %p126
      $region22: #{inception_b_forward.19} parent=11 // pred_check_branch
        %184 = sbr.rel (%p182) target = $region24
      $region23: #{inception_b_forward.19} parent=11 // pred_region
        %p185 = scmp.lt.s32.totalorder %s20, 0
        %s186 = scalar_select %p185, %s20, 0
        %s187 = scalar_lea.vmem %s3, %s186
      $region24: #{inception_b_forward.19} parent=11 // pred_fallthru
        _
    $region12: #{inception_b_forward.19} parent=5 // pred_fallthru
      _
    %p188 = scmp.lt.s32.totalorder %s10, 2
    // Predicated region
    $region25: #{inception_b_forward.19} parent=5 // pred_check
      %p189 = pneg %p188
    $region26: #{inception_b_forward.19} parent=5 // pred_check_branch
      %191 = sbr.rel (%p189) target = $region28
    $region27: #{inception_b_forward.19} parent=5 // pred_region
      // Predicated region
      $region29: #{inception_b_forward.19} parent=27 // pred_check
        %p192 = pneg %p42
      $region30: #{inception_b_forward.19} parent=27 // pred_check_branch
        %194 = sbr.rel (%p192) target = $region32
      $region31: #{inception_b_forward.19} parent=27 // pred_region
        %s195 = smul.u32 16, %s17
        %p196 = scmp.lt.s32.totalorder %s195, 31
        %s197 = scalar_select %p196, %s195, 31
        %s198 = smul.addr %s197, 4
        %s199 = scalar_lea.vmem %s0, %s198
        %s200 = smul.u32 16, %s17
      $region32: #{inception_b_forward.19} parent=27 // pred_fallthru
        _
    $region28: #{inception_b_forward.19} parent=5 // pred_fallthru
      _
    %p201 = scmp.le.s32.totalorder 1, %s10
    %p202 = scmp.lt.s32.totalorder %s10, 3
    %p203 = pnand %p201, %p202
    %p204 = pneg %p203
    // Predicated region
    $region33: #{inception_b_forward.19} parent=5 // pred_check
      _
    $region34: #{inception_b_forward.19} parent=5 // pred_check_branch
      %206 = sbr.rel (%p203) target = $region36
    $region35: #{inception_b_forward.19} parent=5 // pred_region
      %s207 = ssub.s32 %s10, 1
      %s208 = smul.u32 16, %s19
      %p209 = scmp.lt.s32.totalorder %s208, 31
      %s210 = scalar_select %p209, %s208, 31
      %s211 = smul.addr %s210, 4
      %s212 = scalar_lea.vmem %s0, %s211
      %p213 = pneg %p48
      %p214 = pneg %p45
      %p215 = scmp.lt.s32.totalorder %s20, 0
      %s216 = scalar_select %p215, %s20, 0
      %s217 = smul.addr %s216, 4
      %s218 = scalar_lea.vmem %s1, %s217
      %p219 = pneg %p74
      %p220 = pneg %p71
      %p221 = scmp.lt.s32.totalorder %s20, 0
      %s222 = scalar_select %p221, %s20, 0
      %s223 = scalar_lea.vmem %s2, %s222
      %p224 = pneg %p100
      %p225 = pneg %p97
      %p226 = scmp.lt.s32.totalorder %s20, 0
      %s227 = scalar_select %p226, %s20, 0
      %s228 = scalar_lea.vmem %s3, %s227
      %p229 = pneg %p126
      %p230 = pneg %p123
      %p231 = pneg %p154
      %p232 = pneg %p151
      %s233 = smul.u32 16, %s19
      %p234 = scmp.lt.s32.totalorder %s233, 31
      %s235 = scalar_select %p234, %s233, 31
      %p236 = scmp.lt.s32.totalorder %s20, 0
      %s237 = scalar_select %p236, %s20, 0
      %s238 = sadd.s32 %s237, %s235
      %s239 = smul.addr %s238, 8
      %s240 = scalar_lea.vmem %s4, %s239
      %s241 = smul.u32 16, %s19
      %p242 = scmp.lt.s32.totalorder %s241, 31
      %s243 = scalar_select %p242, %s241, 31
      %s244 = smul.addr %s243, 4
      %s245 = scalar_lea.vmem %s0, %s244
      %s246 = smul.u32 16, %s19
      %p247 = scmp.lt.s32.totalorder %s20, 0
      %s248 = scalar_select %p247, %s20, 0
      %s249 = smul.addr %s248, 4
      %s250 = scalar_lea.vmem %s1, %s249
      %p251 = scmp.lt.s32.totalorder %s20, 0
      %s252 = scalar_select %p251, %s20, 0
      %s253 = scalar_lea.vmem %s2, %s252
      %p254 = scmp.lt.s32.totalorder %s20, 0
      %s255 = scalar_select %p254, %s20, 0
      %s256 = scalar_lea.vmem %s3, %s255
      %s257 = smul.u32 16, %s19
      %p258 = scmp.lt.s32.totalorder %s257, 31
      %s259 = scalar_select %p258, %s257, 31
      %p260 = scmp.lt.s32.totalorder %s20, 0
      %s261 = scalar_select %p260, %s20, 0
      %s262 = sadd.s32 %s261, %s259
      %s263 = smul.addr %s262, 8
      %s264 = scalar_lea.vmem %s4, %s263
      %s265 = smul.u32 16, %s19
      %v267 = vld [vmem:[%s245] sm:$0xf]
      %v268 = vld [vmem:[%s245 + $0x4] sm:$0xf]
      %v269 = vld [vmem:[%s245 + $0x8] sm:$0xf]
      %v270 = vld [vmem:[%s245 + $0xc] sm:$0xf]
      %v271 = vld [vmem:[%s245 + $0x10] sm:$0xf]
      %v272 = vld [vmem:[%s245 + $0x14] sm:$0xf]
      %v273 = vld [vmem:[%s245 + $0x18] sm:$0xf]
      %v274 = vld [vmem:[%s245 + $0x1c] sm:$0xf]
      %v275 = vld [vmem:[%s245 + $0x20] sm:$0xf]
      %v276 = vld [vmem:[%s245 + $0x24] sm:$0xf]
      %v277 = vld [vmem:[%s245 + $0x28] sm:$0xf]
      %v278 = vld [vmem:[%s245 + $0x2c] sm:$0xf]
      %v279 = vld [vmem:[%s245 + $0x30] sm:$0xf]
      %v280 = vld [vmem:[%s245 + $0x34] sm:$0xf]
      %v281 = vld [vmem:[%s245 + $0x38] sm:$0xf]
      %v282 = vld [vmem:[%s245 + $0x3c] sm:$0xf]
      %v283 = vld [vmem:[%s250] sm:$0xf]
      %v284 = vld [vmem:[%s250 + $0x4] sm:$0xf]
      %v285 = vld [vmem:[%s250 + $0x8] sm:$0xf]
      %v286 = vld [vmem:[%s250 + $0xc] sm:$0xf]
      %v287 = vld [vmem:[%s250 + $0x10] sm:$0xf]
      %v288 = vld [vmem:[%s250 + $0x14] sm:$0xf]
      %v305 = vunpack.c.l.b16 %v267
      %v306 = vunpack.c.l.b16 %v268
      %v307 = vunpack.c.l.b16 %v269
      %v308 = vunpack.c.l.b16 %v270
      %v309 = vunpack.c.l.b16 %v271
      %v310 = vunpack.c.l.b16 %v272
      %v311 = vunpack.c.l.b16 %v273
      %v312 = vunpack.c.l.b16 %v274
      %v313 = vunpack.c.l.b16 %v275
      %v314 = vunpack.c.l.b16 %v276
      %v315 = vunpack.c.l.b16 %v277
      %v316 = vunpack.c.l.b16 %v278
      %v317 = vunpack.c.l.b16 %v279
      %v318 = vunpack.c.l.b16 %v280
      %v319 = vunpack.c.l.b16 %v281
      %v320 = vunpack.c.l.b16 %v282
      %v321 = vpack.c.b16 %v306, %v305
      %v322 = vpack.c.b16 %v308, %v307
      %v323 = vpack.c.b16 %v310, %v309
      %v324 = vpack.c.b16 %v312, %v311
      %v325 = vpack.c.b16 %v314, %v313
      %v326 = vpack.c.b16 %v316, %v315
      %v327 = vpack.c.b16 %v318, %v317
      %v328 = vpack.c.b16 %v320, %v319
      %v335 = vunpack.c.l.b16 %v283
      %v336 = vunpack.c.l.b16 %v284
      %v337 = vunpack.c.l.b16 %v285
      %v338 = vunpack.c.l.b16 %v286
      %v339 = vunpack.c.l.b16 %v287
      %v340 = vunpack.c.l.b16 %v288
      %v341 = vpack.c.b16 %v336, %v335
      %v342 = vpack.c.b16 %v338, %v337
      %v343 = vpack.c.b16 %v340, %v339
      %vm347 = vcmask 392192
      %v349 = vsel %vm347, %v321, 0
      %v352 = vsel %vm347, %v322, 0
      %v355 = vsel %vm347, %v323, 0
      %v358 = vsel %vm347, %v324, 0
      %v361 = vsel %vm347, %v325, 0
      %v364 = vsel %vm347, %v326, 0
      %v367 = vsel %vm347, %v327, 0
      %v370 = vsel %vm347, %v328, 0
      %372 = vmatprep.subr.bf16.mxu0 0
      %373 = vmatpush1.bf16.msra.mxu0 %v341
      %374 = vmatprep.subr.bf16.mxu0 0
      %375 = vmatpush1.bf16.msra.mxu0 %v342
      %376 = vmatprep.subr.bf16.mxu0 0
      %377 = vmatpush1.bf16.msra.mxu0 %v343
      %378 = vmatprep.subr.bf16.mxu0 0
      %379 = vmatpush1.bf16.msra.mxu0 0
      %380 = vmatprep.subr.bf16.mxu0 0
      %381 = vmatpush1.bf16.msra.mxu0 0
      %382 = vmatprep.subr.bf16.mxu0 0
      %383 = vmatpush1.bf16.msra.mxu0 0
      %384 = vmatprep.subr.bf16.mxu0 0
      %385 = vmatpush1.bf16.msra.mxu0 0
      %386 = vmatprep.subr.bf16.mxu0 0
      %387 = vmatpush1.bf16.msra.mxu0 0
      %388 = vmatprep.subr.bf16.mxu0 0
      %389 = vmatpush1.bf16.msra.mxu0 0
      %390 = vmatprep.subr.bf16.mxu0 0
      %391 = vmatpush1.bf16.msra.mxu0 0
      %392 = vmatprep.subr.bf16.mxu0 0
      %393 = vmatpush1.bf16.msra.mxu0 0
      %394 = vmatprep.subr.bf16.mxu0 0
      %395 = vmatpush1.bf16.msra.mxu0 0
      %396 = vmatprep.subr.bf16.mxu0 0
      %397 = vmatpush1.bf16.msra.mxu0 0
      %398 = vmatprep.subr.bf16.mxu0 0
      %399 = vmatpush1.bf16.msra.mxu0 0
      %400 = vmatprep.subr.bf16.mxu0 0
      %401 = vmatpush1.bf16.msra.mxu0 0
      %402 = vmatprep.subr.bf16.mxu0 0
      %403 = vmatpush1.bf16.msra.mxu0 0
      %404 = vmatprep.mubr.bf16.mxu0 0
      %405 = vmatmul.mubr.bf16.gmra.mrb[0].mxu0 %v349
      %v406 = vpop.f32.mrb[0].mxu0
      %v407 = vadd.f32 0.0, %v406
      %v408 = vpop.f32.mrb[0].mxu0
      %v409 = vpop.f32.mrb[0].mxu0
      %v410 = vadd.f32 0.0, %v409
      %v411 = vpop.f32.mrb[0].mxu0
      %412 = vmatprep.mubr.bf16.mxu0 0
      %413 = vmatmul.mubr.bf16.gmra.mrb[0].mxu0 %v352
      %v414 = vpop.f32.mrb[0].mxu0
      %v415 = vadd.f32 0.0, %v414
      %v416 = vpop.f32.mrb[0].mxu0
      %v417 = vpop.f32.mrb[0].mxu0
      %v418 = vadd.f32 0.0, %v417
      %v419 = vpop.f32.mrb[0].mxu0
      %420 = vmatprep.mubr.bf16.mxu0 0
      %421 = vmatmul.mubr.bf16.gmra.mrb[0].mxu0 %v355
      %v422 = vpop.f32.mrb[0].mxu0
      %v423 = vadd.f32 0.0, %v422
      %v424 = vpop.f32.mrb[0].mxu0
      %v425 = vpop.f32.mrb[0].mxu0
      %v426 = vadd.f32 0.0, %v425
      %v427 = vpop.f32.mrb[0].mxu0
      %428 = vmatprep.mubr.bf16.mxu0 0
      %429 = vmatmul.mubr.bf16.gmra.mrb[0].mxu0 %v358
      %v430 = vpop.f32.mrb[0].mxu0
      %v431 = vadd.f32 0.0, %v430
      %v432 = vpop.f32.mrb[0].mxu0
      %v433 = vpop.f32.mrb[0].mxu0
      %v434 = vadd.f32 0.0, %v433
      %v435 = vpop.f32.mrb[0].mxu0
      %436 = vmatprep.mubr.bf16.mxu0 0
      %437 = vmatmul.mubr.bf16.gmra.mrb[0].mxu0 %v361
      %v438 = vpop.f32.mrb[0].mxu0
      %v439 = vadd.f32 0.0, %v438
      %v440 = vpop.f32.mrb[0].mxu0
      %v441 = vpop.f32.mrb[0].mxu0
      %v442 = vadd.f32 0.0, %v441
      %v443 = vpop.f32.mrb[0].mxu0
      %444 = vmatprep.mubr.bf16.mxu0 0
      %445 = vmatmul.mubr.bf16.gmra.mrb[0].mxu0 %v364
      %v446 = vpop.f32.mrb[0].mxu0
      %v447 = vadd.f32 0.0, %v446
      %v448 = vpop.f32.mrb[0].mxu0
      %v449 = vpop.f32.mrb[0].mxu0
      %v450 = vadd.f32 0.0, %v449
      %v451 = vpop.f32.mrb[0].mxu0
      %452 = vmatprep.mubr.bf16.mxu0 0
      %453 = vmatmul.mubr.bf16.gmra.mrb[0].mxu0 %v367
      %v454 = vpop.f32.mrb[0].mxu0
      %v455 = vadd.f32 0.0, %v454
      %v456 = vpop.f32.mrb[0].mxu0
      %v457 = vpop.f32.mrb[0].mxu0
      %v458 = vadd.f32 0.0, %v457
      %v459 = vpop.f32.mrb[0].mxu0
      %460 = vmatprep.mubr.bf16.mxu0 0
      %461 = vmatmul.mubr.bf16.gmra.mrb[0].mxu0 %v370
      %v462 = vpop.f32.mrb[0].mxu0
      %v463 = vadd.f32 0.0, %v462
      %v464 = vpop.f32.mrb[0].mxu0
      %v465 = vpop.f32.mrb[0].mxu0
      %v466 = vadd.f32 0.0, %v465
      %v467 = vpop.f32.mrb[0].mxu0
      %468 = vdwg.mxu0
      %v469 = vld [vmem:[%s253] sm:$0x1]
      %v471 = vlaneseq
      %v472 = vshrl.u32 %v471, 7
      %v473 = vsub.s32 0, %v472
      %v474 = vrot.slane %v469, %v473
      %v476 = vmul.f32 %v407, %v474
      %v477 = vmul.f32 %v410, %v474
      %v478 = vmul.f32 %v415, %v474
      %v479 = vmul.f32 %v418, %v474
      %v480 = vmul.f32 %v423, %v474
      %v481 = vmul.f32 %v426, %v474
      %v482 = vmul.f32 %v431, %v474
      %v483 = vmul.f32 %v434, %v474
      %v484 = vmul.f32 %v439, %v474
      %v485 = vmul.f32 %v442, %v474
      %v486 = vmul.f32 %v447, %v474
      %v487 = vmul.f32 %v450, %v474
      %v488 = vmul.f32 %v455, %v474
      %v489 = vmul.f32 %v458, %v474
      %v490 = vmul.f32 %v463, %v474
      %v491 = vmul.f32 %v466, %v474
      %v492 = vld [vmem:[%s256] sm:$0x1]
      %v494 = vlaneseq
      %v495 = vshrl.u32 %v494, 7
      %v496 = vsub.s32 0, %v495
      %v497 = vrot.slane %v492, %v496
      %v499 = vadd.f32 %v476, %v497
      %v500 = vadd.f32 %v477, %v497
      %v501 = vadd.f32 %v478, %v497
      %v502 = vadd.f32 %v479, %v497
      %v503 = vadd.f32 %v480, %v497
      %v504 = vadd.f32 %v481, %v497
      %v505 = vadd.f32 %v482, %v497
      %v506 = vadd.f32 %v483, %v497
      %v507 = vadd.f32 %v484, %v497
      %v508 = vadd.f32 %v485, %v497
      %v509 = vadd.f32 %v486, %v497
      %v510 = vadd.f32 %v487, %v497
      %v511 = vadd.f32 %v488, %v497
      %v512 = vadd.f32 %v489, %v497
      %v513 = vadd.f32 %v490, %v497
      %v514 = vadd.f32 %v491, %v497
      %v515 = vmax.f32 %v499, 0.0
      %v516 = vmax.f32 %v500, 0.0
      %v517 = vmax.f32 %v501, 0.0
      %v518 = vmax.f32 %v502, 0.0
      %v519 = vmax.f32 %v503, 0.0
      %v520 = vmax.f32 %v504, 0.0
      %v521 = vmax.f32 %v505, 0.0
      %v522 = vmax.f32 %v506, 0.0
      %v523 = vmax.f32 %v507, 0.0
      %v524 = vmax.f32 %v508, 0.0
      %v525 = vmax.f32 %v509, 0.0
      %v526 = vmax.f32 %v510, 0.0
      %v527 = vmax.f32 %v511, 0.0
      %v528 = vmax.f32 %v512, 0.0
      %v529 = vmax.f32 %v513, 0.0
      %v530 = vmax.f32 %v514, 0.0
      %531 = vst [vmem:[%s264] sm:$0xff] %v515
      %532 = vst [vmem:[%s264 + $0x8] sm:$0xff] %v516
      %533 = vst [vmem:[%s264 + $0x10] sm:$0xff] %v517
      %534 = vst [vmem:[%s264 + $0x18] sm:$0xff] %v518
      %535 = vst [vmem:[%s264 + $0x20] sm:$0xff] %v519
      %536 = vst [vmem:[%s264 + $0x28] sm:$0xff] %v520
      %537 = vst [vmem:[%s264 + $0x30] sm:$0xff] %v521
      %538 = vst [vmem:[%s264 + $0x38] sm:$0xff] %v522
      %539 = vst [vmem:[%s264 + $0x40] sm:$0xff] %v523
      %540 = vst [vmem:[%s264 + $0x48] sm:$0xff] %v524
      %541 = vst [vmem:[%s264 + $0x50] sm:$0xff] %v525
      %542 = vst [vmem:[%s264 + $0x58] sm:$0xff] %v526
      %543 = vst [vmem:[%s264 + $0x60] sm:$0xff] %v527
      %544 = vst [vmem:[%s264 + $0x68] sm:$0xff] %v528
      %545 = vst [vmem:[%s264 + $0x70] sm:$0xff] %v529
      %546 = vst [vmem:[%s264 + $0x78] sm:$0xff] %v530
      %s547 = smul.u32 16, %s19
      %p548 = scmp.lt.s32.totalorder %s547, 31
      %s549 = scalar_select %p548, %s547, 31
      %p550 = scmp.lt.s32.totalorder %s20, 0
      %s551 = scalar_select %p550, %s20, 0
      %s552 = sadd.s32 %s551, %s549
      %s553 = smul.addr %s552, 8
      %s554 = scalar_lea.vmem %s4, %s553
      // Predicated region
      $region37: #{inception_b_forward.19} parent=35 // pred_check
        %p555 = pneg %p151
      $region38: #{inception_b_forward.19} parent=35 // pred_check_branch
        %557 = sbr.rel (%p555) target = $region40
      $region39: #{inception_b_forward.19} parent=35 // pred_region
        %s558 = smul.u32 16, %s19
      $region40: #{inception_b_forward.19} parent=35 // pred_fallthru
        _
    $region36: #{inception_b_forward.19} parent=5 // pred_fallthru
      _
    %p559 = scmp.le.s32.totalorder 2, %s10
    // Predicated region
    $region41: #{inception_b_forward.19} parent=5 // pred_check
      %p560 = pneg %p559
    $region42: #{inception_b_forward.19} parent=5 // pred_check_branch
      %562 = sbr.rel (%p560) target = $region44
    $region43: #{inception_b_forward.19} parent=5 // pred_region
      %s563 = ssub.s32 %s10, 2
      // Predicated region
      $region45: #{inception_b_forward.19} parent=43 // pred_check
        %p564 = pneg %p157
      $region46: #{inception_b_forward.19} parent=43 // pred_check_branch
        %566 = sbr.rel (%p564) target = $region48
      $region47: #{inception_b_forward.19} parent=43 // pred_region
        %s567 = smul.u32 16, %s21
        %p568 = scmp.lt.s32.totalorder %s567, 31
        %s569 = scalar_select %p568, %s567, 31
        %p570 = scmp.lt.s32.totalorder %s22, 0
        %s571 = scalar_select %p570, %s22, 0
        %s572 = sadd.s32 %s571, %s569
        %s573 = smul.addr %s572, 8
        %s574 = scalar_lea.vmem %s4, %s573
      $region48: #{inception_b_forward.19} parent=43 // pred_fallthru
        _
    $region44: #{inception_b_forward.19} parent=5 // pred_fallthru
      _
  $region6: #{inception_b_forward.19} parent=0 // loop_footer
    %s14 = sadd.s32 1, %s10
  $region7: #{inception_b_forward.19} parent=0 // loop_footer_branch
    %9 = sbr.rel target = $region3
  $region8: #{inception_b_forward.19} parent=0 // loop_exit
    _

// kernel: reverse.6
$region0: #{reverse.6}
  #allocation0 [shape = 's32[1]{0}', space=sflag, size = 0x4, scoped, tag = 'scoped memory for reverse.6']
  %s0 = inlined_call_operand.vmem [shape: f32[2,24,15,7], index: 0, kind: input, shape index: {}]
  %s1 = inlined_call_operand.vmem [shape: f32[2,24,15,7], index: 1, kind: output, shape index: {}]
  %s2 = scalar_lea.vmem %s0, 96
  %v3 = vld [vmem:[%s2] sm:$0xff]
  %4 = vst [vmem:[%s1] sm:$0xff] %v3
  %s5 = scalar_lea.vmem %s0, 208
  %v6 = vld [vmem:[%s5] sm:$0xff]
  %s7 = scalar_lea.vmem %s1, 112
  %8 = vst [vmem:[%s7] sm:$0xff] %v6
  %s9 = scalar_lea.vmem %s0, 80
  %v10 = vld [vmem:[%s9] sm:$0xff]
  %s11 = scalar_lea.vmem %s1, 16
  %12 = vst [vmem:[%s11] sm:$0xff] %v10
  %s13 = scalar_lea.vmem %s0, 192
  %v14 = vld [vmem:[%s13] sm:$0xff]
  %s15 = scalar_lea.vmem %s1, 128
  %16 = vst [vmem:[%s15] sm:$0xff] %v14
  %s17 = scalar_lea.vmem %s0, 64
  %v18 = vld [vmem:[%s17] sm:$0xff]
  %s19 = scalar_lea.vmem %s1, 32
  %20 = vst [vmem:[%s19] sm:$0xff] %v18
  %s21 = scalar_lea.vmem %s0, 176
  %v22 = vld [vmem:[%s21] sm:$0xff]
  %s23 = scalar_lea.vmem %s1, 144
  %24 = vst [vmem:[%s23] sm:$0xff] %v22
  %s25 = scalar_lea.vmem %s0, 48
  %v26 = vld [vmem:[%s25] sm:$0xff]
  %s27 = scalar_lea.vmem %s1, 48
  %28 = vst [vmem:[%s27] sm:$0xff] %v26
  %s29 = scalar_lea.vmem %s0, 160
  %v30 = vld [vmem:[%s29] sm:$0xff]
  %s31 = scalar_lea.vmem %s1, 160
  %32 = vst [vmem:[%s31] sm:$0xff] %v30
  %s33 = scalar_lea.vmem %s0, 32
  %v34 = vld [vmem:[%s33] sm:$0xff]
  %s35 = scalar_lea.vmem %s1, 64
  %36 = vst [vmem:[%s35] sm:$0xff] %v34
  %s37 = scalar_lea.vmem %s0, 144
  %v38 = vld [vmem:[%s37] sm:$0xff]
  %s39 = scalar_lea.vmem %s1, 176
  %40 = vst [vmem:[%s39] sm:$0xff] %v38
  %s41 = scalar_lea.vmem %s0, 16
  %v42 = vld [vmem:[%s41] sm:$0xff]
  %s43 = scalar_lea.vmem %s1, 80
  %44 = vst [vmem:[%s43] sm:$0xff] %v42
  %s45 = scalar_lea.vmem %s0, 128
  %v46 = vld [vmem:[%s45] sm:$0xff]
  %s47 = scalar_lea.vmem %s1, 192
  %48 = vst [vmem:[%s47] sm:$0xff] %v46
  %v49 = vld [vmem:[%s0] sm:$0xff]
  %s50 = scalar_lea.vmem %s1, 96
  %51 = vst [vmem:[%s50] sm:$0xff] %v49
  %s52 = scalar_lea.vmem %s0, 112
  %v53 = vld [vmem:[%s52] sm:$0xff]
  %s54 = scalar_lea.vmem %s1, 208
  %55 = vst [vmem:[%s54] sm:$0xff] %v53
  %s56 = scalar_lea.vmem %s0, 104
  %v57 = vld [vmem:[%s56] sm:$0xff]
  %s58 = scalar_lea.vmem %s1, 8
  %59 = vst [vmem:[%s58] sm:$0xff] %v57
  %s60 = scalar_lea.vmem %s0, 216
  %v61 = vld [vmem:[%s60] sm:$0xff]
  %s62 = scalar_lea.vmem %s1, 120
  %63 = vst [vmem:[%s62] sm:$0xff] %v61
  %s64 = scalar_lea.vmem %s0, 88
  %v65 = vld [vmem:[%s64] sm:$0xff]
  %s66 = scalar_lea.vmem %s1, 24
  %67 = vst [vmem:[%s66] sm:$0xff] %v65
  %s68 = scalar_lea.vmem %s0, 200
  %v69 = vld [vmem:[%s68] sm:$0xff]
  %s70 = scalar_lea.vmem %s1, 136
  %71 = vst [vmem:[%s70] sm:$0xff] %v69
  %s72 = scalar_lea.vmem %s0, 72
  %v73 = vld [vmem:[%s72] sm:$0xff]
  %s74 = scalar_lea.vmem %s1, 40
  %75 = vst [vmem:[%s74] sm:$0xff] %v73
  %s76 = scalar_lea.vmem %s0, 184
  %v77 = vld [vmem:[%s76] sm:$0xff]
  %s78 = scalar_lea.vmem %s1, 152
  %79 = vst [vmem:[%s78] sm:$0xff] %v77
  %s80 = scalar_lea.vmem %s0, 56
  %v81 = vld [vmem:[%s80] sm:$0xff]
  %s82 = scalar_lea.vmem %s1, 56
  %83 = vst [vmem:[%s82] sm:$0xff] %v81
  %s84 = scalar_lea.vmem %s0, 168
  %v85 = vld [vmem:[%s84] sm:$0xff]
  %s86 = scalar_lea.vmem %s1, 168
  %87 = vst [vmem:[%s86] sm:$0xff] %v85
  %s88 = scalar_lea.vmem %s0, 40
  %v89 = vld [vmem:[%s88] sm:$0xff]
  %s90 = scalar_lea.vmem %s1, 72
  %91 = vst [vmem:[%s90] sm:$0xff] %v89
  %s92 = scalar_lea.vmem %s0, 152
  %v93 = vld [vmem:[%s92] sm:$0xff]
  %s94 = scalar_lea.vmem %s1, 184
  %95 = vst [vmem:[%s94] sm:$0xff] %v93
  %s96 = scalar_lea.vmem %s0, 24
  %v97 = vld [vmem:[%s96] sm:$0xff]
  %s98 = scalar_lea.vmem %s1, 88
  %99 = vst [vmem:[%s98] sm:$0xff] %v97
  %s100 = scalar_lea.vmem %s0, 136
  %v101 = vld [vmem:[%s100] sm:$0xff]
  %s102 = scalar_lea.vmem %s1, 200
  %103 = vst [vmem:[%s102] sm:$0xff] %v101
  %s104 = scalar_lea.vmem %s0, 8
  %v105 = vld [vmem:[%s104] sm:$0xff]
  %s106 = scalar_lea.vmem %s1, 104
  %107 = vst [vmem:[%s106] sm:$0xff] %v105
  %s108 = scalar_lea.vmem %s0, 120
  %v109 = vld [vmem:[%s108] sm:$0xff]
  %s110 = scalar_lea.vmem %s1, 216
  %111 = vst [vmem:[%s110] sm:$0xff] %v109

// kernel: inception_b_forward.20
$region0: #{inception_b_forward.20}
  #allocation0 [shape = 'u32[]', space=smem, size = 0x4, offset = 0x4, fixed_abs, tag = 'smem constant byte address 0x4 - core index']
  #allocation1 [shape = 'u32[144,128]{1,0:T(1,128)}', space=vmem, size = 0x12000, scoped, tag = 'internal scratch']
  %s0 = inlined_call_operand.vmem [shape: bf16[480,608], index: 0, kind: input, shape index: {}]
  %s1 = inlined_call_operand.vmem [shape: bf16[608,128], index: 1, kind: input, shape index: {}]
  %s2 = inlined_call_operand.vmem [shape: f32[1,128], index: 2, kind: input, shape index: {}]
  %s3 = inlined_call_operand.vmem [shape: f32[1,128], index: 3, kind: input, shape index: {}]
  %s4 = inlined_call_operand.vmem [shape: bf16[480,128], index: 4, kind: output, shape index: {}]
  %s5 = sld [smem:[#allocation0]]
  $region49: #{inception_b_forward.20} parent=0
    _
  %s7 = ssub.s32 1, %s5
  %s8 = scalar_select 0, %s7, %s5
  loop: start=0, step=1, limit=4
  $region2: #{inception_b_forward.20} parent=0 // loop_pre_header
    _
  $region3: #{inception_b_forward.20} parent=0 // loop_header
    %s10 = sphi 0, %s14
    %p11 = scmp.ge.s32.totalorder %s10, 4
    %s17 = sphi 0, %s29
    %s18 = sphi 0, %s25
    %s19 = sphi 0, %s17
    %s20 = sphi 0, %s18
    %s21 = sphi 0, %s19
    %s22 = sphi 0, %s20
    %s32 = sphi 0, %s34
    %s35 = sphi 0, %s32
    %s36 = sphi 0, %s35
    %s52 = sphi 0, %s36
    %s58 = sphi 0, %s60
    %s61 = sphi 0, %s58
    %s62 = sphi 0, %s61
    %s78 = sphi 0, %s62
    %s84 = sphi 0, %s86
    %s87 = sphi 0, %s84
    %s88 = sphi 0, %s87
    %s104 = sphi 0, %s88
    %s110 = sphi 0, %s112
    %s113 = sphi 0, %s110
    %s114 = sphi 0, %s113
    %s130 = sphi 0, %s114
    %s138 = sphi 0, %s140
    %s141 = sphi 0, %s138
    %s142 = sphi 0, %s141
    %s158 = sphi 0, %s142
  $region4: #{inception_b_forward.20} parent=0 // loop_header_branch
    %13 = sbr.rel (%p11) target = $region8
  $region5: #{inception_b_forward.20} parent=0 // loop_body
    %s15 = ssub.s32 %s10, 1
    %s16 = ssub.s32 %s10, 2
    %s23 = sadd.s32 1, %s18
    %p24 = scmp.ge.s32.totalorder %s23, 1
    %s25 = scalar_select %p24, 0, %s23
    %s26 = sadd.s32 1, %s17
    %s27 = scalar_select %p24, %s26, %s17
    %p28 = scmp.ge.s32.totalorder %s27, 2
    %s29 = scalar_select %p28, 0, %s27
    %s30 = ssub.s32 %s17, %s29
    %p31 = scmp.eq.s32.totalorder %s30, 0
    %s33 = sadd.s32 %s32, 1
    %s34 = scalar_select %p31, %s32, %s33
    %p37 = pneg %p31
    %p38 = scmp.eq.s32.totalorder %s10, 1
    %p39 = por %p37, %p38
    %p40 = scmp.ne.s32.totalorder %s32, %s35
    %p41 = scmp.eq.s32.totalorder %s10, 0
    %p42 = por %p40, %p41
    %p43 = scmp.ne.s32.totalorder %s32, %s35
    %p44 = scmp.eq.s32.totalorder %s15, 1
    %p45 = por %p43, %p44
    %p46 = scmp.ne.s32.totalorder %s35, %s36
    %p47 = scmp.eq.s32.totalorder %s15, 0
    %p48 = por %p46, %p47
    %p49 = scmp.ne.s32.totalorder %s35, %s36
    %p50 = scmp.eq.s32.totalorder %s16, 1
    %p51 = por %p49, %p50
    %p53 = scmp.ne.s32.totalorder %s36, %s52
    %p54 = scmp.eq.s32.totalorder %s16, 0
    %p55 = por %p53, %p54
    %s56 = ssub.s32 %s18, %s25
    %p57 = scmp.eq.s32.totalorder %s56, 0
    %s59 = sadd.s32 %s58, 1
    %s60 = scalar_select %p57, %s58, %s59
    %p63 = pneg %p57
    %p64 = scmp.eq.s32.totalorder %s10, 1
    %p65 = por %p63, %p64
    %p66 = scmp.ne.s32.totalorder %s58, %s61
    %p67 = scmp.eq.s32.totalorder %s10, 0
    %p68 = por %p66, %p67
    %p69 = scmp.ne.s32.totalorder %s58, %s61
    %p70 = scmp.eq.s32.totalorder %s15, 1
    %p71 = por %p69, %p70
    %p72 = scmp.ne.s32.totalorder %s61, %s62
    %p73 = scmp.eq.s32.totalorder %s15, 0
    %p74 = por %p72, %p73
    %p75 = scmp.ne.s32.totalorder %s61, %s62
    %p76 = scmp.eq.s32.totalorder %s16, 1
    %p77 = por %p75, %p76
    %p79 = scmp.ne.s32.totalorder %s62, %s78
    %p80 = scmp.eq.s32.totalorder %s16, 0
    %p81 = por %p79, %p80
    %s82 = ssub.s32 %s18, %s25
    %p83 = scmp.eq.s32.totalorder %s82, 0
    %s85 = sadd.s32 %s84, 1
    %s86 = scalar_select %p83, %s84, %s85
    %p89 = pneg %p83
    %p90 = scmp.eq.s32.totalorder %s10, 1
    %p91 = por %p89, %p90
    %p92 = scmp.ne.s32.totalorder %s84, %s87
    %p93 = scmp.eq.s32.totalorder %s10, 0
    %p94 = por %p92, %p93
    %p95 = scmp.ne.s32.totalorder %s84, %s87
    %p96 = scmp.eq.s32.totalorder %s15, 1
    %p97 = por %p95, %p96
    %p98 = scmp.ne.s32.totalorder %s87, %s88
    %p99 = scmp.eq.s32.totalorder %s15, 0
    %p100 = por %p98, %p99
    %p101 = scmp.ne.s32.totalorder %s87, %s88
    %p102 = scmp.eq.s32.totalorder %s16, 1
    %p103 = por %p101, %p102
    %p105 = scmp.ne.s32.totalorder %s88, %s104
    %p106 = scmp.eq.s32.totalorder %s16, 0
    %p107 = por %p105, %p106
    %s108 = ssub.s32 %s18, %s25
    %p109 = scmp.eq.s32.totalorder %s108, 0
    %s111 = sadd.s32 %s110, 1
    %s112 = scalar_select %p109, %s110, %s111
    %p115 = pneg %p109
    %p116 = scmp.eq.s32.totalorder %s10, 1
    %p117 = por %p115, %p116
    %p118 = scmp.ne.s32.totalorder %s110, %s113
    %p119 = scmp.eq.s32.totalorder %s10, 0
    %p120 = por %p118, %p119
    %p121 = scmp.ne.s32.totalorder %s110, %s113
    %p122 = scmp.eq.s32.totalorder %s15, 1
    %p123 = por %p121, %p122
    %p124 = scmp.ne.s32.totalorder %s113, %s114
    %p125 = scmp.eq.s32.totalorder %s15, 0
    %p126 = por %p124, %p125
    %p127 = scmp.ne.s32.totalorder %s113, %s114
    %p128 = scmp.eq.s32.totalorder %s16, 1
    %p129 = por %p127, %p128
    %p131 = scmp.ne.s32.totalorder %s114, %s130
    %p132 = scmp.eq.s32.totalorder %s16, 0
    %p133 = por %p131, %p132
    %s134 = ssub.s32 %s17, %s29
    %s135 = ssub.s32 %s18, %s25
    %s136 = sor.u32 %s134, %s135
    %p137 = scmp.eq.s32.totalorder %s136, 0
    %s139 = sadd.s32 %s138, 1
    %s140 = scalar_select %p137, %s138, %s139
    %p143 = pneg %p137
    %p144 = scmp.eq.s32.totalorder %s10, 1
    %p145 = por %p143, %p144
    %p146 = scmp.ne.s32.totalorder %s138, %s141
    %p147 = scmp.eq.s32.totalorder %s10, 0
    %p148 = por %p146, %p147
    %p149 = scmp.ne.s32.totalorder %s138, %s141
    %p150 = scmp.eq.s32.totalorder %s15, 1
    %p151 = por %p149, %p150
    %p152 = scmp.ne.s32.totalorder %s141, %s142
    %p153 = scmp.eq.s32.totalorder %s15, 0
    %p154 = por %p152, %p153
    %p155 = scmp.ne.s32.totalorder %s141, %s142
    %p156 = scmp.eq.s32.totalorder %s16, 1
    %p157 = por %p155, %p156
    %p159 = scmp.ne.s32.totalorder %s142, %s158
    %p160 = scmp.eq.s32.totalorder %s16, 0
    %p161 = por %p159, %p160
    %p162 = scmp.le.s32.totalorder 1, %s10
    %p163 = scmp.lt.s32.totalorder %s10, 3
    %p164 = pnand %p162, %p163
    %p165 = pneg %p164
    // Predicated region
    $region9: #{inception_b_forward.20} parent=5 // pred_check
      _
    $region10: #{inception_b_forward.20} parent=5 // pred_check_branch
      %167 = sbr.rel (%p164) target = $region12
    $region11: #{inception_b_forward.20} parent=5 // pred_region
      %s168 = ssub.s32 %s10, 1
      // Predicated region
      $region13: #{inception_b_forward.20} parent=11 // pred_check
        %p169 = pneg %p74
      $region14: #{inception_b_forward.20} parent=11 // pred_check_branch
        %171 = sbr.rel (%p169) target = $region16
      $region15: #{inception_b_forward.20} parent=11 // pred_region
        %p172 = scmp.lt.s32.totalorder %s20, 0
        %s173 = scalar_select %p172, %s20, 0
        %s174 = smul.addr %s173, 4
        %s175 = scalar_lea.vmem %s1, %s174
      $region16: #{inception_b_forward.20} parent=11 // pred_fallthru
        _
      // Predicated region
      $region17: #{inception_b_forward.20} parent=11 // pred_check
        %p176 = pneg %p100
      $region18: #{inception_b_forward.20} parent=11 // pred_check_branch
        %178 = sbr.rel (%p176) target = $region20
      $region19: #{inception_b_forward.20} parent=11 // pred_region
        %p179 = scmp.lt.s32.totalorder %s20, 0
        %s180 = scalar_select %p179, %s20, 0
        %s181 = scalar_lea.vmem %s2, %s180
      $region20: #{inception_b_forward.20} parent=11 // pred_fallthru
        _
      // Predicated region
      $region21: #{inception_b_forward.20} parent=11 // pred_check
        %p182 = pneg %p126
      $region22: #{inception_b_forward.20} parent=11 // pred_check_branch
        %184 = sbr.rel (%p182) target = $region24
      $region23: #{inception_b_forward.20} parent=11 // pred_region
        %p185 = scmp.lt.s32.totalorder %s20, 0
        %s186 = scalar_select %p185, %s20, 0
        %s187 = scalar_lea.vmem %s3, %s186
      $region24: #{inception_b_forward.20} parent=11 // pred_fallthru
        _
    $region12: #{inception_b_forward.20} parent=5 // pred_fallthru
      _
    %p188 = scmp.lt.s32.totalorder %s10, 2
    // Predicated region
    $region25: #{inception_b_forward.20} parent=5 // pred_check
      %p189 = pneg %p188
    $region26: #{inception_b_forward.20} parent=5 // pred_check_branch
      %191 = sbr.rel (%p189) target = $region28
    $region27: #{inception_b_forward.20} parent=5 // pred_region
      // Predicated region
      $region29: #{inception_b_forward.20} parent=27 // pred_check
        %p192 = pneg %p42
      $region30: #{inception_b_forward.20} parent=27 // pred_check_branch
        %194 = sbr.rel (%p192) target = $region32
      $region31: #{inception_b_forward.20} parent=27 // pred_region
        %s195 = smul.u32 30, %s17
        %p196 = scmp.lt.s32.totalorder %s195, 59
        %s197 = scalar_select %p196, %s195, 59
        %s198 = smul.addr %s197, 5
        %s199 = smul.addr %s198, 4
        %s200 = scalar_lea.vmem %s0, %s199
        %s201 = smul.u32 30, %s17
      $region32: #{inception_b_forward.20} parent=27 // pred_fallthru
        _
    $region28: #{inception_b_forward.20} parent=5 // pred_fallthru
      _
    %p202 = scmp.le.s32.totalorder 1, %s10
    %p203 = scmp.lt.s32.totalorder %s10, 3
    %p204 = pnand %p202, %p203
    %p205 = pneg %p204
    // Predicated region
    $region33: #{inception_b_forward.20} parent=5 // pred_check
      _
    $region34: #{inception_b_forward.20} parent=5 // pred_check_branch
      %207 = sbr.rel (%p204) target = $region36
    $region35: #{inception_b_forward.20} parent=5 // pred_region
      %s208 = ssub.s32 %s10, 1
      %s209 = smul.u32 30, %s19
      %p210 = scmp.lt.s32.totalorder %s209, 59
      %s211 = scalar_select %p210, %s209, 59
      %s212 = smul.addr %s211, 5
      %s213 = smul.addr %s212, 4
      %s214 = scalar_lea.vmem %s0, %s213
      %p215 = pneg %p48
      %p216 = pneg %p45
      %p217 = scmp.lt.s32.totalorder %s20, 0
      %s218 = scalar_select %p217, %s20, 0
      %s219 = smul.addr %s218, 4
      %s220 = scalar_lea.vmem %s1, %s219
      %p221 = pneg %p74
      %p222 = pneg %p71
      %p223 = scmp.lt.s32.totalorder %s20, 0
      %s224 = scalar_select %p223, %s20, 0
      %s225 = scalar_lea.vmem %s2, %s224
      %p226 = pneg %p100
      %p227 = pneg %p97
      %p228 = scmp.lt.s32.totalorder %s20, 0
      %s229 = scalar_select %p228, %s20, 0
      %s230 = scalar_lea.vmem %s3, %s229
      %p231 = pneg %p126
      %p232 = pneg %p123
      %p233 = pneg %p154
      %p234 = pneg %p151
      %s235 = smul.u32 30, %s19
      %p236 = scmp.lt.s32.totalorder %s235, 59
      %s237 = scalar_select %p236, %s235, 59
      %p238 = scmp.lt.s32.totalorder %s20, 0
      %s239 = scalar_select %p238, %s20, 0
      %s240 = sadd.s32 %s239, %s237
      %s241 = smul.addr %s240, 4
      %s242 = scalar_lea.vmem %s4, %s241
      %s243 = smul.u32 30, %s19
      %p244 = scmp.lt.s32.totalorder %s243, 59
      %s245 = scalar_select %p244, %s243, 59
      %s246 = smul.addr %s245, 5
      %s247 = smul.addr %s246, 4
      %s248 = scalar_lea.vmem %s0, %s247
      %s249 = smul.u32 30, %s19
      %p250 = scmp.lt.s32.totalorder %s20, 0
      %s251 = scalar_select %p250, %s20, 0
      %s252 = smul.addr %s251, 4
      %s253 = scalar_lea.vmem %s1, %s252
      %p254 = scmp.lt.s32.totalorder %s20, 0
      %s255 = scalar_select %p254, %s20, 0
      %s256 = scalar_lea.vmem %s2, %s255
      %p257 = scmp.lt.s32.totalorder %s20, 0
      %s258 = scalar_select %p257, %s20, 0
      %s259 = scalar_lea.vmem %s3, %s258
      %s260 = smul.u32 30, %s19
      %p261 = scmp.lt.s32.totalorder %s260, 59
      %s262 = scalar_select %p261, %s260, 59
      %p263 = scmp.lt.s32.totalorder %s20, 0
      %s264 = scalar_select %p263, %s20, 0
      %s265 = sadd.s32 %s264, %s262
      %s266 = smul.addr %s265, 4
      %s267 = scalar_lea.vmem %s4, %s266
      %s268 = smul.u32 30, %s19
      %v270 = vld [vmem:[%s248] sm:$0xff]
      %v271 = vld [vmem:[%s248 + $0x8] sm:$0xff]
      %v272 = vld [vmem:[%s248 + $0x10] sm:$0xf]
      %v273 = vld [vmem:[%s248 + $0x14] sm:$0xff]
      %v274 = vld [vmem:[%s248 + $0x1c] sm:$0xff]
      %v275 = vld [vmem:[%s248 + $0x24] sm:$0xf]
      %v276 = vld [vmem:[%s248 + $0x28] sm:$0xff]
      %v277 = vld [vmem:[%s248 + $0x30] sm:$0xff]
      %v278 = vld [vmem:[%s248 + $0x38] sm:$0xf]
      %v279 = vld [vmem:[%s248 + $0x3c] sm:$0xff]
      %v280 = vld [vmem:[%s248 + $0x44] sm:$0xff]
      %v281 = vld [vmem:[%s248 + $0x4c] sm:$0xf]
      %v282 = vld [vmem:[%s248 + $0x50] sm:$0xff]
      %v283 = vld [vmem:[%s248 + $0x58] sm:$0xff]
      %v284 = vld [vmem:[%s248 + $0x60] sm:$0xf]
      %v285 = vld [vmem:[%s248 + $0x64] sm:$0xff]
      %v286 = vld [vmem:[%s248 + $0x6c] sm:$0xff]
      %v287 = vld [vmem:[%s248 + $0x74] sm:$0xf]
      %v288 = vld [vmem:[%s248 + $0x78] sm:$0xff]
      %v289 = vld [vmem:[%s248 + $0x80] sm:$0xff]
      %v290 = vld [vmem:[%s248 + $0x88] sm:$0xf]
      %v291 = vld [vmem:[%s248 + $0x8c] sm:$0xff]
      %v292 = vld [vmem:[%s248 + $0x94] sm:$0xff]
      %v293 = vld [vmem:[%s248 + $0x9c] sm:$0xf]
      %v294 = vld [vmem:[%s248 + $0xa0] sm:$0xff]
      %v295 = vld [vmem:[%s248 + $0xa8] sm:$0xff]
      %v296 = vld [vmem:[%s248 + $0xb0] sm:$0xf]
      %v297 = vld [vmem:[%s248 + $0xb4] sm:$0xff]
      %v298 = vld [vmem:[%s248 + $0xbc] sm:$0xff]
      %v299 = vld [vmem:[%s248 + $0xc4] sm:$0xf]
      %v300 = vld [vmem:[%s248 + $0xc8] sm:$0xff]
      %v301 = vld [vmem:[%s248 + $0xd0] sm:$0xff]
      %v302 = vld [vmem:[%s248 + $0xd8] sm:$0xf]
      %v303 = vld [vmem:[%s248 + $0xdc] sm:$0xff]
      %v304 = vld [vmem:[%s248 + $0xe4] sm:$0xff]
      %v305 = vld [vmem:[%s248 + $0xec] sm:$0xf]
      %v306 = vld [vmem:[%s248 + $0xf0] sm:$0xff]
      %v307 = vld [vmem:[%s248 + $0xf8] sm:$0xff]
      %v308 = vld [vmem:[%s248 + $0x100] sm:$0xf]
      %v309 = vld [vmem:[%s248 + $0x104] sm:$0xff]
      %v310 = vld [vmem:[%s248 + $0x10c] sm:$0xff]
      %v311 = vld [vmem:[%s248 + $0x114] sm:$0xf]
      %v312 = vld [vmem:[%s248 + $0x118] sm:$0xff]
      %v313 = vld [vmem:[%s248 + $0x120] sm:$0xff]
      %v314 = vld [vmem:[%s248 + $0x128] sm:$0xf]
      %v315 = vld [vmem:[%s248 + $0x12c] sm:$0xff]
      %v316 = vld [vmem:[%s248 + $0x134] sm:$0xff]
      %v317 = vld [vmem:[%s248 + $0x13c] sm:$0xf]
      %v318 = vld [vmem:[%s248 + $0x140] sm:$0xff]
      %v319 = vld [vmem:[%s248 + $0x148] sm:$0xff]
      %v320 = vld [vmem:[%s248 + $0x150] sm:$0xf]
      %v321 = vld [vmem:[%s248 + $0x154] sm:$0xff]
      %v322 = vld [vmem:[%s248 + $0x15c] sm:$0xff]
      %v323 = vld [vmem:[%s248 + $0x164] sm:$0xf]
      %v324 = vld [vmem:[%s248 + $0x168] sm:$0xff]
      %v325 = vld [vmem:[%s248 + $0x170] sm:$0xff]
      %v326 = vld [vmem:[%s248 + $0x178] sm:$0xf]
      %v327 = vld [vmem:[%s248 + $0x17c] sm:$0xff]
      %v328 = vld [vmem:[%s248 + $0x184] sm:$0xff]
      %v329 = vld [vmem:[%s248 + $0x18c] sm:$0xf]
      %v330 = vld [vmem:[%s248 + $0x190] sm:$0xff]
      %v331 = vld [vmem:[%s248 + $0x198] sm:$0xff]
      %v332 = vld [vmem:[%s248 + $0x1a0] sm:$0xf]
      %v333 = vld [vmem:[%s248 + $0x1a4] sm:$0xff]
      %v334 = vld [vmem:[%s248 + $0x1ac] sm:$0xff]
      %v335 = vld [vmem:[%s248 + $0x1b4] sm:$0xf]
      %v336 = vld [vmem:[%s248 + $0x1b8] sm:$0xff]
      %v337 = vld [vmem:[%s248 + $0x1c0] sm:$0xff]
      %v338 = vld [vmem:[%s248 + $0x1c8] sm:$0xf]
      %v339 = vld [vmem:[%s248 + $0x1cc] sm:$0xff]
      %v340 = vld [vmem:[%s248 + $0x1d4] sm:$0xff]
      %v341 = vld [vmem:[%s248 + $0x1dc] sm:$0xf]
      %v342 = vld [vmem:[%s248 + $0x1e0] sm:$0xff]
      %v343 = vld [vmem:[%s248 + $0x1e8] sm:$0xff]
      %v344 = vld [vmem:[%s248 + $0x1f0] sm:$0xf]
      %v345 = vld [vmem:[%s248 + $0x1f4] sm:$0xff]
      %v346 = vld [vmem:[%s248 + $0x1fc] sm:$0xff]
      %v347 = vld [vmem:[%s248 + $0x204] sm:$0xf]
      %v348 = vld [vmem:[%s248 + $0x208] sm:$0xff]
      %v349 = vld [vmem:[%s248 + $0x210] sm:$0xff]
      %v350 = vld [vmem:[%s248 + $0x218] sm:$0xf]
      %v351 = vld [vmem:[%s248 + $0x21c] sm:$0xff]
      %v352 = vld [vmem:[%s248 + $0x224] sm:$0xff]
      %v353 = vld [vmem:[%s248 + $0x22c] sm:$0xf]
      %v354 = vld [vmem:[%s248 + $0x230] sm:$0xff]
      %v355 = vld [vmem:[%s248 + $0x238] sm:$0xff]
      %v356 = vld [vmem:[%s248 + $0x240] sm:$0xf]
      %v357 = vld [vmem:[%s248 + $0x244] sm:$0xff]
      %v358 = vld [vmem:[%s248 + $0x24c] sm:$0xff]
      %v359 = vld [vmem:[%s248 + $0x254] sm:$0xf]
      %v360 = vld [vmem:[%s253] sm:$0xf]
      %v361 = vld [vmem:[%s253 + $0x4] sm:$0xf]
      %v362 = vld [vmem:[%s253 + $0x8] sm:$0xf]
      %v363 = vld [vmem:[%s253 + $0xc] sm:$0xf]
      %v364 = vld [vmem:[%s253 + $0x10] sm:$0xf]
      %v365 = vld [vmem:[%s253 + $0x14] sm:$0xf]
      %v366 = vld [vmem:[%s253 + $0x18] sm:$0xf]
      %v367 = vld [vmem:[%s253 + $0x1c] sm:$0xf]
      %v368 = vld [vmem:[%s253 + $0x20] sm:$0xf]
      %v369 = vld [vmem:[%s253 + $0x24] sm:$0xf]
      %v370 = vld [vmem:[%s253 + $0x28] sm:$0xf]
      %v371 = vld [vmem:[%s253 + $0x2c] sm:$0xf]
      %v372 = vld [vmem:[%s253 + $0x30] sm:$0xf]
      %v373 = vld [vmem:[%s253 + $0x34] sm:$0xf]
      %v374 = vld [vmem:[%s253 + $0x38] sm:$0xf]
      %v375 = vld [vmem:[%s253 + $0x3c] sm:$0xf]
      %v376 = vld [vmem:[%s253 + $0x40] sm:$0xf]
      %v377 = vld [vmem:[%s253 + $0x44] sm:$0xf]
      %v378 = vld [vmem:[%s253 + $0x48] sm:$0xf]
      %v379 = vld [vmem:[%s253 + $0x4c] sm:$0xf]
      %v380 = vld [vmem:[%s253 + $0x50] sm:$0xf]
      %v381 = vld [vmem:[%s253 + $0x54] sm:$0xf]
      %v382 = vld [vmem:[%s253 + $0x58] sm:$0xf]
      %v383 = vld [vmem:[%s253 + $0x5c] sm:$0xf]
      %v384 = vld [vmem:[%s253 + $0x60] sm:$0xf]
      %v385 = vld [vmem:[%s253 + $0x64] sm:$0xf]
      %v386 = vld [vmem:[%s253 + $0x68] sm:$0xf]
      %v387 = vld [vmem:[%s253 + $0x6c] sm:$0xf]
      %v388 = vld [vmem:[%s253 + $0x70] sm:$0xf]
      %v389 = vld [vmem:[%s253 + $0x74] sm:$0xf]
      %v390 = vld [vmem:[%s253 + $0x78] sm:$0xf]
      %v391 = vld [vmem:[%s253 + $0x7c] sm:$0xf]
      %v392 = vld [vmem:[%s253 + $0x80] sm:$0xf]
      %v393 = vld [vmem:[%s253 + $0x84] sm:$0xf]
      %v394 = vld [vmem:[%s253 + $0x88] sm:$0xf]
      %v395 = vld [vmem:[%s253 + $0x8c] sm:$0xf]
      %v396 = vld [vmem:[%s253 + $0x90] sm:$0xf]
      %v397 = vld [vmem:[%s253 + $0x94] sm:$0xf]
      %v398 = vld [vmem:[%s253 + $0x98] sm:$0xf]
      %v399 = vld [vmem:[%s253 + $0x9c] sm:$0xf]
      %v400 = vld [vmem:[%s253 + $0xa0] sm:$0xf]
      %v401 = vld [vmem:[%s253 + $0xa4] sm:$0xf]
      %v402 = vld [vmem:[%s253 + $0xa8] sm:$0xf]
      %v403 = vld [vmem:[%s253 + $0xac] sm:$0xf]
      %v404 = vld [vmem:[%s253 + $0xb0] sm:$0xf]
      %v405 = vld [vmem:[%s253 + $0xb4] sm:$0xf]
      %v406 = vld [vmem:[%s253 + $0xb8] sm:$0xf]
      %v407 = vld [vmem:[%s253 + $0xbc] sm:$0xf]
      %v408 = vld [vmem:[%s253 + $0xc0] sm:$0xf]
      %v409 = vld [vmem:[%s253 + $0xc4] sm:$0xf]
      %v410 = vld [vmem:[%s253 + $0xc8] sm:$0xf]
      %v411 = vld [vmem:[%s253 + $0xcc] sm:$0xf]
      %v412 = vld [vmem:[%s253 + $0xd0] sm:$0xf]
      %v413 = vld [vmem:[%s253 + $0xd4] sm:$0xf]
      %v414 = vld [vmem:[%s253 + $0xd8] sm:$0xf]
      %v415 = vld [vmem:[%s253 + $0xdc] sm:$0xf]
      %v416 = vld [vmem:[%s253 + $0xe0] sm:$0xf]
      %v417 = vld [vmem:[%s253 + $0xe4] sm:$0xf]
      %v418 = vld [vmem:[%s253 + $0xe8] sm:$0xf]
      %v419 = vld [vmem:[%s253 + $0xec] sm:$0xf]
      %v420 = vld [vmem:[%s253 + $0xf0] sm:$0xf]
      %v421 = vld [vmem:[%s253 + $0xf4] sm:$0xf]
      %v422 = vld [vmem:[%s253 + $0xf8] sm:$0xf]
      %v423 = vld [vmem:[%s253 + $0xfc] sm:$0xf]
      %v424 = vld [vmem:[%s253 + $0x100] sm:$0xf]
      %v425 = vld [vmem:[%s253 + $0x104] sm:$0xf]
      %v426 = vld [vmem:[%s253 + $0x108] sm:$0xf]
      %v427 = vld [vmem:[%s253 + $0x10c] sm:$0xf]
      %v428 = vld [vmem:[%s253 + $0x110] sm:$0xf]
      %v429 = vld [vmem:[%s253 + $0x114] sm:$0xf]
      %v430 = vld [vmem:[%s253 + $0x118] sm:$0xf]
      %v431 = vld [vmem:[%s253 + $0x11c] sm:$0xf]
      %v432 = vld [vmem:[%s253 + $0x120] sm:$0xf]
      %v433 = vld [vmem:[%s253 + $0x124] sm:$0xf]
      %v434 = vld [vmem:[%s253 + $0x128] sm:$0xf]
      %v435 = vld [vmem:[%s253 + $0x12c] sm:$0xf]
      %v526 = vunpack.c.l.b16 %v270
      %v527 = vunpack.c.h.b16 %v270
      %v528 = vunpack.c.l.b16 %v271
      %v529 = vunpack.c.h.b16 %v271
      %v530 = vunpack.c.l.b16 %v272
      %v531 = vunpack.c.l.b16 %v273
      %v532 = vunpack.c.h.b16 %v273
      %v533 = vunpack.c.l.b16 %v274
      %v534 = vunpack.c.h.b16 %v274
      %v535 = vunpack.c.l.b16 %v275
      %v536 = vunpack.c.l.b16 %v276
      %v537 = vunpack.c.h.b16 %v276
      %v538 = vunpack.c.l.b16 %v277
      %v539 = vunpack.c.h.b16 %v277
      %v540 = vunpack.c.l.b16 %v278
      %v541 = vunpack.c.l.b16 %v279
      %v542 = vunpack.c.h.b16 %v279
      %v543 = vunpack.c.l.b16 %v280
      %v544 = vunpack.c.h.b16 %v280
      %v545 = vunpack.c.l.b16 %v281
      %v546 = vunpack.c.l.b16 %v282
      %v547 = vunpack.c.h.b16 %v282
      %v548 = vunpack.c.l.b16 %v283
      %v549 = vunpack.c.h.b16 %v283
      %v550 = vunpack.c.l.b16 %v284
      %v551 = vunpack.c.l.b16 %v285
      %v552 = vunpack.c.h.b16 %v285
      %v553 = vunpack.c.l.b16 %v286
      %v554 = vunpack.c.h.b16 %v286
      %v555 = vunpack.c.l.b16 %v287
      %v556 = vunpack.c.l.b16 %v288
      %v557 = vunpack.c.h.b16 %v288
      %v558 = vunpack.c.l.b16 %v289
      %v559 = vunpack.c.h.b16 %v289
      %v560 = vunpack.c.l.b16 %v290
      %v561 = vunpack.c.l.b16 %v291
      %v562 = vunpack.c.h.b16 %v291
      %v563 = vunpack.c.l.b16 %v292
      %v564 = vunpack.c.h.b16 %v292
      %v565 = vunpack.c.l.b16 %v293
      %v566 = vunpack.c.l.b16 %v294
      %v567 = vunpack.c.h.b16 %v294
      %v568 = vunpack.c.l.b16 %v295
      %v569 = vunpack.c.h.b16 %v295
      %v570 = vunpack.c.l.b16 %v296
      %v571 = vunpack.c.l.b16 %v297
      %v572 = vunpack.c.h.b16 %v297
      %v573 = vunpack.c.l.b16 %v298
      %v574 = vunpack.c.h.b16 %v298
      %v575 = vunpack.c.l.b16 %v299
      %v576 = vunpack.c.l.b16 %v300
      %v577 = vunpack.c.h.b16 %v300
      %v578 = vunpack.c.l.b16 %v301
      %v579 = vunpack.c.h.b16 %v301
      %v580 = vunpack.c.l.b16 %v302
      %v581 = vunpack.c.l.b16 %v303
      %v582 = vunpack.c.h.b16 %v303
      %v583 = vunpack.c.l.b16 %v304
      %v584 = vunpack.c.h.b16 %v304
      %v585 = vunpack.c.l.b16 %v305
      %v586 = vunpack.c.l.b16 %v306
      %v587 = vunpack.c.h.b16 %v306
      %v588 = vunpack.c.l.b16 %v307
      %v589 = vunpack.c.h.b16 %v307
      %v590 = vunpack.c.l.b16 %v308
      %v591 = vunpack.c.l.b16 %v309
      %v592 = vunpack.c.h.b16 %v309
      %v593 = vunpack.c.l.b16 %v310
      %v594 = vunpack.c.h.b16 %v310
      %v595 = vunpack.c.l.b16 %v311
      %v596 = vunpack.c.l.b16 %v312
      %v597 = vunpack.c.h.b16 %v312
      %v598 = vunpack.c.l.b16 %v313
      %v599 = vunpack.c.h.b16 %v313
      %v600 = vunpack.c.l.b16 %v314
      %v601 = vunpack.c.l.b16 %v315
      %v602 = vunpack.c.h.b16 %v315
      %v603 = vunpack.c.l.b16 %v316
      %v604 = vunpack.c.h.b16 %v316
      %v605 = vunpack.c.l.b16 %v317
      %v606 = vunpack.c.l.b16 %v318
      %v607 = vunpack.c.h.b16 %v318
      %v608 = vunpack.c.l.b16 %v319
      %v609 = vunpack.c.h.b16 %v319
      %v610 = vunpack.c.l.b16 %v320
      %v611 = vunpack.c.l.b16 %v321
      %v612 = vunpack.c.h.b16 %v321
      %v613 = vunpack.c.l.b16 %v322
      %v614 = vunpack.c.h.b16 %v322
      %v615 = vunpack.c.l.b16 %v323
      %v616 = vunpack.c.l.b16 %v324
      %v617 = vunpack.c.h.b16 %v324
      %v618 = vunpack.c.l.b16 %v325
      %v619 = vunpack.c.h.b16 %v325
      %v620 = vunpack.c.l.b16 %v326
      %v621 = vunpack.c.l.b16 %v327
      %v622 = vunpack.c.h.b16 %v327
      %v623 = vunpack.c.l.b16 %v328
      %v624 = vunpack.c.h.b16 %v328
      %v625 = vunpack.c.l.b16 %v329
      %v626 = vunpack.c.l.b16 %v330
      %v627 = vunpack.c.h.b16 %v330
      %v628 = vunpack.c.l.b16 %v331
      %v629 = vunpack.c.h.b16 %v331
      %v630 = vunpack.c.l.b16 %v332
      %v631 = vunpack.c.l.b16 %v333
      %v632 = vunpack.c.h.b16 %v333
      %v633 = vunpack.c.l.b16 %v334
      %v634 = vunpack.c.h.b16 %v334
      %v635 = vunpack.c.l.b16 %v335
      %v636 = vunpack.c.l.b16 %v336
      %v637 = vunpack.c.h.b16 %v336
      %v638 = vunpack.c.l.b16 %v337
      %v639 = vunpack.c.h.b16 %v337
      %v640 = vunpack.c.l.b16 %v338
      %v641 = vunpack.c.l.b16 %v339
      %v642 = vunpack.c.h.b16 %v339
      %v643 = vunpack.c.l.b16 %v340
      %v644 = vunpack.c.h.b16 %v340
      %v645 = vunpack.c.l.b16 %v341
      %v646 = vunpack.c.l.b16 %v342
      %v647 = vunpack.c.h.b16 %v342
      %v648 = vunpack.c.l.b16 %v343
      %v649 = vunpack.c.h.b16 %v343
      %v650 = vunpack.c.l.b16 %v344
      %v651 = vunpack.c.l.b16 %v345
      %v652 = vunpack.c.h.b16 %v345
      %v653 = vunpack.c.l.b16 %v346
      %v654 = vunpack.c.h.b16 %v346
      %v655 = vunpack.c.l.b16 %v347
      %v656 = vunpack.c.l.b16 %v348
      %v657 = vunpack.c.h.b16 %v348
      %v658 = vunpack.c.l.b16 %v349
      %v659 = vunpack.c.h.b16 %v349
      %v660 = vunpack.c.l.b16 %v350
      %v661 = vunpack.c.l.b16 %v351
      %v662 = vunpack.c.h.b16 %v351
      %v663 = vunpack.c.l.b16 %v352
      %v664 = vunpack.c.h.b16 %v352
      %v665 = vunpack.c.l.b16 %v353
      %v666 = vunpack.c.l.b16 %v354
      %v667 = vunpack.c.h.b16 %v354
      %v668 = vunpack.c.l.b16 %v355
      %v669 = vunpack.c.h.b16 %v355
      %v670 = vunpack.c.l.b16 %v356
      %v671 = vunpack.c.l.b16 %v357
      %v672 = vunpack.c.h.b16 %v357
      %v673 = vunpack.c.l.b16 %v358
      %v674 = vunpack.c.h.b16 %v358
      %v675 = vunpack.c.l.b16 %v359
      %v676 = vpack.c.b16 %v531, %v526
      %v677 = vpack.c.b16 %v532, %v527
      %v678 = vpack.c.b16 %v533, %v528
      %v679 = vpack.c.b16 %v534, %v529
      %v680 = vpack.c.b16 %v535, %v530
      %v681 = vpack.c.b16 %v541, %v536
      %v682 = vpack.c.b16 %v542, %v537
      %v683 = vpack.c.b16 %v543, %v538
      %v684 = vpack.c.b16 %v544, %v539
      %v685 = vpack.c.b16 %v545, %v540
      %v686 = vpack.c.b16 %v551, %v546
      %v687 = vpack.c.b16 %v552, %v547
      %v688 = vpack.c.b16 %v553, %v548
      %v689 = vpack.c.b16 %v554, %v549
      %v690 = vpack.c.b16 %v555, %v550
      %v691 = vpack.c.b16 %v561, %v556
      %v692 = vpack.c.b16 %v562, %v557
      %v693 = vpack.c.b16 %v563, %v558
      %v694 = vpack.c.b16 %v564, %v559
      %v695 = vpack.c.b16 %v565, %v560
      %v696 = vpack.c.b16 %v571, %v566
      %v697 = vpack.c.b16 %v572, %v567
      %v698 = vpack.c.b16 %v573, %v568
      %v699 = vpack.c.b16 %v574, %v569
      %v700 = vpack.c.b16 %v575, %v570
      %v701 = vpack.c.b16 %v581, %v576
      %v702 = vpack.c.b16 %v582, %v577
      %v703 = vpack.c.b16 %v583, %v578
      %v704 = vpack.c.b16 %v584, %v579
      %v705 = vpack.c.b16 %v585, %v580
      %v706 = vpack.c.b16 %v591, %v586
      %v707 = vpack.c.b16 %v592, %v587
      %v708 = vpack.c.b16 %v593, %v588
      %v709 = vpack.c.b16 %v594, %v589
      %v710 = vpack.c.b16 %v595, %v590
      %v711 = vpack.c.b16 %v601, %v596
      %v712 = vpack.c.b16 %v602, %v597
      %v713 = vpack.c.b16 %v603, %v598
      %v714 = vpack.c.b16 %v604, %v599
      %v715 = vpack.c.b16 %v605, %v600
      %v716 = vpack.c.b16 %v611, %v606
      %v717 = vpack.c.b16 %v612, %v607
      %v718 = vpack.c.b16 %v613, %v608
      %v719 = vpack.c.b16 %v614, %v609
      %v720 = vpack.c.b16 %v615, %v610
      %v721 = vpack.c.b16 %v621, %v616
      %v722 = vpack.c.b16 %v622, %v617
      %v723 = vpack.c.b16 %v623, %v618
      %v724 = vpack.c.b16 %v624, %v619
      %v725 = vpack.c.b16 %v625, %v620
      %v726 = vpack.c.b16 %v631, %v626
      %v727 = vpack.c.b16 %v632, %v627
      %v728 = vpack.c.b16 %v633, %v628
      %v729 = vpack.c.b16 %v634, %v629
      %v730 = vpack.c.b16 %v635, %v630
      %v731 = vpack.c.b16 %v641, %v636
      %v732 = vpack.c.b16 %v642, %v637
      %v733 = vpack.c.b16 %v643, %v638
      %v734 = vpack.c.b16 %v644, %v639
      %v735 = vpack.c.b16 %v645, %v640
      %v736 = vpack.c.b16 %v651, %v646
      %v737 = vpack.c.b16 %v652, %v647
      %v738 = vpack.c.b16 %v653, %v648
      %v739 = vpack.c.b16 %v654, %v649
      %v740 = vpack.c.b16 %v655, %v650
      %v741 = vpack.c.b16 %v661, %v656
      %v742 = vpack.c.b16 %v662, %v657
      %v743 = vpack.c.b16 %v663, %v658
      %v744 = vpack.c.b16 %v664, %v659
      %v745 = vpack.c.b16 %v665, %v660
      %v746 = vpack.c.b16 %v671, %v666
      %v747 = vpack.c.b16 %v672, %v667
      %v748 = vpack.c.b16 %v673, %v668
      %v749 = vpack.c.b16 %v674, %v669
      %v750 = vpack.c.b16 %v675, %v670
      %v887 = vunpack.c.l.b16 %v360
      %v888 = vunpack.c.l.b16 %v361
      %v889 = vunpack.c.l.b16 %v362
      %v890 = vunpack.c.l.b16 %v363
      %v891 = vunpack.c.l.b16 %v364
      %v892 = vunpack.c.l.b16 %v365
      %v893 = vunpack.c.l.b16 %v366
      %v894 = vunpack.c.l.b16 %v367
      %v895 = vunpack.c.l.b16 %v368
      %v896 = vunpack.c.l.b16 %v369
      %v897 = vunpack.c.l.b16 %v370
      %v898 = vunpack.c.l.b16 %v371
      %v899 = vunpack.c.l.b16 %v372
      %v900 = vunpack.c.l.b16 %v373
      %v901 = vunpack.c.l.b16 %v374
      %v902 = vunpack.c.l.b16 %v375
      %v903 = vunpack.c.l.b16 %v376
      %v904 = vunpack.c.l.b16 %v377
      %v905 = vunpack.c.l.b16 %v378
      %v906 = vunpack.c.l.b16 %v379
      %v907 = vunpack.c.l.b16 %v380
      %v908 = vunpack.c.l.b16 %v381
      %v909 = vunpack.c.l.b16 %v382
      %v910 = vunpack.c.l.b16 %v383
      %v911 = vunpack.c.l.b16 %v384
      %v912 = vunpack.c.l.b16 %v385
      %v913 = vunpack.c.l.b16 %v386
      %v914 = vunpack.c.l.b16 %v387
      %v915 = vunpack.c.l.b16 %v388
      %v916 = vunpack.c.l.b16 %v389
      %v917 = vunpack.c.l.b16 %v390
      %v918 = vunpack.c.l.b16 %v391
      %v919 = vunpack.c.l.b16 %v392
      %v920 = vunpack.c.l.b16 %v393
      %v921 = vunpack.c.l.b16 %v394
      %v922 = vunpack.c.l.b16 %v395
      %v923 = vunpack.c.l.b16 %v396
      %v924 = vunpack.c.l.b16 %v397
      %v925 = vunpack.c.l.b16 %v398
      %v926 = vunpack.c.l.b16 %v399
      %v927 = vunpack.c.l.b16 %v400
      %v928 = vunpack.c.l.b16 %v401
      %v929 = vunpack.c.l.b16 %v402
      %v930 = vunpack.c.l.b16 %v403
      %v931 = vunpack.c.l.b16 %v404
      %v932 = vunpack.c.l.b16 %v405
      %v933 = vunpack.c.l.b16 %v406
      %v934 = vunpack.c.l.b16 %v407
      %v935 = vunpack.c.l.b16 %v408
      %v936 = vunpack.c.l.b16 %v409
      %v937 = vunpack.c.l.b16 %v410
      %v938 = vunpack.c.l.b16 %v411
      %v939 = vunpack.c.l.b16 %v412
      %v940 = vunpack.c.l.b16 %v413
      %v941 = vunpack.c.l.b16 %v414
      %v942 = vunpack.c.l.b16 %v415
      %v943 = vunpack.c.l.b16 %v416
      %v944 = vunpack.c.l.b16 %v417
      %v945 = vunpack.c.l.b16 %v418
      %v946 = vunpack.c.l.b16 %v419
      %v947 = vunpack.c.l.b16 %v420
      %v948 = vunpack.c.l.b16 %v421
      %v949 = vunpack.c.l.b16 %v422
      %v950 = vunpack.c.l.b16 %v423
      %v951 = vunpack.c.l.b16 %v424
      %v952 = vunpack.c.l.b16 %v425
      %v953 = vunpack.c.l.b16 %v426
      %v954 = vunpack.c.l.b16 %v427
      %v955 = vunpack.c.l.b16 %v428
      %v956 = vunpack.c.l.b16 %v429
      %v957 = vunpack.c.l.b16 %v430
      %v958 = vunpack.c.l.b16 %v431
      %v959 = vunpack.c.l.b16 %v432
      %v960 = vunpack.c.l.b16 %v433
      %v961 = vunpack.c.l.b16 %v434
      %v962 = vunpack.c.l.b16 %v435
      %v963 = vpack.c.b16 %v888, %v887
      %v964 = vpack.c.b16 %v890, %v889
      %v965 = vpack.c.b16 %v892, %v891
      %v966 = vpack.c.b16 %v894, %v893
      %v967 = vpack.c.b16 %v896, %v895
      %v968 = vpack.c.b16 %v898, %v897
      %v969 = vpack.c.b16 %v900, %v899
      %v970 = vpack.c.b16 %v902, %v901
      %v971 = vpack.c.b16 %v904, %v903
      %v972 = vpack.c.b16 %v906, %v905
      %v973 = vpack.c.b16 %v908, %v907
      %v974 = vpack.c.b16 %v910, %v909
      %v975 = vpack.c.b16 %v912, %v911
      %v976 = vpack.c.b16 %v914, %v913
      %v977 = vpack.c.b16 %v916, %v915
      %v978 = vpack.c.b16 %v918, %v917
      %v979 = vpack.c.b16 %v920, %v919
      %v980 = vpack.c.b16 %v922, %v921
      %v981 = vpack.c.b16 %v924, %v923
      %v982 = vpack.c.b16 %v926, %v925
      %v983 = vpack.c.b16 %v928, %v927
      %v984 = vpack.c.b16 %v930, %v929
      %v985 = vpack.c.b16 %v932, %v931
      %v986 = vpack.c.b16 %v934, %v933
      %v987 = vpack.c.b16 %v936, %v935
      %v988 = vpack.c.b16 %v938, %v937
      %v989 = vpack.c.b16 %v940, %v939
      %v990 = vpack.c.b16 %v942, %v941
      %v991 = vpack.c.b16 %v944, %v943
      %v992 = vpack.c.b16 %v946, %v945
      %v993 = vpack.c.b16 %v948, %v947
      %v994 = vpack.c.b16 %v950, %v949
      %v995 = vpack.c.b16 %v952, %v951
      %v996 = vpack.c.b16 %v954, %v953
      %v997 = vpack.c.b16 %v956, %v955
      %v998 = vpack.c.b16 %v958, %v957
      %v999 = vpack.c.b16 %v960, %v959
      %v1000 = vpack.c.b16 %v962, %v961
      %vm1039 = vcmask 785408
      %v1041 = vsel %vm1039, %v680, 0
      %v1044 = vsel %vm1039, %v685, 0
      %v1047 = vsel %vm1039, %v690, 0
      %v1050 = vsel %vm1039, %v695, 0
      %v1053 = vsel %vm1039, %v700, 0
      %v1056 = vsel %vm1039, %v705, 0
      %v1059 = vsel %vm1039, %v710, 0
      %v1062 = vsel %vm1039, %v715, 0
      %v1065 = vsel %vm1039, %v720, 0
      %v1068 = vsel %vm1039, %v725, 0
      %v1071 = vsel %vm1039, %v730, 0
      %v1074 = vsel %vm1039, %v735, 0
      %v1077 = vsel %vm1039, %v740, 0
      %v1080 = vsel %vm1039, %v745, 0
      %v1083 = vsel %vm1039, %v750, 0
      %1085 = vmatprep.subr.bf16.mxu0 0
      %1086 = vmatpush1.bf16.msra.mxu0 %v963
      %1087 = vmatprep.subr.bf16.mxu0 0
      %1088 = vmatpush1.bf16.msra.mxu0 %v964
      %1089 = vmatprep.subr.bf16.mxu0 0
      %1090 = vmatpush1.bf16.msra.mxu0 %v965
      %1091 = vmatprep.subr.bf16.mxu0 0
      %1092 = vmatpush1.bf16.msra.mxu0 %v966
      %1093 = vmatprep.subr.bf16.mxu0 0
      %1094 = vmatpush1.bf16.msra.mxu0 %v967
      %1095 = vmatprep.subr.bf16.mxu0 0
      %1096 = vmatpush1.bf16.msra.mxu0 %v968
      %1097 = vmatprep.subr.bf16.mxu0 0
      %1098 = vmatpush1.bf16.msra.mxu0 %v969
      %1099 = vmatprep.subr.bf16.mxu0 0
      %1100 = vmatpush1.bf16.msra.mxu0 %v970
      %1101 = vmatprep.subr.bf16.mxu0 0
      %1102 = vmatpush1.bf16.msra.mxu0 %v971
      %1103 = vmatprep.subr.bf16.mxu0 0
      %1104 = vmatpush1.bf16.msra.mxu0 %v972
      %1105 = vmatprep.subr.bf16.mxu0 0
      %1106 = vmatpush1.bf16.msra.mxu0 %v973
      %1107 = vmatprep.subr.bf16.mxu0 0
      %1108 = vmatpush1.bf16.msra.mxu0 %v974
      %1109 = vmatprep.subr.bf16.mxu0 0
      %1110 = vmatpush1.bf16.msra.mxu0 %v975
      %1111 = vmatprep.subr.bf16.mxu0 0
      %1112 = vmatpush1.bf16.msra.mxu0 %v976
      %1113 = vmatprep.subr.bf16.mxu0 0
      %1114 = vmatpush1.bf16.msra.mxu0 %v977
      %1115 = vmatprep.subr.bf16.mxu0 0
      %1116 = vmatpush1.bf16.msra.mxu0 %v978
      %1117 = vmatprep.mubr.bf16.mxu0 %v677
      %1118 = vmatmul.mubr.bf16.gmra.mrb[0].mxu0 %v676
      %v1119 = vpop.f32.mrb[0].mxu0
      %v1120 = vadd.f32 0.0, %v1119
      %v1121 = vpop.f32.mrb[0].mxu0
      %v1122 = vpop.f32.mrb[0].mxu0
      %v1123 = vadd.f32 0.0, %v1122
      %v1124 = vpop.f32.mrb[0].mxu0
      %1125 = vmatprep.mubr.bf16.mxu0 %v682
      %1126 = vmatmul.mubr.bf16.gmra.mrb[0].mxu0 %v681
      %v1127 = vpop.f32.mrb[0].mxu0
      %v1128 = vadd.f32 0.0, %v1127
      %v1129 = vpop.f32.mrb[0].mxu0
      %v1130 = vpop.f32.mrb[0].mxu0
      %v1131 = vadd.f32 0.0, %v1130
      %v1132 = vpop.f32.mrb[0].mxu0
      %1133 = vmatprep.mubr.bf16.mxu0 %v687
      %1134 = vmatmul.mubr.bf16.gmra.mrb[0].mxu0 %v686
      %v1135 = vpop.f32.mrb[0].mxu0
      %v1136 = vadd.f32 0.0, %v1135
      %v1137 = vpop.f32.mrb[0].mxu0
      %v1138 = vpop.f32.mrb[0].mxu0
      %v1139 = vadd.f32 0.0, %v1138
      %v1140 = vpop.f32.mrb[0].mxu0
      %1141 = vmatprep.mubr.bf16.mxu0 %v692
      %1142 = vmatmul.mubr.bf16.gmra.mrb[0].mxu0 %v691
      %v1143 = vpop.f32.mrb[0].mxu0
      %v1144 = vadd.f32 0.0, %v1143
      %v1145 = vpop.f32.mrb[0].mxu0
      %v1146 = vpop.f32.mrb[0].mxu0
      %v1147 = vadd.f32 0.0, %v1146
      %v1148 = vpop.f32.mrb[0].mxu0
      %1149 = vmatprep.mubr.bf16.mxu0 %v697
      %1150 = vmatmul.mubr.bf16.gmra.mrb[0].mxu0 %v696
      %v1151 = vpop.f32.mrb[0].mxu0
      %v1152 = vadd.f32 0.0, %v1151
      %v1153 = vpop.f32.mrb[0].mxu0
      %v1154 = vpop.f32.mrb[0].mxu0
      %v1155 = vadd.f32 0.0, %v1154
      %v1156 = vpop.f32.mrb[0].mxu0
      %1157 = vmatprep.mubr.bf16.mxu0 %v702
      %1158 = vmatmul.mubr.bf16.gmra.mrb[0].mxu0 %v701
      %v1159 = vpop.f32.mrb[0].mxu0
      %v1160 = vadd.f32 0.0, %v1159
      %v1161 = vpop.f32.mrb[0].mxu0
      %v1162 = vpop.f32.mrb[0].mxu0
      %v1163 = vadd.f32 0.0, %v1162
      %v1164 = vpop.f32.mrb[0].mxu0
      %1165 = vmatprep.mubr.bf16.mxu0 %v707
      %1166 = vmatmul.mubr.bf16.gmra.mrb[0].mxu0 %v706
      %v1167 = vpop.f32.mrb[0].mxu0
      %v1168 = vadd.f32 0.0, %v1167
      %v1169 = vpop.f32.mrb[0].mxu0
      %v1170 = vpop.f32.mrb[0].mxu0
      %v1171 = vadd.f32 0.0, %v1170
      %v1172 = vpop.f32.mrb[0].mxu0
      %1173 = vmatprep.mubr.bf16.mxu0 %v712
      %1174 = vmatmul.mubr.bf16.gmra.mrb[0].mxu0 %v711
      %v1175 = vpop.f32.mrb[0].mxu0
      %v1176 = vadd.f32 0.0, %v1175
      %v1177 = vpop.f32.mrb[0].mxu0
      %v1178 = vpop.f32.mrb[0].mxu0
      %v1179 = vadd.f32 0.0, %v1178
      %v1180 = vpop.f32.mrb[0].mxu0
      %1181 = vmatprep.mubr.bf16.mxu0 %v717
      %1182 = vmatmul.mubr.bf16.gmra.mrb[0].mxu0 %v716
      %v1183 = vpop.f32.mrb[0].mxu0
      %v1184 = vadd.f32 0.0, %v1183
      %v1185 = vpop.f32.mrb[0].mxu0
      %v1186 = vpop.f32.mrb[0].mxu0
      %v1187 = vadd.f32 0.0, %v1186
      %v1188 = vpop.f32.mrb[0].mxu0
      %1189 = vmatprep.mubr.bf16.mxu0 %v722
      %1190 = vmatmul.mubr.bf16.gmra.mrb[0].mxu0 %v721
      %v1191 = vpop.f32.mrb[0].mxu0
      %v1192 = vadd.f32 0.0, %v1191
      %v1193 = vpop.f32.mrb[0].mxu0
      %v1194 = vpop.f32.mrb[0].mxu0
      %v1195 = vadd.f32 0.0, %v1194
      %v1196 = vpop.f32.mrb[0].mxu0
      %1197 = vmatprep.mubr.bf16.mxu0 %v727
      %1198 = vmatmul.mubr.bf16.gmra.mrb[0].mxu0 %v726
      %v1199 = vpop.f32.mrb[0].mxu0
      %v1200 = vadd.f32 0.0, %v1199
      %v1201 = vpop.f32.mrb[0].mxu0
      %v1202 = vpop.f32.mrb[0].mxu0
      %v1203 = vadd.f32 0.0, %v1202
      %v1204 = vpop.f32.mrb[0].mxu0
      %1205 = vmatprep.mubr.bf16.mxu0 %v732
      %1206 = vmatmul.mubr.bf16.gmra.mrb[0].mxu0 %v731
      %v1207 = vpop.f32.mrb[0].mxu0
      %v1208 = vadd.f32 0.0, %v1207
      %v1209 = vpop.f32.mrb[0].mxu0
      %v1210 = vpop.f32.mrb[0].mxu0
      %v1211 = vadd.f32 0.0, %v1210
      %v1212 = vpop.f32.mrb[0].mxu0
      %1213 = vmatprep.mubr.bf16.mxu0 %v737
      %1214 = vmatmul.mubr.bf16.gmra.mrb[0].mxu0 %v736
      %v1215 = vpop.f32.mrb[0].mxu0
      %v1216 = vadd.f32 0.0, %v1215
      %v1217 = vpop.f32.mrb[0].mxu0
      %v1218 = vpop.f32.mrb[0].mxu0
      %v1219 = vadd.f32 0.0, %v1218
      %v1220 = vpop.f32.mrb[0].mxu0
      %1221 = vmatprep.mubr.bf16.mxu0 %v742
      %1222 = vmatmul.mubr.bf16.gmra.mrb[0].mxu0 %v741
      %v1223 = vpop.f32.mrb[0].mxu0
      %v1224 = vadd.f32 0.0, %v1223
      %v1225 = vpop.f32.mrb[0].mxu0
      %v1226 = vpop.f32.mrb[0].mxu0
      %v1227 = vadd.f32 0.0, %v1226
      %v1228 = vpop.f32.mrb[0].mxu0
      %1229 = vmatprep.mubr.bf16.mxu0 %v747
      %1230 = vmatmul.mubr.bf16.gmra.mrb[0].mxu0 %v746
      %v1231 = vpop.f32.mrb[0].mxu0
      %v1232 = vadd.f32 0.0, %v1231
      %v1233 = vpop.f32.mrb[0].mxu0
      %v1234 = vpop.f32.mrb[0].mxu0
      %v1235 = vadd.f32 0.0, %v1234
      %v1236 = vpop.f32.mrb[0].mxu0
      %1237 = vdwg.mxu0
      %1238 = vmatprep.subr.bf16.mxu0 0
      %1239 = vmatpush1.bf16.msra.mxu0 %v979
      %1240 = vmatprep.subr.bf16.mxu0 0
      %1241 = vmatpush1.bf16.msra.mxu0 %v980
      %1242 = vmatprep.subr.bf16.mxu0 0
      %1243 = vmatpush1.bf16.msra.mxu0 %v981
      %1244 = vmatprep.subr.bf16.mxu0 0
      %1245 = vmatpush1.bf16.msra.mxu0 %v982
      %1246 = vmatprep.subr.bf16.mxu0 0
      %1247 = vmatpush1.bf16.msra.mxu0 %v983
      %1248 = vmatprep.subr.bf16.mxu0 0
      %1249 = vmatpush1.bf16.msra.mxu0 %v984
      %1250 = vmatprep.subr.bf16.mxu0 0
      %1251 = vmatpush1.bf16.msra.mxu0 %v985
      %1252 = vmatprep.subr.bf16.mxu0 0
      %1253 = vmatpush1.bf16.msra.mxu0 %v986
      %1254 = vmatprep.subr.bf16.mxu0 0
      %1255 = vmatpush1.bf16.msra.mxu0 %v987
      %1256 = vmatprep.subr.bf16.mxu0 0
      %1257 = vmatpush1.bf16.msra.mxu0 %v988
      %1258 = vmatprep.subr.bf16.mxu0 0
      %1259 = vmatpush1.bf16.msra.mxu0 %v989
      %1260 = vmatprep.subr.bf16.mxu0 0
      %1261 = vmatpush1.bf16.msra.mxu0 %v990
      %1262 = vmatprep.subr.bf16.mxu0 0
      %1263 = vmatpush1.bf16.msra.mxu0 %v991
      %1264 = vmatprep.subr.bf16.mxu0 0
      %1265 = vmatpush1.bf16.msra.mxu0 %v992
      %1266 = vmatprep.subr.bf16.mxu0 0
      %1267 = vmatpush1.bf16.msra.mxu0 %v993
      %1268 = vmatprep.subr.bf16.mxu0 0
      %1269 = vmatpush1.bf16.msra.mxu0 %v994
      %1270 = vmatprep.mubr.bf16.mxu0 %v679
      %1271 = vmatmul.mubr.bf16.gmra.mrb[0].mxu0 %v678
      %v1272 = vpop.f32.mrb[0].mxu0
      %v1273 = vadd.f32 %v1120, %v1272
      %v1274 = vpop.f32.mrb[0].mxu0
      %v1275 = vpop.f32.mrb[0].mxu0
      %v1276 = vadd.f32 %v1123, %v1275
      %v1277 = vpop.f32.mrb[0].mxu0
      %1278 = vmatprep.mubr.bf16.mxu0 %v684
      %1279 = vmatmul.mubr.bf16.gmra.mrb[0].mxu0 %v683
      %v1280 = vpop.f32.mrb[0].mxu0
      %v1281 = vadd.f32 %v1128, %v1280
      %v1282 = vpop.f32.mrb[0].mxu0
      %v1283 = vpop.f32.mrb[0].mxu0
      %v1284 = vadd.f32 %v1131, %v1283
      %v1285 = vpop.f32.mrb[0].mxu0
      %1286 = vmatprep.mubr.bf16.mxu0 %v689
      %1287 = vmatmul.mubr.bf16.gmra.mrb[0].mxu0 %v688
      %v1288 = vpop.f32.mrb[0].mxu0
      %v1289 = vadd.f32 %v1136, %v1288
      %v1290 = vpop.f32.mrb[0].mxu0
      %v1291 = vpop.f32.mrb[0].mxu0
      %v1292 = vadd.f32 %v1139, %v1291
      %v1293 = vpop.f32.mrb[0].mxu0
      %1294 = vmatprep.mubr.bf16.mxu0 %v694
      %1295 = vmatmul.mubr.bf16.gmra.mrb[0].mxu0 %v693
      %v1296 = vpop.f32.mrb[0].mxu0
      %v1297 = vadd.f32 %v1144, %v1296
      %v1298 = vpop.f32.mrb[0].mxu0
      %v1299 = vpop.f32.mrb[0].mxu0
      %v1300 = vadd.f32 %v1147, %v1299
      %v1301 = vpop.f32.mrb[0].mxu0
      %1302 = vmatprep.mubr.bf16.mxu0 %v699
      %1303 = vmatmul.mubr.bf16.gmra.mrb[0].mxu0 %v698
      %v1304 = vpop.f32.mrb[0].mxu0
      %v1305 = vadd.f32 %v1152, %v1304
      %v1306 = vpop.f32.mrb[0].mxu0
      %v1307 = vpop.f32.mrb[0].mxu0
      %v1308 = vadd.f32 %v1155, %v1307
      %v1309 = vpop.f32.mrb[0].mxu0
      %1310 = vmatprep.mubr.bf16.mxu0 %v704
      %1311 = vmatmul.mubr.bf16.gmra.mrb[0].mxu0 %v703
      %v1312 = vpop.f32.mrb[0].mxu0
      %v1313 = vadd.f32 %v1160, %v1312
      %v1314 = vpop.f32.mrb[0].mxu0
      %v1315 = vpop.f32.mrb[0].mxu0
      %v1316 = vadd.f32 %v1163, %v1315
      %v1317 = vpop.f32.mrb[0].mxu0
      %1318 = vmatprep.mubr.bf16.mxu0 %v709
      %1319 = vmatmul.mubr.bf16.gmra.mrb[0].mxu0 %v708
      %v1320 = vpop.f32.mrb[0].mxu0
      %v1321 = vadd.f32 %v1168, %v1320
      %v1322 = vpop.f32.mrb[0].mxu0
      %v1323 = vpop.f32.mrb[0].mxu0
      %v1324 = vadd.f32 %v1171, %v1323
      %v1325 = vpop.f32.mrb[0].mxu0
      %1326 = vmatprep.mubr.bf16.mxu0 %v714
      %1327 = vmatmul.mubr.bf16.gmra.mrb[0].mxu0 %v713
      %v1328 = vpop.f32.mrb[0].mxu0
      %v1329 = vadd.f32 %v1176, %v1328
      %v1330 = vpop.f32.mrb[0].mxu0
      %v1331 = vpop.f32.mrb[0].mxu0
      %v1332 = vadd.f32 %v1179, %v1331
      %v1333 = vpop.f32.mrb[0].mxu0
      %1334 = vmatprep.mubr.bf16.mxu0 %v719
      %1335 = vmatmul.mubr.bf16.gmra.mrb[0].mxu0 %v718
      %v1336 = vpop.f32.mrb[0].mxu0
      %v1337 = vadd.f32 %v1184, %v1336
      %v1338 = vpop.f32.mrb[0].mxu0
      %v1339 = vpop.f32.mrb[0].mxu0
      %v1340 = vadd.f32 %v1187, %v1339
      %v1341 = vpop.f32.mrb[0].mxu0
      %1342 = vmatprep.mubr.bf16.mxu0 %v724
      %1343 = vmatmul.mubr.bf16.gmra.mrb[0].mxu0 %v723
      %v1344 = vpop.f32.mrb[0].mxu0
      %v1345 = vadd.f32 %v1192, %v1344
      %v1346 = vpop.f32.mrb[0].mxu0
      %v1347 = vpop.f32.mrb[0].mxu0
      %v1348 = vadd.f32 %v1195, %v1347
      %v1349 = vpop.f32.mrb[0].mxu0
      %1350 = vmatprep.mubr.bf16.mxu0 %v729
      %1351 = vmatmul.mubr.bf16.gmra.mrb[0].mxu0 %v728
      %v1352 = vpop.f32.mrb[0].mxu0
      %v1353 = vadd.f32 %v1200, %v1352
      %v1354 = vpop.f32.mrb[0].mxu0
      %v1355 = vpop.f32.mrb[0].mxu0
      %v1356 = vadd.f32 %v1203, %v1355
      %v1357 = vpop.f32.mrb[0].mxu0
      %1358 = vmatprep.mubr.bf16.mxu0 %v734
      %1359 = vmatmul.mubr.bf16.gmra.mrb[0].mxu0 %v733
      %v1360 = vpop.f32.mrb[0].mxu0
      %v1361 = vadd.f32 %v1208, %v1360
      %v1362 = vpop.f32.mrb[0].mxu0
      %v1363 = vpop.f32.mrb[0].mxu0
      %v1364 = vadd.f32 %v1211, %v1363
      %v1365 = vpop.f32.mrb[0].mxu0
      %1366 = vmatprep.mubr.bf16.mxu0 %v739
      %1367 = vmatmul.mubr.bf16.gmra.mrb[0].mxu0 %v738
      %v1368 = vpop.f32.mrb[0].mxu0
      %v1369 = vadd.f32 %v1216, %v1368
      %v1370 = vpop.f32.mrb[0].mxu0
      %v1371 = vpop.f32.mrb[0].mxu0
      %v1372 = vadd.f32 %v1219, %v1371
      %v1373 = vpop.f32.mrb[0].mxu0
      %1374 = vmatprep.mubr.bf16.mxu0 %v744
      %1375 = vmatmul.mubr.bf16.gmra.mrb[0].mxu0 %v743
      %v1376 = vpop.f32.mrb[0].mxu0
      %v1377 = vadd.f32 %v1224, %v1376
      %v1378 = vpop.f32.mrb[0].mxu0
      %v1379 = vpop.f32.mrb[0].mxu0
      %v1380 = vadd.f32 %v1227, %v1379
      %v1381 = vpop.f32.mrb[0].mxu0
      %1382 = vmatprep.mubr.bf16.mxu0 %v749
      %1383 = vmatmul.mubr.bf16.gmra.mrb[0].mxu0 %v748
      %v1384 = vpop.f32.mrb[0].mxu0
      %v1385 = vadd.f32 %v1232, %v1384
      %v1386 = vpop.f32.mrb[0].mxu0
      %v1387 = vpop.f32.mrb[0].mxu0
      %v1388 = vadd.f32 %v1235, %v1387
      %v1389 = vpop.f32.mrb[0].mxu0
      %1390 = vdwg.mxu0
      %1391 = vmatprep.subr.bf16.mxu0 0
      %1392 = vmatpush1.bf16.msra.mxu0 %v995
      %1393 = vmatprep.subr.bf16.mxu0 0
      %1394 = vmatpush1.bf16.msra.mxu0 %v996
      %1395 = vmatprep.subr.bf16.mxu0 0
      %1396 = vmatpush1.bf16.msra.mxu0 %v997
      %1397 = vmatprep.subr.bf16.mxu0 0
      %1398 = vmatpush1.bf16.msra.mxu0 %v998
      %1399 = vmatprep.subr.bf16.mxu0 0
      %1400 = vmatpush1.bf16.msra.mxu0 %v999
      %1401 = vmatprep.subr.bf16.mxu0 0
      %1402 = vmatpush1.bf16.msra.mxu0 %v1000
      %1403 = vmatprep.subr.bf16.mxu0 0
      %1404 = vmatpush1.bf16.msra.mxu0 0
      %1405 = vmatprep.subr.bf16.mxu0 0
      %1406 = vmatpush1.bf16.msra.mxu0 0
      %1407 = vmatprep.subr.bf16.mxu0 0
      %1408 = vmatpush1.bf16.msra.mxu0 0
      %1409 = vmatprep.subr.bf16.mxu0 0
      %1410 = vmatpush1.bf16.msra.mxu0 0
      %1411 = vmatprep.subr.bf16.mxu0 0
      %1412 = vmatpush1.bf16.msra.mxu0 0
      %1413 = vmatprep.subr.bf16.mxu0 0
      %1414 = vmatpush1.bf16.msra.mxu0 0
      %1415 = vmatprep.subr.bf16.mxu0 0
      %1416 = vmatpush1.bf16.msra.mxu0 0
      %1417 = vmatprep.subr.bf16.mxu0 0
      %1418 = vmatpush1.bf16.msra.mxu0 0
      %1419 = vmatprep.subr.bf16.mxu0 0
      %1420 = vmatpush1.bf16.msra.mxu0 0
      %1421 = vmatprep.subr.bf16.mxu0 0
      %1422 = vmatpush1.bf16.msra.mxu0 0
      %1423 = vmatprep.mubr.bf16.mxu0 0
      %1424 = vmatmul.mubr.bf16.gmra.mrb[0].mxu0 %v1041
      %v1425 = vpop.f32.mrb[0].mxu0
      %v1426 = vadd.f32 %v1273, %v1425
      %v1427 = vpop.f32.mrb[0].mxu0
      %v1428 = vpop.f32.mrb[0].mxu0
      %v1429 = vadd.f32 %v1276, %v1428
      %v1430 = vpop.f32.mrb[0].mxu0
      %1431 = vmatprep.mubr.bf16.mxu0 0
      %1432 = vmatmul.mubr.bf16.gmra.mrb[0].mxu0 %v1044
      %v1433 = vpop.f32.mrb[0].mxu0
      %v1434 = vadd.f32 %v1281, %v1433
      %v1435 = vpop.f32.mrb[0].mxu0
      %v1436 = vpop.f32.mrb[0].mxu0
      %v1437 = vadd.f32 %v1284, %v1436
      %v1438 = vpop.f32.mrb[0].mxu0
      %1439 = vmatprep.mubr.bf16.mxu0 0
      %1440 = vmatmul.mubr.bf16.gmra.mrb[0].mxu0 %v1047
      %v1441 = vpop.f32.mrb[0].mxu0
      %v1442 = vadd.f32 %v1289, %v1441
      %v1443 = vpop.f32.mrb[0].mxu0
      %v1444 = vpop.f32.mrb[0].mxu0
      %v1445 = vadd.f32 %v1292, %v1444
      %v1446 = vpop.f32.mrb[0].mxu0
      %1447 = vmatprep.mubr.bf16.mxu0 0
      %1448 = vmatmul.mubr.bf16.gmra.mrb[0].mxu0 %v1050
      %v1449 = vpop.f32.mrb[0].mxu0
      %v1450 = vadd.f32 %v1297, %v1449
      %v1451 = vpop.f32.mrb[0].mxu0
      %v1452 = vpop.f32.mrb[0].mxu0
      %v1453 = vadd.f32 %v1300, %v1452
      %v1454 = vpop.f32.mrb[0].mxu0
      %1455 = vmatprep.mubr.bf16.mxu0 0
      %1456 = vmatmul.mubr.bf16.gmra.mrb[0].mxu0 %v1053
      %v1457 = vpop.f32.mrb[0].mxu0
      %v1458 = vadd.f32 %v1305, %v1457
      %v1459 = vpop.f32.mrb[0].mxu0
      %v1460 = vpop.f32.mrb[0].mxu0
      %v1461 = vadd.f32 %v1308, %v1460
      %v1462 = vpop.f32.mrb[0].mxu0
      %1463 = vmatprep.mubr.bf16.mxu0 0
      %1464 = vmatmul.mubr.bf16.gmra.mrb[0].mxu0 %v1056
      %v1465 = vpop.f32.mrb[0].mxu0
      %v1466 = vadd.f32 %v1313, %v1465
      %v1467 = vpop.f32.mrb[0].mxu0
      %v1468 = vpop.f32.mrb[0].mxu0
      %v1469 = vadd.f32 %v1316, %v1468
      %v1470 = vpop.f32.mrb[0].mxu0
      %1471 = vmatprep.mubr.bf16.mxu0 0
      %1472 = vmatmul.mubr.bf16.gmra.mrb[0].mxu0 %v1059
      %v1473 = vpop.f32.mrb[0].mxu0
      %v1474 = vadd.f32 %v1321, %v1473
      %v1475 = vpop.f32.mrb[0].mxu0
      %v1476 = vpop.f32.mrb[0].mxu0
      %v1477 = vadd.f32 %v1324, %v1476
      %v1478 = vpop.f32.mrb[0].mxu0
      %1479 = vmatprep.mubr.bf16.mxu0 0
      %1480 = vmatmul.mubr.bf16.gmra.mrb[0].mxu0 %v1062
      %v1481 = vpop.f32.mrb[0].mxu0
      %v1482 = vadd.f32 %v1329, %v1481
      %v1483 = vpop.f32.mrb[0].mxu0
      %v1484 = vpop.f32.mrb[0].mxu0
      %v1485 = vadd.f32 %v1332, %v1484
      %v1486 = vpop.f32.mrb[0].mxu0
      %1487 = vmatprep.mubr.bf16.mxu0 0
      %1488 = vmatmul.mubr.bf16.gmra.mrb[0].mxu0 %v1065
      %v1489 = vpop.f32.mrb[0].mxu0
      %v1490 = vadd.f32 %v1337, %v1489
      %v1491 = vpop.f32.mrb[0].mxu0
      %v1492 = vpop.f32.mrb[0].mxu0
      %v1493 = vadd.f32 %v1340, %v1492
      %v1494 = vpop.f32.mrb[0].mxu0
      %1495 = vmatprep.mubr.bf16.mxu0 0
      %1496 = vmatmul.mubr.bf16.gmra.mrb[0].mxu0 %v1068
      %v1497 = vpop.f32.mrb[0].mxu0
      %v1498 = vadd.f32 %v1345, %v1497
      %v1499 = vpop.f32.mrb[0].mxu0
      %v1500 = vpop.f32.mrb[0].mxu0
      %v1501 = vadd.f32 %v1348, %v1500
      %v1502 = vpop.f32.mrb[0].mxu0
      %1503 = vmatprep.mubr.bf16.mxu0 0
      %1504 = vmatmul.mubr.bf16.gmra.mrb[0].mxu0 %v1071
      %v1505 = vpop.f32.mrb[0].mxu0
      %v1506 = vadd.f32 %v1353, %v1505
      %v1507 = vpop.f32.mrb[0].mxu0
      %v1508 = vpop.f32.mrb[0].mxu0
      %v1509 = vadd.f32 %v1356, %v1508
      %v1510 = vpop.f32.mrb[0].mxu0
      %1511 = vmatprep.mubr.bf16.mxu0 0
      %1512 = vmatmul.mubr.bf16.gmra.mrb[0].mxu0 %v1074
      %v1513 = vpop.f32.mrb[0].mxu0
      %v1514 = vadd.f32 %v1361, %v1513
      %v1515 = vpop.f32.mrb[0].mxu0
      %v1516 = vpop.f32.mrb[0].mxu0
      %v1517 = vadd.f32 %v1364, %v1516
      %v1518 = vpop.f32.mrb[0].mxu0
      %1519 = vmatprep.mubr.bf16.mxu0 0
      %1520 = vmatmul.mubr.bf16.gmra.mrb[0].mxu0 %v1077
      %v1521 = vpop.f32.mrb[0].mxu0
      %v1522 = vadd.f32 %v1369, %v1521
      %v1523 = vpop.f32.mrb[0].mxu0
      %v1524 = vpop.f32.mrb[0].mxu0
      %v1525 = vadd.f32 %v1372, %v1524
      %v1526 = vpop.f32.mrb[0].mxu0
      %1527 = vmatprep.mubr.bf16.mxu0 0
      %1528 = vmatmul.mubr.bf16.gmra.mrb[0].mxu0 %v1080
      %v1529 = vpop.f32.mrb[0].mxu0
      %v1530 = vadd.f32 %v1377, %v1529
      %v1531 = vpop.f32.mrb[0].mxu0
      %v1532 = vpop.f32.mrb[0].mxu0
      %v1533 = vadd.f32 %v1380, %v1532
      %v1534 = vpop.f32.mrb[0].mxu0
      %1535 = vmatprep.mubr.bf16.mxu0 0
      %1536 = vmatmul.mubr.bf16.gmra.mrb[0].mxu0 %v1083
      %v1537 = vpop.f32.mrb[0].mxu0
      %v1538 = vadd.f32 %v1385, %v1537
      %v1539 = vpop.f32.mrb[0].mxu0
      %v1540 = vpop.f32.mrb[0].mxu0
      %v1541 = vadd.f32 %v1388, %v1540
      %v1542 = vpop.f32.mrb[0].mxu0
      %1543 = vdwg.mxu0
      %v1544 = vld [vmem:[%s256] sm:$0x1]
      %v1546 = vlaneseq
      %v1547 = vshrl.u32 %v1546, 7
      %v1548 = vsub.s32 0, %v1547
      %v1549 = vrot.slane %v1544, %v1548
      %v1551 = vmul.f32 %v1426, %v1549
      %v1552 = vmul.f32 %v1429, %v1549
      %v1553 = vmul.f32 %v1434, %v1549
      %v1554 = vmul.f32 %v1437, %v1549
      %v1555 = vmul.f32 %v1442, %v1549
      %v1556 = vmul.f32 %v1445, %v1549
      %v1557 = vmul.f32 %v1450, %v1549
      %v1558 = vmul.f32 %v1453, %v1549
      %v1559 = vmul.f32 %v1458, %v1549
      %v1560 = vmul.f32 %v1461, %v1549
      %v1561 = vmul.f32 %v1466, %v1549
      %v1562 = vmul.f32 %v1469, %v1549
      %v1563 = vmul.f32 %v1474, %v1549
      %v1564 = vmul.f32 %v1477, %v1549
      %v1565 = vmul.f32 %v1482, %v1549
      %v1566 = vmul.f32 %v1485, %v1549
      %v1567 = vmul.f32 %v1490, %v1549
      %v1568 = vmul.f32 %v1493, %v1549
      %v1569 = vmul.f32 %v1498, %v1549
      %v1570 = vmul.f32 %v1501, %v1549
      %v1571 = vmul.f32 %v1506, %v1549
      %v1572 = vmul.f32 %v1509, %v1549
      %v1573 = vmul.f32 %v1514, %v1549
      %v1574 = vmul.f32 %v1517, %v1549
      %v1575 = vmul.f32 %v1522, %v1549
      %v1576 = vmul.f32 %v1525, %v1549
      %v1577 = vmul.f32 %v1530, %v1549
      %v1578 = vmul.f32 %v1533, %v1549
      %v1579 = vmul.f32 %v1538, %v1549
      %v1580 = vmul.f32 %v1541, %v1549
      %v1581 = vld [vmem:[%s259] sm:$0x1]
      %v1583 = vlaneseq
      %v1584 = vshrl.u32 %v1583, 7
      %v1585 = vsub.s32 0, %v1584
      %v1586 = vrot.slane %v1581, %v1585
      %v1588 = vadd.f32 %v1551, %v1586
      %v1589 = vadd.f32 %v1552, %v1586
      %v1590 = vadd.f32 %v1553, %v1586
      %v1591 = vadd.f32 %v1554, %v1586
      %v1592 = vadd.f32 %v1555, %v1586
      %v1593 = vadd.f32 %v1556, %v1586
      %v1594 = vadd.f32 %v1557, %v1586
      %v1595 = vadd.f32 %v1558, %v1586
      %v1596 = vadd.f32 %v1559, %v1586
      %v1597 = vadd.f32 %v1560, %v1586
      %v1598 = vadd.f32 %v1561, %v1586
      %v1599 = vadd.f32 %v1562, %v1586
      %v1600 = vadd.f32 %v1563, %v1586
      %v1601 = vadd.f32 %v1564, %v1586
      %v1602 = vadd.f32 %v1565, %v1586
      %v1603 = vadd.f32 %v1566, %v1586
      %v1604 = vadd.f32 %v1567, %v1586
      %v1605 = vadd.f32 %v1568, %v1586
      %v1606 = vadd.f32 %v1569, %v1586
      %v1607 = vadd.f32 %v1570, %v1586
      %v1608 = vadd.f32 %v1571, %v1586
      %v1609 = vadd.f32 %v1572, %v1586
      %v1610 = vadd.f32 %v1573, %v1586
      %v1611 = vadd.f32 %v1574, %v1586
      %v1612 = vadd.f32 %v1575, %v1586
      %v1613 = vadd.f32 %v1576, %v1586
      %v1614 = vadd.f32 %v1577, %v1586
      %v1615 = vadd.f32 %v1578, %v1586
      %v1616 = vadd.f32 %v1579, %v1586
      %v1617 = vadd.f32 %v1580, %v1586
      %v1618 = vmax.f32 %v1588, 0.0
      %v1619 = vmax.f32 %v1589, 0.0
      %v1620 = vmax.f32 %v1590, 0.0
      %v1621 = vmax.f32 %v1591, 0.0
      %v1622 = vmax.f32 %v1592, 0.0
      %v1623 = vmax.f32 %v1593, 0.0
      %v1624 = vmax.f32 %v1594, 0.0
      %v1625 = vmax.f32 %v1595, 0.0
      %v1626 = vmax.f32 %v1596, 0.0
      %v1627 = vmax.f32 %v1597, 0.0
      %v1628 = vmax.f32 %v1598, 0.0
      %v1629 = vmax.f32 %v1599, 0.0
      %v1630 = vmax.f32 %v1600, 0.0
      %v1631 = vmax.f32 %v1601, 0.0
      %v1632 = vmax.f32 %v1602, 0.0
      %v1633 = vmax.f32 %v1603, 0.0
      %v1634 = vmax.f32 %v1604, 0.0
      %v1635 = vmax.f32 %v1605, 0.0
      %v1636 = vmax.f32 %v1606, 0.0
      %v1637 = vmax.f32 %v1607, 0.0
      %v1638 = vmax.f32 %v1608, 0.0
      %v1639 = vmax.f32 %v1609, 0.0
      %v1640 = vmax.f32 %v1610, 0.0
      %v1641 = vmax.f32 %v1611, 0.0
      %v1642 = vmax.f32 %v1612, 0.0
      %v1643 = vmax.f32 %v1613, 0.0
      %v1644 = vmax.f32 %v1614, 0.0
      %v1645 = vmax.f32 %v1615, 0.0
      %v1646 = vmax.f32 %v1616, 0.0
      %v1647 = vmax.f32 %v1617, 0.0
      %v1648 = vpack.c.bf16 %v1619, %v1618
      %v1649 = vpack.c.bf16 %v1621, %v1620
      %v1650 = vpack.c.bf16 %v1623, %v1622
      %v1651 = vpack.c.bf16 %v1625, %v1624
      %v1652 = vpack.c.bf16 %v1627, %v1626
      %v1653 = vpack.c.bf16 %v1629, %v1628
      %v1654 = vpack.c.bf16 %v1631, %v1630
      %v1655 = vpack.c.bf16 %v1633, %v1632
      %v1656 = vpack.c.bf16 %v1635, %v1634
      %v1657 = vpack.c.bf16 %v1637, %v1636
      %v1658 = vpack.c.bf16 %v1639, %v1638
      %v1659 = vpack.c.bf16 %v1641, %v1640
      %v1660 = vpack.c.bf16 %v1643, %v1642
      %v1661 = vpack.c.bf16 %v1645, %v1644
      %v1662 = vpack.c.bf16 %v1647, %v1646
      %v1678 = vunpack.c.l.b16 %v1648
      %v1679 = vunpack.c.h.b16 %v1648
      %v1680 = vunpack.c.l.b16 %v1649
      %v1681 = vunpack.c.h.b16 %v1649
      %v1682 = vunpack.c.l.b16 %v1650
      %v1683 = vunpack.c.h.b16 %v1650
      %v1684 = vunpack.c.l.b16 %v1651
      %v1685 = vunpack.c.h.b16 %v1651
      %v1686 = vunpack.c.l.b16 %v1652
      %v1687 = vunpack.c.h.b16 %v1652
      %v1688 = vunpack.c.l.b16 %v1653
      %v1689 = vunpack.c.h.b16 %v1653
      %v1690 = vunpack.c.l.b16 %v1654
      %v1691 = vunpack.c.h.b16 %v1654
      %v1692 = vunpack.c.l.b16 %v1655
      %v1693 = vunpack.c.h.b16 %v1655
      %v1694 = vunpack.c.l.b16 %v1656
      %v1695 = vunpack.c.h.b16 %v1656
      %v1696 = vunpack.c.l.b16 %v1657
      %v1697 = vunpack.c.h.b16 %v1657
      %v1698 = vunpack.c.l.b16 %v1658
      %v1699 = vunpack.c.h.b16 %v1658
      %v1700 = vunpack.c.l.b16 %v1659
      %v1701 = vunpack.c.h.b16 %v1659
      %v1702 = vunpack.c.l.b16 %v1660
      %v1703 = vunpack.c.h.b16 %v1660
      %v1704 = vunpack.c.l.b16 %v1661
      %v1705 = vunpack.c.h.b16 %v1661
      %v1706 = vunpack.c.l.b16 %v1662
      %v1707 = vunpack.c.h.b16 %v1662
      %v1708 = vpack.c.b16 %v1678, %v1678
      %v1709 = vpack.c.b16 %v1679, %v1679
      %v1710 = vpack.c.b16 %v1680, %v1680
      %v1711 = vpack.c.b16 %v1681, %v1681
      %v1712 = vpack.c.b16 %v1682, %v1682
      %v1713 = vpack.c.b16 %v1683, %v1683
      %v1714 = vpack.c.b16 %v1684, %v1684
      %v1715 = vpack.c.b16 %v1685, %v1685
      %v1716 = vpack.c.b16 %v1686, %v1686
      %v1717 = vpack.c.b16 %v1687, %v1687
      %v1718 = vpack.c.b16 %v1688, %v1688
      %v1719 = vpack.c.b16 %v1689, %v1689
      %v1720 = vpack.c.b16 %v1690, %v1690
      %v1721 = vpack.c.b16 %v1691, %v1691
      %v1722 = vpack.c.b16 %v1692, %v1692
      %v1723 = vpack.c.b16 %v1693, %v1693
      %v1724 = vpack.c.b16 %v1694, %v1694
      %v1725 = vpack.c.b16 %v1695, %v1695
      %v1726 = vpack.c.b16 %v1696, %v1696
      %v1727 = vpack.c.b16 %v1697, %v1697
      %v1728 = vpack.c.b16 %v1698, %v1698
      %v1729 = vpack.c.b16 %v1699, %v1699
      %v1730 = vpack.c.b16 %v1700, %v1700
      %v1731 = vpack.c.b16 %v1701, %v1701
      %v1732 = vpack.c.b16 %v1702, %v1702
      %v1733 = vpack.c.b16 %v1703, %v1703
      %v1734 = vpack.c.b16 %v1704, %v1704
      %v1735 = vpack.c.b16 %v1705, %v1705
      %v1736 = vpack.c.b16 %v1706, %v1706
      %v1737 = vpack.c.b16 %v1707, %v1707
      %1768 = vst [vmem:[%s267] sm:$0xf] %v1708
      %1769 = vst [vmem:[%s267 + $0x4] sm:$0xf] %v1709
      %1770 = vst [vmem:[%s267 + $0x8] sm:$0xf] %v1710
      %1771 = vst [vmem:[%s267 + $0xc] sm:$0xf] %v1711
      %1772 = vst [vmem:[%s267 + $0x10] sm:$0xf] %v1712
      %1773 = vst [vmem:[%s267 + $0x14] sm:$0xf] %v1713
      %1774 = vst [vmem:[%s267 + $0x18] sm:$0xf] %v1714
      %1775 = vst [vmem:[%s267 + $0x1c] sm:$0xf] %v1715
      %1776 = vst [vmem:[%s267 + $0x20] sm:$0xf] %v1716
      %1777 = vst [vmem:[%s267 + $0x24] sm:$0xf] %v1717
      %1778 = vst [vmem:[%s267 + $0x28] sm:$0xf] %v1718
      %1779 = vst [vmem:[%s267 + $0x2c] sm:$0xf] %v1719
      %1780 = vst [vmem:[%s267 + $0x30] sm:$0xf] %v1720
      %1781 = vst [vmem:[%s267 + $0x34] sm:$0xf] %v1721
      %1782 = vst [vmem:[%s267 + $0x38] sm:$0xf] %v1722
      %1783 = vst [vmem:[%s267 + $0x3c] sm:$0xf] %v1723
      %1784 = vst [vmem:[%s267 + $0x40] sm:$0xf] %v1724
      %1785 = vst [vmem:[%s267 + $0x44] sm:$0xf] %v1725
      %1786 = vst [vmem:[%s267 + $0x48] sm:$0xf] %v1726
      %1787 = vst [vmem:[%s267 + $0x4c] sm:$0xf] %v1727
      %1788 = vst [vmem:[%s267 + $0x50] sm:$0xf] %v1728
      %1789 = vst [vmem:[%s267 + $0x54] sm:$0xf] %v1729
      %1790 = vst [vmem:[%s267 + $0x58] sm:$0xf] %v1730
      %1791 = vst [vmem:[%s267 + $0x5c] sm:$0xf] %v1731
      %1792 = vst [vmem:[%s267 + $0x60] sm:$0xf] %v1732
      %1793 = vst [vmem:[%s267 + $0x64] sm:$0xf] %v1733
      %1794 = vst [vmem:[%s267 + $0x68] sm:$0xf] %v1734
      %1795 = vst [vmem:[%s267 + $0x6c] sm:$0xf] %v1735
      %1796 = vst [vmem:[%s267 + $0x70] sm:$0xf] %v1736
      %1797 = vst [vmem:[%s267 + $0x74] sm:$0xf] %v1737
      %s1798 = smul.u32 30, %s19
      %p1799 = scmp.lt.s32.totalorder %s1798, 59
      %s1800 = scalar_select %p1799, %s1798, 59
      %p1801 = scmp.lt.s32.totalorder %s20, 0
      %s1802 = scalar_select %p1801, %s20, 0
      %s1803 = sadd.s32 %s1802, %s1800
      %s1804 = smul.addr %s1803, 4
      %s1805 = scalar_lea.vmem %s4, %s1804
      // Predicated region
      $region37: #{inception_b_forward.20} parent=35 // pred_check
        %p1806 = pneg %p151
      $region38: #{inception_b_forward.20} parent=35 // pred_check_branch
        %1808 = sbr.rel (%p1806) target = $region40
      $region39: #{inception_b_forward.20} parent=35 // pred_region
        %s1809 = smul.u32 30, %s19
      $region40: #{inception_b_forward.20} parent=35 // pred_fallthru
        _
    $region36: #{inception_b_forward.20} parent=5 // pred_fallthru
      _
    %p1810 = scmp.le.s32.totalorder 2, %s10
    // Predicated region
    $region41: #{inception_b_forward.20} parent=5 // pred_check
      %p1811 = pneg %p1810
    $region42: #{inception_b_forward.20} parent=5 // pred_check_branch
      %1813 = sbr.rel (%p1811) target = $region44
    $region43: #{inception_b_forward.20} parent=5 // pred_region
      %s1814 = ssub.s32 %s10, 2
      // Predicated region
      $region45: #{inception_b_forward.20} parent=43 // pred_check
        %p1815 = pneg %p157
      $region46: #{inception_b_forward.20} parent=43 // pred_check_branch
        %1817 = sbr.rel (%p1815) target = $region48
      $region47: #{inception_b_forward.20} parent=43 // pred_region
        %s1818 = smul.u32 30, %s21
        %p1819 = scmp.lt.s32.totalorder %s1818, 59
        %s1820 = scalar_select %p1819, %s1818, 59
        %p1821 = scmp.lt.s32.totalorder %s22, 0
        %s1822 = scalar_select %p1821, %s22, 0
        %s1823 = sadd.s32 %s1822, %s1820
        %s1824 = smul.addr %s1823, 4
        %s1825 = scalar_lea.vmem %s4, %s1824
      $region48: #{inception_b_forward.20} parent=43 // pred_fallthru
        _
    $region44: #{inception_b_forward.20} parent=5 // pred_fallthru
      _
  $region6: #{inception_b_forward.20} parent=0 // loop_footer
    %s14 = sadd.s32 1, %s10
  $region7: #{inception_b_forward.20} parent=0 // loop_footer_branch
    %9 = sbr.rel target = $region3
  $region8: #{inception_b_forward.20} parent=0 // loop_exit
    _

// kernel: inception_b_forward.21
$region0: #{inception_b_forward.21}
  #allocation0 [shape = 'u32[]', space=smem, size = 0x4, offset = 0x4, fixed_abs, tag = 'smem constant byte address 0x4 - core index']
  #allocation1 [shape = 'u32[144,128]{1,0:T(1,128)}', space=vmem, size = 0x12000, scoped, tag = 'internal scratch']
  %s0 = inlined_call_operand.vmem [shape: bf16[128,48], index: 0, kind: input, shape index: {}]
  %s1 = inlined_call_operand.vmem [shape: bf16[48,128], index: 1, kind: input, shape index: {}]
  %s2 = inlined_call_operand.vmem [shape: f32[1,128], index: 2, kind: input, shape index: {}]
  %s3 = inlined_call_operand.vmem [shape: f32[1,128], index: 3, kind: input, shape index: {}]
  %s4 = inlined_call_operand.vmem [shape: f32[128,128], index: 4, kind: output, shape index: {}]
  %s5 = sld [smem:[#allocation0]]
  $region49: #{inception_b_forward.21} parent=0
    _
  %s7 = ssub.s32 1, %s5
  %s8 = scalar_select 0, %s7, %s5
  loop: start=0, step=1, limit=4
  $region2: #{inception_b_forward.21} parent=0 // loop_pre_header
    _
  $region3: #{inception_b_forward.21} parent=0 // loop_header
    %s10 = sphi 0, %s14
    %p11 = scmp.ge.s32.totalorder %s10, 4
    %s17 = sphi 0, %s29
    %s18 = sphi 0, %s25
    %s19 = sphi 0, %s17
    %s20 = sphi 0, %s18
    %s21 = sphi 0, %s19
    %s22 = sphi 0, %s20
    %s32 = sphi 0, %s34
    %s35 = sphi 0, %s32
    %s36 = sphi 0, %s35
    %s52 = sphi 0, %s36
    %s58 = sphi 0, %s60
    %s61 = sphi 0, %s58
    %s62 = sphi 0, %s61
    %s78 = sphi 0, %s62
    %s84 = sphi 0, %s86
    %s87 = sphi 0, %s84
    %s88 = sphi 0, %s87
    %s104 = sphi 0, %s88
    %s110 = sphi 0, %s112
    %s113 = sphi 0, %s110
    %s114 = sphi 0, %s113
    %s130 = sphi 0, %s114
    %s138 = sphi 0, %s140
    %s141 = sphi 0, %s138
    %s142 = sphi 0, %s141
    %s158 = sphi 0, %s142
  $region4: #{inception_b_forward.21} parent=0 // loop_header_branch
    %13 = sbr.rel (%p11) target = $region8
  $region5: #{inception_b_forward.21} parent=0 // loop_body
    %s15 = ssub.s32 %s10, 1
    %s16 = ssub.s32 %s10, 2
    %s23 = sadd.s32 1, %s18
    %p24 = scmp.ge.s32.totalorder %s23, 1
    %s25 = scalar_select %p24, 0, %s23
    %s26 = sadd.s32 1, %s17
    %s27 = scalar_select %p24, %s26, %s17
    %p28 = scmp.ge.s32.totalorder %s27, 2
    %s29 = scalar_select %p28, 0, %s27
    %s30 = ssub.s32 %s17, %s29
    %p31 = scmp.eq.s32.totalorder %s30, 0
    %s33 = sadd.s32 %s32, 1
    %s34 = scalar_select %p31, %s32, %s33
    %p37 = pneg %p31
    %p38 = scmp.eq.s32.totalorder %s10, 1
    %p39 = por %p37, %p38
    %p40 = scmp.ne.s32.totalorder %s32, %s35
    %p41 = scmp.eq.s32.totalorder %s10, 0
    %p42 = por %p40, %p41
    %p43 = scmp.ne.s32.totalorder %s32, %s35
    %p44 = scmp.eq.s32.totalorder %s15, 1
    %p45 = por %p43, %p44
    %p46 = scmp.ne.s32.totalorder %s35, %s36
    %p47 = scmp.eq.s32.totalorder %s15, 0
    %p48 = por %p46, %p47
    %p49 = scmp.ne.s32.totalorder %s35, %s36
    %p50 = scmp.eq.s32.totalorder %s16, 1
    %p51 = por %p49, %p50
    %p53 = scmp.ne.s32.totalorder %s36, %s52
    %p54 = scmp.eq.s32.totalorder %s16, 0
    %p55 = por %p53, %p54
    %s56 = ssub.s32 %s18, %s25
    %p57 = scmp.eq.s32.totalorder %s56, 0
    %s59 = sadd.s32 %s58, 1
    %s60 = scalar_select %p57, %s58, %s59
    %p63 = pneg %p57
    %p64 = scmp.eq.s32.totalorder %s10, 1
    %p65 = por %p63, %p64
    %p66 = scmp.ne.s32.totalorder %s58, %s61
    %p67 = scmp.eq.s32.totalorder %s10, 0
    %p68 = por %p66, %p67
    %p69 = scmp.ne.s32.totalorder %s58, %s61
    %p70 = scmp.eq.s32.totalorder %s15, 1
    %p71 = por %p69, %p70
    %p72 = scmp.ne.s32.totalorder %s61, %s62
    %p73 = scmp.eq.s32.totalorder %s15, 0
    %p74 = por %p72, %p73
    %p75 = scmp.ne.s32.totalorder %s61, %s62
    %p76 = scmp.eq.s32.totalorder %s16, 1
    %p77 = por %p75, %p76
    %p79 = scmp.ne.s32.totalorder %s62, %s78
    %p80 = scmp.eq.s32.totalorder %s16, 0
    %p81 = por %p79, %p80
    %s82 = ssub.s32 %s18, %s25
    %p83 = scmp.eq.s32.totalorder %s82, 0
    %s85 = sadd.s32 %s84, 1
    %s86 = scalar_select %p83, %s84, %s85
    %p89 = pneg %p83
    %p90 = scmp.eq.s32.totalorder %s10, 1
    %p91 = por %p89, %p90
    %p92 = scmp.ne.s32.totalorder %s84, %s87
    %p93 = scmp.eq.s32.totalorder %s10, 0
    %p94 = por %p92, %p93
    %p95 = scmp.ne.s32.totalorder %s84, %s87
    %p96 = scmp.eq.s32.totalorder %s15, 1
    %p97 = por %p95, %p96
    %p98 = scmp.ne.s32.totalorder %s87, %s88
    %p99 = scmp.eq.s32.totalorder %s15, 0
    %p100 = por %p98, %p99
    %p101 = scmp.ne.s32.totalorder %s87, %s88
    %p102 = scmp.eq.s32.totalorder %s16, 1
    %p103 = por %p101, %p102
    %p105 = scmp.ne.s32.totalorder %s88, %s104
    %p106 = scmp.eq.s32.totalorder %s16, 0
    %p107 = por %p105, %p106
    %s108 = ssub.s32 %s18, %s25
    %p109 = scmp.eq.s32.totalorder %s108, 0
    %s111 = sadd.s32 %s110, 1
    %s112 = scalar_select %p109, %s110, %s111
    %p115 = pneg %p109
    %p116 = scmp.eq.s32.totalorder %s10, 1
    %p117 = por %p115, %p116
    %p118 = scmp.ne.s32.totalorder %s110, %s113
    %p119 = scmp.eq.s32.totalorder %s10, 0
    %p120 = por %p118, %p119
    %p121 = scmp.ne.s32.totalorder %s110, %s113
    %p122 = scmp.eq.s32.totalorder %s15, 1
    %p123 = por %p121, %p122
    %p124 = scmp.ne.s32.totalorder %s113, %s114
    %p125 = scmp.eq.s32.totalorder %s15, 0
    %p126 = por %p124, %p125
    %p127 = scmp.ne.s32.totalorder %s113, %s114
    %p128 = scmp.eq.s32.totalorder %s16, 1
    %p129 = por %p127, %p128
    %p131 = scmp.ne.s32.totalorder %s114, %s130
    %p132 = scmp.eq.s32.totalorder %s16, 0
    %p133 = por %p131, %p132
    %s134 = ssub.s32 %s17, %s29
    %s135 = ssub.s32 %s18, %s25
    %s136 = sor.u32 %s134, %s135
    %p137 = scmp.eq.s32.totalorder %s136, 0
    %s139 = sadd.s32 %s138, 1
    %s140 = scalar_select %p137, %s138, %s139
    %p143 = pneg %p137
    %p144 = scmp.eq.s32.totalorder %s10, 1
    %p145 = por %p143, %p144
    %p146 = scmp.ne.s32.totalorder %s138, %s141
    %p147 = scmp.eq.s32.totalorder %s10, 0
    %p148 = por %p146, %p147
    %p149 = scmp.ne.s32.totalorder %s138, %s141
    %p150 = scmp.eq.s32.totalorder %s15, 1
    %p151 = por %p149, %p150
    %p152 = scmp.ne.s32.totalorder %s141, %s142
    %p153 = scmp.eq.s32.totalorder %s15, 0
    %p154 = por %p152, %p153
    %p155 = scmp.ne.s32.totalorder %s141, %s142
    %p156 = scmp.eq.s32.totalorder %s16, 1
    %p157 = por %p155, %p156
    %p159 = scmp.ne.s32.totalorder %s142, %s158
    %p160 = scmp.eq.s32.totalorder %s16, 0
    %p161 = por %p159, %p160
    %p162 = scmp.le.s32.totalorder 1, %s10
    %p163 = scmp.lt.s32.totalorder %s10, 3
    %p164 = pnand %p162, %p163
    %p165 = pneg %p164
    // Predicated region
    $region9: #{inception_b_forward.21} parent=5 // pred_check
      _
    $region10: #{inception_b_forward.21} parent=5 // pred_check_branch
      %167 = sbr.rel (%p164) target = $region12
    $region11: #{inception_b_forward.21} parent=5 // pred_region
      %s168 = ssub.s32 %s10, 1
      // Predicated region
      $region13: #{inception_b_forward.21} parent=11 // pred_check
        %p169 = pneg %p74
      $region14: #{inception_b_forward.21} parent=11 // pred_check_branch
        %171 = sbr.rel (%p169) target = $region16
      $region15: #{inception_b_forward.21} parent=11 // pred_region
        %p172 = scmp.lt.s32.totalorder %s20, 0
        %s173 = scalar_select %p172, %s20, 0
        %s174 = smul.addr %s173, 4
        %s175 = scalar_lea.vmem %s1, %s174
      $region16: #{inception_b_forward.21} parent=11 // pred_fallthru
        _
      // Predicated region
      $region17: #{inception_b_forward.21} parent=11 // pred_check
        %p176 = pneg %p100
      $region18: #{inception_b_forward.21} parent=11 // pred_check_branch
        %178 = sbr.rel (%p176) target = $region20
      $region19: #{inception_b_forward.21} parent=11 // pred_region
        %p179 = scmp.lt.s32.totalorder %s20, 0
        %s180 = scalar_select %p179, %s20, 0
        %s181 = scalar_lea.vmem %s2, %s180
      $region20: #{inception_b_forward.21} parent=11 // pred_fallthru
        _
      // Predicated region
      $region21: #{inception_b_forward.21} parent=11 // pred_check
        %p182 = pneg %p126
      $region22: #{inception_b_forward.21} parent=11 // pred_check_branch
        %184 = sbr.rel (%p182) target = $region24
      $region23: #{inception_b_forward.21} parent=11 // pred_region
        %p185 = scmp.lt.s32.totalorder %s20, 0
        %s186 = scalar_select %p185, %s20, 0
        %s187 = scalar_lea.vmem %s3, %s186
      $region24: #{inception_b_forward.21} parent=11 // pred_fallthru
        _
    $region12: #{inception_b_forward.21} parent=5 // pred_fallthru
      _
    %p188 = scmp.lt.s32.totalorder %s10, 2
    // Predicated region
    $region25: #{inception_b_forward.21} parent=5 // pred_check
      %p189 = pneg %p188
    $region26: #{inception_b_forward.21} parent=5 // pred_check_branch
      %191 = sbr.rel (%p189) target = $region28
    $region27: #{inception_b_forward.21} parent=5 // pred_region
      // Predicated region
      $region29: #{inception_b_forward.21} parent=27 // pred_check
        %p192 = pneg %p42
      $region30: #{inception_b_forward.21} parent=27 // pred_check_branch
        %194 = sbr.rel (%p192) target = $region32
      $region31: #{inception_b_forward.21} parent=27 // pred_region
        %s195 = smul.u32 8, %s17
        %p196 = scmp.lt.s32.totalorder %s195, 15
        %s197 = scalar_select %p196, %s195, 15
        %s198 = smul.addr %s197, 4
        %s199 = scalar_lea.vmem %s0, %s198
        %s200 = smul.u32 8, %s17
      $region32: #{inception_b_forward.21} parent=27 // pred_fallthru
        _
    $region28: #{inception_b_forward.21} parent=5 // pred_fallthru
      _
    %p201 = scmp.le.s32.totalorder 1, %s10
    %p202 = scmp.lt.s32.totalorder %s10, 3
    %p203 = pnand %p201, %p202
    %p204 = pneg %p203
    // Predicated region
    $region33: #{inception_b_forward.21} parent=5 // pred_check
      _
    $region34: #{inception_b_forward.21} parent=5 // pred_check_branch
      %206 = sbr.rel (%p203) target = $region36
    $region35: #{inception_b_forward.21} parent=5 // pred_region
      %s207 = ssub.s32 %s10, 1
      %s208 = smul.u32 8, %s19
      %p209 = scmp.lt.s32.totalorder %s208, 15
      %s210 = scalar_select %p209, %s208, 15
      %s211 = smul.addr %s210, 4
      %s212 = scalar_lea.vmem %s0, %s211
      %p213 = pneg %p48
      %p214 = pneg %p45
      %p215 = scmp.lt.s32.totalorder %s20, 0
      %s216 = scalar_select %p215, %s20, 0
      %s217 = smul.addr %s216, 4
      %s218 = scalar_lea.vmem %s1, %s217
      %p219 = pneg %p74
      %p220 = pneg %p71
      %p221 = scmp.lt.s32.totalorder %s20, 0
      %s222 = scalar_select %p221, %s20, 0
      %s223 = scalar_lea.vmem %s2, %s222
      %p224 = pneg %p100
      %p225 = pneg %p97
      %p226 = scmp.lt.s32.totalorder %s20, 0
      %s227 = scalar_select %p226, %s20, 0
      %s228 = scalar_lea.vmem %s3, %s227
      %p229 = pneg %p126
      %p230 = pneg %p123
      %p231 = pneg %p154
      %p232 = pneg %p151
      %s233 = smul.u32 8, %s19
      %p234 = scmp.lt.s32.totalorder %s233, 15
      %s235 = scalar_select %p234, %s233, 15
      %p236 = scmp.lt.s32.totalorder %s20, 0
      %s237 = scalar_select %p236, %s20, 0
      %s238 = sadd.s32 %s237, %s235
      %s239 = smul.addr %s238, 8
      %s240 = scalar_lea.vmem %s4, %s239
      %s241 = smul.u32 8, %s19
      %p242 = scmp.lt.s32.totalorder %s241, 15
      %s243 = scalar_select %p242, %s241, 15
      %s244 = smul.addr %s243, 4
      %s245 = scalar_lea.vmem %s0, %s244
      %s246 = smul.u32 8, %s19
      %p247 = scmp.lt.s32.totalorder %s20, 0
      %s248 = scalar_select %p247, %s20, 0
      %s249 = smul.addr %s248, 4
      %s250 = scalar_lea.vmem %s1, %s249
      %p251 = scmp.lt.s32.totalorder %s20, 0
      %s252 = scalar_select %p251, %s20, 0
      %s253 = scalar_lea.vmem %s2, %s252
      %p254 = scmp.lt.s32.totalorder %s20, 0
      %s255 = scalar_select %p254, %s20, 0
      %s256 = scalar_lea.vmem %s3, %s255
      %s257 = smul.u32 8, %s19
      %p258 = scmp.lt.s32.totalorder %s257, 15
      %s259 = scalar_select %p258, %s257, 15
      %p260 = scmp.lt.s32.totalorder %s20, 0
      %s261 = scalar_select %p260, %s20, 0
      %s262 = sadd.s32 %s261, %s259
      %s263 = smul.addr %s262, 8
      %s264 = scalar_lea.vmem %s4, %s263
      %s265 = smul.u32 8, %s19
      %v267 = vld [vmem:[%s245] sm:$0xf]
      %v268 = vld [vmem:[%s245 + $0x4] sm:$0xf]
      %v269 = vld [vmem:[%s245 + $0x8] sm:$0xf]
      %v270 = vld [vmem:[%s245 + $0xc] sm:$0xf]
      %v271 = vld [vmem:[%s245 + $0x10] sm:$0xf]
      %v272 = vld [vmem:[%s245 + $0x14] sm:$0xf]
      %v273 = vld [vmem:[%s245 + $0x18] sm:$0xf]
      %v274 = vld [vmem:[%s245 + $0x1c] sm:$0xf]
      %v275 = vld [vmem:[%s250] sm:$0xf]
      %v276 = vld [vmem:[%s250 + $0x4] sm:$0xf]
      %v277 = vld [vmem:[%s250 + $0x8] sm:$0xf]
      %v278 = vld [vmem:[%s250 + $0xc] sm:$0xf]
      %v279 = vld [vmem:[%s250 + $0x10] sm:$0xf]
      %v280 = vld [vmem:[%s250 + $0x14] sm:$0xf]
      %v289 = vunpack.c.l.b16 %v267
      %v290 = vunpack.c.l.b16 %v268
      %v291 = vunpack.c.l.b16 %v269
      %v292 = vunpack.c.l.b16 %v270
      %v293 = vunpack.c.l.b16 %v271
      %v294 = vunpack.c.l.b16 %v272
      %v295 = vunpack.c.l.b16 %v273
      %v296 = vunpack.c.l.b16 %v274
      %v297 = vpack.c.b16 %v290, %v289
      %v298 = vpack.c.b16 %v292, %v291
      %v299 = vpack.c.b16 %v294, %v293
      %v300 = vpack.c.b16 %v296, %v295
      %v307 = vunpack.c.l.b16 %v275
      %v308 = vunpack.c.l.b16 %v276
      %v309 = vunpack.c.l.b16 %v277
      %v310 = vunpack.c.l.b16 %v278
      %v311 = vunpack.c.l.b16 %v279
      %v312 = vunpack.c.l.b16 %v280
      %v313 = vpack.c.b16 %v308, %v307
      %v314 = vpack.c.b16 %v310, %v309
      %v315 = vpack.c.b16 %v312, %v311
      %vm319 = vcmask 392192
      %v321 = vsel %vm319, %v297, 0
      %v324 = vsel %vm319, %v298, 0
      %v327 = vsel %vm319, %v299, 0
      %v330 = vsel %vm319, %v300, 0
      %332 = vmatprep.subr.bf16.mxu0 0
      %333 = vmatpush1.bf16.msra.mxu0 %v313
      %334 = vmatprep.subr.bf16.mxu0 0
      %335 = vmatpush1.bf16.msra.mxu0 %v314
      %336 = vmatprep.subr.bf16.mxu0 0
      %337 = vmatpush1.bf16.msra.mxu0 %v315
      %338 = vmatprep.subr.bf16.mxu0 0
      %339 = vmatpush1.bf16.msra.mxu0 0
      %340 = vmatprep.subr.bf16.mxu0 0
      %341 = vmatpush1.bf16.msra.mxu0 0
      %342 = vmatprep.subr.bf16.mxu0 0
      %343 = vmatpush1.bf16.msra.mxu0 0
      %344 = vmatprep.subr.bf16.mxu0 0
      %345 = vmatpush1.bf16.msra.mxu0 0
      %346 = vmatprep.subr.bf16.mxu0 0
      %347 = vmatpush1.bf16.msra.mxu0 0
      %348 = vmatprep.subr.bf16.mxu0 0
      %349 = vmatpush1.bf16.msra.mxu0 0
      %350 = vmatprep.subr.bf16.mxu0 0
      %351 = vmatpush1.bf16.msra.mxu0 0
      %352 = vmatprep.subr.bf16.mxu0 0
      %353 = vmatpush1.bf16.msra.mxu0 0
      %354 = vmatprep.subr.bf16.mxu0 0
      %355 = vmatpush1.bf16.msra.mxu0 0
      %356 = vmatprep.subr.bf16.mxu0 0
      %357 = vmatpush1.bf16.msra.mxu0 0
      %358 = vmatprep.subr.bf16.mxu0 0
      %359 = vmatpush1.bf16.msra.mxu0 0
      %360 = vmatprep.subr.bf16.mxu0 0
      %361 = vmatpush1.bf16.msra.mxu0 0
      %362 = vmatprep.subr.bf16.mxu0 0
      %363 = vmatpush1.bf16.msra.mxu0 0
      %364 = vmatprep.mubr.bf16.mxu0 0
      %365 = vmatmul.mubr.bf16.gmra.mrb[0].mxu0 %v321
      %v366 = vpop.f32.mrb[0].mxu0
      %v367 = vadd.f32 0.0, %v366
      %v368 = vpop.f32.mrb[0].mxu0
      %v369 = vpop.f32.mrb[0].mxu0
      %v370 = vadd.f32 0.0, %v369
      %v371 = vpop.f32.mrb[0].mxu0
      %372 = vmatprep.mubr.bf16.mxu0 0
      %373 = vmatmul.mubr.bf16.gmra.mrb[0].mxu0 %v324
      %v374 = vpop.f32.mrb[0].mxu0
      %v375 = vadd.f32 0.0, %v374
      %v376 = vpop.f32.mrb[0].mxu0
      %v377 = vpop.f32.mrb[0].mxu0
      %v378 = vadd.f32 0.0, %v377
      %v379 = vpop.f32.mrb[0].mxu0
      %380 = vmatprep.mubr.bf16.mxu0 0
      %381 = vmatmul.mubr.bf16.gmra.mrb[0].mxu0 %v327
      %v382 = vpop.f32.mrb[0].mxu0
      %v383 = vadd.f32 0.0, %v382
      %v384 = vpop.f32.mrb[0].mxu0
      %v385 = vpop.f32.mrb[0].mxu0
      %v386 = vadd.f32 0.0, %v385
      %v387 = vpop.f32.mrb[0].mxu0
      %388 = vmatprep.mubr.bf16.mxu0 0
      %389 = vmatmul.mubr.bf16.gmra.mrb[0].mxu0 %v330
      %v390 = vpop.f32.mrb[0].mxu0
      %v391 = vadd.f32 0.0, %v390
      %v392 = vpop.f32.mrb[0].mxu0
      %v393 = vpop.f32.mrb[0].mxu0
      %v394 = vadd.f32 0.0, %v393
      %v395 = vpop.f32.mrb[0].mxu0
      %396 = vdwg.mxu0
      %v397 = vld [vmem:[%s253] sm:$0x1]
      %v399 = vlaneseq
      %v400 = vshrl.u32 %v399, 7
      %v401 = vsub.s32 0, %v400
      %v402 = vrot.slane %v397, %v401
      %v404 = vmul.f32 %v367, %v402
      %v405 = vmul.f32 %v370, %v402
      %v406 = vmul.f32 %v375, %v402
      %v407 = vmul.f32 %v378, %v402
      %v408 = vmul.f32 %v383, %v402
      %v409 = vmul.f32 %v386, %v402
      %v410 = vmul.f32 %v391, %v402
      %v411 = vmul.f32 %v394, %v402
      %v412 = vld [vmem:[%s256] sm:$0x1]
      %v414 = vlaneseq
      %v415 = vshrl.u32 %v414, 7
      %v416 = vsub.s32 0, %v415
      %v417 = vrot.slane %v412, %v416
      %v419 = vadd.f32 %v404, %v417
      %v420 = vadd.f32 %v405, %v417
      %v421 = vadd.f32 %v406, %v417
      %v422 = vadd.f32 %v407, %v417
      %v423 = vadd.f32 %v408, %v417
      %v424 = vadd.f32 %v409, %v417
      %v425 = vadd.f32 %v410, %v417
      %v426 = vadd.f32 %v411, %v417
      %v427 = vmax.f32 %v419, 0.0
      %v428 = vmax.f32 %v420, 0.0
      %v429 = vmax.f32 %v421, 0.0
      %v430 = vmax.f32 %v422, 0.0
      %v431 = vmax.f32 %v423, 0.0
      %v432 = vmax.f32 %v424, 0.0
      %v433 = vmax.f32 %v425, 0.0
      %v434 = vmax.f32 %v426, 0.0
      %435 = vst [vmem:[%s264] sm:$0xff] %v427
      %436 = vst [vmem:[%s264 + $0x8] sm:$0xff] %v428
      %437 = vst [vmem:[%s264 + $0x10] sm:$0xff] %v429
      %438 = vst [vmem:[%s264 + $0x18] sm:$0xff] %v430
      %439 = vst [vmem:[%s264 + $0x20] sm:$0xff] %v431
      %440 = vst [vmem:[%s264 + $0x28] sm:$0xff] %v432
      %441 = vst [vmem:[%s264 + $0x30] sm:$0xff] %v433
      %442 = vst [vmem:[%s264 + $0x38] sm:$0xff] %v434
      %s443 = smul.u32 8, %s19
      %p444 = scmp.lt.s32.totalorder %s443, 15
      %s445 = scalar_select %p444, %s443, 15
      %p446 = scmp.lt.s32.totalorder %s20, 0
      %s447 = scalar_select %p446, %s20, 0
      %s448 = sadd.s32 %s447, %s445
      %s449 = smul.addr %s448, 8
      %s450 = scalar_lea.vmem %s4, %s449
      // Predicated region
      $region37: #{inception_b_forward.21} parent=35 // pred_check
        %p451 = pneg %p151
      $region38: #{inception_b_forward.21} parent=35 // pred_check_branch
        %453 = sbr.rel (%p451) target = $region40
      $region39: #{inception_b_forward.21} parent=35 // pred_region
        %s454 = smul.u32 8, %s19
      $region40: #{inception_b_forward.21} parent=35 // pred_fallthru
        _
    $region36: #{inception_b_forward.21} parent=5 // pred_fallthru
      _
    %p455 = scmp.le.s32.totalorder 2, %s10
    // Predicated region
    $region41: #{inception_b_forward.21} parent=5 // pred_check
      %p456 = pneg %p455
    $region42: #{inception_b_forward.21} parent=5 // pred_check_branch
      %458 = sbr.rel (%p456) target = $region44
    $region43: #{inception_b_forward.21} parent=5 // pred_region
      %s459 = ssub.s32 %s10, 2
      // Predicated region
      $region45: #{inception_b_forward.21} parent=43 // pred_check
        %p460 = pneg %p157
      $region46: #{inception_b_forward.21} parent=43 // pred_check_branch
        %462 = sbr.rel (%p460) target = $region48
      $region47: #{inception_b_forward.21} parent=43 // pred_region
        %s463 = smul.u32 8, %s21
        %p464 = scmp.lt.s32.totalorder %s463, 15
        %s465 = scalar_select %p464, %s463, 15
        %p466 = scmp.lt.s32.totalorder %s22, 0
        %s467 = scalar_select %p466, %s22, 0
        %s468 = sadd.s32 %s467, %s465
        %s469 = smul.addr %s468, 8
        %s470 = scalar_lea.vmem %s4, %s469
      $region48: #{inception_b_forward.21} parent=43 // pred_fallthru
        _
    $region44: #{inception_b_forward.21} parent=5 // pred_fallthru
      _
  $region6: #{inception_b_forward.21} parent=0 // loop_footer
    %s14 = sadd.s32 1, %s10
  $region7: #{inception_b_forward.21} parent=0 // loop_footer_branch
    %9 = sbr.rel target = $region3
  $region8: #{inception_b_forward.21} parent=0 // loop_exit
    _

// kernel: inception_b_forward.22
$region0: #{inception_b_forward.22}
  #allocation0 [shape = 'u32[]', space=smem, size = 0x4, offset = 0x4, fixed_abs, tag = 'smem constant byte address 0x4 - core index']
  #allocation1 [shape = 'u32[144,128]{1,0:T(1,128)}', space=vmem, size = 0x12000, scoped, tag = 'internal scratch']
  %s0 = inlined_call_operand.vmem [shape: bf16[64,48], index: 0, kind: input, shape index: {}]
  %s1 = inlined_call_operand.vmem [shape: bf16[48,128], index: 1, kind: input, shape index: {}]
  %s2 = inlined_call_operand.vmem [shape: f32[1,128], index: 2, kind: input, shape index: {}]
  %s3 = inlined_call_operand.vmem [shape: f32[1,128], index: 3, kind: input, shape index: {}]
  %s4 = inlined_call_operand.vmem [shape: f32[64,128], index: 4, kind: output, shape index: {}]
  %s5 = sld [smem:[#allocation0]]
  $region49: #{inception_b_forward.22} parent=0
    _
  %s7 = ssub.s32 1, %s5
  %s8 = scalar_select 0, %s7, %s5
  loop: start=0, step=1, limit=4
  $region2: #{inception_b_forward.22} parent=0 // loop_pre_header
    _
  $region3: #{inception_b_forward.22} parent=0 // loop_header
    %s10 = sphi 0, %s14
    %p11 = scmp.ge.s32.totalorder %s10, 4
    %s17 = sphi 0, %s29
    %s18 = sphi 0, %s25
    %s19 = sphi 0, %s17
    %s20 = sphi 0, %s18
    %s21 = sphi 0, %s19
    %s22 = sphi 0, %s20
    %s32 = sphi 0, %s34
    %s35 = sphi 0, %s32
    %s36 = sphi 0, %s35
    %s52 = sphi 0, %s36
    %s58 = sphi 0, %s60
    %s61 = sphi 0, %s58
    %s62 = sphi 0, %s61
    %s78 = sphi 0, %s62
    %s84 = sphi 0, %s86
    %s87 = sphi 0, %s84
    %s88 = sphi 0, %s87
    %s104 = sphi 0, %s88
    %s110 = sphi 0, %s112
    %s113 = sphi 0, %s110
    %s114 = sphi 0, %s113
    %s130 = sphi 0, %s114
    %s138 = sphi 0, %s140
    %s141 = sphi 0, %s138
    %s142 = sphi 0, %s141
    %s158 = sphi 0, %s142
  $region4: #{inception_b_forward.22} parent=0 // loop_header_branch
    %13 = sbr.rel (%p11) target = $region8
  $region5: #{inception_b_forward.22} parent=0 // loop_body
    %s15 = ssub.s32 %s10, 1
    %s16 = ssub.s32 %s10, 2
    %s23 = sadd.s32 1, %s18
    %p24 = scmp.ge.s32.totalorder %s23, 1
    %s25 = scalar_select %p24, 0, %s23
    %s26 = sadd.s32 1, %s17
    %s27 = scalar_select %p24, %s26, %s17
    %p28 = scmp.ge.s32.totalorder %s27, 2
    %s29 = scalar_select %p28, 0, %s27
    %s30 = ssub.s32 %s17, %s29
    %p31 = scmp.eq.s32.totalorder %s30, 0
    %s33 = sadd.s32 %s32, 1
    %s34 = scalar_select %p31, %s32, %s33
    %p37 = pneg %p31
    %p38 = scmp.eq.s32.totalorder %s10, 1
    %p39 = por %p37, %p38
    %p40 = scmp.ne.s32.totalorder %s32, %s35
    %p41 = scmp.eq.s32.totalorder %s10, 0
    %p42 = por %p40, %p41
    %p43 = scmp.ne.s32.totalorder %s32, %s35
    %p44 = scmp.eq.s32.totalorder %s15, 1
    %p45 = por %p43, %p44
    %p46 = scmp.ne.s32.totalorder %s35, %s36
    %p47 = scmp.eq.s32.totalorder %s15, 0
    %p48 = por %p46, %p47
    %p49 = scmp.ne.s32.totalorder %s35, %s36
    %p50 = scmp.eq.s32.totalorder %s16, 1
    %p51 = por %p49, %p50
    %p53 = scmp.ne.s32.totalorder %s36, %s52
    %p54 = scmp.eq.s32.totalorder %s16, 0
    %p55 = por %p53, %p54
    %s56 = ssub.s32 %s18, %s25
    %p57 = scmp.eq.s32.totalorder %s56, 0
    %s59 = sadd.s32 %s58, 1
    %s60 = scalar_select %p57, %s58, %s59
    %p63 = pneg %p57
    %p64 = scmp.eq.s32.totalorder %s10, 1
    %p65 = por %p63, %p64
    %p66 = scmp.ne.s32.totalorder %s58, %s61
    %p67 = scmp.eq.s32.totalorder %s10, 0
    %p68 = por %p66, %p67
    %p69 = scmp.ne.s32.totalorder %s58, %s61
    %p70 = scmp.eq.s32.totalorder %s15, 1
    %p71 = por %p69, %p70
    %p72 = scmp.ne.s32.totalorder %s61, %s62
    %p73 = scmp.eq.s32.totalorder %s15, 0
    %p74 = por %p72, %p73
    %p75 = scmp.ne.s32.totalorder %s61, %s62
    %p76 = scmp.eq.s32.totalorder %s16, 1
    %p77 = por %p75, %p76
    %p79 = scmp.ne.s32.totalorder %s62, %s78
    %p80 = scmp.eq.s32.totalorder %s16, 0
    %p81 = por %p79, %p80
    %s82 = ssub.s32 %s18, %s25
    %p83 = scmp.eq.s32.totalorder %s82, 0
    %s85 = sadd.s32 %s84, 1
    %s86 = scalar_select %p83, %s84, %s85
    %p89 = pneg %p83
    %p90 = scmp.eq.s32.totalorder %s10, 1
    %p91 = por %p89, %p90
    %p92 = scmp.ne.s32.totalorder %s84, %s87
    %p93 = scmp.eq.s32.totalorder %s10, 0
    %p94 = por %p92, %p93
    %p95 = scmp.ne.s32.totalorder %s84, %s87
    %p96 = scmp.eq.s32.totalorder %s15, 1
    %p97 = por %p95, %p96
    %p98 = scmp.ne.s32.totalorder %s87, %s88
    %p99 = scmp.eq.s32.totalorder %s15, 0
    %p100 = por %p98, %p99
    %p101 = scmp.ne.s32.totalorder %s87, %s88
    %p102 = scmp.eq.s32.totalorder %s16, 1
    %p103 = por %p101, %p102
    %p105 = scmp.ne.s32.totalorder %s88, %s104
    %p106 = scmp.eq.s32.totalorder %s16, 0
    %p107 = por %p105, %p106
    %s108 = ssub.s32 %s18, %s25
    %p109 = scmp.eq.s32.totalorder %s108, 0
    %s111 = sadd.s32 %s110, 1
    %s112 = scalar_select %p109, %s110, %s111
    %p115 = pneg %p109
    %p116 = scmp.eq.s32.totalorder %s10, 1
    %p117 = por %p115, %p116
    %p118 = scmp.ne.s32.totalorder %s110, %s113
    %p119 = scmp.eq.s32.totalorder %s10, 0
    %p120 = por %p118, %p119
    %p121 = scmp.ne.s32.totalorder %s110, %s113
    %p122 = scmp.eq.s32.totalorder %s15, 1
    %p123 = por %p121, %p122
    %p124 = scmp.ne.s32.totalorder %s113, %s114
    %p125 = scmp.eq.s32.totalorder %s15, 0
    %p126 = por %p124, %p125
    %p127 = scmp.ne.s32.totalorder %s113, %s114
    %p128 = scmp.eq.s32.totalorder %s16, 1
    %p129 = por %p127, %p128
    %p131 = scmp.ne.s32.totalorder %s114, %s130
    %p132 = scmp.eq.s32.totalorder %s16, 0
    %p133 = por %p131, %p132
    %s134 = ssub.s32 %s17, %s29
    %s135 = ssub.s32 %s18, %s25
    %s136 = sor.u32 %s134, %s135
    %p137 = scmp.eq.s32.totalorder %s136, 0
    %s139 = sadd.s32 %s138, 1
    %s140 = scalar_select %p137, %s138, %s139
    %p143 = pneg %p137
    %p144 = scmp.eq.s32.totalorder %s10, 1
    %p145 = por %p143, %p144
    %p146 = scmp.ne.s32.totalorder %s138, %s141
    %p147 = scmp.eq.s32.totalorder %s10, 0
    %p148 = por %p146, %p147
    %p149 = scmp.ne.s32.totalorder %s138, %s141
    %p150 = scmp.eq.s32.totalorder %s15, 1
    %p151 = por %p149, %p150
    %p152 = scmp.ne.s32.totalorder %s141, %s142
    %p153 = scmp.eq.s32.totalorder %s15, 0
    %p154 = por %p152, %p153
    %p155 = scmp.ne.s32.totalorder %s141, %s142
    %p156 = scmp.eq.s32.totalorder %s16, 1
    %p157 = por %p155, %p156
    %p159 = scmp.ne.s32.totalorder %s142, %s158
    %p160 = scmp.eq.s32.totalorder %s16, 0
    %p161 = por %p159, %p160
    %p162 = scmp.le.s32.totalorder 1, %s10
    %p163 = scmp.lt.s32.totalorder %s10, 3
    %p164 = pnand %p162, %p163
    %p165 = pneg %p164
    // Predicated region
    $region9: #{inception_b_forward.22} parent=5 // pred_check
      _
    $region10: #{inception_b_forward.22} parent=5 // pred_check_branch
      %167 = sbr.rel (%p164) target = $region12
    $region11: #{inception_b_forward.22} parent=5 // pred_region
      %s168 = ssub.s32 %s10, 1
      // Predicated region
      $region13: #{inception_b_forward.22} parent=11 // pred_check
        %p169 = pneg %p74
      $region14: #{inception_b_forward.22} parent=11 // pred_check_branch
        %171 = sbr.rel (%p169) target = $region16
      $region15: #{inception_b_forward.22} parent=11 // pred_region
        %p172 = scmp.lt.s32.totalorder %s20, 0
        %s173 = scalar_select %p172, %s20, 0
        %s174 = smul.addr %s173, 4
        %s175 = scalar_lea.vmem %s1, %s174
      $region16: #{inception_b_forward.22} parent=11 // pred_fallthru
        _
      // Predicated region
      $region17: #{inception_b_forward.22} parent=11 // pred_check
        %p176 = pneg %p100
      $region18: #{inception_b_forward.22} parent=11 // pred_check_branch
        %178 = sbr.rel (%p176) target = $region20
      $region19: #{inception_b_forward.22} parent=11 // pred_region
        %p179 = scmp.lt.s32.totalorder %s20, 0
        %s180 = scalar_select %p179, %s20, 0
        %s181 = scalar_lea.vmem %s2, %s180
      $region20: #{inception_b_forward.22} parent=11 // pred_fallthru
        _
      // Predicated region
      $region21: #{inception_b_forward.22} parent=11 // pred_check
        %p182 = pneg %p126
      $region22: #{inception_b_forward.22} parent=11 // pred_check_branch
        %184 = sbr.rel (%p182) target = $region24
      $region23: #{inception_b_forward.22} parent=11 // pred_region
        %p185 = scmp.lt.s32.totalorder %s20, 0
        %s186 = scalar_select %p185, %s20, 0
        %s187 = scalar_lea.vmem %s3, %s186
      $region24: #{inception_b_forward.22} parent=11 // pred_fallthru
        _
    $region12: #{inception_b_forward.22} parent=5 // pred_fallthru
      _
    %p188 = scmp.lt.s32.totalorder %s10, 2
    // Predicated region
    $region25: #{inception_b_forward.22} parent=5 // pred_check
      %p189 = pneg %p188
    $region26: #{inception_b_forward.22} parent=5 // pred_check_branch
      %191 = sbr.rel (%p189) target = $region28
    $region27: #{inception_b_forward.22} parent=5 // pred_region
      // Predicated region
      $region29: #{inception_b_forward.22} parent=27 // pred_check
        %p192 = pneg %p42
      $region30: #{inception_b_forward.22} parent=27 // pred_check_branch
        %194 = sbr.rel (%p192) target = $region32
      $region31: #{inception_b_forward.22} parent=27 // pred_region
        %s195 = smul.u32 4, %s17
        %p196 = scmp.lt.s32.totalorder %s195, 7
        %s197 = scalar_select %p196, %s195, 7
        %s198 = smul.addr %s197, 4
        %s199 = scalar_lea.vmem %s0, %s198
        %s200 = smul.u32 4, %s17
      $region32: #{inception_b_forward.22} parent=27 // pred_fallthru
        _
    $region28: #{inception_b_forward.22} parent=5 // pred_fallthru
      _
    %p201 = scmp.le.s32.totalorder 1, %s10
    %p202 = scmp.lt.s32.totalorder %s10, 3
    %p203 = pnand %p201, %p202
    %p204 = pneg %p203
    // Predicated region
    $region33: #{inception_b_forward.22} parent=5 // pred_check
      _
    $region34: #{inception_b_forward.22} parent=5 // pred_check_branch
      %206 = sbr.rel (%p203) target = $region36
    $region35: #{inception_b_forward.22} parent=5 // pred_region
      %s207 = ssub.s32 %s10, 1
      %s208 = smul.u32 4, %s19
      %p209 = scmp.lt.s32.totalorder %s208, 7
      %s210 = scalar_select %p209, %s208, 7
      %s211 = smul.addr %s210, 4
      %s212 = scalar_lea.vmem %s0, %s211
      %p213 = pneg %p48
      %p214 = pneg %p45
      %p215 = scmp.lt.s32.totalorder %s20, 0
      %s216 = scalar_select %p215, %s20, 0
      %s217 = smul.addr %s216, 4
      %s218 = scalar_lea.vmem %s1, %s217
      %p219 = pneg %p74
      %p220 = pneg %p71
      %p221 = scmp.lt.s32.totalorder %s20, 0
      %s222 = scalar_select %p221, %s20, 0
      %s223 = scalar_lea.vmem %s2, %s222
      %p224 = pneg %p100
      %p225 = pneg %p97
      %p226 = scmp.lt.s32.totalorder %s20, 0
      %s227 = scalar_select %p226, %s20, 0
      %s228 = scalar_lea.vmem %s3, %s227
      %p229 = pneg %p126
      %p230 = pneg %p123
      %p231 = pneg %p154
      %p232 = pneg %p151
      %s233 = smul.u32 4, %s19
      %p234 = scmp.lt.s32.totalorder %s233, 7
      %s235 = scalar_select %p234, %s233, 7
      %p236 = scmp.lt.s32.totalorder %s20, 0
      %s237 = scalar_select %p236, %s20, 0
      %s238 = sadd.s32 %s237, %s235
      %s239 = smul.addr %s238, 8
      %s240 = scalar_lea.vmem %s4, %s239
      %s241 = smul.u32 4, %s19
      %p242 = scmp.lt.s32.totalorder %s241, 7
      %s243 = scalar_select %p242, %s241, 7
      %s244 = smul.addr %s243, 4
      %s245 = scalar_lea.vmem %s0, %s244
      %s246 = smul.u32 4, %s19
      %p247 = scmp.lt.s32.totalorder %s20, 0
      %s248 = scalar_select %p247, %s20, 0
      %s249 = smul.addr %s248, 4
      %s250 = scalar_lea.vmem %s1, %s249
      %p251 = scmp.lt.s32.totalorder %s20, 0
      %s252 = scalar_select %p251, %s20, 0
      %s253 = scalar_lea.vmem %s2, %s252
      %p254 = scmp.lt.s32.totalorder %s20, 0
      %s255 = scalar_select %p254, %s20, 0
      %s256 = scalar_lea.vmem %s3, %s255
      %s257 = smul.u32 4, %s19
      %p258 = scmp.lt.s32.totalorder %s257, 7
      %s259 = scalar_select %p258, %s257, 7
      %p260 = scmp.lt.s32.totalorder %s20, 0
      %s261 = scalar_select %p260, %s20, 0
      %s262 = sadd.s32 %s261, %s259
      %s263 = smul.addr %s262, 8
      %s264 = scalar_lea.vmem %s4, %s263
      %s265 = smul.u32 4, %s19
      %v267 = vld [vmem:[%s245] sm:$0xf]
      %v268 = vld [vmem:[%s245 + $0x4] sm:$0xf]
      %v269 = vld [vmem:[%s245 + $0x8] sm:$0xf]
      %v270 = vld [vmem:[%s245 + $0xc] sm:$0xf]
      %v271 = vld [vmem:[%s250] sm:$0xf]
      %v272 = vld [vmem:[%s250 + $0x4] sm:$0xf]
      %v273 = vld [vmem:[%s250 + $0x8] sm:$0xf]
      %v274 = vld [vmem:[%s250 + $0xc] sm:$0xf]
      %v275 = vld [vmem:[%s250 + $0x10] sm:$0xf]
      %v276 = vld [vmem:[%s250 + $0x14] sm:$0xf]
      %v281 = vunpack.c.l.b16 %v267
      %v282 = vunpack.c.l.b16 %v268
      %v283 = vunpack.c.l.b16 %v269
      %v284 = vunpack.c.l.b16 %v270
      %v285 = vpack.c.b16 %v282, %v281
      %v286 = vpack.c.b16 %v284, %v283
      %v293 = vunpack.c.l.b16 %v271
      %v294 = vunpack.c.l.b16 %v272
      %v295 = vunpack.c.l.b16 %v273
      %v296 = vunpack.c.l.b16 %v274
      %v297 = vunpack.c.l.b16 %v275
      %v298 = vunpack.c.l.b16 %v276
      %v299 = vpack.c.b16 %v294, %v293
      %v300 = vpack.c.b16 %v296, %v295
      %v301 = vpack.c.b16 %v298, %v297
      %vm305 = vcmask 392192
      %v307 = vsel %vm305, %v285, 0
      %v310 = vsel %vm305, %v286, 0
      %312 = vmatprep.subr.bf16.mxu0 0
      %313 = vmatpush1.bf16.msra.mxu0 %v299
      %314 = vmatprep.subr.bf16.mxu0 0
      %315 = vmatpush1.bf16.msra.mxu0 %v300
      %316 = vmatprep.subr.bf16.mxu0 0
      %317 = vmatpush1.bf16.msra.mxu0 %v301
      %318 = vmatprep.subr.bf16.mxu0 0
      %319 = vmatpush1.bf16.msra.mxu0 0
      %320 = vmatprep.subr.bf16.mxu0 0
      %321 = vmatpush1.bf16.msra.mxu0 0
      %322 = vmatprep.subr.bf16.mxu0 0
      %323 = vmatpush1.bf16.msra.mxu0 0
      %324 = vmatprep.subr.bf16.mxu0 0
      %325 = vmatpush1.bf16.msra.mxu0 0
      %326 = vmatprep.subr.bf16.mxu0 0
      %327 = vmatpush1.bf16.msra.mxu0 0
      %328 = vmatprep.subr.bf16.mxu0 0
      %329 = vmatpush1.bf16.msra.mxu0 0
      %330 = vmatprep.subr.bf16.mxu0 0
      %331 = vmatpush1.bf16.msra.mxu0 0
      %332 = vmatprep.subr.bf16.mxu0 0
      %333 = vmatpush1.bf16.msra.mxu0 0
      %334 = vmatprep.subr.bf16.mxu0 0
      %335 = vmatpush1.bf16.msra.mxu0 0
      %336 = vmatprep.subr.bf16.mxu0 0
      %337 = vmatpush1.bf16.msra.mxu0 0
      %338 = vmatprep.subr.bf16.mxu0 0
      %339 = vmatpush1.bf16.msra.mxu0 0
      %340 = vmatprep.subr.bf16.mxu0 0
      %341 = vmatpush1.bf16.msra.mxu0 0
      %342 = vmatprep.subr.bf16.mxu0 0
      %343 = vmatpush1.bf16.msra.mxu0 0
      %344 = vmatprep.mubr.bf16.mxu0 0
      %345 = vmatmul.mubr.bf16.gmra.mrb[0].mxu0 %v307
      %v346 = vpop.f32.mrb[0].mxu0
      %v347 = vadd.f32 0.0, %v346
      %v348 = vpop.f32.mrb[0].mxu0
      %v349 = vpop.f32.mrb[0].mxu0
      %v350 = vadd.f32 0.0, %v349
      %v351 = vpop.f32.mrb[0].mxu0
      %352 = vmatprep.mubr.bf16.mxu0 0
      %353 = vmatmul.mubr.bf16.gmra.mrb[0].mxu0 %v310
      %v354 = vpop.f32.mrb[0].mxu0
      %v355 = vadd.f32 0.0, %v354
      %v356 = vpop.f32.mrb[0].mxu0
      %v357 = vpop.f32.mrb[0].mxu0
      %v358 = vadd.f32 0.0, %v357
      %v359 = vpop.f32.mrb[0].mxu0
      %360 = vdwg.mxu0
      %v361 = vld [vmem:[%s253] sm:$0x1]
      %v363 = vlaneseq
      %v364 = vshrl.u32 %v363, 7
      %v365 = vsub.s32 0, %v364
      %v366 = vrot.slane %v361, %v365
      %v368 = vmul.f32 %v347, %v366
      %v369 = vmul.f32 %v350, %v366
      %v370 = vmul.f32 %v355, %v366
      %v371 = vmul.f32 %v358, %v366
      %v372 = vld [vmem:[%s256] sm:$0x1]
      %v374 = vlaneseq
      %v375 = vshrl.u32 %v374, 7
      %v376 = vsub.s32 0, %v375
      %v377 = vrot.slane %v372, %v376
      %v379 = vadd.f32 %v368, %v377
      %v380 = vadd.f32 %v369, %v377
      %v381 = vadd.f32 %v370, %v377
      %v382 = vadd.f32 %v371, %v377
      %v383 = vmax.f32 %v379, 0.0
      %v384 = vmax.f32 %v380, 0.0
      %v385 = vmax.f32 %v381, 0.0
      %v386 = vmax.f32 %v382, 0.0
      %387 = vst [vmem:[%s264] sm:$0xff] %v383
      %388 = vst [vmem:[%s264 + $0x8] sm:$0xff] %v384
      %389 = vst [vmem:[%s264 + $0x10] sm:$0xff] %v385
      %390 = vst [vmem:[%s264 + $0x18] sm:$0xff] %v386
      %s391 = smul.u32 4, %s19
      %p392 = scmp.lt.s32.totalorder %s391, 7
      %s393 = scalar_select %p392, %s391, 7
      %p394 = scmp.lt.s32.totalorder %s20, 0
      %s395 = scalar_select %p394, %s20, 0
      %s396 = sadd.s32 %s395, %s393
      %s397 = smul.addr %s396, 8
      %s398 = scalar_lea.vmem %s4, %s397
      // Predicated region
      $region37: #{inception_b_forward.22} parent=35 // pred_check
        %p399 = pneg %p151
      $region38: #{inception_b_forward.22} parent=35 // pred_check_branch
        %401 = sbr.rel (%p399) target = $region40
      $region39: #{inception_b_forward.22} parent=35 // pred_region
        %s402 = smul.u32 4, %s19
      $region40: #{inception_b_forward.22} parent=35 // pred_fallthru
        _
    $region36: #{inception_b_forward.22} parent=5 // pred_fallthru
      _
    %p403 = scmp.le.s32.totalorder 2, %s10
    // Predicated region
    $region41: #{inception_b_forward.22} parent=5 // pred_check
      %p404 = pneg %p403
    $region42: #{inception_b_forward.22} parent=5 // pred_check_branch
      %406 = sbr.rel (%p404) target = $region44
    $region43: #{inception_b_forward.22} parent=5 // pred_region
      %s407 = ssub.s32 %s10, 2
      // Predicated region
      $region45: #{inception_b_forward.22} parent=43 // pred_check
        %p408 = pneg %p157
      $region46: #{inception_b_forward.22} parent=43 // pred_check_branch
        %410 = sbr.rel (%p408) target = $region48
      $region47: #{inception_b_forward.22} parent=43 // pred_region
        %s411 = smul.u32 4, %s21
        %p412 = scmp.lt.s32.totalorder %s411, 7
        %s413 = scalar_select %p412, %s411, 7
        %p414 = scmp.lt.s32.totalorder %s22, 0
        %s415 = scalar_select %p414, %s22, 0
        %s416 = sadd.s32 %s415, %s413
        %s417 = smul.addr %s416, 8
        %s418 = scalar_lea.vmem %s4, %s417
      $region48: #{inception_b_forward.22} parent=43 // pred_fallthru
        _
    $region44: #{inception_b_forward.22} parent=5 // pred_fallthru
      _
  $region6: #{inception_b_forward.22} parent=0 // loop_footer
    %s14 = sadd.s32 1, %s10
  $region7: #{inception_b_forward.22} parent=0 // loop_footer_branch
    %9 = sbr.rel target = $region3
  $region8: #{inception_b_forward.22} parent=0 // loop_exit
    _

// kernel: reverse.7
$region0: #{reverse.7}
  #allocation0 [shape = 's32[1]{0}', space=sflag, size = 0x4, scoped, tag = 'scoped memory for reverse.7']
  %s0 = inlined_call_operand.vmem [shape: f32[2,24,7,3], index: 0, kind: input, shape index: {}]
  %s1 = inlined_call_operand.vmem [shape: f32[2,24,7,3], index: 1, kind: output, shape index: {}]
  %s2 = scalar_lea.vmem %s0, 16
  %v3 = vld [vmem:[%s2] sm:$0x7f]
  %4 = vst [vmem:[%s1] sm:$0xff] %v3
  %s5 = scalar_lea.vmem %s0, 40
  %v6 = vld [vmem:[%s5] sm:$0x7f]
  %s7 = scalar_lea.vmem %s1, 24
  %8 = vst [vmem:[%s7] sm:$0xff] %v6
  %s9 = scalar_lea.vmem %s0, 8
  %v10 = vld [vmem:[%s9] sm:$0x7f]
  %s11 = scalar_lea.vmem %s1, 8
  %12 = vst [vmem:[%s11] sm:$0xff] %v10
  %s13 = scalar_lea.vmem %s0, 32
  %v14 = vld [vmem:[%s13] sm:$0x7f]
  %s15 = scalar_lea.vmem %s1, 32
  %16 = vst [vmem:[%s15] sm:$0xff] %v14
  %v17 = vld [vmem:[%s0] sm:$0x7f]
  %s18 = scalar_lea.vmem %s1, 16
  %19 = vst [vmem:[%s18] sm:$0xff] %v17
  %s20 = scalar_lea.vmem %s0, 24
  %v21 = vld [vmem:[%s20] sm:$0x7f]
  %s22 = scalar_lea.vmem %s1, 40
  %23 = vst [vmem:[%s22] sm:$0xff] %v21

// kernel: inception_b_forward.23
$region0: #{inception_b_forward.23}
  #allocation0 [shape = 'u32[]', space=smem, size = 0x4, offset = 0x4, fixed_abs, tag = 'smem constant byte address 0x4 - core index']
  #allocation1 [shape = 'u32[144,128]{1,0:T(1,128)}', space=vmem, size = 0x12000, scoped, tag = 'internal scratch']
  %s0 = inlined_call_operand.vmem [shape: bf16[128,896], index: 0, kind: input, shape index: {}]
  %s1 = inlined_call_operand.vmem [shape: bf16[896,128], index: 1, kind: input, shape index: {}]
  %s2 = inlined_call_operand.vmem [shape: f32[1,128], index: 2, kind: input, shape index: {}]
  %s3 = inlined_call_operand.vmem [shape: f32[1,128], index: 3, kind: input, shape index: {}]
  %s4 = inlined_call_operand.vmem [shape: f32[128,128], index: 4, kind: output, shape index: {}]
  %s5 = sld [smem:[#allocation0]]
  $region49: #{inception_b_forward.23} parent=0
    _
  %s7 = ssub.s32 1, %s5
  %s8 = scalar_select 0, %s7, %s5
  loop: start=0, step=1, limit=4
  $region2: #{inception_b_forward.23} parent=0 // loop_pre_header
    _
  $region3: #{inception_b_forward.23} parent=0 // loop_header
    %s10 = sphi 0, %s14
    %p11 = scmp.ge.s32.totalorder %s10, 4
    %s17 = sphi 0, %s29
    %s18 = sphi 0, %s25
    %s19 = sphi 0, %s17
    %s20 = sphi 0, %s18
    %s21 = sphi 0, %s19
    %s22 = sphi 0, %s20
    %s32 = sphi 0, %s34
    %s35 = sphi 0, %s32
    %s36 = sphi 0, %s35
    %s52 = sphi 0, %s36
    %s58 = sphi 0, %s60
    %s61 = sphi 0, %s58
    %s62 = sphi 0, %s61
    %s78 = sphi 0, %s62
    %s84 = sphi 0, %s86
    %s87 = sphi 0, %s84
    %s88 = sphi 0, %s87
    %s104 = sphi 0, %s88
    %s110 = sphi 0, %s112
    %s113 = sphi 0, %s110
    %s114 = sphi 0, %s113
    %s130 = sphi 0, %s114
    %s138 = sphi 0, %s140
    %s141 = sphi 0, %s138
    %s142 = sphi 0, %s141
    %s158 = sphi 0, %s142
  $region4: #{inception_b_forward.23} parent=0 // loop_header_branch
    %13 = sbr.rel (%p11) target = $region8
  $region5: #{inception_b_forward.23} parent=0 // loop_body
    %s15 = ssub.s32 %s10, 1
    %s16 = ssub.s32 %s10, 2
    %s23 = sadd.s32 1, %s18
    %p24 = scmp.ge.s32.totalorder %s23, 1
    %s25 = scalar_select %p24, 0, %s23
    %s26 = sadd.s32 1, %s17
    %s27 = scalar_select %p24, %s26, %s17
    %p28 = scmp.ge.s32.totalorder %s27, 2
    %s29 = scalar_select %p28, 0, %s27
    %s30 = ssub.s32 %s17, %s29
    %p31 = scmp.eq.s32.totalorder %s30, 0
    %s33 = sadd.s32 %s32, 1
    %s34 = scalar_select %p31, %s32, %s33
    %p37 = pneg %p31
    %p38 = scmp.eq.s32.totalorder %s10, 1
    %p39 = por %p37, %p38
    %p40 = scmp.ne.s32.totalorder %s32, %s35
    %p41 = scmp.eq.s32.totalorder %s10, 0
    %p42 = por %p40, %p41
    %p43 = scmp.ne.s32.totalorder %s32, %s35
    %p44 = scmp.eq.s32.totalorder %s15, 1
    %p45 = por %p43, %p44
    %p46 = scmp.ne.s32.totalorder %s35, %s36
    %p47 = scmp.eq.s32.totalorder %s15, 0
    %p48 = por %p46, %p47
    %p49 = scmp.ne.s32.totalorder %s35, %s36
    %p50 = scmp.eq.s32.totalorder %s16, 1
    %p51 = por %p49, %p50
    %p53 = scmp.ne.s32.totalorder %s36, %s52
    %p54 = scmp.eq.s32.totalorder %s16, 0
    %p55 = por %p53, %p54
    %s56 = ssub.s32 %s18, %s25
    %p57 = scmp.eq.s32.totalorder %s56, 0
    %s59 = sadd.s32 %s58, 1
    %s60 = scalar_select %p57, %s58, %s59
    %p63 = pneg %p57
    %p64 = scmp.eq.s32.totalorder %s10, 1
    %p65 = por %p63, %p64
    %p66 = scmp.ne.s32.totalorder %s58, %s61
    %p67 = scmp.eq.s32.totalorder %s10, 0
    %p68 = por %p66, %p67
    %p69 = scmp.ne.s32.totalorder %s58, %s61
    %p70 = scmp.eq.s32.totalorder %s15, 1
    %p71 = por %p69, %p70
    %p72 = scmp.ne.s32.totalorder %s61, %s62
    %p73 = scmp.eq.s32.totalorder %s15, 0
    %p74 = por %p72, %p73
    %p75 = scmp.ne.s32.totalorder %s61, %s62
    %p76 = scmp.eq.s32.totalorder %s16, 1
    %p77 = por %p75, %p76
    %p79 = scmp.ne.s32.totalorder %s62, %s78
    %p80 = scmp.eq.s32.totalorder %s16, 0
    %p81 = por %p79, %p80
    %s82 = ssub.s32 %s18, %s25
    %p83 = scmp.eq.s32.totalorder %s82, 0
    %s85 = sadd.s32 %s84, 1
    %s86 = scalar_select %p83, %s84, %s85
    %p89 = pneg %p83
    %p90 = scmp.eq.s32.totalorder %s10, 1
    %p91 = por %p89, %p90
    %p92 = scmp.ne.s32.totalorder %s84, %s87
    %p93 = scmp.eq.s32.totalorder %s10, 0
    %p94 = por %p92, %p93
    %p95 = scmp.ne.s32.totalorder %s84, %s87
    %p96 = scmp.eq.s32.totalorder %s15, 1
    %p97 = por %p95, %p96
    %p98 = scmp.ne.s32.totalorder %s87, %s88
    %p99 = scmp.eq.s32.totalorder %s15, 0
    %p100 = por %p98, %p99
    %p101 = scmp.ne.s32.totalorder %s87, %s88
    %p102 = scmp.eq.s32.totalorder %s16, 1
    %p103 = por %p101, %p102
    %p105 = scmp.ne.s32.totalorder %s88, %s104
    %p106 = scmp.eq.s32.totalorder %s16, 0
    %p107 = por %p105, %p106
    %s108 = ssub.s32 %s18, %s25
    %p109 = scmp.eq.s32.totalorder %s108, 0
    %s111 = sadd.s32 %s110, 1
    %s112 = scalar_select %p109, %s110, %s111
    %p115 = pneg %p109
    %p116 = scmp.eq.s32.totalorder %s10, 1
    %p117 = por %p115, %p116
    %p118 = scmp.ne.s32.totalorder %s110, %s113
    %p119 = scmp.eq.s32.totalorder %s10, 0
    %p120 = por %p118, %p119
    %p121 = scmp.ne.s32.totalorder %s110, %s113
    %p122 = scmp.eq.s32.totalorder %s15, 1
    %p123 = por %p121, %p122
    %p124 = scmp.ne.s32.totalorder %s113, %s114
    %p125 = scmp.eq.s32.totalorder %s15, 0
    %p126 = por %p124, %p125
    %p127 = scmp.ne.s32.totalorder %s113, %s114
    %p128 = scmp.eq.s32.totalorder %s16, 1
    %p129 = por %p127, %p128
    %p131 = scmp.ne.s32.totalorder %s114, %s130
    %p132 = scmp.eq.s32.totalorder %s16, 0
    %p133 = por %p131, %p132
    %s134 = ssub.s32 %s17, %s29
    %s135 = ssub.s32 %s18, %s25
    %s136 = sor.u32 %s134, %s135
    %p137 = scmp.eq.s32.totalorder %s136, 0
    %s139 = sadd.s32 %s138, 1
    %s140 = scalar_select %p137, %s138, %s139
    %p143 = pneg %p137
    %p144 = scmp.eq.s32.totalorder %s10, 1
    %p145 = por %p143, %p144
    %p146 = scmp.ne.s32.totalorder %s138, %s141
    %p147 = scmp.eq.s32.totalorder %s10, 0
    %p148 = por %p146, %p147
    %p149 = scmp.ne.s32.totalorder %s138, %s141
    %p150 = scmp.eq.s32.totalorder %s15, 1
    %p151 = por %p149, %p150
    %p152 = scmp.ne.s32.totalorder %s141, %s142
    %p153 = scmp.eq.s32.totalorder %s15, 0
    %p154 = por %p152, %p153
    %p155 = scmp.ne.s32.totalorder %s141, %s142
    %p156 = scmp.eq.s32.totalorder %s16, 1
    %p157 = por %p155, %p156
    %p159 = scmp.ne.s32.totalorder %s142, %s158
    %p160 = scmp.eq.s32.totalorder %s16, 0
    %p161 = por %p159, %p160
    %p162 = scmp.le.s32.totalorder 1, %s10
    %p163 = scmp.lt.s32.totalorder %s10, 3
    %p164 = pnand %p162, %p163
    %p165 = pneg %p164
    // Predicated region
    $region9: #{inception_b_forward.23} parent=5 // pred_check
      _
    $region10: #{inception_b_forward.23} parent=5 // pred_check_branch
      %167 = sbr.rel (%p164) target = $region12
    $region11: #{inception_b_forward.23} parent=5 // pred_region
      %s168 = ssub.s32 %s10, 1
      // Predicated region
      $region13: #{inception_b_forward.23} parent=11 // pred_check
        %p169 = pneg %p74
      $region14: #{inception_b_forward.23} parent=11 // pred_check_branch
        %171 = sbr.rel (%p169) target = $region16
      $region15: #{inception_b_forward.23} parent=11 // pred_region
        %p172 = scmp.lt.s32.totalorder %s20, 0
        %s173 = scalar_select %p172, %s20, 0
        %s174 = smul.addr %s173, 4
        %s175 = scalar_lea.vmem %s1, %s174
      $region16: #{inception_b_forward.23} parent=11 // pred_fallthru
        _
      // Predicated region
      $region17: #{inception_b_forward.23} parent=11 // pred_check
        %p176 = pneg %p100
      $region18: #{inception_b_forward.23} parent=11 // pred_check_branch
        %178 = sbr.rel (%p176) target = $region20
      $region19: #{inception_b_forward.23} parent=11 // pred_region
        %p179 = scmp.lt.s32.totalorder %s20, 0
        %s180 = scalar_select %p179, %s20, 0
        %s181 = scalar_lea.vmem %s2, %s180
      $region20: #{inception_b_forward.23} parent=11 // pred_fallthru
        _
      // Predicated region
      $region21: #{inception_b_forward.23} parent=11 // pred_check
        %p182 = pneg %p126
      $region22: #{inception_b_forward.23} parent=11 // pred_check_branch
        %184 = sbr.rel (%p182) target = $region24
      $region23: #{inception_b_forward.23} parent=11 // pred_region
        %p185 = scmp.lt.s32.totalorder %s20, 0
        %s186 = scalar_select %p185, %s20, 0
        %s187 = scalar_lea.vmem %s3, %s186
      $region24: #{inception_b_forward.23} parent=11 // pred_fallthru
        _
    $region12: #{inception_b_forward.23} parent=5 // pred_fallthru
      _
    %p188 = scmp.lt.s32.totalorder %s10, 2
    // Predicated region
    $region25: #{inception_b_forward.23} parent=5 // pred_check
      %p189 = pneg %p188
    $region26: #{inception_b_forward.23} parent=5 // pred_check_branch
      %191 = sbr.rel (%p189) target = $region28
    $region27: #{inception_b_forward.23} parent=5 // pred_region
      // Predicated region
      $region29: #{inception_b_forward.23} parent=27 // pred_check
        %p192 = pneg %p42
      $region30: #{inception_b_forward.23} parent=27 // pred_check_branch
        %194 = sbr.rel (%p192) target = $region32
      $region31: #{inception_b_forward.23} parent=27 // pred_region
        %s195 = smul.u32 8, %s17
        %p196 = scmp.lt.s32.totalorder %s195, 15
        %s197 = scalar_select %p196, %s195, 15
        %s198 = smul.addr %s197, 7
        %s199 = smul.addr %s198, 4
        %s200 = scalar_lea.vmem %s0, %s199
        %s201 = smul.u32 8, %s17
      $region32: #{inception_b_forward.23} parent=27 // pred_fallthru
        _
    $region28: #{inception_b_forward.23} parent=5 // pred_fallthru
      _
    %p202 = scmp.le.s32.totalorder 1, %s10
    %p203 = scmp.lt.s32.totalorder %s10, 3
    %p204 = pnand %p202, %p203
    %p205 = pneg %p204
    // Predicated region
    $region33: #{inception_b_forward.23} parent=5 // pred_check
      _
    $region34: #{inception_b_forward.23} parent=5 // pred_check_branch
      %207 = sbr.rel (%p204) target = $region36
    $region35: #{inception_b_forward.23} parent=5 // pred_region
      %s208 = ssub.s32 %s10, 1
      %s209 = smul.u32 8, %s19
      %p210 = scmp.lt.s32.totalorder %s209, 15
      %s211 = scalar_select %p210, %s209, 15
      %s212 = smul.addr %s211, 7
      %s213 = smul.addr %s212, 4
      %s214 = scalar_lea.vmem %s0, %s213
      %p215 = pneg %p48
      %p216 = pneg %p45
      %p217 = scmp.lt.s32.totalorder %s20, 0
      %s218 = scalar_select %p217, %s20, 0
      %s219 = smul.addr %s218, 4
      %s220 = scalar_lea.vmem %s1, %s219
      %p221 = pneg %p74
      %p222 = pneg %p71
      %p223 = scmp.lt.s32.totalorder %s20, 0
      %s224 = scalar_select %p223, %s20, 0
      %s225 = scalar_lea.vmem %s2, %s224
      %p226 = pneg %p100
      %p227 = pneg %p97
      %p228 = scmp.lt.s32.totalorder %s20, 0
      %s229 = scalar_select %p228, %s20, 0
      %s230 = scalar_lea.vmem %s3, %s229
      %p231 = pneg %p126
      %p232 = pneg %p123
      %p233 = pneg %p154
      %p234 = pneg %p151
      %s235 = smul.u32 8, %s19
      %p236 = scmp.lt.s32.totalorder %s235, 15
      %s237 = scalar_select %p236, %s235, 15
      %p238 = scmp.lt.s32.totalorder %s20, 0
      %s239 = scalar_select %p238, %s20, 0
      %s240 = sadd.s32 %s239, %s237
      %s241 = smul.addr %s240, 8
      %s242 = scalar_lea.vmem %s4, %s241
      %s243 = smul.u32 8, %s19
      %p244 = scmp.lt.s32.totalorder %s243, 15
      %s245 = scalar_select %p244, %s243, 15
      %s246 = smul.addr %s245, 7
      %s247 = smul.addr %s246, 4
      %s248 = scalar_lea.vmem %s0, %s247
      %s249 = smul.u32 8, %s19
      %p250 = scmp.lt.s32.totalorder %s20, 0
      %s251 = scalar_select %p250, %s20, 0
      %s252 = smul.addr %s251, 4
      %s253 = scalar_lea.vmem %s1, %s252
      %p254 = scmp.lt.s32.totalorder %s20, 0
      %s255 = scalar_select %p254, %s20, 0
      %s256 = scalar_lea.vmem %s2, %s255
      %p257 = scmp.lt.s32.totalorder %s20, 0
      %s258 = scalar_select %p257, %s20, 0
      %s259 = scalar_lea.vmem %s3, %s258
      %s260 = smul.u32 8, %s19
      %p261 = scmp.lt.s32.totalorder %s260, 15
      %s262 = scalar_select %p261, %s260, 15
      %p263 = scmp.lt.s32.totalorder %s20, 0
      %s264 = scalar_select %p263, %s20, 0
      %s265 = sadd.s32 %s264, %s262
      %s266 = smul.addr %s265, 8
      %s267 = scalar_lea.vmem %s4, %s266
      %s268 = smul.u32 8, %s19
      %v270 = vld [vmem:[%s248] sm:$0xff]
      %v271 = vld [vmem:[%s248 + $0x8] sm:$0xff]
      %v272 = vld [vmem:[%s248 + $0x10] sm:$0xff]
      %v273 = vld [vmem:[%s248 + $0x18] sm:$0xf]
      %v274 = vld [vmem:[%s248 + $0x1c] sm:$0xff]
      %v275 = vld [vmem:[%s248 + $0x24] sm:$0xff]
      %v276 = vld [vmem:[%s248 + $0x2c] sm:$0xff]
      %v277 = vld [vmem:[%s248 + $0x34] sm:$0xf]
      %v278 = vld [vmem:[%s248 + $0x38] sm:$0xff]
      %v279 = vld [vmem:[%s248 + $0x40] sm:$0xff]
      %v280 = vld [vmem:[%s248 + $0x48] sm:$0xff]
      %v281 = vld [vmem:[%s248 + $0x50] sm:$0xf]
      %v282 = vld [vmem:[%s248 + $0x54] sm:$0xff]
      %v283 = vld [vmem:[%s248 + $0x5c] sm:$0xff]
      %v284 = vld [vmem:[%s248 + $0x64] sm:$0xff]
      %v285 = vld [vmem:[%s248 + $0x6c] sm:$0xf]
      %v286 = vld [vmem:[%s248 + $0x70] sm:$0xff]
      %v287 = vld [vmem:[%s248 + $0x78] sm:$0xff]
      %v288 = vld [vmem:[%s248 + $0x80] sm:$0xff]
      %v289 = vld [vmem:[%s248 + $0x88] sm:$0xf]
      %v290 = vld [vmem:[%s248 + $0x8c] sm:$0xff]
      %v291 = vld [vmem:[%s248 + $0x94] sm:$0xff]
      %v292 = vld [vmem:[%s248 + $0x9c] sm:$0xff]
      %v293 = vld [vmem:[%s248 + $0xa4] sm:$0xf]
      %v294 = vld [vmem:[%s248 + $0xa8] sm:$0xff]
      %v295 = vld [vmem:[%s248 + $0xb0] sm:$0xff]
      %v296 = vld [vmem:[%s248 + $0xb8] sm:$0xff]
      %v297 = vld [vmem:[%s248 + $0xc0] sm:$0xf]
      %v298 = vld [vmem:[%s248 + $0xc4] sm:$0xff]
      %v299 = vld [vmem:[%s248 + $0xcc] sm:$0xff]
      %v300 = vld [vmem:[%s248 + $0xd4] sm:$0xff]
      %v301 = vld [vmem:[%s248 + $0xdc] sm:$0xf]
      %v302 = vld [vmem:[%s253] sm:$0xf]
      %v303 = vld [vmem:[%s253 + $0x4] sm:$0xf]
      %v304 = vld [vmem:[%s253 + $0x8] sm:$0xf]
      %v305 = vld [vmem:[%s253 + $0xc] sm:$0xf]
      %v306 = vld [vmem:[%s253 + $0x10] sm:$0xf]
      %v307 = vld [vmem:[%s253 + $0x14] sm:$0xf]
      %v308 = vld [vmem:[%s253 + $0x18] sm:$0xf]
      %v309 = vld [vmem:[%s253 + $0x1c] sm:$0xf]
      %v310 = vld [vmem:[%s253 + $0x20] sm:$0xf]
      %v311 = vld [vmem:[%s253 + $0x24] sm:$0xf]
      %v312 = vld [vmem:[%s253 + $0x28] sm:$0xf]
      %v313 = vld [vmem:[%s253 + $0x2c] sm:$0xf]
      %v314 = vld [vmem:[%s253 + $0x30] sm:$0xf]
      %v315 = vld [vmem:[%s253 + $0x34] sm:$0xf]
      %v316 = vld [vmem:[%s253 + $0x38] sm:$0xf]
      %v317 = vld [vmem:[%s253 + $0x3c] sm:$0xf]
      %v318 = vld [vmem:[%s253 + $0x40] sm:$0xf]
      %v319 = vld [vmem:[%s253 + $0x44] sm:$0xf]
      %v320 = vld [vmem:[%s253 + $0x48] sm:$0xf]
      %v321 = vld [vmem:[%s253 + $0x4c] sm:$0xf]
      %v322 = vld [vmem:[%s253 + $0x50] sm:$0xf]
      %v323 = vld [vmem:[%s253 + $0x54] sm:$0xf]
      %v324 = vld [vmem:[%s253 + $0x58] sm:$0xf]
      %v325 = vld [vmem:[%s253 + $0x5c] sm:$0xf]
      %v326 = vld [vmem:[%s253 + $0x60] sm:$0xf]
      %v327 = vld [vmem:[%s253 + $0x64] sm:$0xf]
      %v328 = vld [vmem:[%s253 + $0x68] sm:$0xf]
      %v329 = vld [vmem:[%s253 + $0x6c] sm:$0xf]
      %v330 = vld [vmem:[%s253 + $0x70] sm:$0xf]
      %v331 = vld [vmem:[%s253 + $0x74] sm:$0xf]
      %v332 = vld [vmem:[%s253 + $0x78] sm:$0xf]
      %v333 = vld [vmem:[%s253 + $0x7c] sm:$0xf]
      %v334 = vld [vmem:[%s253 + $0x80] sm:$0xf]
      %v335 = vld [vmem:[%s253 + $0x84] sm:$0xf]
      %v336 = vld [vmem:[%s253 + $0x88] sm:$0xf]
      %v337 = vld [vmem:[%s253 + $0x8c] sm:$0xf]
      %v338 = vld [vmem:[%s253 + $0x90] sm:$0xf]
      %v339 = vld [vmem:[%s253 + $0x94] sm:$0xf]
      %v340 = vld [vmem:[%s253 + $0x98] sm:$0xf]
      %v341 = vld [vmem:[%s253 + $0x9c] sm:$0xf]
      %v342 = vld [vmem:[%s253 + $0xa0] sm:$0xf]
      %v343 = vld [vmem:[%s253 + $0xa4] sm:$0xf]
      %v344 = vld [vmem:[%s253 + $0xa8] sm:$0xf]
      %v345 = vld [vmem:[%s253 + $0xac] sm:$0xf]
      %v346 = vld [vmem:[%s253 + $0xb0] sm:$0xf]
      %v347 = vld [vmem:[%s253 + $0xb4] sm:$0xf]
      %v348 = vld [vmem:[%s253 + $0xb8] sm:$0xf]
      %v349 = vld [vmem:[%s253 + $0xbc] sm:$0xf]
      %v350 = vld [vmem:[%s253 + $0xc0] sm:$0xf]
      %v351 = vld [vmem:[%s253 + $0xc4] sm:$0xf]
      %v352 = vld [vmem:[%s253 + $0xc8] sm:$0xf]
      %v353 = vld [vmem:[%s253 + $0xcc] sm:$0xf]
      %v354 = vld [vmem:[%s253 + $0xd0] sm:$0xf]
      %v355 = vld [vmem:[%s253 + $0xd4] sm:$0xf]
      %v356 = vld [vmem:[%s253 + $0xd8] sm:$0xf]
      %v357 = vld [vmem:[%s253 + $0xdc] sm:$0xf]
      %v358 = vld [vmem:[%s253 + $0xe0] sm:$0xf]
      %v359 = vld [vmem:[%s253 + $0xe4] sm:$0xf]
      %v360 = vld [vmem:[%s253 + $0xe8] sm:$0xf]
      %v361 = vld [vmem:[%s253 + $0xec] sm:$0xf]
      %v362 = vld [vmem:[%s253 + $0xf0] sm:$0xf]
      %v363 = vld [vmem:[%s253 + $0xf4] sm:$0xf]
      %v364 = vld [vmem:[%s253 + $0xf8] sm:$0xf]
      %v365 = vld [vmem:[%s253 + $0xfc] sm:$0xf]
      %v366 = vld [vmem:[%s253 + $0x100] sm:$0xf]
      %v367 = vld [vmem:[%s253 + $0x104] sm:$0xf]
      %v368 = vld [vmem:[%s253 + $0x108] sm:$0xf]
      %v369 = vld [vmem:[%s253 + $0x10c] sm:$0xf]
      %v370 = vld [vmem:[%s253 + $0x110] sm:$0xf]
      %v371 = vld [vmem:[%s253 + $0x114] sm:$0xf]
      %v372 = vld [vmem:[%s253 + $0x118] sm:$0xf]
      %v373 = vld [vmem:[%s253 + $0x11c] sm:$0xf]
      %v374 = vld [vmem:[%s253 + $0x120] sm:$0xf]
      %v375 = vld [vmem:[%s253 + $0x124] sm:$0xf]
      %v376 = vld [vmem:[%s253 + $0x128] sm:$0xf]
      %v377 = vld [vmem:[%s253 + $0x12c] sm:$0xf]
      %v378 = vld [vmem:[%s253 + $0x130] sm:$0xf]
      %v379 = vld [vmem:[%s253 + $0x134] sm:$0xf]
      %v380 = vld [vmem:[%s253 + $0x138] sm:$0xf]
      %v381 = vld [vmem:[%s253 + $0x13c] sm:$0xf]
      %v382 = vld [vmem:[%s253 + $0x140] sm:$0xf]
      %v383 = vld [vmem:[%s253 + $0x144] sm:$0xf]
      %v384 = vld [vmem:[%s253 + $0x148] sm:$0xf]
      %v385 = vld [vmem:[%s253 + $0x14c] sm:$0xf]
      %v386 = vld [vmem:[%s253 + $0x150] sm:$0xf]
      %v387 = vld [vmem:[%s253 + $0x154] sm:$0xf]
      %v388 = vld [vmem:[%s253 + $0x158] sm:$0xf]
      %v389 = vld [vmem:[%s253 + $0x15c] sm:$0xf]
      %v390 = vld [vmem:[%s253 + $0x160] sm:$0xf]
      %v391 = vld [vmem:[%s253 + $0x164] sm:$0xf]
      %v392 = vld [vmem:[%s253 + $0x168] sm:$0xf]
      %v393 = vld [vmem:[%s253 + $0x16c] sm:$0xf]
      %v394 = vld [vmem:[%s253 + $0x170] sm:$0xf]
      %v395 = vld [vmem:[%s253 + $0x174] sm:$0xf]
      %v396 = vld [vmem:[%s253 + $0x178] sm:$0xf]
      %v397 = vld [vmem:[%s253 + $0x17c] sm:$0xf]
      %v398 = vld [vmem:[%s253 + $0x180] sm:$0xf]
      %v399 = vld [vmem:[%s253 + $0x184] sm:$0xf]
      %v400 = vld [vmem:[%s253 + $0x188] sm:$0xf]
      %v401 = vld [vmem:[%s253 + $0x18c] sm:$0xf]
      %v402 = vld [vmem:[%s253 + $0x190] sm:$0xf]
      %v403 = vld [vmem:[%s253 + $0x194] sm:$0xf]
      %v404 = vld [vmem:[%s253 + $0x198] sm:$0xf]
      %v405 = vld [vmem:[%s253 + $0x19c] sm:$0xf]
      %v406 = vld [vmem:[%s253 + $0x1a0] sm:$0xf]
      %v407 = vld [vmem:[%s253 + $0x1a4] sm:$0xf]
      %v408 = vld [vmem:[%s253 + $0x1a8] sm:$0xf]
      %v409 = vld [vmem:[%s253 + $0x1ac] sm:$0xf]
      %v410 = vld [vmem:[%s253 + $0x1b0] sm:$0xf]
      %v411 = vld [vmem:[%s253 + $0x1b4] sm:$0xf]
      %v412 = vld [vmem:[%s253 + $0x1b8] sm:$0xf]
      %v413 = vld [vmem:[%s253 + $0x1bc] sm:$0xf]
      %v446 = vunpack.c.l.b16 %v270
      %v447 = vunpack.c.h.b16 %v270
      %v448 = vunpack.c.l.b16 %v271
      %v449 = vunpack.c.h.b16 %v271
      %v450 = vunpack.c.l.b16 %v272
      %v451 = vunpack.c.h.b16 %v272
      %v452 = vunpack.c.l.b16 %v273
      %v453 = vunpack.c.l.b16 %v274
      %v454 = vunpack.c.h.b16 %v274
      %v455 = vunpack.c.l.b16 %v275
      %v456 = vunpack.c.h.b16 %v275
      %v457 = vunpack.c.l.b16 %v276
      %v458 = vunpack.c.h.b16 %v276
      %v459 = vunpack.c.l.b16 %v277
      %v460 = vunpack.c.l.b16 %v278
      %v461 = vunpack.c.h.b16 %v278
      %v462 = vunpack.c.l.b16 %v279
      %v463 = vunpack.c.h.b16 %v279
      %v464 = vunpack.c.l.b16 %v280
      %v465 = vunpack.c.h.b16 %v280
      %v466 = vunpack.c.l.b16 %v281
      %v467 = vunpack.c.l.b16 %v282
      %v468 = vunpack.c.h.b16 %v282
      %v469 = vunpack.c.l.b16 %v283
      %v470 = vunpack.c.h.b16 %v283
      %v471 = vunpack.c.l.b16 %v284
      %v472 = vunpack.c.h.b16 %v284
      %v473 = vunpack.c.l.b16 %v285
      %v474 = vunpack.c.l.b16 %v286
      %v475 = vunpack.c.h.b16 %v286
      %v476 = vunpack.c.l.b16 %v287
      %v477 = vunpack.c.h.b16 %v287
      %v478 = vunpack.c.l.b16 %v288
      %v479 = vunpack.c.h.b16 %v288
      %v480 = vunpack.c.l.b16 %v289
      %v481 = vunpack.c.l.b16 %v290
      %v482 = vunpack.c.h.b16 %v290
      %v483 = vunpack.c.l.b16 %v291
      %v484 = vunpack.c.h.b16 %v291
      %v485 = vunpack.c.l.b16 %v292
      %v486 = vunpack.c.h.b16 %v292
      %v487 = vunpack.c.l.b16 %v293
      %v488 = vunpack.c.l.b16 %v294
      %v489 = vunpack.c.h.b16 %v294
      %v490 = vunpack.c.l.b16 %v295
      %v491 = vunpack.c.h.b16 %v295
      %v492 = vunpack.c.l.b16 %v296
      %v493 = vunpack.c.h.b16 %v296
      %v494 = vunpack.c.l.b16 %v297
      %v495 = vunpack.c.l.b16 %v298
      %v496 = vunpack.c.h.b16 %v298
      %v497 = vunpack.c.l.b16 %v299
      %v498 = vunpack.c.h.b16 %v299
      %v499 = vunpack.c.l.b16 %v300
      %v500 = vunpack.c.h.b16 %v300
      %v501 = vunpack.c.l.b16 %v301
      %v502 = vpack.c.b16 %v453, %v446
      %v503 = vpack.c.b16 %v454, %v447
      %v504 = vpack.c.b16 %v455, %v448
      %v505 = vpack.c.b16 %v456, %v449
      %v506 = vpack.c.b16 %v457, %v450
      %v507 = vpack.c.b16 %v458, %v451
      %v508 = vpack.c.b16 %v459, %v452
      %v509 = vpack.c.b16 %v467, %v460
      %v510 = vpack.c.b16 %v468, %v461
      %v511 = vpack.c.b16 %v469, %v462
      %v512 = vpack.c.b16 %v470, %v463
      %v513 = vpack.c.b16 %v471, %v464
      %v514 = vpack.c.b16 %v472, %v465
      %v515 = vpack.c.b16 %v473, %v466
      %v516 = vpack.c.b16 %v481, %v474
      %v517 = vpack.c.b16 %v482, %v475
      %v518 = vpack.c.b16 %v483, %v476
      %v519 = vpack.c.b16 %v484, %v477
      %v520 = vpack.c.b16 %v485, %v478
      %v521 = vpack.c.b16 %v486, %v479
      %v522 = vpack.c.b16 %v487, %v480
      %v523 = vpack.c.b16 %v495, %v488
      %v524 = vpack.c.b16 %v496, %v489
      %v525 = vpack.c.b16 %v497, %v490
      %v526 = vpack.c.b16 %v498, %v491
      %v527 = vpack.c.b16 %v499, %v492
      %v528 = vpack.c.b16 %v500, %v493
      %v529 = vpack.c.b16 %v501, %v494
      %v670 = vunpack.c.l.b16 %v302
      %v671 = vunpack.c.l.b16 %v303
      %v672 = vunpack.c.l.b16 %v304
      %v673 = vunpack.c.l.b16 %v305
      %v674 = vunpack.c.l.b16 %v306
      %v675 = vunpack.c.l.b16 %v307
      %v676 = vunpack.c.l.b16 %v308
      %v677 = vunpack.c.l.b16 %v309
      %v678 = vunpack.c.l.b16 %v310
      %v679 = vunpack.c.l.b16 %v311
      %v680 = vunpack.c.l.b16 %v312
      %v681 = vunpack.c.l.b16 %v313
      %v682 = vunpack.c.l.b16 %v314
      %v683 = vunpack.c.l.b16 %v315
      %v684 = vunpack.c.l.b16 %v316
      %v685 = vunpack.c.l.b16 %v317
      %v686 = vunpack.c.l.b16 %v318
      %v687 = vunpack.c.l.b16 %v319
      %v688 = vunpack.c.l.b16 %v320
      %v689 = vunpack.c.l.b16 %v321
      %v690 = vunpack.c.l.b16 %v322
      %v691 = vunpack.c.l.b16 %v323
      %v692 = vunpack.c.l.b16 %v324
      %v693 = vunpack.c.l.b16 %v325
      %v694 = vunpack.c.l.b16 %v326
      %v695 = vunpack.c.l.b16 %v327
      %v696 = vunpack.c.l.b16 %v328
      %v697 = vunpack.c.l.b16 %v329
      %v698 = vunpack.c.l.b16 %v330
      %v699 = vunpack.c.l.b16 %v331
      %v700 = vunpack.c.l.b16 %v332
      %v701 = vunpack.c.l.b16 %v333
      %v702 = vunpack.c.l.b16 %v334
      %v703 = vunpack.c.l.b16 %v335
      %v704 = vunpack.c.l.b16 %v336
      %v705 = vunpack.c.l.b16 %v337
      %v706 = vunpack.c.l.b16 %v338
      %v707 = vunpack.c.l.b16 %v339
      %v708 = vunpack.c.l.b16 %v340
      %v709 = vunpack.c.l.b16 %v341
      %v710 = vunpack.c.l.b16 %v342
      %v711 = vunpack.c.l.b16 %v343
      %v712 = vunpack.c.l.b16 %v344
      %v713 = vunpack.c.l.b16 %v345
      %v714 = vunpack.c.l.b16 %v346
      %v715 = vunpack.c.l.b16 %v347
      %v716 = vunpack.c.l.b16 %v348
      %v717 = vunpack.c.l.b16 %v349
      %v718 = vunpack.c.l.b16 %v350
      %v719 = vunpack.c.l.b16 %v351
      %v720 = vunpack.c.l.b16 %v352
      %v721 = vunpack.c.l.b16 %v353
      %v722 = vunpack.c.l.b16 %v354
      %v723 = vunpack.c.l.b16 %v355
      %v724 = vunpack.c.l.b16 %v356
      %v725 = vunpack.c.l.b16 %v357
      %v726 = vunpack.c.l.b16 %v358
      %v727 = vunpack.c.l.b16 %v359
      %v728 = vunpack.c.l.b16 %v360
      %v729 = vunpack.c.l.b16 %v361
      %v730 = vunpack.c.l.b16 %v362
      %v731 = vunpack.c.l.b16 %v363
      %v732 = vunpack.c.l.b16 %v364
      %v733 = vunpack.c.l.b16 %v365
      %v734 = vunpack.c.l.b16 %v366
      %v735 = vunpack.c.l.b16 %v367
      %v736 = vunpack.c.l.b16 %v368
      %v737 = vunpack.c.l.b16 %v369
      %v738 = vunpack.c.l.b16 %v370
      %v739 = vunpack.c.l.b16 %v371
      %v740 = vunpack.c.l.b16 %v372
      %v741 = vunpack.c.l.b16 %v373
      %v742 = vunpack.c.l.b16 %v374
      %v743 = vunpack.c.l.b16 %v375
      %v744 = vunpack.c.l.b16 %v376
      %v745 = vunpack.c.l.b16 %v377
      %v746 = vunpack.c.l.b16 %v378
      %v747 = vunpack.c.l.b16 %v379
      %v748 = vunpack.c.l.b16 %v380
      %v749 = vunpack.c.l.b16 %v381
      %v750 = vunpack.c.l.b16 %v382
      %v751 = vunpack.c.l.b16 %v383
      %v752 = vunpack.c.l.b16 %v384
      %v753 = vunpack.c.l.b16 %v385
      %v754 = vunpack.c.l.b16 %v386
      %v755 = vunpack.c.l.b16 %v387
      %v756 = vunpack.c.l.b16 %v388
      %v757 = vunpack.c.l.b16 %v389
      %v758 = vunpack.c.l.b16 %v390
      %v759 = vunpack.c.l.b16 %v391
      %v760 = vunpack.c.l.b16 %v392
      %v761 = vunpack.c.l.b16 %v393
      %v762 = vunpack.c.l.b16 %v394
      %v763 = vunpack.c.l.b16 %v395
      %v764 = vunpack.c.l.b16 %v396
      %v765 = vunpack.c.l.b16 %v397
      %v766 = vunpack.c.l.b16 %v398
      %v767 = vunpack.c.l.b16 %v399
      %v768 = vunpack.c.l.b16 %v400
      %v769 = vunpack.c.l.b16 %v401
      %v770 = vunpack.c.l.b16 %v402
      %v771 = vunpack.c.l.b16 %v403
      %v772 = vunpack.c.l.b16 %v404
      %v773 = vunpack.c.l.b16 %v405
      %v774 = vunpack.c.l.b16 %v406
      %v775 = vunpack.c.l.b16 %v407
      %v776 = vunpack.c.l.b16 %v408
      %v777 = vunpack.c.l.b16 %v409
      %v778 = vunpack.c.l.b16 %v410
      %v779 = vunpack.c.l.b16 %v411
      %v780 = vunpack.c.l.b16 %v412
      %v781 = vunpack.c.l.b16 %v413
      %v782 = vpack.c.b16 %v671, %v670
      %v783 = vpack.c.b16 %v673, %v672
      %v784 = vpack.c.b16 %v675, %v674
      %v785 = vpack.c.b16 %v677, %v676
      %v786 = vpack.c.b16 %v679, %v678
      %v787 = vpack.c.b16 %v681, %v680
      %v788 = vpack.c.b16 %v683, %v682
      %v789 = vpack.c.b16 %v685, %v684
      %v790 = vpack.c.b16 %v687, %v686
      %v791 = vpack.c.b16 %v689, %v688
      %v792 = vpack.c.b16 %v691, %v690
      %v793 = vpack.c.b16 %v693, %v692
      %v794 = vpack.c.b16 %v695, %v694
      %v795 = vpack.c.b16 %v697, %v696
      %v796 = vpack.c.b16 %v699, %v698
      %v797 = vpack.c.b16 %v701, %v700
      %v798 = vpack.c.b16 %v703, %v702
      %v799 = vpack.c.b16 %v705, %v704
      %v800 = vpack.c.b16 %v707, %v706
      %v801 = vpack.c.b16 %v709, %v708
      %v802 = vpack.c.b16 %v711, %v710
      %v803 = vpack.c.b16 %v713, %v712
      %v804 = vpack.c.b16 %v715, %v714
      %v805 = vpack.c.b16 %v717, %v716
      %v806 = vpack.c.b16 %v719, %v718
      %v807 = vpack.c.b16 %v721, %v720
      %v808 = vpack.c.b16 %v723, %v722
      %v809 = vpack.c.b16 %v725, %v724
      %v810 = vpack.c.b16 %v727, %v726
      %v811 = vpack.c.b16 %v729, %v728
      %v812 = vpack.c.b16 %v731, %v730
      %v813 = vpack.c.b16 %v733, %v732
      %v814 = vpack.c.b16 %v735, %v734
      %v815 = vpack.c.b16 %v737, %v736
      %v816 = vpack.c.b16 %v739, %v738
      %v817 = vpack.c.b16 %v741, %v740
      %v818 = vpack.c.b16 %v743, %v742
      %v819 = vpack.c.b16 %v745, %v744
      %v820 = vpack.c.b16 %v747, %v746
      %v821 = vpack.c.b16 %v749, %v748
      %v822 = vpack.c.b16 %v751, %v750
      %v823 = vpack.c.b16 %v753, %v752
      %v824 = vpack.c.b16 %v755, %v754
      %v825 = vpack.c.b16 %v757, %v756
      %v826 = vpack.c.b16 %v759, %v758
      %v827 = vpack.c.b16 %v761, %v760
      %v828 = vpack.c.b16 %v763, %v762
      %v829 = vpack.c.b16 %v765, %v764
      %v830 = vpack.c.b16 %v767, %v766
      %v831 = vpack.c.b16 %v769, %v768
      %v832 = vpack.c.b16 %v771, %v770
      %v833 = vpack.c.b16 %v773, %v772
      %v834 = vpack.c.b16 %v775, %v774
      %v835 = vpack.c.b16 %v777, %v776
      %v836 = vpack.c.b16 %v779, %v778
      %v837 = vpack.c.b16 %v781, %v780
      %894 = vmatprep.subr.bf16.mxu0 0
      %895 = vmatpush1.bf16.msra.mxu0 %v782
      %896 = vmatprep.subr.bf16.mxu0 0
      %897 = vmatpush1.bf16.msra.mxu0 %v783
      %898 = vmatprep.subr.bf16.mxu0 0
      %899 = vmatpush1.bf16.msra.mxu0 %v784
      %900 = vmatprep.subr.bf16.mxu0 0
      %901 = vmatpush1.bf16.msra.mxu0 %v785
      %902 = vmatprep.subr.bf16.mxu0 0
      %903 = vmatpush1.bf16.msra.mxu0 %v786
      %904 = vmatprep.subr.bf16.mxu0 0
      %905 = vmatpush1.bf16.msra.mxu0 %v787
      %906 = vmatprep.subr.bf16.mxu0 0
      %907 = vmatpush1.bf16.msra.mxu0 %v788
      %908 = vmatprep.subr.bf16.mxu0 0
      %909 = vmatpush1.bf16.msra.mxu0 %v789
      %910 = vmatprep.subr.bf16.mxu0 0
      %911 = vmatpush1.bf16.msra.mxu0 %v790
      %912 = vmatprep.subr.bf16.mxu0 0
      %913 = vmatpush1.bf16.msra.mxu0 %v791
      %914 = vmatprep.subr.bf16.mxu0 0
      %915 = vmatpush1.bf16.msra.mxu0 %v792
      %916 = vmatprep.subr.bf16.mxu0 0
      %917 = vmatpush1.bf16.msra.mxu0 %v793
      %918 = vmatprep.subr.bf16.mxu0 0
      %919 = vmatpush1.bf16.msra.mxu0 %v794
      %920 = vmatprep.subr.bf16.mxu0 0
      %921 = vmatpush1.bf16.msra.mxu0 %v795
      %922 = vmatprep.subr.bf16.mxu0 0
      %923 = vmatpush1.bf16.msra.mxu0 %v796
      %924 = vmatprep.subr.bf16.mxu0 0
      %925 = vmatpush1.bf16.msra.mxu0 %v797
      %926 = vmatprep.mubr.bf16.mxu0 %v503
      %927 = vmatmul.mubr.bf16.gmra.mrb[0].mxu0 %v502
      %v928 = vpop.f32.mrb[0].mxu0
      %v929 = vadd.f32 0.0, %v928
      %v930 = vpop.f32.mrb[0].mxu0
      %v931 = vpop.f32.mrb[0].mxu0
      %v932 = vadd.f32 0.0, %v931
      %v933 = vpop.f32.mrb[0].mxu0
      %934 = vmatprep.mubr.bf16.mxu0 %v510
      %935 = vmatmul.mubr.bf16.gmra.mrb[0].mxu0 %v509
      %v936 = vpop.f32.mrb[0].mxu0
      %v937 = vadd.f32 0.0, %v936
      %v938 = vpop.f32.mrb[0].mxu0
      %v939 = vpop.f32.mrb[0].mxu0
      %v940 = vadd.f32 0.0, %v939
      %v941 = vpop.f32.mrb[0].mxu0
      %942 = vmatprep.mubr.bf16.mxu0 %v517
      %943 = vmatmul.mubr.bf16.gmra.mrb[0].mxu0 %v516
      %v944 = vpop.f32.mrb[0].mxu0
      %v945 = vadd.f32 0.0, %v944
      %v946 = vpop.f32.mrb[0].mxu0
      %v947 = vpop.f32.mrb[0].mxu0
      %v948 = vadd.f32 0.0, %v947
      %v949 = vpop.f32.mrb[0].mxu0
      %950 = vmatprep.mubr.bf16.mxu0 %v524
      %951 = vmatmul.mubr.bf16.gmra.mrb[0].mxu0 %v523
      %v952 = vpop.f32.mrb[0].mxu0
      %v953 = vadd.f32 0.0, %v952
      %v954 = vpop.f32.mrb[0].mxu0
      %v955 = vpop.f32.mrb[0].mxu0
      %v956 = vadd.f32 0.0, %v955
      %v957 = vpop.f32.mrb[0].mxu0
      %958 = vdwg.mxu0
      %959 = vmatprep.subr.bf16.mxu0 0
      %960 = vmatpush1.bf16.msra.mxu0 %v798
      %961 = vmatprep.subr.bf16.mxu0 0
      %962 = vmatpush1.bf16.msra.mxu0 %v799
      %963 = vmatprep.subr.bf16.mxu0 0
      %964 = vmatpush1.bf16.msra.mxu0 %v800
      %965 = vmatprep.subr.bf16.mxu0 0
      %966 = vmatpush1.bf16.msra.mxu0 %v801
      %967 = vmatprep.subr.bf16.mxu0 0
      %968 = vmatpush1.bf16.msra.mxu0 %v802
      %969 = vmatprep.subr.bf16.mxu0 0
      %970 = vmatpush1.bf16.msra.mxu0 %v803
      %971 = vmatprep.subr.bf16.mxu0 0
      %972 = vmatpush1.bf16.msra.mxu0 %v804
      %973 = vmatprep.subr.bf16.mxu0 0
      %974 = vmatpush1.bf16.msra.mxu0 %v805
      %975 = vmatprep.subr.bf16.mxu0 0
      %976 = vmatpush1.bf16.msra.mxu0 %v806
      %977 = vmatprep.subr.bf16.mxu0 0
      %978 = vmatpush1.bf16.msra.mxu0 %v807
      %979 = vmatprep.subr.bf16.mxu0 0
      %980 = vmatpush1.bf16.msra.mxu0 %v808
      %981 = vmatprep.subr.bf16.mxu0 0
      %982 = vmatpush1.bf16.msra.mxu0 %v809
      %983 = vmatprep.subr.bf16.mxu0 0
      %984 = vmatpush1.bf16.msra.mxu0 %v810
      %985 = vmatprep.subr.bf16.mxu0 0
      %986 = vmatpush1.bf16.msra.mxu0 %v811
      %987 = vmatprep.subr.bf16.mxu0 0
      %988 = vmatpush1.bf16.msra.mxu0 %v812
      %989 = vmatprep.subr.bf16.mxu0 0
      %990 = vmatpush1.bf16.msra.mxu0 %v813
      %991 = vmatprep.mubr.bf16.mxu0 %v505
      %992 = vmatmul.mubr.bf16.gmra.mrb[0].mxu0 %v504
      %v993 = vpop.f32.mrb[0].mxu0
      %v994 = vadd.f32 %v929, %v993
      %v995 = vpop.f32.mrb[0].mxu0
      %v996 = vpop.f32.mrb[0].mxu0
      %v997 = vadd.f32 %v932, %v996
      %v998 = vpop.f32.mrb[0].mxu0
      %999 = vmatprep.mubr.bf16.mxu0 %v512
      %1000 = vmatmul.mubr.bf16.gmra.mrb[0].mxu0 %v511
      %v1001 = vpop.f32.mrb[0].mxu0
      %v1002 = vadd.f32 %v937, %v1001
      %v1003 = vpop.f32.mrb[0].mxu0
      %v1004 = vpop.f32.mrb[0].mxu0
      %v1005 = vadd.f32 %v940, %v1004
      %v1006 = vpop.f32.mrb[0].mxu0
      %1007 = vmatprep.mubr.bf16.mxu0 %v519
      %1008 = vmatmul.mubr.bf16.gmra.mrb[0].mxu0 %v518
      %v1009 = vpop.f32.mrb[0].mxu0
      %v1010 = vadd.f32 %v945, %v1009
      %v1011 = vpop.f32.mrb[0].mxu0
      %v1012 = vpop.f32.mrb[0].mxu0
      %v1013 = vadd.f32 %v948, %v1012
      %v1014 = vpop.f32.mrb[0].mxu0
      %1015 = vmatprep.mubr.bf16.mxu0 %v526
      %1016 = vmatmul.mubr.bf16.gmra.mrb[0].mxu0 %v525
      %v1017 = vpop.f32.mrb[0].mxu0
      %v1018 = vadd.f32 %v953, %v1017
      %v1019 = vpop.f32.mrb[0].mxu0
      %v1020 = vpop.f32.mrb[0].mxu0
      %v1021 = vadd.f32 %v956, %v1020
      %v1022 = vpop.f32.mrb[0].mxu0
      %1023 = vdwg.mxu0
      %1024 = vmatprep.subr.bf16.mxu0 0
      %1025 = vmatpush1.bf16.msra.mxu0 %v814
      %1026 = vmatprep.subr.bf16.mxu0 0
      %1027 = vmatpush1.bf16.msra.mxu0 %v815
      %1028 = vmatprep.subr.bf16.mxu0 0
      %1029 = vmatpush1.bf16.msra.mxu0 %v816
      %1030 = vmatprep.subr.bf16.mxu0 0
      %1031 = vmatpush1.bf16.msra.mxu0 %v817
      %1032 = vmatprep.subr.bf16.mxu0 0
      %1033 = vmatpush1.bf16.msra.mxu0 %v818
      %1034 = vmatprep.subr.bf16.mxu0 0
      %1035 = vmatpush1.bf16.msra.mxu0 %v819
      %1036 = vmatprep.subr.bf16.mxu0 0
      %1037 = vmatpush1.bf16.msra.mxu0 %v820
      %1038 = vmatprep.subr.bf16.mxu0 0
      %1039 = vmatpush1.bf16.msra.mxu0 %v821
      %1040 = vmatprep.subr.bf16.mxu0 0
      %1041 = vmatpush1.bf16.msra.mxu0 %v822
      %1042 = vmatprep.subr.bf16.mxu0 0
      %1043 = vmatpush1.bf16.msra.mxu0 %v823
      %1044 = vmatprep.subr.bf16.mxu0 0
      %1045 = vmatpush1.bf16.msra.mxu0 %v824
      %1046 = vmatprep.subr.bf16.mxu0 0
      %1047 = vmatpush1.bf16.msra.mxu0 %v825
      %1048 = vmatprep.subr.bf16.mxu0 0
      %1049 = vmatpush1.bf16.msra.mxu0 %v826
      %1050 = vmatprep.subr.bf16.mxu0 0
      %1051 = vmatpush1.bf16.msra.mxu0 %v827
      %1052 = vmatprep.subr.bf16.mxu0 0
      %1053 = vmatpush1.bf16.msra.mxu0 %v828
      %1054 = vmatprep.subr.bf16.mxu0 0
      %1055 = vmatpush1.bf16.msra.mxu0 %v829
      %1056 = vmatprep.mubr.bf16.mxu0 %v507
      %1057 = vmatmul.mubr.bf16.gmra.mrb[0].mxu0 %v506
      %v1058 = vpop.f32.mrb[0].mxu0
      %v1059 = vadd.f32 %v994, %v1058
      %v1060 = vpop.f32.mrb[0].mxu0
      %v1061 = vpop.f32.mrb[0].mxu0
      %v1062 = vadd.f32 %v997, %v1061
      %v1063 = vpop.f32.mrb[0].mxu0
      %1064 = vmatprep.mubr.bf16.mxu0 %v514
      %1065 = vmatmul.mubr.bf16.gmra.mrb[0].mxu0 %v513
      %v1066 = vpop.f32.mrb[0].mxu0
      %v1067 = vadd.f32 %v1002, %v1066
      %v1068 = vpop.f32.mrb[0].mxu0
      %v1069 = vpop.f32.mrb[0].mxu0
      %v1070 = vadd.f32 %v1005, %v1069
      %v1071 = vpop.f32.mrb[0].mxu0
      %1072 = vmatprep.mubr.bf16.mxu0 %v521
      %1073 = vmatmul.mubr.bf16.gmra.mrb[0].mxu0 %v520
      %v1074 = vpop.f32.mrb[0].mxu0
      %v1075 = vadd.f32 %v1010, %v1074
      %v1076 = vpop.f32.mrb[0].mxu0
      %v1077 = vpop.f32.mrb[0].mxu0
      %v1078 = vadd.f32 %v1013, %v1077
      %v1079 = vpop.f32.mrb[0].mxu0
      %1080 = vmatprep.mubr.bf16.mxu0 %v528
      %1081 = vmatmul.mubr.bf16.gmra.mrb[0].mxu0 %v527
      %v1082 = vpop.f32.mrb[0].mxu0
      %v1083 = vadd.f32 %v1018, %v1082
      %v1084 = vpop.f32.mrb[0].mxu0
      %v1085 = vpop.f32.mrb[0].mxu0
      %v1086 = vadd.f32 %v1021, %v1085
      %v1087 = vpop.f32.mrb[0].mxu0
      %1088 = vdwg.mxu0
      %1089 = vmatprep.subr.bf16.mxu0 0
      %1090 = vmatpush1.bf16.msra.mxu0 %v830
      %1091 = vmatprep.subr.bf16.mxu0 0
      %1092 = vmatpush1.bf16.msra.mxu0 %v831
      %1093 = vmatprep.subr.bf16.mxu0 0
      %1094 = vmatpush1.bf16.msra.mxu0 %v832
      %1095 = vmatprep.subr.bf16.mxu0 0
      %1096 = vmatpush1.bf16.msra.mxu0 %v833
      %1097 = vmatprep.subr.bf16.mxu0 0
      %1098 = vmatpush1.bf16.msra.mxu0 %v834
      %1099 = vmatprep.subr.bf16.mxu0 0
      %1100 = vmatpush1.bf16.msra.mxu0 %v835
      %1101 = vmatprep.subr.bf16.mxu0 0
      %1102 = vmatpush1.bf16.msra.mxu0 %v836
      %1103 = vmatprep.subr.bf16.mxu0 0
      %1104 = vmatpush1.bf16.msra.mxu0 %v837
      %1105 = vmatprep.subr.bf16.mxu0 0
      %1106 = vmatpush1.bf16.msra.mxu0 0
      %1107 = vmatprep.subr.bf16.mxu0 0
      %1108 = vmatpush1.bf16.msra.mxu0 0
      %1109 = vmatprep.subr.bf16.mxu0 0
      %1110 = vmatpush1.bf16.msra.mxu0 0
      %1111 = vmatprep.subr.bf16.mxu0 0
      %1112 = vmatpush1.bf16.msra.mxu0 0
      %1113 = vmatprep.subr.bf16.mxu0 0
      %1114 = vmatpush1.bf16.msra.mxu0 0
      %1115 = vmatprep.subr.bf16.mxu0 0
      %1116 = vmatpush1.bf16.msra.mxu0 0
      %1117 = vmatprep.subr.bf16.mxu0 0
      %1118 = vmatpush1.bf16.msra.mxu0 0
      %1119 = vmatprep.subr.bf16.mxu0 0
      %1120 = vmatpush1.bf16.msra.mxu0 0
      %1121 = vmatprep.mubr.bf16.mxu0 0
      %1122 = vmatmul.mubr.bf16.gmra.mrb[0].mxu0 %v508
      %v1123 = vpop.f32.mrb[0].mxu0
      %v1124 = vadd.f32 %v1059, %v1123
      %v1125 = vpop.f32.mrb[0].mxu0
      %v1126 = vpop.f32.mrb[0].mxu0
      %v1127 = vadd.f32 %v1062, %v1126
      %v1128 = vpop.f32.mrb[0].mxu0
      %1129 = vmatprep.mubr.bf16.mxu0 0
      %1130 = vmatmul.mubr.bf16.gmra.mrb[0].mxu0 %v515
      %v1131 = vpop.f32.mrb[0].mxu0
      %v1132 = vadd.f32 %v1067, %v1131
      %v1133 = vpop.f32.mrb[0].mxu0
      %v1134 = vpop.f32.mrb[0].mxu0
      %v1135 = vadd.f32 %v1070, %v1134
      %v1136 = vpop.f32.mrb[0].mxu0
      %1137 = vmatprep.mubr.bf16.mxu0 0
      %1138 = vmatmul.mubr.bf16.gmra.mrb[0].mxu0 %v522
      %v1139 = vpop.f32.mrb[0].mxu0
      %v1140 = vadd.f32 %v1075, %v1139
      %v1141 = vpop.f32.mrb[0].mxu0
      %v1142 = vpop.f32.mrb[0].mxu0
      %v1143 = vadd.f32 %v1078, %v1142
      %v1144 = vpop.f32.mrb[0].mxu0
      %1145 = vmatprep.mubr.bf16.mxu0 0
      %1146 = vmatmul.mubr.bf16.gmra.mrb[0].mxu0 %v529
      %v1147 = vpop.f32.mrb[0].mxu0
      %v1148 = vadd.f32 %v1083, %v1147
      %v1149 = vpop.f32.mrb[0].mxu0
      %v1150 = vpop.f32.mrb[0].mxu0
      %v1151 = vadd.f32 %v1086, %v1150
      %v1152 = vpop.f32.mrb[0].mxu0
      %1153 = vdwg.mxu0
      %v1154 = vld [vmem:[%s256] sm:$0x1]
      %v1156 = vlaneseq
      %v1157 = vshrl.u32 %v1156, 7
      %v1158 = vsub.s32 0, %v1157
      %v1159 = vrot.slane %v1154, %v1158
      %v1161 = vmul.f32 %v1124, %v1159
      %v1162 = vmul.f32 %v1127, %v1159
      %v1163 = vmul.f32 %v1132, %v1159
      %v1164 = vmul.f32 %v1135, %v1159
      %v1165 = vmul.f32 %v1140, %v1159
      %v1166 = vmul.f32 %v1143, %v1159
      %v1167 = vmul.f32 %v1148, %v1159
      %v1168 = vmul.f32 %v1151, %v1159
      %v1169 = vld [vmem:[%s259] sm:$0x1]
      %v1171 = vlaneseq
      %v1172 = vshrl.u32 %v1171, 7
      %v1173 = vsub.s32 0, %v1172
      %v1174 = vrot.slane %v1169, %v1173
      %v1176 = vadd.f32 %v1161, %v1174
      %v1177 = vadd.f32 %v1162, %v1174
      %v1178 = vadd.f32 %v1163, %v1174
      %v1179 = vadd.f32 %v1164, %v1174
      %v1180 = vadd.f32 %v1165, %v1174
      %v1181 = vadd.f32 %v1166, %v1174
      %v1182 = vadd.f32 %v1167, %v1174
      %v1183 = vadd.f32 %v1168, %v1174
      %v1184 = vmax.f32 %v1176, 0.0
      %v1185 = vmax.f32 %v1177, 0.0
      %v1186 = vmax.f32 %v1178, 0.0
      %v1187 = vmax.f32 %v1179, 0.0
      %v1188 = vmax.f32 %v1180, 0.0
      %v1189 = vmax.f32 %v1181, 0.0
      %v1190 = vmax.f32 %v1182, 0.0
      %v1191 = vmax.f32 %v1183, 0.0
      %1192 = vst [vmem:[%s267] sm:$0xff] %v1184
      %1193 = vst [vmem:[%s267 + $0x8] sm:$0xff] %v1185
      %1194 = vst [vmem:[%s267 + $0x10] sm:$0xff] %v1186
      %1195 = vst [vmem:[%s267 + $0x18] sm:$0xff] %v1187
      %1196 = vst [vmem:[%s267 + $0x20] sm:$0xff] %v1188
      %1197 = vst [vmem:[%s267 + $0x28] sm:$0xff] %v1189
      %1198 = vst [vmem:[%s267 + $0x30] sm:$0xff] %v1190
      %1199 = vst [vmem:[%s267 + $0x38] sm:$0xff] %v1191
      %s1200 = smul.u32 8, %s19
      %p1201 = scmp.lt.s32.totalorder %s1200, 15
      %s1202 = scalar_select %p1201, %s1200, 15
      %p1203 = scmp.lt.s32.totalorder %s20, 0
      %s1204 = scalar_select %p1203, %s20, 0
      %s1205 = sadd.s32 %s1204, %s1202
      %s1206 = smul.addr %s1205, 8
      %s1207 = scalar_lea.vmem %s4, %s1206
      // Predicated region
      $region37: #{inception_b_forward.23} parent=35 // pred_check
        %p1208 = pneg %p151
      $region38: #{inception_b_forward.23} parent=35 // pred_check_branch
        %1210 = sbr.rel (%p1208) target = $region40
      $region39: #{inception_b_forward.23} parent=35 // pred_region
        %s1211 = smul.u32 8, %s19
      $region40: #{inception_b_forward.23} parent=35 // pred_fallthru
        _
    $region36: #{inception_b_forward.23} parent=5 // pred_fallthru
      _
    %p1212 = scmp.le.s32.totalorder 2, %s10
    // Predicated region
    $region41: #{inception_b_forward.23} parent=5 // pred_check
      %p1213 = pneg %p1212
    $region42: #{inception_b_forward.23} parent=5 // pred_check_branch
      %1215 = sbr.rel (%p1213) target = $region44
    $region43: #{inception_b_forward.23} parent=5 // pred_region
      %s1216 = ssub.s32 %s10, 2
      // Predicated region
      $region45: #{inception_b_forward.23} parent=43 // pred_check
        %p1217 = pneg %p157
      $region46: #{inception_b_forward.23} parent=43 // pred_check_branch
        %1219 = sbr.rel (%p1217) target = $region48
      $region47: #{inception_b_forward.23} parent=43 // pred_region
        %s1220 = smul.u32 8, %s21
        %p1221 = scmp.lt.s32.totalorder %s1220, 15
        %s1222 = scalar_select %p1221, %s1220, 15
        %p1223 = scmp.lt.s32.totalorder %s22, 0
        %s1224 = scalar_select %p1223, %s22, 0
        %s1225 = sadd.s32 %s1224, %s1222
        %s1226 = smul.addr %s1225, 8
        %s1227 = scalar_lea.vmem %s4, %s1226
      $region48: #{inception_b_forward.23} parent=43 // pred_fallthru
        _
    $region44: #{inception_b_forward.23} parent=5 // pred_fallthru
      _
  $region6: #{inception_b_forward.23} parent=0 // loop_footer
    %s14 = sadd.s32 1, %s10
  $region7: #{inception_b_forward.23} parent=0 // loop_footer_branch
    %9 = sbr.rel target = $region3
  $region8: #{inception_b_forward.23} parent=0 // loop_exit
    _

// kernel: inception_b_forward.12
$region0: #{inception_b_forward.12}
  #allocation0 [shape = 'u32[]', space=smem, size = 0x4, offset = 0x4, fixed_abs, tag = 'smem constant byte address 0x4 - core index']
  #allocation1 [shape = 'u32[144,128]{1,0:T(1,128)}', space=vmem, size = 0x12000, scoped, tag = 'internal scratch']
  %s0 = inlined_call_operand.vmem [shape: bf16[128,16], index: 0, kind: input, shape index: {}]
  %s1 = inlined_call_operand.vmem [shape: bf16[16,128], index: 1, kind: input, shape index: {}]
  %s2 = inlined_call_operand.vmem [shape: f32[1,128], index: 2, kind: input, shape index: {}]
  %s3 = inlined_call_operand.vmem [shape: f32[1,128], index: 3, kind: input, shape index: {}]
  %s4 = inlined_call_operand.vmem [shape: f32[128,128], index: 4, kind: output, shape index: {}]
  %s5 = sld [smem:[#allocation0]]
  $region49: #{inception_b_forward.12} parent=0
    _
  %s7 = ssub.s32 1, %s5
  %s8 = scalar_select 0, %s7, %s5
  loop: start=0, step=1, limit=4
  $region2: #{inception_b_forward.12} parent=0 // loop_pre_header
    _
  $region3: #{inception_b_forward.12} parent=0 // loop_header
    %s10 = sphi 0, %s14
    %p11 = scmp.ge.s32.totalorder %s10, 4
    %s17 = sphi 0, %s29
    %s18 = sphi 0, %s25
    %s19 = sphi 0, %s17
    %s20 = sphi 0, %s18
    %s21 = sphi 0, %s19
    %s22 = sphi 0, %s20
    %s32 = sphi 0, %s34
    %s35 = sphi 0, %s32
    %s36 = sphi 0, %s35
    %s52 = sphi 0, %s36
    %s58 = sphi 0, %s60
    %s61 = sphi 0, %s58
    %s62 = sphi 0, %s61
    %s78 = sphi 0, %s62
    %s84 = sphi 0, %s86
    %s87 = sphi 0, %s84
    %s88 = sphi 0, %s87
    %s104 = sphi 0, %s88
    %s110 = sphi 0, %s112
    %s113 = sphi 0, %s110
    %s114 = sphi 0, %s113
    %s130 = sphi 0, %s114
    %s138 = sphi 0, %s140
    %s141 = sphi 0, %s138
    %s142 = sphi 0, %s141
    %s158 = sphi 0, %s142
  $region4: #{inception_b_forward.12} parent=0 // loop_header_branch
    %13 = sbr.rel (%p11) target = $region8
  $region5: #{inception_b_forward.12} parent=0 // loop_body
    %s15 = ssub.s32 %s10, 1
    %s16 = ssub.s32 %s10, 2
    %s23 = sadd.s32 1, %s18
    %p24 = scmp.ge.s32.totalorder %s23, 1
    %s25 = scalar_select %p24, 0, %s23
    %s26 = sadd.s32 1, %s17
    %s27 = scalar_select %p24, %s26, %s17
    %p28 = scmp.ge.s32.totalorder %s27, 2
    %s29 = scalar_select %p28, 0, %s27
    %s30 = ssub.s32 %s17, %s29
    %p31 = scmp.eq.s32.totalorder %s30, 0
    %s33 = sadd.s32 %s32, 1
    %s34 = scalar_select %p31, %s32, %s33
    %p37 = pneg %p31
    %p38 = scmp.eq.s32.totalorder %s10, 1
    %p39 = por %p37, %p38
    %p40 = scmp.ne.s32.totalorder %s32, %s35
    %p41 = scmp.eq.s32.totalorder %s10, 0
    %p42 = por %p40, %p41
    %p43 = scmp.ne.s32.totalorder %s32, %s35
    %p44 = scmp.eq.s32.totalorder %s15, 1
    %p45 = por %p43, %p44
    %p46 = scmp.ne.s32.totalorder %s35, %s36
    %p47 = scmp.eq.s32.totalorder %s15, 0
    %p48 = por %p46, %p47
    %p49 = scmp.ne.s32.totalorder %s35, %s36
    %p50 = scmp.eq.s32.totalorder %s16, 1
    %p51 = por %p49, %p50
    %p53 = scmp.ne.s32.totalorder %s36, %s52
    %p54 = scmp.eq.s32.totalorder %s16, 0
    %p55 = por %p53, %p54
    %s56 = ssub.s32 %s18, %s25
    %p57 = scmp.eq.s32.totalorder %s56, 0
    %s59 = sadd.s32 %s58, 1
    %s60 = scalar_select %p57, %s58, %s59
    %p63 = pneg %p57
    %p64 = scmp.eq.s32.totalorder %s10, 1
    %p65 = por %p63, %p64
    %p66 = scmp.ne.s32.totalorder %s58, %s61
    %p67 = scmp.eq.s32.totalorder %s10, 0
    %p68 = por %p66, %p67
    %p69 = scmp.ne.s32.totalorder %s58, %s61
    %p70 = scmp.eq.s32.totalorder %s15, 1
    %p71 = por %p69, %p70
    %p72 = scmp.ne.s32.totalorder %s61, %s62
    %p73 = scmp.eq.s32.totalorder %s15, 0
    %p74 = por %p72, %p73
    %p75 = scmp.ne.s32.totalorder %s61, %s62
    %p76 = scmp.eq.s32.totalorder %s16, 1
    %p77 = por %p75, %p76
    %p79 = scmp.ne.s32.totalorder %s62, %s78
    %p80 = scmp.eq.s32.totalorder %s16, 0
    %p81 = por %p79, %p80
    %s82 = ssub.s32 %s18, %s25
    %p83 = scmp.eq.s32.totalorder %s82, 0
    %s85 = sadd.s32 %s84, 1
    %s86 = scalar_select %p83, %s84, %s85
    %p89 = pneg %p83
    %p90 = scmp.eq.s32.totalorder %s10, 1
    %p91 = por %p89, %p90
    %p92 = scmp.ne.s32.totalorder %s84, %s87
    %p93 = scmp.eq.s32.totalorder %s10, 0
    %p94 = por %p92, %p93
    %p95 = scmp.ne.s32.totalorder %s84, %s87
    %p96 = scmp.eq.s32.totalorder %s15, 1
    %p97 = por %p95, %p96
    %p98 = scmp.ne.s32.totalorder %s87, %s88
    %p99 = scmp.eq.s32.totalorder %s15, 0
    %p100 = por %p98, %p99
    %p101 = scmp.ne.s32.totalorder %s87, %s88
    %p102 = scmp.eq.s32.totalorder %s16, 1
    %p103 = por %p101, %p102
    %p105 = scmp.ne.s32.totalorder %s88, %s104
    %p106 = scmp.eq.s32.totalorder %s16, 0
    %p107 = por %p105, %p106
    %s108 = ssub.s32 %s18, %s25
    %p109 = scmp.eq.s32.totalorder %s108, 0
    %s111 = sadd.s32 %s110, 1
    %s112 = scalar_select %p109, %s110, %s111
    %p115 = pneg %p109
    %p116 = scmp.eq.s32.totalorder %s10, 1
    %p117 = por %p115, %p116
    %p118 = scmp.ne.s32.totalorder %s110, %s113
    %p119 = scmp.eq.s32.totalorder %s10, 0
    %p120 = por %p118, %p119
    %p121 = scmp.ne.s32.totalorder %s110, %s113
    %p122 = scmp.eq.s32.totalorder %s15, 1
    %p123 = por %p121, %p122
    %p124 = scmp.ne.s32.totalorder %s113, %s114
    %p125 = scmp.eq.s32.totalorder %s15, 0
    %p126 = por %p124, %p125
    %p127 = scmp.ne.s32.totalorder %s113, %s114
    %p128 = scmp.eq.s32.totalorder %s16, 1
    %p129 = por %p127, %p128
    %p131 = scmp.ne.s32.totalorder %s114, %s130
    %p132 = scmp.eq.s32.totalorder %s16, 0
    %p133 = por %p131, %p132
    %s134 = ssub.s32 %s17, %s29
    %s135 = ssub.s32 %s18, %s25
    %s136 = sor.u32 %s134, %s135
    %p137 = scmp.eq.s32.totalorder %s136, 0
    %s139 = sadd.s32 %s138, 1
    %s140 = scalar_select %p137, %s138, %s139
    %p143 = pneg %p137
    %p144 = scmp.eq.s32.totalorder %s10, 1
    %p145 = por %p143, %p144
    %p146 = scmp.ne.s32.totalorder %s138, %s141
    %p147 = scmp.eq.s32.totalorder %s10, 0
    %p148 = por %p146, %p147
    %p149 = scmp.ne.s32.totalorder %s138, %s141
    %p150 = scmp.eq.s32.totalorder %s15, 1
    %p151 = por %p149, %p150
    %p152 = scmp.ne.s32.totalorder %s141, %s142
    %p153 = scmp.eq.s32.totalorder %s15, 0
    %p154 = por %p152, %p153
    %p155 = scmp.ne.s32.totalorder %s141, %s142
    %p156 = scmp.eq.s32.totalorder %s16, 1
    %p157 = por %p155, %p156
    %p159 = scmp.ne.s32.totalorder %s142, %s158
    %p160 = scmp.eq.s32.totalorder %s16, 0
    %p161 = por %p159, %p160
    %p162 = scmp.le.s32.totalorder 1, %s10
    %p163 = scmp.lt.s32.totalorder %s10, 3
    %p164 = pnand %p162, %p163
    %p165 = pneg %p164
    // Predicated region
    $region9: #{inception_b_forward.12} parent=5 // pred_check
      _
    $region10: #{inception_b_forward.12} parent=5 // pred_check_branch
      %167 = sbr.rel (%p164) target = $region12
    $region11: #{inception_b_forward.12} parent=5 // pred_region
      %s168 = ssub.s32 %s10, 1
      // Predicated region
      $region13: #{inception_b_forward.12} parent=11 // pred_check
        %p169 = pneg %p74
      $region14: #{inception_b_forward.12} parent=11 // pred_check_branch
        %171 = sbr.rel (%p169) target = $region16
      $region15: #{inception_b_forward.12} parent=11 // pred_region
        %p172 = scmp.lt.s32.totalorder %s20, 0
        %s173 = scalar_select %p172, %s20, 0
        %s174 = smul.addr %s173, 4
        %s175 = scalar_lea.vmem %s1, %s174
      $region16: #{inception_b_forward.12} parent=11 // pred_fallthru
        _
      // Predicated region
      $region17: #{inception_b_forward.12} parent=11 // pred_check
        %p176 = pneg %p100
      $region18: #{inception_b_forward.12} parent=11 // pred_check_branch
        %178 = sbr.rel (%p176) target = $region20
      $region19: #{inception_b_forward.12} parent=11 // pred_region
        %p179 = scmp.lt.s32.totalorder %s20, 0
        %s180 = scalar_select %p179, %s20, 0
        %s181 = scalar_lea.vmem %s2, %s180
      $region20: #{inception_b_forward.12} parent=11 // pred_fallthru
        _
      // Predicated region
      $region21: #{inception_b_forward.12} parent=11 // pred_check
        %p182 = pneg %p126
      $region22: #{inception_b_forward.12} parent=11 // pred_check_branch
        %184 = sbr.rel (%p182) target = $region24
      $region23: #{inception_b_forward.12} parent=11 // pred_region
        %p185 = scmp.lt.s32.totalorder %s20, 0
        %s186 = scalar_select %p185, %s20, 0
        %s187 = scalar_lea.vmem %s3, %s186
      $region24: #{inception_b_forward.12} parent=11 // pred_fallthru
        _
    $region12: #{inception_b_forward.12} parent=5 // pred_fallthru
      _
    %p188 = scmp.lt.s32.totalorder %s10, 2
    // Predicated region
    $region25: #{inception_b_forward.12} parent=5 // pred_check
      %p189 = pneg %p188
    $region26: #{inception_b_forward.12} parent=5 // pred_check_branch
      %191 = sbr.rel (%p189) target = $region28
    $region27: #{inception_b_forward.12} parent=5 // pred_region
      // Predicated region
      $region29: #{inception_b_forward.12} parent=27 // pred_check
        %p192 = pneg %p42
      $region30: #{inception_b_forward.12} parent=27 // pred_check_branch
        %194 = sbr.rel (%p192) target = $region32
      $region31: #{inception_b_forward.12} parent=27 // pred_region
        %s195 = smul.u32 8, %s17
        %p196 = scmp.lt.s32.totalorder %s195, 15
        %s197 = scalar_select %p196, %s195, 15
        %s198 = smul.addr %s197, 4
        %s199 = scalar_lea.vmem %s0, %s198
        %s200 = smul.u32 8, %s17
      $region32: #{inception_b_forward.12} parent=27 // pred_fallthru
        _
    $region28: #{inception_b_forward.12} parent=5 // pred_fallthru
      _
    %p201 = scmp.le.s32.totalorder 1, %s10
    %p202 = scmp.lt.s32.totalorder %s10, 3
    %p203 = pnand %p201, %p202
    %p204 = pneg %p203
    // Predicated region
    $region33: #{inception_b_forward.12} parent=5 // pred_check
      _
    $region34: #{inception_b_forward.12} parent=5 // pred_check_branch
      %206 = sbr.rel (%p203) target = $region36
    $region35: #{inception_b_forward.12} parent=5 // pred_region
      %s207 = ssub.s32 %s10, 1
      %s208 = smul.u32 8, %s19
      %p209 = scmp.lt.s32.totalorder %s208, 15
      %s210 = scalar_select %p209, %s208, 15
      %s211 = smul.addr %s210, 4
      %s212 = scalar_lea.vmem %s0, %s211
      %p213 = pneg %p48
      %p214 = pneg %p45
      %p215 = scmp.lt.s32.totalorder %s20, 0
      %s216 = scalar_select %p215, %s20, 0
      %s217 = smul.addr %s216, 4
      %s218 = scalar_lea.vmem %s1, %s217
      %p219 = pneg %p74
      %p220 = pneg %p71
      %p221 = scmp.lt.s32.totalorder %s20, 0
      %s222 = scalar_select %p221, %s20, 0
      %s223 = scalar_lea.vmem %s2, %s222
      %p224 = pneg %p100
      %p225 = pneg %p97
      %p226 = scmp.lt.s32.totalorder %s20, 0
      %s227 = scalar_select %p226, %s20, 0
      %s228 = scalar_lea.vmem %s3, %s227
      %p229 = pneg %p126
      %p230 = pneg %p123
      %p231 = pneg %p154
      %p232 = pneg %p151
      %s233 = smul.u32 8, %s19
      %p234 = scmp.lt.s32.totalorder %s233, 15
      %s235 = scalar_select %p234, %s233, 15
      %p236 = scmp.lt.s32.totalorder %s20, 0
      %s237 = scalar_select %p236, %s20, 0
      %s238 = sadd.s32 %s237, %s235
      %s239 = smul.addr %s238, 8
      %s240 = scalar_lea.vmem %s4, %s239
      %s241 = smul.u32 8, %s19
      %p242 = scmp.lt.s32.totalorder %s241, 15
      %s243 = scalar_select %p242, %s241, 15
      %s244 = smul.addr %s243, 4
      %s245 = scalar_lea.vmem %s0, %s244
      %s246 = smul.u32 8, %s19
      %p247 = scmp.lt.s32.totalorder %s20, 0
      %s248 = scalar_select %p247, %s20, 0
      %s249 = smul.addr %s248, 4
      %s250 = scalar_lea.vmem %s1, %s249
      %p251 = scmp.lt.s32.totalorder %s20, 0
      %s252 = scalar_select %p251, %s20, 0
      %s253 = scalar_lea.vmem %s2, %s252
      %p254 = scmp.lt.s32.totalorder %s20, 0
      %s255 = scalar_select %p254, %s20, 0
      %s256 = scalar_lea.vmem %s3, %s255
      %s257 = smul.u32 8, %s19
      %p258 = scmp.lt.s32.totalorder %s257, 15
      %s259 = scalar_select %p258, %s257, 15
      %p260 = scmp.lt.s32.totalorder %s20, 0
      %s261 = scalar_select %p260, %s20, 0
      %s262 = sadd.s32 %s261, %s259
      %s263 = smul.addr %s262, 8
      %s264 = scalar_lea.vmem %s4, %s263
      %s265 = smul.u32 8, %s19
      %v267 = vld [vmem:[%s245] sm:$0xf]
      %v268 = vld [vmem:[%s245 + $0x4] sm:$0xf]
      %v269 = vld [vmem:[%s245 + $0x8] sm:$0xf]
      %v270 = vld [vmem:[%s245 + $0xc] sm:$0xf]
      %v271 = vld [vmem:[%s245 + $0x10] sm:$0xf]
      %v272 = vld [vmem:[%s245 + $0x14] sm:$0xf]
      %v273 = vld [vmem:[%s245 + $0x18] sm:$0xf]
      %v274 = vld [vmem:[%s245 + $0x1c] sm:$0xf]
      %v275 = vld [vmem:[%s250] sm:$0xf]
      %v276 = vld [vmem:[%s250 + $0x4] sm:$0xf]
      %v285 = vunpack.c.l.b16 %v267
      %v286 = vunpack.c.l.b16 %v268
      %v287 = vunpack.c.l.b16 %v269
      %v288 = vunpack.c.l.b16 %v270
      %v289 = vunpack.c.l.b16 %v271
      %v290 = vunpack.c.l.b16 %v272
      %v291 = vunpack.c.l.b16 %v273
      %v292 = vunpack.c.l.b16 %v274
      %v293 = vpack.c.b16 %v286, %v285
      %v294 = vpack.c.b16 %v288, %v287
      %v295 = vpack.c.b16 %v290, %v289
      %v296 = vpack.c.b16 %v292, %v291
      %v299 = vunpack.c.l.b16 %v275
      %v300 = vunpack.c.l.b16 %v276
      %v301 = vpack.c.b16 %v300, %v299
      %vm303 = vcmask 130048
      %v305 = vsel %vm303, %v293, 0
      %v308 = vsel %vm303, %v294, 0
      %v311 = vsel %vm303, %v295, 0
      %v314 = vsel %vm303, %v296, 0
      %316 = vmatprep.subr.bf16.mxu0 0
      %317 = vmatpush1.bf16.msra.mxu0 %v301
      %318 = vmatprep.subr.bf16.mxu0 0
      %319 = vmatpush1.bf16.msra.mxu0 0
      %320 = vmatprep.subr.bf16.mxu0 0
      %321 = vmatpush1.bf16.msra.mxu0 0
      %322 = vmatprep.subr.bf16.mxu0 0
      %323 = vmatpush1.bf16.msra.mxu0 0
      %324 = vmatprep.subr.bf16.mxu0 0
      %325 = vmatpush1.bf16.msra.mxu0 0
      %326 = vmatprep.subr.bf16.mxu0 0
      %327 = vmatpush1.bf16.msra.mxu0 0
      %328 = vmatprep.subr.bf16.mxu0 0
      %329 = vmatpush1.bf16.msra.mxu0 0
      %330 = vmatprep.subr.bf16.mxu0 0
      %331 = vmatpush1.bf16.msra.mxu0 0
      %332 = vmatprep.subr.bf16.mxu0 0
      %333 = vmatpush1.bf16.msra.mxu0 0
      %334 = vmatprep.subr.bf16.mxu0 0
      %335 = vmatpush1.bf16.msra.mxu0 0
      %336 = vmatprep.subr.bf16.mxu0 0
      %337 = vmatpush1.bf16.msra.mxu0 0
      %338 = vmatprep.subr.bf16.mxu0 0
      %339 = vmatpush1.bf16.msra.mxu0 0
      %340 = vmatprep.subr.bf16.mxu0 0
      %341 = vmatpush1.bf16.msra.mxu0 0
      %342 = vmatprep.subr.bf16.mxu0 0
      %343 = vmatpush1.bf16.msra.mxu0 0
      %344 = vmatprep.subr.bf16.mxu0 0
      %345 = vmatpush1.bf16.msra.mxu0 0
      %346 = vmatprep.subr.bf16.mxu0 0
      %347 = vmatpush1.bf16.msra.mxu0 0
      %348 = vmatprep.mubr.bf16.mxu0 0
      %349 = vmatmul.mubr.bf16.gmra.mrb[0].mxu0 %v305
      %v350 = vpop.f32.mrb[0].mxu0
      %v351 = vadd.f32 0.0, %v350
      %v352 = vpop.f32.mrb[0].mxu0
      %v353 = vpop.f32.mrb[0].mxu0
      %v354 = vadd.f32 0.0, %v353
      %v355 = vpop.f32.mrb[0].mxu0
      %356 = vmatprep.mubr.bf16.mxu0 0
      %357 = vmatmul.mubr.bf16.gmra.mrb[0].mxu0 %v308
      %v358 = vpop.f32.mrb[0].mxu0
      %v359 = vadd.f32 0.0, %v358
      %v360 = vpop.f32.mrb[0].mxu0
      %v361 = vpop.f32.mrb[0].mxu0
      %v362 = vadd.f32 0.0, %v361
      %v363 = vpop.f32.mrb[0].mxu0
      %364 = vmatprep.mubr.bf16.mxu0 0
      %365 = vmatmul.mubr.bf16.gmra.mrb[0].mxu0 %v311
      %v366 = vpop.f32.mrb[0].mxu0
      %v367 = vadd.f32 0.0, %v366
      %v368 = vpop.f32.mrb[0].mxu0
      %v369 = vpop.f32.mrb[0].mxu0
      %v370 = vadd.f32 0.0, %v369
      %v371 = vpop.f32.mrb[0].mxu0
      %372 = vmatprep.mubr.bf16.mxu0 0
      %373 = vmatmul.mubr.bf16.gmra.mrb[0].mxu0 %v314
      %v374 = vpop.f32.mrb[0].mxu0
      %v375 = vadd.f32 0.0, %v374
      %v376 = vpop.f32.mrb[0].mxu0
      %v377 = vpop.f32.mrb[0].mxu0
      %v378 = vadd.f32 0.0, %v377
      %v379 = vpop.f32.mrb[0].mxu0
      %380 = vdwg.mxu0
      %v381 = vld [vmem:[%s253] sm:$0x1]
      %v383 = vlaneseq
      %v384 = vshrl.u32 %v383, 7
      %v385 = vsub.s32 0, %v384
      %v386 = vrot.slane %v381, %v385
      %v388 = vmul.f32 %v351, %v386
      %v389 = vmul.f32 %v354, %v386
      %v390 = vmul.f32 %v359, %v386
      %v391 = vmul.f32 %v362, %v386
      %v392 = vmul.f32 %v367, %v386
      %v393 = vmul.f32 %v370, %v386
      %v394 = vmul.f32 %v375, %v386
      %v395 = vmul.f32 %v378, %v386
      %v396 = vld [vmem:[%s256] sm:$0x1]
      %v398 = vlaneseq
      %v399 = vshrl.u32 %v398, 7
      %v400 = vsub.s32 0, %v399
      %v401 = vrot.slane %v396, %v400
      %v403 = vadd.f32 %v388, %v401
      %v404 = vadd.f32 %v389, %v401
      %v405 = vadd.f32 %v390, %v401
      %v406 = vadd.f32 %v391, %v401
      %v407 = vadd.f32 %v392, %v401
      %v408 = vadd.f32 %v393, %v401
      %v409 = vadd.f32 %v394, %v401
      %v410 = vadd.f32 %v395, %v401
      %v411 = vmax.f32 %v403, 0.0
      %v412 = vmax.f32 %v404, 0.0
      %v413 = vmax.f32 %v405, 0.0
      %v414 = vmax.f32 %v406, 0.0
      %v415 = vmax.f32 %v407, 0.0
      %v416 = vmax.f32 %v408, 0.0
      %v417 = vmax.f32 %v409, 0.0
      %v418 = vmax.f32 %v410, 0.0
      %419 = vst [vmem:[%s264] sm:$0xff] %v411
      %420 = vst [vmem:[%s264 + $0x8] sm:$0xff] %v412
      %421 = vst [vmem:[%s264 + $0x10] sm:$0xff] %v413
      %422 = vst [vmem:[%s264 + $0x18] sm:$0xff] %v414
      %423 = vst [vmem:[%s264 + $0x20] sm:$0xff] %v415
      %424 = vst [vmem:[%s264 + $0x28] sm:$0xff] %v416
      %425 = vst [vmem:[%s264 + $0x30] sm:$0xff] %v417
      %426 = vst [vmem:[%s264 + $0x38] sm:$0xff] %v418
      %s427 = smul.u32 8, %s19
      %p428 = scmp.lt.s32.totalorder %s427, 15
      %s429 = scalar_select %p428, %s427, 15
      %p430 = scmp.lt.s32.totalorder %s20, 0
      %s431 = scalar_select %p430, %s20, 0
      %s432 = sadd.s32 %s431, %s429
      %s433 = smul.addr %s432, 8
      %s434 = scalar_lea.vmem %s4, %s433
      // Predicated region
      $region37: #{inception_b_forward.12} parent=35 // pred_check
        %p435 = pneg %p151
      $region38: #{inception_b_forward.12} parent=35 // pred_check_branch
        %437 = sbr.rel (%p435) target = $region40
      $region39: #{inception_b_forward.12} parent=35 // pred_region
        %s438 = smul.u32 8, %s19
      $region40: #{inception_b_forward.12} parent=35 // pred_fallthru
        _
    $region36: #{inception_b_forward.12} parent=5 // pred_fallthru
      _
    %p439 = scmp.le.s32.totalorder 2, %s10
    // Predicated region
    $region41: #{inception_b_forward.12} parent=5 // pred_check
      %p440 = pneg %p439
    $region42: #{inception_b_forward.12} parent=5 // pred_check_branch
      %442 = sbr.rel (%p440) target = $region44
    $region43: #{inception_b_forward.12} parent=5 // pred_region
      %s443 = ssub.s32 %s10, 2
      // Predicated region
      $region45: #{inception_b_forward.12} parent=43 // pred_check
        %p444 = pneg %p157
      $region46: #{inception_b_forward.12} parent=43 // pred_check_branch
        %446 = sbr.rel (%p444) target = $region48
      $region47: #{inception_b_forward.12} parent=43 // pred_region
        %s447 = smul.u32 8, %s21
        %p448 = scmp.lt.s32.totalorder %s447, 15
        %s449 = scalar_select %p448, %s447, 15
        %p450 = scmp.lt.s32.totalorder %s22, 0
        %s451 = scalar_select %p450, %s22, 0
        %s452 = sadd.s32 %s451, %s449
        %s453 = smul.addr %s452, 8
        %s454 = scalar_lea.vmem %s4, %s453
      $region48: #{inception_b_forward.12} parent=43 // pred_fallthru
        _
    $region44: #{inception_b_forward.12} parent=5 // pred_fallthru
      _
  $region6: #{inception_b_forward.12} parent=0 // loop_footer
    %s14 = sadd.s32 1, %s10
  $region7: #{inception_b_forward.12} parent=0 // loop_footer_branch
    %9 = sbr.rel target = $region3
  $region8: #{inception_b_forward.12} parent=0 // loop_exit
    _

// kernel: inception_b_forward.13
$region0: #{inception_b_forward.13}
  #allocation0 [shape = 'u32[]', space=smem, size = 0x4, offset = 0x4, fixed_abs, tag = 'smem constant byte address 0x4 - core index']
  #allocation1 [shape = 'u32[144,128]{1,0:T(1,128)}', space=vmem, size = 0x12000, scoped, tag = 'internal scratch']
  %s0 = inlined_call_operand.vmem [shape: bf16[64,192], index: 0, kind: input, shape index: {}]
  %s1 = inlined_call_operand.vmem [shape: bf16[192,256], index: 1, kind: input, shape index: {}]
  %s2 = inlined_call_operand.vmem [shape: f32[1,256], index: 2, kind: input, shape index: {}]
  %s3 = inlined_call_operand.vmem [shape: f32[1,256], index: 3, kind: input, shape index: {}]
  %s4 = inlined_call_operand.vmem [shape: f32[64,256], index: 4, kind: output, shape index: {}]
  %s5 = sld [smem:[#allocation0]]
  $region49: #{inception_b_forward.13} parent=0
    _
  %s7 = ssub.s32 1, %s5
  %s8 = scalar_select 0, %s7, %s5
  loop: start=0, step=1, limit=4
  $region2: #{inception_b_forward.13} parent=0 // loop_pre_header
    _
  $region3: #{inception_b_forward.13} parent=0 // loop_header
    %s10 = sphi 0, %s14
    %p11 = scmp.ge.s32.totalorder %s10, 4
    %s17 = sphi 0, %s29
    %s18 = sphi 0, %s25
    %s19 = sphi 0, %s17
    %s20 = sphi 0, %s18
    %s21 = sphi 0, %s19
    %s22 = sphi 0, %s20
    %s32 = sphi 0, %s34
    %s35 = sphi 0, %s32
    %s36 = sphi 0, %s35
    %s52 = sphi 0, %s36
    %s58 = sphi 0, %s60
    %s61 = sphi 0, %s58
    %s62 = sphi 0, %s61
    %s78 = sphi 0, %s62
    %s84 = sphi 0, %s86
    %s87 = sphi 0, %s84
    %s88 = sphi 0, %s87
    %s104 = sphi 0, %s88
    %s110 = sphi 0, %s112
    %s113 = sphi 0, %s110
    %s114 = sphi 0, %s113
    %s130 = sphi 0, %s114
    %s138 = sphi 0, %s140
    %s141 = sphi 0, %s138
    %s142 = sphi 0, %s141
    %s158 = sphi 0, %s142
  $region4: #{inception_b_forward.13} parent=0 // loop_header_branch
    %13 = sbr.rel (%p11) target = $region8
  $region5: #{inception_b_forward.13} parent=0 // loop_body
    %s15 = ssub.s32 %s10, 1
    %s16 = ssub.s32 %s10, 2
    %s23 = sadd.s32 1, %s18
    %p24 = scmp.ge.s32.totalorder %s23, 1
    %s25 = scalar_select %p24, 0, %s23
    %s26 = sadd.s32 1, %s17
    %s27 = scalar_select %p24, %s26, %s17
    %p28 = scmp.ge.s32.totalorder %s27, 2
    %s29 = scalar_select %p28, 0, %s27
    %s30 = ssub.s32 %s17, %s29
    %p31 = scmp.eq.s32.totalorder %s30, 0
    %s33 = sadd.s32 %s32, 1
    %s34 = scalar_select %p31, %s32, %s33
    %p37 = pneg %p31
    %p38 = scmp.eq.s32.totalorder %s10, 1
    %p39 = por %p37, %p38
    %p40 = scmp.ne.s32.totalorder %s32, %s35
    %p41 = scmp.eq.s32.totalorder %s10, 0
    %p42 = por %p40, %p41
    %p43 = scmp.ne.s32.totalorder %s32, %s35
    %p44 = scmp.eq.s32.totalorder %s15, 1
    %p45 = por %p43, %p44
    %p46 = scmp.ne.s32.totalorder %s35, %s36
    %p47 = scmp.eq.s32.totalorder %s15, 0
    %p48 = por %p46, %p47
    %p49 = scmp.ne.s32.totalorder %s35, %s36
    %p50 = scmp.eq.s32.totalorder %s16, 1
    %p51 = por %p49, %p50
    %p53 = scmp.ne.s32.totalorder %s36, %s52
    %p54 = scmp.eq.s32.totalorder %s16, 0
    %p55 = por %p53, %p54
    %s56 = ssub.s32 %s18, %s25
    %p57 = scmp.eq.s32.totalorder %s56, 0
    %s59 = sadd.s32 %s58, 1
    %s60 = scalar_select %p57, %s58, %s59
    %p63 = pneg %p57
    %p64 = scmp.eq.s32.totalorder %s10, 1
    %p65 = por %p63, %p64
    %p66 = scmp.ne.s32.totalorder %s58, %s61
    %p67 = scmp.eq.s32.totalorder %s10, 0
    %p68 = por %p66, %p67
    %p69 = scmp.ne.s32.totalorder %s58, %s61
    %p70 = scmp.eq.s32.totalorder %s15, 1
    %p71 = por %p69, %p70
    %p72 = scmp.ne.s32.totalorder %s61, %s62
    %p73 = scmp.eq.s32.totalorder %s15, 0
    %p74 = por %p72, %p73
    %p75 = scmp.ne.s32.totalorder %s61, %s62
    %p76 = scmp.eq.s32.totalorder %s16, 1
    %p77 = por %p75, %p76
    %p79 = scmp.ne.s32.totalorder %s62, %s78
    %p80 = scmp.eq.s32.totalorder %s16, 0
    %p81 = por %p79, %p80
    %s82 = ssub.s32 %s18, %s25
    %p83 = scmp.eq.s32.totalorder %s82, 0
    %s85 = sadd.s32 %s84, 1
    %s86 = scalar_select %p83, %s84, %s85
    %p89 = pneg %p83
    %p90 = scmp.eq.s32.totalorder %s10, 1
    %p91 = por %p89, %p90
    %p92 = scmp.ne.s32.totalorder %s84, %s87
    %p93 = scmp.eq.s32.totalorder %s10, 0
    %p94 = por %p92, %p93
    %p95 = scmp.ne.s32.totalorder %s84, %s87
    %p96 = scmp.eq.s32.totalorder %s15, 1
    %p97 = por %p95, %p96
    %p98 = scmp.ne.s32.totalorder %s87, %s88
    %p99 = scmp.eq.s32.totalorder %s15, 0
    %p100 = por %p98, %p99
    %p101 = scmp.ne.s32.totalorder %s87, %s88
    %p102 = scmp.eq.s32.totalorder %s16, 1
    %p103 = por %p101, %p102
    %p105 = scmp.ne.s32.totalorder %s88, %s104
    %p106 = scmp.eq.s32.totalorder %s16, 0
    %p107 = por %p105, %p106
    %s108 = ssub.s32 %s18, %s25
    %p109 = scmp.eq.s32.totalorder %s108, 0
    %s111 = sadd.s32 %s110, 1
    %s112 = scalar_select %p109, %s110, %s111
    %p115 = pneg %p109
    %p116 = scmp.eq.s32.totalorder %s10, 1
    %p117 = por %p115, %p116
    %p118 = scmp.ne.s32.totalorder %s110, %s113
    %p119 = scmp.eq.s32.totalorder %s10, 0
    %p120 = por %p118, %p119
    %p121 = scmp.ne.s32.totalorder %s110, %s113
    %p122 = scmp.eq.s32.totalorder %s15, 1
    %p123 = por %p121, %p122
    %p124 = scmp.ne.s32.totalorder %s113, %s114
    %p125 = scmp.eq.s32.totalorder %s15, 0
    %p126 = por %p124, %p125
    %p127 = scmp.ne.s32.totalorder %s113, %s114
    %p128 = scmp.eq.s32.totalorder %s16, 1
    %p129 = por %p127, %p128
    %p131 = scmp.ne.s32.totalorder %s114, %s130
    %p132 = scmp.eq.s32.totalorder %s16, 0
    %p133 = por %p131, %p132
    %s134 = ssub.s32 %s17, %s29
    %s135 = ssub.s32 %s18, %s25
    %s136 = sor.u32 %s134, %s135
    %p137 = scmp.eq.s32.totalorder %s136, 0
    %s139 = sadd.s32 %s138, 1
    %s140 = scalar_select %p137, %s138, %s139
    %p143 = pneg %p137
    %p144 = scmp.eq.s32.totalorder %s10, 1
    %p145 = por %p143, %p144
    %p146 = scmp.ne.s32.totalorder %s138, %s141
    %p147 = scmp.eq.s32.totalorder %s10, 0
    %p148 = por %p146, %p147
    %p149 = scmp.ne.s32.totalorder %s138, %s141
    %p150 = scmp.eq.s32.totalorder %s15, 1
    %p151 = por %p149, %p150
    %p152 = scmp.ne.s32.totalorder %s141, %s142
    %p153 = scmp.eq.s32.totalorder %s15, 0
    %p154 = por %p152, %p153
    %p155 = scmp.ne.s32.totalorder %s141, %s142
    %p156 = scmp.eq.s32.totalorder %s16, 1
    %p157 = por %p155, %p156
    %p159 = scmp.ne.s32.totalorder %s142, %s158
    %p160 = scmp.eq.s32.totalorder %s16, 0
    %p161 = por %p159, %p160
    %p162 = scmp.le.s32.totalorder 1, %s10
    %p163 = scmp.lt.s32.totalorder %s10, 3
    %p164 = pnand %p162, %p163
    %p165 = pneg %p164
    // Predicated region
    $region9: #{inception_b_forward.13} parent=5 // pred_check
      _
    $region10: #{inception_b_forward.13} parent=5 // pred_check_branch
      %167 = sbr.rel (%p164) target = $region12
    $region11: #{inception_b_forward.13} parent=5 // pred_region
      %s168 = ssub.s32 %s10, 1
      // Predicated region
      $region13: #{inception_b_forward.13} parent=11 // pred_check
        %p169 = pneg %p74
      $region14: #{inception_b_forward.13} parent=11 // pred_check_branch
        %171 = sbr.rel (%p169) target = $region16
      $region15: #{inception_b_forward.13} parent=11 // pred_region
        %s172 = smul.u32 2, %s20
        %p173 = scmp.lt.s32.totalorder %s172, 1
        %s174 = scalar_select %p173, %s172, 1
        %s175 = smul.addr %s174, 4
        %s176 = scalar_lea.vmem %s1, %s175
        %s177 = smul.u32 2, %s20
      $region16: #{inception_b_forward.13} parent=11 // pred_fallthru
        _
      // Predicated region
      $region17: #{inception_b_forward.13} parent=11 // pred_check
        %p178 = pneg %p100
      $region18: #{inception_b_forward.13} parent=11 // pred_check_branch
        %180 = sbr.rel (%p178) target = $region20
      $region19: #{inception_b_forward.13} parent=11 // pred_region
        %s181 = smul.u32 2, %s20
        %p182 = scmp.lt.s32.totalorder %s181, 1
        %s183 = scalar_select %p182, %s181, 1
        %s184 = scalar_lea.vmem %s2, %s183
        %s185 = smul.u32 2, %s20
      $region20: #{inception_b_forward.13} parent=11 // pred_fallthru
        _
      // Predicated region
      $region21: #{inception_b_forward.13} parent=11 // pred_check
        %p186 = pneg %p126
      $region22: #{inception_b_forward.13} parent=11 // pred_check_branch
        %188 = sbr.rel (%p186) target = $region24
      $region23: #{inception_b_forward.13} parent=11 // pred_region
        %s189 = smul.u32 2, %s20
        %p190 = scmp.lt.s32.totalorder %s189, 1
        %s191 = scalar_select %p190, %s189, 1
        %s192 = scalar_lea.vmem %s3, %s191
        %s193 = smul.u32 2, %s20
      $region24: #{inception_b_forward.13} parent=11 // pred_fallthru
        _
    $region12: #{inception_b_forward.13} parent=5 // pred_fallthru
      _
    %p194 = scmp.lt.s32.totalorder %s10, 2
    // Predicated region
    $region25: #{inception_b_forward.13} parent=5 // pred_check
      %p195 = pneg %p194
    $region26: #{inception_b_forward.13} parent=5 // pred_check_branch
      %197 = sbr.rel (%p195) target = $region28
    $region27: #{inception_b_forward.13} parent=5 // pred_region
      // Predicated region
      $region29: #{inception_b_forward.13} parent=27 // pred_check
        %p198 = pneg %p42
      $region30: #{inception_b_forward.13} parent=27 // pred_check_branch
        %200 = sbr.rel (%p198) target = $region32
      $region31: #{inception_b_forward.13} parent=27 // pred_region
        %s201 = smul.u32 4, %s17
        %p202 = scmp.lt.s32.totalorder %s201, 7
        %s203 = scalar_select %p202, %s201, 7
        %s204 = smul.addr %s203, 2
        %s205 = smul.addr %s204, 4
        %s206 = scalar_lea.vmem %s0, %s205
        %s207 = smul.u32 4, %s17
      $region32: #{inception_b_forward.13} parent=27 // pred_fallthru
        _
    $region28: #{inception_b_forward.13} parent=5 // pred_fallthru
      _
    %p208 = scmp.le.s32.totalorder 1, %s10
    %p209 = scmp.lt.s32.totalorder %s10, 3
    %p210 = pnand %p208, %p209
    %p211 = pneg %p210
    // Predicated region
    $region33: #{inception_b_forward.13} parent=5 // pred_check
      _
    $region34: #{inception_b_forward.13} parent=5 // pred_check_branch
      %213 = sbr.rel (%p210) target = $region36
    $region35: #{inception_b_forward.13} parent=5 // pred_region
      %s214 = ssub.s32 %s10, 1
      %s215 = smul.u32 4, %s19
      %p216 = scmp.lt.s32.totalorder %s215, 7
      %s217 = scalar_select %p216, %s215, 7
      %s218 = smul.addr %s217, 2
      %s219 = smul.addr %s218, 4
      %s220 = scalar_lea.vmem %s0, %s219
      %p221 = pneg %p48
      %p222 = pneg %p45
      %s223 = smul.u32 2, %s20
      %p224 = scmp.lt.s32.totalorder %s223, 1
      %s225 = scalar_select %p224, %s223, 1
      %s226 = smul.addr %s225, 4
      %s227 = scalar_lea.vmem %s1, %s226
      %p228 = pneg %p74
      %p229 = pneg %p71
      %s230 = smul.u32 2, %s20
      %p231 = scmp.lt.s32.totalorder %s230, 1
      %s232 = scalar_select %p231, %s230, 1
      %s233 = scalar_lea.vmem %s2, %s232
      %p234 = pneg %p100
      %p235 = pneg %p97
      %s236 = smul.u32 2, %s20
      %p237 = scmp.lt.s32.totalorder %s236, 1
      %s238 = scalar_select %p237, %s236, 1
      %s239 = scalar_lea.vmem %s3, %s238
      %p240 = pneg %p126
      %p241 = pneg %p123
      %p242 = pneg %p154
      %p243 = pneg %p151
      %s244 = smul.u32 4, %s19
      %s245 = smul.u32 2, %s20
      %p246 = scmp.lt.s32.totalorder %s244, 7
      %s247 = scalar_select %p246, %s244, 7
      %p248 = scmp.lt.s32.totalorder %s245, 1
      %s249 = scalar_select %p248, %s245, 1
      %s250 = smul.addr %s247, 2
      %s251 = sadd.s32 %s249, %s250
      %s252 = smul.addr %s251, 8
      %s253 = scalar_lea.vmem %s4, %s252
      %s254 = smul.u32 4, %s19
      %p255 = scmp.lt.s32.totalorder %s254, 7
      %s256 = scalar_select %p255, %s254, 7
      %s257 = smul.addr %s256, 2
      %s258 = smul.addr %s257, 4
      %s259 = scalar_lea.vmem %s0, %s258
      %s260 = smul.u32 4, %s19
      %s261 = smul.u32 2, %s20
      %p262 = scmp.lt.s32.totalorder %s261, 1
      %s263 = scalar_select %p262, %s261, 1
      %s264 = smul.addr %s263, 4
      %s265 = scalar_lea.vmem %s1, %s264
      %s266 = smul.u32 2, %s20
      %s267 = smul.u32 2, %s20
      %p268 = scmp.lt.s32.totalorder %s267, 1
      %s269 = scalar_select %p268, %s267, 1
      %s270 = scalar_lea.vmem %s2, %s269
      %s271 = smul.u32 2, %s20
      %s272 = smul.u32 2, %s20
      %p273 = scmp.lt.s32.totalorder %s272, 1
      %s274 = scalar_select %p273, %s272, 1
      %s275 = scalar_lea.vmem %s3, %s274
      %s276 = smul.u32 2, %s20
      %s277 = smul.u32 4, %s19
      %s278 = smul.u32 2, %s20
      %p279 = scmp.lt.s32.totalorder %s277, 7
      %s280 = scalar_select %p279, %s277, 7
      %p281 = scmp.lt.s32.totalorder %s278, 1
      %s282 = scalar_select %p281, %s278, 1
      %s283 = smul.addr %s280, 2
      %s284 = sadd.s32 %s282, %s283
      %s285 = smul.addr %s284, 8
      %s286 = scalar_lea.vmem %s4, %s285
      %s287 = smul.u32 4, %s19
      %s288 = smul.u32 2, %s20
      %v290 = vld [vmem:[%s259] sm:$0xff]
      %v291 = vld [vmem:[%s259 + $0x8] sm:$0xff]
      %v292 = vld [vmem:[%s259 + $0x10] sm:$0xff]
      %v293 = vld [vmem:[%s259 + $0x18] sm:$0xff]
      %v294 = vld [vmem:[%s265] sm:$0xff]
      %v295 = vld [vmem:[%s265 + $0x8] sm:$0xff]
      %v296 = vld [vmem:[%s265 + $0x10] sm:$0xff]
      %v297 = vld [vmem:[%s265 + $0x18] sm:$0xff]
      %v298 = vld [vmem:[%s265 + $0x20] sm:$0xff]
      %v299 = vld [vmem:[%s265 + $0x28] sm:$0xff]
      %v300 = vld [vmem:[%s265 + $0x30] sm:$0xff]
      %v301 = vld [vmem:[%s265 + $0x38] sm:$0xff]
      %v302 = vld [vmem:[%s265 + $0x40] sm:$0xff]
      %v303 = vld [vmem:[%s265 + $0x48] sm:$0xff]
      %v304 = vld [vmem:[%s265 + $0x50] sm:$0xff]
      %v305 = vld [vmem:[%s265 + $0x58] sm:$0xff]
      %v306 = vld [vmem:[%s265 + $0x60] sm:$0xff]
      %v307 = vld [vmem:[%s265 + $0x68] sm:$0xff]
      %v308 = vld [vmem:[%s265 + $0x70] sm:$0xff]
      %v309 = vld [vmem:[%s265 + $0x78] sm:$0xff]
      %v310 = vld [vmem:[%s265 + $0x80] sm:$0xff]
      %v311 = vld [vmem:[%s265 + $0x88] sm:$0xff]
      %v312 = vld [vmem:[%s265 + $0x90] sm:$0xff]
      %v313 = vld [vmem:[%s265 + $0x98] sm:$0xff]
      %v314 = vld [vmem:[%s265 + $0xa0] sm:$0xff]
      %v315 = vld [vmem:[%s265 + $0xa8] sm:$0xff]
      %v316 = vld [vmem:[%s265 + $0xb0] sm:$0xff]
      %v317 = vld [vmem:[%s265 + $0xb8] sm:$0xff]
      %v322 = vunpack.c.l.b16 %v290
      %v323 = vunpack.c.h.b16 %v290
      %v324 = vunpack.c.l.b16 %v291
      %v325 = vunpack.c.h.b16 %v291
      %v326 = vunpack.c.l.b16 %v292
      %v327 = vunpack.c.h.b16 %v292
      %v328 = vunpack.c.l.b16 %v293
      %v329 = vunpack.c.h.b16 %v293
      %v330 = vpack.c.b16 %v324, %v322
      %v331 = vpack.c.b16 %v325, %v323
      %v332 = vpack.c.b16 %v328, %v326
      %v333 = vpack.c.b16 %v329, %v327
      %v360 = vunpack.c.l.b16 %v294
      %v361 = vunpack.c.h.b16 %v294
      %v362 = vunpack.c.l.b16 %v295
      %v363 = vunpack.c.h.b16 %v295
      %v364 = vunpack.c.l.b16 %v296
      %v365 = vunpack.c.h.b16 %v296
      %v366 = vunpack.c.l.b16 %v297
      %v367 = vunpack.c.h.b16 %v297
      %v368 = vunpack.c.l.b16 %v298
      %v369 = vunpack.c.h.b16 %v298
      %v370 = vunpack.c.l.b16 %v299
      %v371 = vunpack.c.h.b16 %v299
      %v372 = vunpack.c.l.b16 %v300
      %v373 = vunpack.c.h.b16 %v300
      %v374 = vunpack.c.l.b16 %v301
      %v375 = vunpack.c.h.b16 %v301
      %v376 = vunpack.c.l.b16 %v302
      %v377 = vunpack.c.h.b16 %v302
      %v378 = vunpack.c.l.b16 %v303
      %v379 = vunpack.c.h.b16 %v303
      %v380 = vunpack.c.l.b16 %v304
      %v381 = vunpack.c.h.b16 %v304
      %v382 = vunpack.c.l.b16 %v305
      %v383 = vunpack.c.h.b16 %v305
      %v384 = vunpack.c.l.b16 %v306
      %v385 = vunpack.c.h.b16 %v306
      %v386 = vunpack.c.l.b16 %v307
      %v387 = vunpack.c.h.b16 %v307
      %v388 = vunpack.c.l.b16 %v308
      %v389 = vunpack.c.h.b16 %v308
      %v390 = vunpack.c.l.b16 %v309
      %v391 = vunpack.c.h.b16 %v309
      %v392 = vunpack.c.l.b16 %v310
      %v393 = vunpack.c.h.b16 %v310
      %v394 = vunpack.c.l.b16 %v311
      %v395 = vunpack.c.h.b16 %v311
      %v396 = vunpack.c.l.b16 %v312
      %v397 = vunpack.c.h.b16 %v312
      %v398 = vunpack.c.l.b16 %v313
      %v399 = vunpack.c.h.b16 %v313
      %v400 = vunpack.c.l.b16 %v314
      %v401 = vunpack.c.h.b16 %v314
      %v402 = vunpack.c.l.b16 %v315
      %v403 = vunpack.c.h.b16 %v315
      %v404 = vunpack.c.l.b16 %v316
      %v405 = vunpack.c.h.b16 %v316
      %v406 = vunpack.c.l.b16 %v317
      %v407 = vunpack.c.h.b16 %v317
      %v408 = vpack.c.b16 %v362, %v360
      %v409 = vpack.c.b16 %v363, %v361
      %v410 = vpack.c.b16 %v366, %v364
      %v411 = vpack.c.b16 %v367, %v365
      %v412 = vpack.c.b16 %v370, %v368
      %v413 = vpack.c.b16 %v371, %v369
      %v414 = vpack.c.b16 %v374, %v372
      %v415 = vpack.c.b16 %v375, %v373
      %v416 = vpack.c.b16 %v378, %v376
      %v417 = vpack.c.b16 %v379, %v377
      %v418 = vpack.c.b16 %v382, %v380
      %v419 = vpack.c.b16 %v383, %v381
      %v420 = vpack.c.b16 %v386, %v384
      %v421 = vpack.c.b16 %v387, %v385
      %v422 = vpack.c.b16 %v390, %v388
      %v423 = vpack.c.b16 %v391, %v389
      %v424 = vpack.c.b16 %v394, %v392
      %v425 = vpack.c.b16 %v395, %v393
      %v426 = vpack.c.b16 %v398, %v396
      %v427 = vpack.c.b16 %v399, %v397
      %v428 = vpack.c.b16 %v402, %v400
      %v429 = vpack.c.b16 %v403, %v401
      %v430 = vpack.c.b16 %v406, %v404
      %v431 = vpack.c.b16 %v407, %v405
      %vm456 = vcmask 523264
      %v458 = vsel %vm456, %v331, 0
      %v461 = vsel %vm456, %v333, 0
      %463 = vmatprep.subr.bf16.mxu0 %v409
      %464 = vmatpush1.bf16.msra.mxu0 %v408
      %465 = vmatprep.subr.bf16.mxu0 %v411
      %466 = vmatpush1.bf16.msra.mxu0 %v410
      %467 = vmatprep.subr.bf16.mxu0 %v413
      %468 = vmatpush1.bf16.msra.mxu0 %v412
      %469 = vmatprep.subr.bf16.mxu0 %v415
      %470 = vmatpush1.bf16.msra.mxu0 %v414
      %471 = vmatprep.subr.bf16.mxu0 %v417
      %472 = vmatpush1.bf16.msra.mxu0 %v416
      %473 = vmatprep.subr.bf16.mxu0 %v419
      %474 = vmatpush1.bf16.msra.mxu0 %v418
      %475 = vmatprep.subr.bf16.mxu0 %v421
      %476 = vmatpush1.bf16.msra.mxu0 %v420
      %477 = vmatprep.subr.bf16.mxu0 %v423
      %478 = vmatpush1.bf16.msra.mxu0 %v422
      %479 = vmatprep.subr.bf16.mxu0 %v425
      %480 = vmatpush1.bf16.msra.mxu0 %v424
      %481 = vmatprep.subr.bf16.mxu0 %v427
      %482 = vmatpush1.bf16.msra.mxu0 %v426
      %483 = vmatprep.subr.bf16.mxu0 %v429
      %484 = vmatpush1.bf16.msra.mxu0 %v428
      %485 = vmatprep.subr.bf16.mxu0 %v431
      %486 = vmatpush1.bf16.msra.mxu0 %v430
      %487 = vmatprep.subr.bf16.mxu0 0
      %488 = vmatpush1.bf16.msra.mxu0 0
      %489 = vmatprep.subr.bf16.mxu0 0
      %490 = vmatpush1.bf16.msra.mxu0 0
      %491 = vmatprep.subr.bf16.mxu0 0
      %492 = vmatpush1.bf16.msra.mxu0 0
      %493 = vmatprep.subr.bf16.mxu0 0
      %494 = vmatpush1.bf16.msra.mxu0 0
      %495 = vmatprep.mubr.bf16.mxu0 %v458
      %496 = vmatmul.mubr.bf16.gmra.mrb[0].mxu0 %v330
      %v497 = vpop.f32.mrb[0].mxu0
      %v498 = vadd.f32 0.0, %v497
      %v499 = vpop.f32.mrb[0].mxu0
      %v500 = vadd.f32 0.0, %v499
      %v501 = vpop.f32.mrb[0].mxu0
      %v502 = vadd.f32 0.0, %v501
      %v503 = vpop.f32.mrb[0].mxu0
      %v504 = vadd.f32 0.0, %v503
      %505 = vmatprep.mubr.bf16.mxu0 %v461
      %506 = vmatmul.mubr.bf16.gmra.mrb[0].mxu0 %v332
      %v507 = vpop.f32.mrb[0].mxu0
      %v508 = vadd.f32 0.0, %v507
      %v509 = vpop.f32.mrb[0].mxu0
      %v510 = vadd.f32 0.0, %v509
      %v511 = vpop.f32.mrb[0].mxu0
      %v512 = vadd.f32 0.0, %v511
      %v513 = vpop.f32.mrb[0].mxu0
      %v514 = vadd.f32 0.0, %v513
      %515 = vdwg.mxu0
      %v516 = vld [vmem:[%s270] sm:$0x3]
      %v518 = vlaneseq
      %v519 = vshrl.u32 %v518, 7
      %v520 = vsub.s32 0, %v519
      %v521 = vrot.slane %v516, %v520
      %v522 = vlaneseq
      %v523 = vshrl.u32 %v522, 7
      %v524 = vsub.s32 1, %v523
      %v525 = vrot.slane %v516, %v524
      %v528 = vmul.f32 %v498, %v521
      %v529 = vmul.f32 %v500, %v525
      %v530 = vmul.f32 %v502, %v521
      %v531 = vmul.f32 %v504, %v525
      %v532 = vmul.f32 %v508, %v521
      %v533 = vmul.f32 %v510, %v525
      %v534 = vmul.f32 %v512, %v521
      %v535 = vmul.f32 %v514, %v525
      %v536 = vld [vmem:[%s275] sm:$0x3]
      %v538 = vlaneseq
      %v539 = vshrl.u32 %v538, 7
      %v540 = vsub.s32 0, %v539
      %v541 = vrot.slane %v536, %v540
      %v542 = vlaneseq
      %v543 = vshrl.u32 %v542, 7
      %v544 = vsub.s32 1, %v543
      %v545 = vrot.slane %v536, %v544
      %v548 = vadd.f32 %v528, %v541
      %v549 = vadd.f32 %v529, %v545
      %v550 = vadd.f32 %v530, %v541
      %v551 = vadd.f32 %v531, %v545
      %v552 = vadd.f32 %v532, %v541
      %v553 = vadd.f32 %v533, %v545
      %v554 = vadd.f32 %v534, %v541
      %v555 = vadd.f32 %v535, %v545
      %v556 = vmax.f32 %v548, 0.0
      %v557 = vmax.f32 %v549, 0.0
      %v558 = vmax.f32 %v550, 0.0
      %v559 = vmax.f32 %v551, 0.0
      %v560 = vmax.f32 %v552, 0.0
      %v561 = vmax.f32 %v553, 0.0
      %v562 = vmax.f32 %v554, 0.0
      %v563 = vmax.f32 %v555, 0.0
      %564 = vst [vmem:[%s286] sm:$0xff] %v556
      %565 = vst [vmem:[%s286 + $0x8] sm:$0xff] %v557
      %566 = vst [vmem:[%s286 + $0x10] sm:$0xff] %v558
      %567 = vst [vmem:[%s286 + $0x18] sm:$0xff] %v559
      %568 = vst [vmem:[%s286 + $0x20] sm:$0xff] %v560
      %569 = vst [vmem:[%s286 + $0x28] sm:$0xff] %v561
      %570 = vst [vmem:[%s286 + $0x30] sm:$0xff] %v562
      %571 = vst [vmem:[%s286 + $0x38] sm:$0xff] %v563
      %s572 = smul.u32 4, %s19
      %s573 = smul.u32 2, %s20
      %p574 = scmp.lt.s32.totalorder %s572, 7
      %s575 = scalar_select %p574, %s572, 7
      %p576 = scmp.lt.s32.totalorder %s573, 1
      %s577 = scalar_select %p576, %s573, 1
      %s578 = smul.addr %s575, 2
      %s579 = sadd.s32 %s577, %s578
      %s580 = smul.addr %s579, 8
      %s581 = scalar_lea.vmem %s4, %s580
      // Predicated region
      $region37: #{inception_b_forward.13} parent=35 // pred_check
        %p582 = pneg %p151
      $region38: #{inception_b_forward.13} parent=35 // pred_check_branch
        %584 = sbr.rel (%p582) target = $region40
      $region39: #{inception_b_forward.13} parent=35 // pred_region
        %s585 = smul.u32 4, %s19
        %s586 = smul.u32 2, %s20
      $region40: #{inception_b_forward.13} parent=35 // pred_fallthru
        _
    $region36: #{inception_b_forward.13} parent=5 // pred_fallthru
      _
    %p587 = scmp.le.s32.totalorder 2, %s10
    // Predicated region
    $region41: #{inception_b_forward.13} parent=5 // pred_check
      %p588 = pneg %p587
    $region42: #{inception_b_forward.13} parent=5 // pred_check_branch
      %590 = sbr.rel (%p588) target = $region44
    $region43: #{inception_b_forward.13} parent=5 // pred_region
      %s591 = ssub.s32 %s10, 2
      // Predicated region
      $region45: #{inception_b_forward.13} parent=43 // pred_check
        %p592 = pneg %p157
      $region46: #{inception_b_forward.13} parent=43 // pred_check_branch
        %594 = sbr.rel (%p592) target = $region48
      $region47: #{inception_b_forward.13} parent=43 // pred_region
        %s595 = smul.u32 4, %s21
        %s596 = smul.u32 2, %s22
        %p597 = scmp.lt.s32.totalorder %s595, 7
        %s598 = scalar_select %p597, %s595, 7
        %p599 = scmp.lt.s32.totalorder %s596, 1
        %s600 = scalar_select %p599, %s596, 1
        %s601 = smul.addr %s598, 2
        %s602 = sadd.s32 %s600, %s601
        %s603 = smul.addr %s602, 8
        %s604 = scalar_lea.vmem %s4, %s603
      $region48: #{inception_b_forward.13} parent=43 // pred_fallthru
        _
    $region44: #{inception_b_forward.13} parent=5 // pred_fallthru
      _
  $region6: #{inception_b_forward.13} parent=0 // loop_footer
    %s14 = sadd.s32 1, %s10
  $region7: #{inception_b_forward.13} parent=0 // loop_footer_branch
    %9 = sbr.rel target = $region3
  $region8: #{inception_b_forward.13} parent=0 // loop_exit
    _

// kernel: reverse.4
$region0: #{reverse.4}
  #allocation0 [shape = 's32[1]{0}', space=sflag, size = 0x4, scoped, tag = 'scoped memory for reverse.4']
  %s0 = inlined_call_operand.vmem [shape: f32[2,96,7,3], index: 0, kind: input, shape index: {}]
  %s1 = inlined_call_operand.vmem [shape: f32[2,96,7,3], index: 1, kind: output, shape index: {}]
  %s2 = scalar_lea.vmem %s0, 16
  %v3 = vld [vmem:[%s2] sm:$0x7f]
  %4 = vst [vmem:[%s1] sm:$0xff] %v3
  %s5 = scalar_lea.vmem %s0, 40
  %v6 = vld [vmem:[%s5] sm:$0x7f]
  %s7 = scalar_lea.vmem %s1, 24
  %8 = vst [vmem:[%s7] sm:$0xff] %v6
  %s9 = scalar_lea.vmem %s0, 8
  %v10 = vld [vmem:[%s9] sm:$0x7f]
  %s11 = scalar_lea.vmem %s1, 8
  %12 = vst [vmem:[%s11] sm:$0xff] %v10
  %s13 = scalar_lea.vmem %s0, 32
  %v14 = vld [vmem:[%s13] sm:$0x7f]
  %s15 = scalar_lea.vmem %s1, 32
  %16 = vst [vmem:[%s15] sm:$0xff] %v14
  %v17 = vld [vmem:[%s0] sm:$0x7f]
  %s18 = scalar_lea.vmem %s1, 16
  %19 = vst [vmem:[%s18] sm:$0xff] %v17
  %s20 = scalar_lea.vmem %s0, 24
  %v21 = vld [vmem:[%s20] sm:$0x7f]
  %s22 = scalar_lea.vmem %s1, 40
  %23 = vst [vmem:[%s22] sm:$0xff] %v21

// kernel: inception_b_forward.14
$region0: #{inception_b_forward.14}
  #allocation0 [shape = 'u32[]', space=smem, size = 0x4, offset = 0x4, fixed_abs, tag = 'smem constant byte address 0x4 - core index']
  #allocation1 [shape = 'u32[144,128]{1,0:T(1,128)}', space=vmem, size = 0x12000, scoped, tag = 'internal scratch']
  %s0 = inlined_call_operand.vmem [shape: bf16[128,176], index: 0, kind: input, shape index: {}]
  %s1 = inlined_call_operand.vmem [shape: bf16[176,384], index: 1, kind: input, shape index: {}]
  %s2 = inlined_call_operand.vmem [shape: f32[1,384], index: 2, kind: input, shape index: {}]
  %s3 = inlined_call_operand.vmem [shape: f32[1,384], index: 3, kind: input, shape index: {}]
  %s4 = inlined_call_operand.vmem [shape: f32[128,384], index: 4, kind: output, shape index: {}]
  %s5 = sld [smem:[#allocation0]]
  $region49: #{inception_b_forward.14} parent=0
    _
  %s7 = ssub.s32 1, %s5
  %s8 = scalar_select 0, %s7, %s5
  loop: start=0, step=1, limit=4
  $region2: #{inception_b_forward.14} parent=0 // loop_pre_header
    _
  $region3: #{inception_b_forward.14} parent=0 // loop_header
    %s10 = sphi 0, %s14
    %p11 = scmp.ge.s32.totalorder %s10, 4
    %s17 = sphi 0, %s29
    %s18 = sphi 0, %s25
    %s19 = sphi 0, %s17
    %s20 = sphi 0, %s18
    %s21 = sphi 0, %s19
    %s22 = sphi 0, %s20
    %s32 = sphi 0, %s34
    %s35 = sphi 0, %s32
    %s36 = sphi 0, %s35
    %s52 = sphi 0, %s36
    %s58 = sphi 0, %s60
    %s61 = sphi 0, %s58
    %s62 = sphi 0, %s61
    %s78 = sphi 0, %s62
    %s84 = sphi 0, %s86
    %s87 = sphi 0, %s84
    %s88 = sphi 0, %s87
    %s104 = sphi 0, %s88
    %s110 = sphi 0, %s112
    %s113 = sphi 0, %s110
    %s114 = sphi 0, %s113
    %s130 = sphi 0, %s114
    %s138 = sphi 0, %s140
    %s141 = sphi 0, %s138
    %s142 = sphi 0, %s141
    %s158 = sphi 0, %s142
  $region4: #{inception_b_forward.14} parent=0 // loop_header_branch
    %13 = sbr.rel (%p11) target = $region8
  $region5: #{inception_b_forward.14} parent=0 // loop_body
    %s15 = ssub.s32 %s10, 1
    %s16 = ssub.s32 %s10, 2
    %s23 = sadd.s32 1, %s18
    %p24 = scmp.ge.s32.totalorder %s23, 1
    %s25 = scalar_select %p24, 0, %s23
    %s26 = sadd.s32 1, %s17
    %s27 = scalar_select %p24, %s26, %s17
    %p28 = scmp.ge.s32.totalorder %s27, 2
    %s29 = scalar_select %p28, 0, %s27
    %s30 = ssub.s32 %s17, %s29
    %p31 = scmp.eq.s32.totalorder %s30, 0
    %s33 = sadd.s32 %s32, 1
    %s34 = scalar_select %p31, %s32, %s33
    %p37 = pneg %p31
    %p38 = scmp.eq.s32.totalorder %s10, 1
    %p39 = por %p37, %p38
    %p40 = scmp.ne.s32.totalorder %s32, %s35
    %p41 = scmp.eq.s32.totalorder %s10, 0
    %p42 = por %p40, %p41
    %p43 = scmp.ne.s32.totalorder %s32, %s35
    %p44 = scmp.eq.s32.totalorder %s15, 1
    %p45 = por %p43, %p44
    %p46 = scmp.ne.s32.totalorder %s35, %s36
    %p47 = scmp.eq.s32.totalorder %s15, 0
    %p48 = por %p46, %p47
    %p49 = scmp.ne.s32.totalorder %s35, %s36
    %p50 = scmp.eq.s32.totalorder %s16, 1
    %p51 = por %p49, %p50
    %p53 = scmp.ne.s32.totalorder %s36, %s52
    %p54 = scmp.eq.s32.totalorder %s16, 0
    %p55 = por %p53, %p54
    %s56 = ssub.s32 %s18, %s25
    %p57 = scmp.eq.s32.totalorder %s56, 0
    %s59 = sadd.s32 %s58, 1
    %s60 = scalar_select %p57, %s58, %s59
    %p63 = pneg %p57
    %p64 = scmp.eq.s32.totalorder %s10, 1
    %p65 = por %p63, %p64
    %p66 = scmp.ne.s32.totalorder %s58, %s61
    %p67 = scmp.eq.s32.totalorder %s10, 0
    %p68 = por %p66, %p67
    %p69 = scmp.ne.s32.totalorder %s58, %s61
    %p70 = scmp.eq.s32.totalorder %s15, 1
    %p71 = por %p69, %p70
    %p72 = scmp.ne.s32.totalorder %s61, %s62
    %p73 = scmp.eq.s32.totalorder %s15, 0
    %p74 = por %p72, %p73
    %p75 = scmp.ne.s32.totalorder %s61, %s62
    %p76 = scmp.eq.s32.totalorder %s16, 1
    %p77 = por %p75, %p76
    %p79 = scmp.ne.s32.totalorder %s62, %s78
    %p80 = scmp.eq.s32.totalorder %s16, 0
    %p81 = por %p79, %p80
    %s82 = ssub.s32 %s18, %s25
    %p83 = scmp.eq.s32.totalorder %s82, 0
    %s85 = sadd.s32 %s84, 1
    %s86 = scalar_select %p83, %s84, %s85
    %p89 = pneg %p83
    %p90 = scmp.eq.s32.totalorder %s10, 1
    %p91 = por %p89, %p90
    %p92 = scmp.ne.s32.totalorder %s84, %s87
    %p93 = scmp.eq.s32.totalorder %s10, 0
    %p94 = por %p92, %p93
    %p95 = scmp.ne.s32.totalorder %s84, %s87
    %p96 = scmp.eq.s32.totalorder %s15, 1
    %p97 = por %p95, %p96
    %p98 = scmp.ne.s32.totalorder %s87, %s88
    %p99 = scmp.eq.s32.totalorder %s15, 0
    %p100 = por %p98, %p99
    %p101 = scmp.ne.s32.totalorder %s87, %s88
    %p102 = scmp.eq.s32.totalorder %s16, 1
    %p103 = por %p101, %p102
    %p105 = scmp.ne.s32.totalorder %s88, %s104
    %p106 = scmp.eq.s32.totalorder %s16, 0
    %p107 = por %p105, %p106
    %s108 = ssub.s32 %s18, %s25
    %p109 = scmp.eq.s32.totalorder %s108, 0
    %s111 = sadd.s32 %s110, 1
    %s112 = scalar_select %p109, %s110, %s111
    %p115 = pneg %p109
    %p116 = scmp.eq.s32.totalorder %s10, 1
    %p117 = por %p115, %p116
    %p118 = scmp.ne.s32.totalorder %s110, %s113
    %p119 = scmp.eq.s32.totalorder %s10, 0
    %p120 = por %p118, %p119
    %p121 = scmp.ne.s32.totalorder %s110, %s113
    %p122 = scmp.eq.s32.totalorder %s15, 1
    %p123 = por %p121, %p122
    %p124 = scmp.ne.s32.totalorder %s113, %s114
    %p125 = scmp.eq.s32.totalorder %s15, 0
    %p126 = por %p124, %p125
    %p127 = scmp.ne.s32.totalorder %s113, %s114
    %p128 = scmp.eq.s32.totalorder %s16, 1
    %p129 = por %p127, %p128
    %p131 = scmp.ne.s32.totalorder %s114, %s130
    %p132 = scmp.eq.s32.totalorder %s16, 0
    %p133 = por %p131, %p132
    %s134 = ssub.s32 %s17, %s29
    %s135 = ssub.s32 %s18, %s25
    %s136 = sor.u32 %s134, %s135
    %p137 = scmp.eq.s32.totalorder %s136, 0
    %s139 = sadd.s32 %s138, 1
    %s140 = scalar_select %p137, %s138, %s139
    %p143 = pneg %p137
    %p144 = scmp.eq.s32.totalorder %s10, 1
    %p145 = por %p143, %p144
    %p146 = scmp.ne.s32.totalorder %s138, %s141
    %p147 = scmp.eq.s32.totalorder %s10, 0
    %p148 = por %p146, %p147
    %p149 = scmp.ne.s32.totalorder %s138, %s141
    %p150 = scmp.eq.s32.totalorder %s15, 1
    %p151 = por %p149, %p150
    %p152 = scmp.ne.s32.totalorder %s141, %s142
    %p153 = scmp.eq.s32.totalorder %s15, 0
    %p154 = por %p152, %p153
    %p155 = scmp.ne.s32.totalorder %s141, %s142
    %p156 = scmp.eq.s32.totalorder %s16, 1
    %p157 = por %p155, %p156
    %p159 = scmp.ne.s32.totalorder %s142, %s158
    %p160 = scmp.eq.s32.totalorder %s16, 0
    %p161 = por %p159, %p160
    %p162 = scmp.le.s32.totalorder 1, %s10
    %p163 = scmp.lt.s32.totalorder %s10, 3
    %p164 = pnand %p162, %p163
    %p165 = pneg %p164
    // Predicated region
    $region9: #{inception_b_forward.14} parent=5 // pred_check
      _
    $region10: #{inception_b_forward.14} parent=5 // pred_check_branch
      %167 = sbr.rel (%p164) target = $region12
    $region11: #{inception_b_forward.14} parent=5 // pred_region
      %s168 = ssub.s32 %s10, 1
      // Predicated region
      $region13: #{inception_b_forward.14} parent=11 // pred_check
        %p169 = pneg %p74
      $region14: #{inception_b_forward.14} parent=11 // pred_check_branch
        %171 = sbr.rel (%p169) target = $region16
      $region15: #{inception_b_forward.14} parent=11 // pred_region
        %s172 = smul.u32 3, %s20
        %p173 = scmp.lt.s32.totalorder %s172, 2
        %s174 = scalar_select %p173, %s172, 2
        %s175 = smul.addr %s174, 4
        %s176 = scalar_lea.vmem %s1, %s175
        %s177 = smul.u32 3, %s20
      $region16: #{inception_b_forward.14} parent=11 // pred_fallthru
        _
      // Predicated region
      $region17: #{inception_b_forward.14} parent=11 // pred_check
        %p178 = pneg %p100
      $region18: #{inception_b_forward.14} parent=11 // pred_check_branch
        %180 = sbr.rel (%p178) target = $region20
      $region19: #{inception_b_forward.14} parent=11 // pred_region
        %s181 = smul.u32 3, %s20
        %p182 = scmp.lt.s32.totalorder %s181, 2
        %s183 = scalar_select %p182, %s181, 2
        %s184 = scalar_lea.vmem %s2, %s183
        %s185 = smul.u32 3, %s20
      $region20: #{inception_b_forward.14} parent=11 // pred_fallthru
        _
      // Predicated region
      $region21: #{inception_b_forward.14} parent=11 // pred_check
        %p186 = pneg %p126
      $region22: #{inception_b_forward.14} parent=11 // pred_check_branch
        %188 = sbr.rel (%p186) target = $region24
      $region23: #{inception_b_forward.14} parent=11 // pred_region
        %s189 = smul.u32 3, %s20
        %p190 = scmp.lt.s32.totalorder %s189, 2
        %s191 = scalar_select %p190, %s189, 2
        %s192 = scalar_lea.vmem %s3, %s191
        %s193 = smul.u32 3, %s20
      $region24: #{inception_b_forward.14} parent=11 // pred_fallthru
        _
    $region12: #{inception_b_forward.14} parent=5 // pred_fallthru
      _
    %p194 = scmp.lt.s32.totalorder %s10, 2
    // Predicated region
    $region25: #{inception_b_forward.14} parent=5 // pred_check
      %p195 = pneg %p194
    $region26: #{inception_b_forward.14} parent=5 // pred_check_branch
      %197 = sbr.rel (%p195) target = $region28
    $region27: #{inception_b_forward.14} parent=5 // pred_region
      // Predicated region
      $region29: #{inception_b_forward.14} parent=27 // pred_check
        %p198 = pneg %p42
      $region30: #{inception_b_forward.14} parent=27 // pred_check_branch
        %200 = sbr.rel (%p198) target = $region32
      $region31: #{inception_b_forward.14} parent=27 // pred_region
        %s201 = smul.u32 8, %s17
        %p202 = scmp.lt.s32.totalorder %s201, 15
        %s203 = scalar_select %p202, %s201, 15
        %s204 = smul.addr %s203, 2
        %s205 = smul.addr %s204, 4
        %s206 = scalar_lea.vmem %s0, %s205
        %s207 = smul.u32 8, %s17
      $region32: #{inception_b_forward.14} parent=27 // pred_fallthru
        _
    $region28: #{inception_b_forward.14} parent=5 // pred_fallthru
      _
    %p208 = scmp.le.s32.totalorder 1, %s10
    %p209 = scmp.lt.s32.totalorder %s10, 3
    %p210 = pnand %p208, %p209
    %p211 = pneg %p210
    // Predicated region
    $region33: #{inception_b_forward.14} parent=5 // pred_check
      _
    $region34: #{inception_b_forward.14} parent=5 // pred_check_branch
      %213 = sbr.rel (%p210) target = $region36
    $region35: #{inception_b_forward.14} parent=5 // pred_region
      %s214 = ssub.s32 %s10, 1
      %s215 = smul.u32 8, %s19
      %p216 = scmp.lt.s32.totalorder %s215, 15
      %s217 = scalar_select %p216, %s215, 15
      %s218 = smul.addr %s217, 2
      %s219 = smul.addr %s218, 4
      %s220 = scalar_lea.vmem %s0, %s219
      %p221 = pneg %p48
      %p222 = pneg %p45
      %s223 = smul.u32 3, %s20
      %p224 = scmp.lt.s32.totalorder %s223, 2
      %s225 = scalar_select %p224, %s223, 2
      %s226 = smul.addr %s225, 4
      %s227 = scalar_lea.vmem %s1, %s226
      %p228 = pneg %p74
      %p229 = pneg %p71
      %s230 = smul.u32 3, %s20
      %p231 = scmp.lt.s32.totalorder %s230, 2
      %s232 = scalar_select %p231, %s230, 2
      %s233 = scalar_lea.vmem %s2, %s232
      %p234 = pneg %p100
      %p235 = pneg %p97
      %s236 = smul.u32 3, %s20
      %p237 = scmp.lt.s32.totalorder %s236, 2
      %s238 = scalar_select %p237, %s236, 2
      %s239 = scalar_lea.vmem %s3, %s238
      %p240 = pneg %p126
      %p241 = pneg %p123
      %p242 = pneg %p154
      %p243 = pneg %p151
      %s244 = smul.u32 8, %s19
      %s245 = smul.u32 3, %s20
      %p246 = scmp.lt.s32.totalorder %s244, 15
      %s247 = scalar_select %p246, %s244, 15
      %p248 = scmp.lt.s32.totalorder %s245, 2
      %s249 = scalar_select %p248, %s245, 2
      %s250 = smul.addr %s247, 3
      %s251 = sadd.s32 %s249, %s250
      %s252 = smul.addr %s251, 8
      %s253 = scalar_lea.vmem %s4, %s252
      %s254 = smul.u32 8, %s19
      %p255 = scmp.lt.s32.totalorder %s254, 15
      %s256 = scalar_select %p255, %s254, 15
      %s257 = smul.addr %s256, 2
      %s258 = smul.addr %s257, 4
      %s259 = scalar_lea.vmem %s0, %s258
      %s260 = smul.u32 8, %s19
      %s261 = smul.u32 3, %s20
      %p262 = scmp.lt.s32.totalorder %s261, 2
      %s263 = scalar_select %p262, %s261, 2
      %s264 = smul.addr %s263, 4
      %s265 = scalar_lea.vmem %s1, %s264
      %s266 = smul.u32 3, %s20
      %s267 = smul.u32 3, %s20
      %p268 = scmp.lt.s32.totalorder %s267, 2
      %s269 = scalar_select %p268, %s267, 2
      %s270 = scalar_lea.vmem %s2, %s269
      %s271 = smul.u32 3, %s20
      %s272 = smul.u32 3, %s20
      %p273 = scmp.lt.s32.totalorder %s272, 2
      %s274 = scalar_select %p273, %s272, 2
      %s275 = scalar_lea.vmem %s3, %s274
      %s276 = smul.u32 3, %s20
      %s277 = smul.u32 8, %s19
      %s278 = smul.u32 3, %s20
      %p279 = scmp.lt.s32.totalorder %s277, 15
      %s280 = scalar_select %p279, %s277, 15
      %p281 = scmp.lt.s32.totalorder %s278, 2
      %s282 = scalar_select %p281, %s278, 2
      %s283 = smul.addr %s280, 3
      %s284 = sadd.s32 %s282, %s283
      %s285 = smul.addr %s284, 8
      %s286 = scalar_lea.vmem %s4, %s285
      %s287 = smul.u32 8, %s19
      %s288 = smul.u32 3, %s20
      %v290 = vld [vmem:[%s259] sm:$0xff]
      %v291 = vld [vmem:[%s259 + $0x8] sm:$0xff]
      %v292 = vld [vmem:[%s259 + $0x10] sm:$0xff]
      %v293 = vld [vmem:[%s259 + $0x18] sm:$0xff]
      %v294 = vld [vmem:[%s259 + $0x20] sm:$0xff]
      %v295 = vld [vmem:[%s259 + $0x28] sm:$0xff]
      %v296 = vld [vmem:[%s259 + $0x30] sm:$0xff]
      %v297 = vld [vmem:[%s259 + $0x38] sm:$0xff]
      %v298 = vld [vmem:[%s265] sm:$0xff]
      %v299 = vld [vmem:[%s265 + $0x8] sm:$0xf]
      %v300 = vld [vmem:[%s265 + $0xc] sm:$0xff]
      %v301 = vld [vmem:[%s265 + $0x14] sm:$0xf]
      %v302 = vld [vmem:[%s265 + $0x18] sm:$0xff]
      %v303 = vld [vmem:[%s265 + $0x20] sm:$0xf]
      %v304 = vld [vmem:[%s265 + $0x24] sm:$0xff]
      %v305 = vld [vmem:[%s265 + $0x2c] sm:$0xf]
      %v306 = vld [vmem:[%s265 + $0x30] sm:$0xff]
      %v307 = vld [vmem:[%s265 + $0x38] sm:$0xf]
      %v308 = vld [vmem:[%s265 + $0x3c] sm:$0xff]
      %v309 = vld [vmem:[%s265 + $0x44] sm:$0xf]
      %v310 = vld [vmem:[%s265 + $0x48] sm:$0xff]
      %v311 = vld [vmem:[%s265 + $0x50] sm:$0xf]
      %v312 = vld [vmem:[%s265 + $0x54] sm:$0xff]
      %v313 = vld [vmem:[%s265 + $0x5c] sm:$0xf]
      %v314 = vld [vmem:[%s265 + $0x60] sm:$0xff]
      %v315 = vld [vmem:[%s265 + $0x68] sm:$0xf]
      %v316 = vld [vmem:[%s265 + $0x6c] sm:$0xff]
      %v317 = vld [vmem:[%s265 + $0x74] sm:$0xf]
      %v318 = vld [vmem:[%s265 + $0x78] sm:$0xff]
      %v319 = vld [vmem:[%s265 + $0x80] sm:$0xf]
      %v320 = vld [vmem:[%s265 + $0x84] sm:$0xff]
      %v321 = vld [vmem:[%s265 + $0x8c] sm:$0xf]
      %v322 = vld [vmem:[%s265 + $0x90] sm:$0xff]
      %v323 = vld [vmem:[%s265 + $0x98] sm:$0xf]
      %v324 = vld [vmem:[%s265 + $0x9c] sm:$0xff]
      %v325 = vld [vmem:[%s265 + $0xa4] sm:$0xf]
      %v326 = vld [vmem:[%s265 + $0xa8] sm:$0xff]
      %v327 = vld [vmem:[%s265 + $0xb0] sm:$0xf]
      %v328 = vld [vmem:[%s265 + $0xb4] sm:$0xff]
      %v329 = vld [vmem:[%s265 + $0xbc] sm:$0xf]
      %v330 = vld [vmem:[%s265 + $0xc0] sm:$0xff]
      %v331 = vld [vmem:[%s265 + $0xc8] sm:$0xf]
      %v332 = vld [vmem:[%s265 + $0xcc] sm:$0xff]
      %v333 = vld [vmem:[%s265 + $0xd4] sm:$0xf]
      %v334 = vld [vmem:[%s265 + $0xd8] sm:$0xff]
      %v335 = vld [vmem:[%s265 + $0xe0] sm:$0xf]
      %v336 = vld [vmem:[%s265 + $0xe4] sm:$0xff]
      %v337 = vld [vmem:[%s265 + $0xec] sm:$0xf]
      %v338 = vld [vmem:[%s265 + $0xf0] sm:$0xff]
      %v339 = vld [vmem:[%s265 + $0xf8] sm:$0xf]
      %v340 = vld [vmem:[%s265 + $0xfc] sm:$0xff]
      %v341 = vld [vmem:[%s265 + $0x104] sm:$0xf]
      %v350 = vunpack.c.l.b16 %v290
      %v351 = vunpack.c.h.b16 %v290
      %v352 = vunpack.c.l.b16 %v291
      %v353 = vunpack.c.h.b16 %v291
      %v354 = vunpack.c.l.b16 %v292
      %v355 = vunpack.c.h.b16 %v292
      %v356 = vunpack.c.l.b16 %v293
      %v357 = vunpack.c.h.b16 %v293
      %v358 = vunpack.c.l.b16 %v294
      %v359 = vunpack.c.h.b16 %v294
      %v360 = vunpack.c.l.b16 %v295
      %v361 = vunpack.c.h.b16 %v295
      %v362 = vunpack.c.l.b16 %v296
      %v363 = vunpack.c.h.b16 %v296
      %v364 = vunpack.c.l.b16 %v297
      %v365 = vunpack.c.h.b16 %v297
      %v366 = vpack.c.b16 %v352, %v350
      %v367 = vpack.c.b16 %v353, %v351
      %v368 = vpack.c.b16 %v356, %v354
      %v369 = vpack.c.b16 %v357, %v355
      %v370 = vpack.c.b16 %v360, %v358
      %v371 = vpack.c.b16 %v361, %v359
      %v372 = vpack.c.b16 %v364, %v362
      %v373 = vpack.c.b16 %v365, %v363
      %v422 = vunpack.c.l.b16 %v298
      %v423 = vunpack.c.h.b16 %v298
      %v424 = vunpack.c.l.b16 %v299
      %v425 = vunpack.c.l.b16 %v300
      %v426 = vunpack.c.h.b16 %v300
      %v427 = vunpack.c.l.b16 %v301
      %v428 = vunpack.c.l.b16 %v302
      %v429 = vunpack.c.h.b16 %v302
      %v430 = vunpack.c.l.b16 %v303
      %v431 = vunpack.c.l.b16 %v304
      %v432 = vunpack.c.h.b16 %v304
      %v433 = vunpack.c.l.b16 %v305
      %v434 = vunpack.c.l.b16 %v306
      %v435 = vunpack.c.h.b16 %v306
      %v436 = vunpack.c.l.b16 %v307
      %v437 = vunpack.c.l.b16 %v308
      %v438 = vunpack.c.h.b16 %v308
      %v439 = vunpack.c.l.b16 %v309
      %v440 = vunpack.c.l.b16 %v310
      %v441 = vunpack.c.h.b16 %v310
      %v442 = vunpack.c.l.b16 %v311
      %v443 = vunpack.c.l.b16 %v312
      %v444 = vunpack.c.h.b16 %v312
      %v445 = vunpack.c.l.b16 %v313
      %v446 = vunpack.c.l.b16 %v314
      %v447 = vunpack.c.h.b16 %v314
      %v448 = vunpack.c.l.b16 %v315
      %v449 = vunpack.c.l.b16 %v316
      %v450 = vunpack.c.h.b16 %v316
      %v451 = vunpack.c.l.b16 %v317
      %v452 = vunpack.c.l.b16 %v318
      %v453 = vunpack.c.h.b16 %v318
      %v454 = vunpack.c.l.b16 %v319
      %v455 = vunpack.c.l.b16 %v320
      %v456 = vunpack.c.h.b16 %v320
      %v457 = vunpack.c.l.b16 %v321
      %v458 = vunpack.c.l.b16 %v322
      %v459 = vunpack.c.h.b16 %v322
      %v460 = vunpack.c.l.b16 %v323
      %v461 = vunpack.c.l.b16 %v324
      %v462 = vunpack.c.h.b16 %v324
      %v463 = vunpack.c.l.b16 %v325
      %v464 = vunpack.c.l.b16 %v326
      %v465 = vunpack.c.h.b16 %v326
      %v466 = vunpack.c.l.b16 %v327
      %v467 = vunpack.c.l.b16 %v328
      %v468 = vunpack.c.h.b16 %v328
      %v469 = vunpack.c.l.b16 %v329
      %v470 = vunpack.c.l.b16 %v330
      %v471 = vunpack.c.h.b16 %v330
      %v472 = vunpack.c.l.b16 %v331
      %v473 = vunpack.c.l.b16 %v332
      %v474 = vunpack.c.h.b16 %v332
      %v475 = vunpack.c.l.b16 %v333
      %v476 = vunpack.c.l.b16 %v334
      %v477 = vunpack.c.h.b16 %v334
      %v478 = vunpack.c.l.b16 %v335
      %v479 = vunpack.c.l.b16 %v336
      %v480 = vunpack.c.h.b16 %v336
      %v481 = vunpack.c.l.b16 %v337
      %v482 = vunpack.c.l.b16 %v338
      %v483 = vunpack.c.h.b16 %v338
      %v484 = vunpack.c.l.b16 %v339
      %v485 = vunpack.c.l.b16 %v340
      %v486 = vunpack.c.h.b16 %v340
      %v487 = vunpack.c.l.b16 %v341
      %v488 = vpack.c.b16 %v425, %v422
      %v489 = vpack.c.b16 %v426, %v423
      %v490 = vpack.c.b16 %v427, %v424
      %v491 = vpack.c.b16 %v431, %v428
      %v492 = vpack.c.b16 %v432, %v429
      %v493 = vpack.c.b16 %v433, %v430
      %v494 = vpack.c.b16 %v437, %v434
      %v495 = vpack.c.b16 %v438, %v435
      %v496 = vpack.c.b16 %v439, %v436
      %v497 = vpack.c.b16 %v443, %v440
      %v498 = vpack.c.b16 %v444, %v441
      %v499 = vpack.c.b16 %v445, %v442
      %v500 = vpack.c.b16 %v449, %v446
      %v501 = vpack.c.b16 %v450, %v447
      %v502 = vpack.c.b16 %v451, %v448
      %v503 = vpack.c.b16 %v455, %v452
      %v504 = vpack.c.b16 %v456, %v453
      %v505 = vpack.c.b16 %v457, %v454
      %v506 = vpack.c.b16 %v461, %v458
      %v507 = vpack.c.b16 %v462, %v459
      %v508 = vpack.c.b16 %v463, %v460
      %v509 = vpack.c.b16 %v467, %v464
      %v510 = vpack.c.b16 %v468, %v465
      %v511 = vpack.c.b16 %v469, %v466
      %v512 = vpack.c.b16 %v473, %v470
      %v513 = vpack.c.b16 %v474, %v471
      %v514 = vpack.c.b16 %v475, %v472
      %v515 = vpack.c.b16 %v479, %v476
      %v516 = vpack.c.b16 %v480, %v477
      %v517 = vpack.c.b16 %v481, %v478
      %v518 = vpack.c.b16 %v485, %v482
      %v519 = vpack.c.b16 %v486, %v483
      %v520 = vpack.c.b16 %v487, %v484
      %vm554 = vcmask 392192
      %v556 = vsel %vm554, %v367, 0
      %v559 = vsel %vm554, %v369, 0
      %v562 = vsel %vm554, %v371, 0
      %v565 = vsel %vm554, %v373, 0
      %567 = vmatprep.subr.bf16.mxu0 %v489
      %568 = vmatpush1.bf16.msra.mxu0 %v488
      %569 = vmatprep.subr.bf16.mxu0 %v492
      %570 = vmatpush1.bf16.msra.mxu0 %v491
      %571 = vmatprep.subr.bf16.mxu0 %v495
      %572 = vmatpush1.bf16.msra.mxu0 %v494
      %573 = vmatprep.subr.bf16.mxu0 %v498
      %574 = vmatpush1.bf16.msra.mxu0 %v497
      %575 = vmatprep.subr.bf16.mxu0 %v501
      %576 = vmatpush1.bf16.msra.mxu0 %v500
      %577 = vmatprep.subr.bf16.mxu0 %v504
      %578 = vmatpush1.bf16.msra.mxu0 %v503
      %579 = vmatprep.subr.bf16.mxu0 %v507
      %580 = vmatpush1.bf16.msra.mxu0 %v506
      %581 = vmatprep.subr.bf16.mxu0 %v510
      %582 = vmatpush1.bf16.msra.mxu0 %v509
      %583 = vmatprep.subr.bf16.mxu0 %v513
      %584 = vmatpush1.bf16.msra.mxu0 %v512
      %585 = vmatprep.subr.bf16.mxu0 %v516
      %586 = vmatpush1.bf16.msra.mxu0 %v515
      %587 = vmatprep.subr.bf16.mxu0 %v519
      %588 = vmatpush1.bf16.msra.mxu0 %v518
      %589 = vmatprep.subr.bf16.mxu0 0
      %590 = vmatpush1.bf16.msra.mxu0 0
      %591 = vmatprep.subr.bf16.mxu0 0
      %592 = vmatpush1.bf16.msra.mxu0 0
      %593 = vmatprep.subr.bf16.mxu0 0
      %594 = vmatpush1.bf16.msra.mxu0 0
      %595 = vmatprep.subr.bf16.mxu0 0
      %596 = vmatpush1.bf16.msra.mxu0 0
      %597 = vmatprep.subr.bf16.mxu0 0
      %598 = vmatpush1.bf16.msra.mxu0 0
      %599 = vmatprep.mubr.bf16.mxu0 %v556
      %600 = vmatmul.mubr.bf16.gmra.mrb[0].mxu0 %v366
      %v601 = vpop.f32.mrb[0].mxu0
      %v602 = vadd.f32 0.0, %v601
      %v603 = vpop.f32.mrb[0].mxu0
      %v604 = vadd.f32 0.0, %v603
      %v605 = vpop.f32.mrb[0].mxu0
      %v606 = vadd.f32 0.0, %v605
      %v607 = vpop.f32.mrb[0].mxu0
      %v608 = vadd.f32 0.0, %v607
      %609 = vmatprep.mubr.bf16.mxu0 %v559
      %610 = vmatmul.mubr.bf16.gmra.mrb[0].mxu0 %v368
      %v611 = vpop.f32.mrb[0].mxu0
      %v612 = vadd.f32 0.0, %v611
      %v613 = vpop.f32.mrb[0].mxu0
      %v614 = vadd.f32 0.0, %v613
      %v615 = vpop.f32.mrb[0].mxu0
      %v616 = vadd.f32 0.0, %v615
      %v617 = vpop.f32.mrb[0].mxu0
      %v618 = vadd.f32 0.0, %v617
      %619 = vmatprep.mubr.bf16.mxu0 %v562
      %620 = vmatmul.mubr.bf16.gmra.mrb[0].mxu0 %v370
      %v621 = vpop.f32.mrb[0].mxu0
      %v622 = vadd.f32 0.0, %v621
      %v623 = vpop.f32.mrb[0].mxu0
      %v624 = vadd.f32 0.0, %v623
      %v625 = vpop.f32.mrb[0].mxu0
      %v626 = vadd.f32 0.0, %v625
      %v627 = vpop.f32.mrb[0].mxu0
      %v628 = vadd.f32 0.0, %v627
      %629 = vmatprep.mubr.bf16.mxu0 %v565
      %630 = vmatmul.mubr.bf16.gmra.mrb[0].mxu0 %v372
      %v631 = vpop.f32.mrb[0].mxu0
      %v632 = vadd.f32 0.0, %v631
      %v633 = vpop.f32.mrb[0].mxu0
      %v634 = vadd.f32 0.0, %v633
      %v635 = vpop.f32.mrb[0].mxu0
      %v636 = vadd.f32 0.0, %v635
      %v637 = vpop.f32.mrb[0].mxu0
      %v638 = vadd.f32 0.0, %v637
      %639 = vdwg.mxu0
      %640 = vmatprep.subr.bf16.mxu0 0
      %641 = vmatpush1.bf16.msra.mxu0 %v490
      %642 = vmatprep.subr.bf16.mxu0 0
      %643 = vmatpush1.bf16.msra.mxu0 %v493
      %644 = vmatprep.subr.bf16.mxu0 0
      %645 = vmatpush1.bf16.msra.mxu0 %v496
      %646 = vmatprep.subr.bf16.mxu0 0
      %647 = vmatpush1.bf16.msra.mxu0 %v499
      %648 = vmatprep.subr.bf16.mxu0 0
      %649 = vmatpush1.bf16.msra.mxu0 %v502
      %650 = vmatprep.subr.bf16.mxu0 0
      %651 = vmatpush1.bf16.msra.mxu0 %v505
      %652 = vmatprep.subr.bf16.mxu0 0
      %653 = vmatpush1.bf16.msra.mxu0 %v508
      %654 = vmatprep.subr.bf16.mxu0 0
      %655 = vmatpush1.bf16.msra.mxu0 %v511
      %656 = vmatprep.subr.bf16.mxu0 0
      %657 = vmatpush1.bf16.msra.mxu0 %v514
      %658 = vmatprep.subr.bf16.mxu0 0
      %659 = vmatpush1.bf16.msra.mxu0 %v517
      %660 = vmatprep.subr.bf16.mxu0 0
      %661 = vmatpush1.bf16.msra.mxu0 %v520
      %662 = vmatprep.subr.bf16.mxu0 0
      %663 = vmatpush1.bf16.msra.mxu0 0
      %664 = vmatprep.subr.bf16.mxu0 0
      %665 = vmatpush1.bf16.msra.mxu0 0
      %666 = vmatprep.subr.bf16.mxu0 0
      %667 = vmatpush1.bf16.msra.mxu0 0
      %668 = vmatprep.subr.bf16.mxu0 0
      %669 = vmatpush1.bf16.msra.mxu0 0
      %670 = vmatprep.subr.bf16.mxu0 0
      %671 = vmatpush1.bf16.msra.mxu0 0
      %672 = vmatprep.mubr.bf16.mxu0 %v556
      %673 = vmatmul.mubr.bf16.gmra.mrb[0].mxu0 %v366
      %v674 = vpop.f32.mrb[0].mxu0
      %v675 = vadd.f32 0.0, %v674
      %v676 = vpop.f32.mrb[0].mxu0
      %v677 = vpop.f32.mrb[0].mxu0
      %v678 = vadd.f32 0.0, %v677
      %v679 = vpop.f32.mrb[0].mxu0
      %680 = vmatprep.mubr.bf16.mxu0 %v559
      %681 = vmatmul.mubr.bf16.gmra.mrb[0].mxu0 %v368
      %v682 = vpop.f32.mrb[0].mxu0
      %v683 = vadd.f32 0.0, %v682
      %v684 = vpop.f32.mrb[0].mxu0
      %v685 = vpop.f32.mrb[0].mxu0
      %v686 = vadd.f32 0.0, %v685
      %v687 = vpop.f32.mrb[0].mxu0
      %688 = vmatprep.mubr.bf16.mxu0 %v562
      %689 = vmatmul.mubr.bf16.gmra.mrb[0].mxu0 %v370
      %v690 = vpop.f32.mrb[0].mxu0
      %v691 = vadd.f32 0.0, %v690
      %v692 = vpop.f32.mrb[0].mxu0
      %v693 = vpop.f32.mrb[0].mxu0
      %v694 = vadd.f32 0.0, %v693
      %v695 = vpop.f32.mrb[0].mxu0
      %696 = vmatprep.mubr.bf16.mxu0 %v565
      %697 = vmatmul.mubr.bf16.gmra.mrb[0].mxu0 %v372
      %v698 = vpop.f32.mrb[0].mxu0
      %v699 = vadd.f32 0.0, %v698
      %v700 = vpop.f32.mrb[0].mxu0
      %v701 = vpop.f32.mrb[0].mxu0
      %v702 = vadd.f32 0.0, %v701
      %v703 = vpop.f32.mrb[0].mxu0
      %704 = vdwg.mxu0
      %v705 = vld [vmem:[%s270] sm:$0x7]
      %v707 = vlaneseq
      %v708 = vshrl.u32 %v707, 7
      %v709 = vsub.s32 0, %v708
      %v710 = vrot.slane %v705, %v709
      %v711 = vlaneseq
      %v712 = vshrl.u32 %v711, 7
      %v713 = vsub.s32 1, %v712
      %v714 = vrot.slane %v705, %v713
      %v715 = vlaneseq
      %v716 = vshrl.u32 %v715, 7
      %v717 = vsub.s32 2, %v716
      %v718 = vrot.slane %v705, %v717
      %v722 = vmul.f32 %v602, %v710
      %v723 = vmul.f32 %v604, %v714
      %v724 = vmul.f32 %v675, %v718
      %v725 = vmul.f32 %v606, %v710
      %v726 = vmul.f32 %v608, %v714
      %v727 = vmul.f32 %v678, %v718
      %v728 = vmul.f32 %v612, %v710
      %v729 = vmul.f32 %v614, %v714
      %v730 = vmul.f32 %v683, %v718
      %v731 = vmul.f32 %v616, %v710
      %v732 = vmul.f32 %v618, %v714
      %v733 = vmul.f32 %v686, %v718
      %v734 = vmul.f32 %v622, %v710
      %v735 = vmul.f32 %v624, %v714
      %v736 = vmul.f32 %v691, %v718
      %v737 = vmul.f32 %v626, %v710
      %v738 = vmul.f32 %v628, %v714
      %v739 = vmul.f32 %v694, %v718
      %v740 = vmul.f32 %v632, %v710
      %v741 = vmul.f32 %v634, %v714
      %v742 = vmul.f32 %v699, %v718
      %v743 = vmul.f32 %v636, %v710
      %v744 = vmul.f32 %v638, %v714
      %v745 = vmul.f32 %v702, %v718
      %v746 = vld [vmem:[%s275] sm:$0x7]
      %v748 = vlaneseq
      %v749 = vshrl.u32 %v748, 7
      %v750 = vsub.s32 0, %v749
      %v751 = vrot.slane %v746, %v750
      %v752 = vlaneseq
      %v753 = vshrl.u32 %v752, 7
      %v754 = vsub.s32 1, %v753
      %v755 = vrot.slane %v746, %v754
      %v756 = vlaneseq
      %v757 = vshrl.u32 %v756, 7
      %v758 = vsub.s32 2, %v757
      %v759 = vrot.slane %v746, %v758
      %v763 = vadd.f32 %v722, %v751
      %v764 = vadd.f32 %v723, %v755
      %v765 = vadd.f32 %v724, %v759
      %v766 = vadd.f32 %v725, %v751
      %v767 = vadd.f32 %v726, %v755
      %v768 = vadd.f32 %v727, %v759
      %v769 = vadd.f32 %v728, %v751
      %v770 = vadd.f32 %v729, %v755
      %v771 = vadd.f32 %v730, %v759
      %v772 = vadd.f32 %v731, %v751
      %v773 = vadd.f32 %v732, %v755
      %v774 = vadd.f32 %v733, %v759
      %v775 = vadd.f32 %v734, %v751
      %v776 = vadd.f32 %v735, %v755
      %v777 = vadd.f32 %v736, %v759
      %v778 = vadd.f32 %v737, %v751
      %v779 = vadd.f32 %v738, %v755
      %v780 = vadd.f32 %v739, %v759
      %v781 = vadd.f32 %v740, %v751
      %v782 = vadd.f32 %v741, %v755
      %v783 = vadd.f32 %v742, %v759
      %v784 = vadd.f32 %v743, %v751
      %v785 = vadd.f32 %v744, %v755
      %v786 = vadd.f32 %v745, %v759
      %v787 = vmax.f32 %v763, 0.0
      %v788 = vmax.f32 %v764, 0.0
      %v789 = vmax.f32 %v765, 0.0
      %v790 = vmax.f32 %v766, 0.0
      %v791 = vmax.f32 %v767, 0.0
      %v792 = vmax.f32 %v768, 0.0
      %v793 = vmax.f32 %v769, 0.0
      %v794 = vmax.f32 %v770, 0.0
      %v795 = vmax.f32 %v771, 0.0
      %v796 = vmax.f32 %v772, 0.0
      %v797 = vmax.f32 %v773, 0.0
      %v798 = vmax.f32 %v774, 0.0
      %v799 = vmax.f32 %v775, 0.0
      %v800 = vmax.f32 %v776, 0.0
      %v801 = vmax.f32 %v777, 0.0
      %v802 = vmax.f32 %v778, 0.0
      %v803 = vmax.f32 %v779, 0.0
      %v804 = vmax.f32 %v780, 0.0
      %v805 = vmax.f32 %v781, 0.0
      %v806 = vmax.f32 %v782, 0.0
      %v807 = vmax.f32 %v783, 0.0
      %v808 = vmax.f32 %v784, 0.0
      %v809 = vmax.f32 %v785, 0.0
      %v810 = vmax.f32 %v786, 0.0
      %811 = vst [vmem:[%s286] sm:$0xff] %v787
      %812 = vst [vmem:[%s286 + $0x8] sm:$0xff] %v788
      %813 = vst [vmem:[%s286 + $0x10] sm:$0xff] %v789
      %814 = vst [vmem:[%s286 + $0x18] sm:$0xff] %v790
      %815 = vst [vmem:[%s286 + $0x20] sm:$0xff] %v791
      %816 = vst [vmem:[%s286 + $0x28] sm:$0xff] %v792
      %817 = vst [vmem:[%s286 + $0x30] sm:$0xff] %v793
      %818 = vst [vmem:[%s286 + $0x38] sm:$0xff] %v794
      %819 = vst [vmem:[%s286 + $0x40] sm:$0xff] %v795
      %820 = vst [vmem:[%s286 + $0x48] sm:$0xff] %v796
      %821 = vst [vmem:[%s286 + $0x50] sm:$0xff] %v797
      %822 = vst [vmem:[%s286 + $0x58] sm:$0xff] %v798
      %823 = vst [vmem:[%s286 + $0x60] sm:$0xff] %v799
      %824 = vst [vmem:[%s286 + $0x68] sm:$0xff] %v800
      %825 = vst [vmem:[%s286 + $0x70] sm:$0xff] %v801
      %826 = vst [vmem:[%s286 + $0x78] sm:$0xff] %v802
      %827 = vst [vmem:[%s286 + $0x80] sm:$0xff] %v803
      %828 = vst [vmem:[%s286 + $0x88] sm:$0xff] %v804
      %829 = vst [vmem:[%s286 + $0x90] sm:$0xff] %v805
      %830 = vst [vmem:[%s286 + $0x98] sm:$0xff] %v806
      %831 = vst [vmem:[%s286 + $0xa0] sm:$0xff] %v807
      %832 = vst [vmem:[%s286 + $0xa8] sm:$0xff] %v808
      %833 = vst [vmem:[%s286 + $0xb0] sm:$0xff] %v809
      %834 = vst [vmem:[%s286 + $0xb8] sm:$0xff] %v810
      %s835 = smul.u32 8, %s19
      %s836 = smul.u32 3, %s20
      %p837 = scmp.lt.s32.totalorder %s835, 15
      %s838 = scalar_select %p837, %s835, 15
      %p839 = scmp.lt.s32.totalorder %s836, 2
      %s840 = scalar_select %p839, %s836, 2
      %s841 = smul.addr %s838, 3
      %s842 = sadd.s32 %s840, %s841
      %s843 = smul.addr %s842, 8
      %s844 = scalar_lea.vmem %s4, %s843
      // Predicated region
      $region37: #{inception_b_forward.14} parent=35 // pred_check
        %p845 = pneg %p151
      $region38: #{inception_b_forward.14} parent=35 // pred_check_branch
        %847 = sbr.rel (%p845) target = $region40
      $region39: #{inception_b_forward.14} parent=35 // pred_region
        %s848 = smul.u32 8, %s19
        %s849 = smul.u32 3, %s20
      $region40: #{inception_b_forward.14} parent=35 // pred_fallthru
        _
    $region36: #{inception_b_forward.14} parent=5 // pred_fallthru
      _
    %p850 = scmp.le.s32.totalorder 2, %s10
    // Predicated region
    $region41: #{inception_b_forward.14} parent=5 // pred_check
      %p851 = pneg %p850
    $region42: #{inception_b_forward.14} parent=5 // pred_check_branch
      %853 = sbr.rel (%p851) target = $region44
    $region43: #{inception_b_forward.14} parent=5 // pred_region
      %s854 = ssub.s32 %s10, 2
      // Predicated region
      $region45: #{inception_b_forward.14} parent=43 // pred_check
        %p855 = pneg %p157
      $region46: #{inception_b_forward.14} parent=43 // pred_check_branch
        %857 = sbr.rel (%p855) target = $region48
      $region47: #{inception_b_forward.14} parent=43 // pred_region
        %s858 = smul.u32 8, %s21
        %s859 = smul.u32 3, %s22
        %p860 = scmp.lt.s32.totalorder %s858, 15
        %s861 = scalar_select %p860, %s858, 15
        %p862 = scmp.lt.s32.totalorder %s859, 2
        %s863 = scalar_select %p862, %s859, 2
        %s864 = smul.addr %s861, 3
        %s865 = sadd.s32 %s863, %s864
        %s866 = smul.addr %s865, 8
        %s867 = scalar_lea.vmem %s4, %s866
      $region48: #{inception_b_forward.14} parent=43 // pred_fallthru
        _
    $region44: #{inception_b_forward.14} parent=5 // pred_fallthru
      _
  $region6: #{inception_b_forward.14} parent=0 // loop_footer
    %s14 = sadd.s32 1, %s10
  $region7: #{inception_b_forward.14} parent=0 // loop_footer_branch
    %9 = sbr.rel target = $region3
  $region8: #{inception_b_forward.14} parent=0 // loop_exit
    _

</llo_original>
